<compile_context>
chip_gen: v7x
topology: tpu7x:2x2x1
jax: 0.10.0
libtpu: 0.0.40
codegen_flags: <defaults>
</compile_context>

<pallas_src>
import math
import functools

import jax
import jax.numpy as jnp
import numpy as np
from jax import lax
from jax.experimental import pallas as pl
from jax.experimental.pallas import tpu as pltpu

N_STATION = 3


def _round_up(x, m):
    return ((x + m - 1) // m) * m


def _mha_hetero_kernel(n_pick, n_station, n_heads, key_dim, val_dim,
                       q_ref, h_ref,
                       wq_ref, wk_ref, wv_ref, wpick_ref, wdel_ref, wout_ref,
                       out_ref):
    B_blk, G, D = h_ref.shape
    P, S, H = n_pick, n_station, n_heads
    kd, vd = key_dim, val_dim
    BH = H * B_blk
    f32 = jnp.float32
    cdt = q_ref.dtype                      # matmul compute dtype (bf16 on the fast path)

    qb = q_ref[...]                        # (B_blk, G, D)
    hb = h_ref[...]                        # (B_blk, G, D)
    q2 = qb.reshape(B_blk * G, D)
    h2 = hb.reshape(B_blk * G, D)
    pick2 = hb[:, :P, :].reshape(B_blk * P, D)
    del2 = hb[:, P:2 * P, :].reshape(B_blk * P, D)

    def mm(a, b):                          # MXU matmul, f32 accumulation
        return jnp.dot(a, b, preferred_element_type=f32)

    def bmmT(a, b):                        # batched a @ b^T (contract last dims)
        return jnp.einsum('bik,bjk->bij', a, b, preferred_element_type=f32)

    def bmm(a, b):                         # batched a @ b
        return jnp.einsum('bij,bjk->bik', a, b, preferred_element_type=f32)

    # ---- Fused projections: one matmul per distinct LHS, all heads in the N dim. ----
    Q_all = mm(q2, wq_ref[...]).astype(cdt)        # (B*G, H*kd)   (norm factor folded in)
    K_all = mm(h2, wk_ref[...]).astype(cdt)        # (B*G, H*kd)
    V_all = mm(h2, wv_ref[...]).astype(cdt)        # (B*G, H*vd)
    QP_all = mm(pick2, wpick_ref[...]).astype(cdt)  # (B*P, 4*H*kd) cols [W1|W2|W3|W7]
    QD_all = mm(del2, wdel_ref[...]).astype(cdt)    # (B*P, 4*H*kd) cols [W4|W5|W6|W8]

    def split_heads(slab, rows, width, base):
        # (B_blk*rows, ncols) -> (H*B_blk, rows, width); batch index = h*B_blk + b.
        parts = [slab[:, base + hd * width: base + (hd + 1) * width]
                 .reshape(B_blk, rows, width) for hd in range(H)]
        return jnp.concatenate(parts, axis=0)

    Qb = split_heads(Q_all, G, kd, 0)              # (BH, G, kd)
    Kb = split_heads(K_all, G, kd, 0)              # (BH, G, kd)
    Vb = split_heads(V_all, G, vd, 0)              # (BH, G, vd)
    QP1 = split_heads(QP_all, P, kd, 0 * H * kd)   # W1
    QP2 = split_heads(QP_all, P, kd, 1 * H * kd)   # W2
    QP3 = split_heads(QP_all, P, kd, 2 * H * kd)   # W3
    QP7 = split_heads(QP_all, P, kd, 3 * H * kd)   # W7
    QD4 = split_heads(QD_all, P, kd, 0 * H * kd)   # W4
    QD5 = split_heads(QD_all, P, kd, 1 * H * kd)   # W5
    QD6 = split_heads(QD_all, P, kd, 2 * H * kd)   # W6
    QD8 = split_heads(QD_all, P, kd, 3 * H * kd)   # W8

    K_pick = Kb[:, :P]
    K_del = Kb[:, P:2 * P]
    K_sta = Kb[:, 2 * P:2 * P + S]

    # ---- Logits: dense (G,G) block + compact (2P,G) extras block (no -inf tail). ----
    compat = bmmT(Qb, Kb)                                                 # (BH, G, G)

    c_pap = bmmT(QP2, K_pick)                                             # (BH, P, P)
    c_pad = bmmT(QP3, K_del)                                              # (BH, P, P)
    c_ps = bmmT(QP7, K_sta)                                               # (BH, P, S)
    c_pd = jnp.sum(QP1.astype(f32) * K_del.astype(f32), -1, keepdims=True)  # (BH, P, 1)
    c_dap = bmmT(QD6, K_pick)
    c_dad = bmmT(QD5, K_del)
    c_ds = bmmT(QD8, K_sta)
    c_dp = jnp.sum(QD4.astype(f32) * K_pick.astype(f32), -1, keepdims=True)

    # Column order [pick(P) | delivery(P) | station(S) | diag(1)] works for both row groups.
    extras = jnp.concatenate(
        [jnp.concatenate([c_pap, c_pad, c_ps, c_pd], axis=-1),
         jnp.concatenate([c_dap, c_dad, c_ds, c_dp], axis=-1)], axis=1)   # (BH, 2P, G)

    # ---- Group-wise softmax: rows < 2P see [compat | extras]; rows >= 2P see compat only. ----
    m_c = jnp.max(compat, axis=-1, keepdims=True)                         # (BH, G, 1)
    m_e = jnp.max(extras, axis=-1, keepdims=True)                         # (BH, 2P, 1)
    m_top = jnp.maximum(m_c[:, :2 * P], m_e)                              # (BH, 2P, 1)
    m_all = jnp.concatenate([m_top, m_c[:, 2 * P:]], axis=1)              # (BH, G, 1)

    e1 = jnp.exp(compat - m_all)                                          # (BH, G, G)
    e2 = jnp.exp(extras - m_top)                                          # (BH, 2P, G)
    s1 = jnp.sum(e1, axis=-1, keepdims=True)
    s2 = jnp.sum(e2, axis=-1, keepdims=True)
    denom = jnp.concatenate([s1[:, :2 * P] + s2, s1[:, 2 * P:]], axis=1)  # (BH, G, 1)
    inv = pl.reciprocal(denom, approx=True)
    attn1 = (e1 * inv).astype(cdt)                                        # (BH, G, G)
    attn2 = e2 * inv[:, :2 * P]                                           # (BH, 2P, G) f32

    # ---- Epilogue (hoisted, head-batched): 2 batched matmuls + 1 broadcast diag term. ----
    row_ids = lax.broadcasted_iota(jnp.int32, (G, 1), 0)
    not_depot = (row_ids < (G - 1)).astype(cdt)          # zero depot row for attn2 @ V
    V_nodep = Vb * not_depot
    V_swap = jnp.concatenate([Vb[:, P:2 * P], Vb[:, :P]], axis=1)         # (BH, 2P, vd)

    heads = bmm(attn1, Vb)                                                # (BH, G, vd) f32
    extra = bmm(attn2.astype(cdt), V_nodep)                               # (BH, 2P, vd)
    extra = extra + attn2[:, :, G - 1:] * V_swap.astype(f32)
    heads = heads + jnp.concatenate(
        [extra, jnp.zeros((BH, S + 1, vd), f32)], axis=1)                 # (BH, G, vd)

    # ---- Head reduction: one matmul against the stacked (and lane-padded) W_out. ----
    heads_cat = jnp.concatenate(
        [heads[hd * B_blk:(hd + 1) * B_blk].reshape(B_blk * G, vd) for hd in range(H)],
        axis=-1).astype(cdt)                                              # (B*G, H*vd)
    out_ref[...] = mm(heads_cat, wout_ref[...])                           # (B*G, E_pad) f32


def mha_hetero_pallas(q, h, params, *, n_heads, key_dim, val_dim, embed_dim,
                      b_blk=None, compute_dtype=jnp.bfloat16, vmem_limit_bytes=None):
    (Wq, Wk, Wv, W1, W2, W3, W4, W5, W6, W7, W8, Wout) = params
    B, G, D = h.shape
    assert q.shape == (B, G, D), "hetero attention requires n_query == graph_size"
    assert key_dim == val_dim, "module stacks W_out over key_dim == val_dim"
    S = N_STATION
    P = (G - 1 - S) // 2
    H = n_heads
    nf = 1.0 / math.sqrt(key_dim)

    if b_blk is None:
        b_blk = max(1, B // 8)             # aim for >= 8 grid steps (overlap + megacore)
        while B % b_blk:
            b_blk -= 1
    assert B % b_blk == 0
    assert b_blk == B or (b_blk * G) % 8 == 0, "batch block must give 8-aligned output rows"

    E_pad = _round_up(embed_dim, 128)      # lane-dense output stores

    def head_major(W, scale=1.0):          # (H, D, K) -> (D, H*K), columns grouped per head
        return (jnp.transpose(W, (1, 0, 2)) * scale).reshape(D, -1).astype(compute_dtype)

    # One-time weight slab construction (layout plumbing, outside the kernel).
    wq_slab = head_major(Wq, nf)                                           # (D, H*kd)
    wk_slab = head_major(Wk)                                               # (D, H*kd)
    wv_slab = head_major(Wv)                                               # (D, H*vd)
    wpick_slab = jnp.concatenate(
        [head_major(W1, nf), head_major(W2, nf), head_major(W3, nf), head_major(W7, nf)], axis=1)
    wdel_slab = jnp.concatenate(
        [head_major(W4, nf), head_major(W5, nf), head_major(W6, nf), head_major(W8, nf)], axis=1)
    wout_slab = jnp.zeros((H * key_dim, E_pad), compute_dtype).at[:, :embed_dim].set(
        Wout.reshape(H * key_dim, embed_dim).astype(compute_dtype))        # (H*kd, E_pad)

    qc = q.astype(compute_dtype)
    hc = h.astype(compute_dtype)

    kernel = functools.partial(_mha_hetero_kernel, P, S, H, key_dim, val_dim)

    def const_spec(arr):
        nd = arr.ndim
        return pl.BlockSpec(arr.shape, lambda i, _nd=nd: (0,) * _nd)

    seq_spec = pl.BlockSpec((b_blk, G, D), lambda i: (i, 0, 0))

    cp = dict(dimension_semantics=("parallel",))
    if vmem_limit_bytes is not None:
        cp["vmem_limit_bytes"] = vmem_limit_bytes

    out = pl.pallas_call(
        kernel,
        out_shape=jax.ShapeDtypeStruct((B * G, E_pad), jnp.float32),
        grid=(B // b_blk,),
        in_specs=[seq_spec, seq_spec,
                  const_spec(wq_slab), const_spec(wk_slab), const_spec(wv_slab),
                  const_spec(wpick_slab), const_spec(wdel_slab),
                  const_spec(wout_slab)],
        out_specs=pl.BlockSpec((b_blk * G, E_pad), lambda i: (i, 0)),
        compiler_params=pltpu.CompilerParams(**cp),
    )(qc, hc, wq_slab, wk_slab, wv_slab, wpick_slab, wdel_slab, wout_slab)
    return out[:, :embed_dim].reshape(B, G, embed_dim)


def mha_hetero_reference(q, h, params, *, n_heads, key_dim, val_dim, embed_dim):
    """Pure-JAX transcription of the PyTorch forward (mask=None) for validation."""
    (Wq, Wk, Wv, W1, W2, W3, W4, W5, W6, W7, W8, Wout) = params
    B, G, D = h.shape
    n_station = N_STATION
    n_pick = (G - 1 - n_station) // 2
    nf = 1.0 / math.sqrt(key_dim)
    H = n_heads
    neg = -jnp.inf

    def proj(x, W):  # (B, n, D) x (H, D, K) -> (H, B, n, K)
        return jnp.einsum('bnd,hdk->hbnk', x, W)

    pick = h[:, :n_pick]
    delivery = h[:, n_pick:2 * n_pick]
    station = h[:, 2 * n_pick:-1]

    Q = proj(q, Wq); K = proj(h, Wk); V = proj(h, Wv)
    K_pick = proj(pick, Wk); V_pick = proj(pick, Wv)
    K_del = proj(delivery, Wk); V_del = proj(delivery, Wv)
    K_sta = proj(station, Wk); V_sta = proj(station, Wv)
    Q_pick = proj(pick, W1); Q_pick_allpick = proj(pick, W2)
    Q_pick_alldel = proj(pick, W3); Q_pick_sta = proj(pick, W7)
    Q_del = proj(delivery, W4); Q_del_alldel = proj(delivery, W5)
    Q_del_allpick = proj(delivery, W6); Q_del_sta = proj(delivery, W8)

    compat = nf * jnp.einsum('hbqk,hbgk->hbqg', Q, K)
    c_pd = nf * jnp.sum(Q_pick * K_del, -1)
    c_pap = nf * jnp.einsum('hbik,hbjk->hbij', Q_pick_allpick, K_pick)
    c_pad = nf * jnp.einsum('hbik,hbjk->hbij', Q_pick_alldel, K_del)
    c_ps = nf * jnp.einsum('hbik,hbjk->hbij', Q_pick_sta, K_sta)
    c_dp = nf * jnp.sum(Q_del * K_pick, -1)
    c_dad = nf * jnp.einsum('hbik,hbjk->hbij', Q_del_alldel, K_del)
    c_dap = nf * jnp.einsum('hbik,hbjk->hbij', Q_del_allpick, K_pick)
    c_ds = nf * jnp.einsum('hbik,hbjk->hbij', Q_del_sta, K_sta)

    rest = n_pick + n_station + 1
    tail = n_station + 1

    def pad2(x, top, bottom):
        return jnp.pad(x, [(0, 0), (0, 0), (top, bottom), (0, 0)], constant_values=neg)

    logits = jnp.concatenate([
        compat,
        pad2(c_pd[..., None], 0, rest),
        pad2(c_pap, 0, rest),
        pad2(c_pad, 0, rest),
        pad2(c_ps, 0, rest),
        pad2(c_dp[..., None], n_pick, tail),
        pad2(c_dad, n_pick, tail),
        pad2(c_dap, n_pick, tail),
        pad2(c_ds, n_pick, tail),
    ], axis=-1)
    attn = jax.nn.softmax(logits, axis=-1)

    V_add_del = jnp.concatenate([V_del, jnp.zeros((H, B, rest, val_dim), V.dtype)], axis=2)
    V_add_pick = jnp.concatenate([jnp.zeros((H, B, n_pick, val_dim), V.dtype), V_pick,
                                  jnp.zeros((H, B, tail, val_dim), V.dtype)], axis=2)

    bmm = lambda a, b: jnp.einsum('hbqn,hbnv->hbqv', a, b)
    heads = bmm(attn[..., :G], V)
    heads = heads + attn[..., G][..., None] * V_add_del
    heads = heads + bmm(attn[..., G + 1:G + 1 + n_pick], V_pick)
    heads = heads + bmm(attn[..., G + 1 + n_pick:G + 1 + 2 * n_pick], V_del)
    heads = heads + bmm(attn[..., G + 1 + 2 * n_pick:2 * G], V_sta)
    heads = heads + attn[..., 2 * G][..., None] * V_add_pick
    heads = heads + bmm(attn[..., 2 * G + 1:2 * G + 1 + n_pick], V_del)
    heads = heads + bmm(attn[..., 2 * G + 1 + n_pick:2 * G + 1 + 2 * n_pick], V_pick)
    heads = heads + bmm(attn[..., 2 * G + 1 + 2 * n_pick:], V_sta)

    out = jnp.einsum('hbqv,hve->bqe', heads, Wout)
    return out


def init_params(key, n_heads, input_dim, embed_dim, key_dim, val_dim):
    """Deterministic uniform(-stdv, stdv) init matching init_parameters()."""
    shapes = [
        (n_heads, input_dim, key_dim),  # W_query
        (n_heads, input_dim, key_dim),  # W_key
        (n_heads, input_dim, val_dim),  # W_val
        (n_heads, input_dim, key_dim),  # W1
        (n_heads, input_dim, key_dim),  # W2
        (n_heads, input_dim, key_dim),  # W3
        (n_heads, input_dim, key_dim),  # W4
        (n_heads, input_dim, key_dim),  # W5
        (n_heads, input_dim, key_dim),  # W6
        (n_heads, input_dim, key_dim),  # W7
        (n_heads, input_dim, key_dim),  # W8
        (n_heads, key_dim, embed_dim),  # W_out
    ]
    keys = jax.random.split(key, len(shapes))
    params = []
    for k, shp in zip(keys, shapes):
        stdv = 1.0 / math.sqrt(shp[-1])
        params.append(jax.random.uniform(k, shp, jnp.float32, -stdv, stdv))
    return tuple(params)


if __name__ == "__main__":
    # Small shapes consistent with the module: graph_size = 2*n_pick + n_station + 1.
    n_heads = 4
    embed_dim = 32
    input_dim = embed_dim          # so input_dim // n_heads == val_dim (as the torch code assumes)
    key_dim = val_dim = embed_dim // n_heads
    batch = 4
    n_pick = 2
    graph_size = 2 * n_pick + N_STATION + 1   # = 8

    root = jax.random.PRNGKey(0)
    k_h, k_q, k_w = jax.random.split(root, 3)
    h = jax.random.normal(k_h, (batch, graph_size, input_dim), jnp.float32)
    q = jax.random.normal(k_q, (batch, graph_size, input_dim), jnp.float32)
    params = init_params(k_w, n_heads, input_dim, embed_dim, key_dim, val_dim)

    ref = jax.block_until_ready(
        mha_hetero_reference(q, h, params, n_heads=n_heads, key_dim=key_dim,
                             val_dim=val_dim, embed_dim=embed_dim))
    ref_scale = float(jnp.max(jnp.abs(ref)))

    # f32 compute path: tight parity with the PyTorch-equivalent reference.
    out_f32 = jax.block_until_ready(
        mha_hetero_pallas(q, h, params, n_heads=n_heads, key_dim=key_dim,
                          val_dim=val_dim, embed_dim=embed_dim, b_blk=2,
                          compute_dtype=jnp.float32))
    err_f32 = float(jnp.max(jnp.abs(out_f32 - ref)))
    if not np.isfinite(err_f32) or err_f32 > 2e-2:
        raise AssertionError(f"f32 Pallas output mismatch vs reference, max abs err = {err_f32}")

    # bf16 matmul path (default, the performance configuration): looser tolerance.
    out_bf16 = jax.block_until_ready(
        mha_hetero_pallas(q, h, params, n_heads=n_heads, key_dim=key_dim,
                          val_dim=val_dim, embed_dim=embed_dim, b_blk=1))
    err_bf16 = float(jnp.max(jnp.abs(out_bf16 - ref)))
    tol_bf16 = 2e-2 + 8e-2 * max(1.0, ref_scale)
    if not np.isfinite(err_bf16) or err_bf16 > tol_bf16:
        raise AssertionError(
            f"bf16 Pallas output mismatch vs reference, max abs err = {err_bf16} (tol {tol_bf16})")

    print("KERNEL_OK")
</pallas_src>

<mosaic_0001>
module attributes {stable_mosaic.version = 11 : i64} {
  func.func @_mha_hetero_kernel(%arg0: i32, %arg1: memref<2x8x32xf32, #tpu.memory_space<vmem>>, %arg2: memref<2x8x32xf32, #tpu.memory_space<vmem>>, %arg3: memref<32x32xf32, #tpu.memory_space<vmem>>, %arg4: memref<32x32xf32, #tpu.memory_space<vmem>>, %arg5: memref<32x32xf32, #tpu.memory_space<vmem>>, %arg6: memref<32x128xf32, #tpu.memory_space<vmem>>, %arg7: memref<32x128xf32, #tpu.memory_space<vmem>>, %arg8: memref<32x128xf32, #tpu.memory_space<vmem>>, %arg9: memref<16x128xf32, #tpu.memory_space<vmem>>) attributes {dimension_semantics = [#tpu.dimension_semantics<parallel>], iteration_bounds = array<i64: 2>, scalar_prefetch = 0 : i64, scratch_operands = 0 : i64, tpu.core_type = #tpu.core_type<tc>, window_params = [{transform_indices = @transform_0, window_bounds = array<i64: 2, 8, 32>}, {transform_indices = @transform_1, window_bounds = array<i64: 2, 8, 32>}, {pipeline_mode = #tpu.pipeline_mode<synchronous>, transform_indices = @transform_2, window_bounds = array<i64: 32, 32>}, {pipeline_mode = #tpu.pipeline_mode<synchronous>, transform_indices = @transform_3, window_bounds = array<i64: 32, 32>}, {pipeline_mode = #tpu.pipeline_mode<synchronous>, transform_indices = @transform_4, window_bounds = array<i64: 32, 32>}, {pipeline_mode = #tpu.pipeline_mode<synchronous>, transform_indices = @transform_5, window_bounds = array<i64: 32, 128>}, {pipeline_mode = #tpu.pipeline_mode<synchronous>, transform_indices = @transform_6, window_bounds = array<i64: 32, 128>}, {pipeline_mode = #tpu.pipeline_mode<synchronous>, transform_indices = @transform_7, window_bounds = array<i64: 32, 128>}, {transform_indices = @transform_8, window_bounds = array<i64: 16, 128>}]} {
    %c0 = arith.constant 0 : index
    %c0_0 = arith.constant 0 : index
    %c0_1 = arith.constant 0 : index
    %0 = vector.load %arg1[%c0, %c0_0, %c0_1] : memref<2x8x32xf32, #tpu.memory_space<vmem>>, vector<2x8x32xf32>
    %c0_2 = arith.constant 0 : index
    %c0_3 = arith.constant 0 : index
    %c0_4 = arith.constant 0 : index
    %1 = vector.load %arg2[%c0_2, %c0_3, %c0_4] : memref<2x8x32xf32, #tpu.memory_space<vmem>>, vector<2x8x32xf32>
    %2 = vector.shape_cast %0 : vector<2x8x32xf32> to vector<16x32xf32>
    %3 = vector.shape_cast %1 : vector<2x8x32xf32> to vector<16x32xf32>
    %4 = vector.extract_strided_slice %1 {offsets = [0, 0, 0], sizes = [2, 2, 32], strides = [1, 1, 1]} : vector<2x8x32xf32> to vector<2x2x32xf32>
    %5 = vector.shape_cast %4 : vector<2x2x32xf32> to vector<4x32xf32>
    %6 = vector.extract_strided_slice %1 {offsets = [0, 2, 0], sizes = [2, 2, 32], strides = [1, 1, 1]} : vector<2x8x32xf32> to vector<2x2x32xf32>
    %7 = vector.shape_cast %6 : vector<2x2x32xf32> to vector<4x32xf32>
    %c0_5 = arith.constant 0 : index
    %c0_6 = arith.constant 0 : index
    %8 = vector.load %arg3[%c0_5, %c0_6] : memref<32x32xf32, #tpu.memory_space<vmem>>, vector<32x32xf32>
    %cst = arith.constant dense<0.000000e+00> : vector<16x32xf32>
    %9 = tpu.matmul %2, %8, %cst {dimension_numbers = #tpu.dot_dimension_numbers<[1], [0], [0], [1], [0, 0, 1, 1], [], []>} : vector<16x32xf32>, vector<32x32xf32>, vector<16x32xf32> -> vector<16x32xf32>
    %c0_7 = arith.constant 0 : index
    %c0_8 = arith.constant 0 : index
    %10 = vector.load %arg4[%c0_7, %c0_8] : memref<32x32xf32, #tpu.memory_space<vmem>>, vector<32x32xf32>
    %cst_9 = arith.constant dense<0.000000e+00> : vector<16x32xf32>
    %11 = tpu.matmul %3, %10, %cst_9 {dimension_numbers = #tpu.dot_dimension_numbers<[1], [0], [0], [1], [0, 0, 1, 1], [], []>} : vector<16x32xf32>, vector<32x32xf32>, vector<16x32xf32> -> vector<16x32xf32>
    %c0_10 = arith.constant 0 : index
    %c0_11 = arith.constant 0 : index
    %12 = vector.load %arg5[%c0_10, %c0_11] : memref<32x32xf32, #tpu.memory_space<vmem>>, vector<32x32xf32>
    %cst_12 = arith.constant dense<0.000000e+00> : vector<16x32xf32>
    %13 = tpu.matmul %3, %12, %cst_12 {dimension_numbers = #tpu.dot_dimension_numbers<[1], [0], [0], [1], [0, 0, 1, 1], [], []>} : vector<16x32xf32>, vector<32x32xf32>, vector<16x32xf32> -> vector<16x32xf32>
    %c0_13 = arith.constant 0 : index
    %c0_14 = arith.constant 0 : index
    %14 = vector.load %arg6[%c0_13, %c0_14] : memref<32x128xf32, #tpu.memory_space<vmem>>, vector<32x128xf32>
    %cst_15 = arith.constant dense<0.000000e+00> : vector<4x128xf32>
    %15 = tpu.matmul %5, %14, %cst_15 {dimension_numbers = #tpu.dot_dimension_numbers<[1], [0], [0], [1], [0, 0, 1, 1], [], []>} : vector<4x32xf32>, vector<32x128xf32>, vector<4x128xf32> -> vector<4x128xf32>
    %c0_16 = arith.constant 0 : index
    %c0_17 = arith.constant 0 : index
    %16 = vector.load %arg7[%c0_16, %c0_17] : memref<32x128xf32, #tpu.memory_space<vmem>>, vector<32x128xf32>
    %cst_18 = arith.constant dense<0.000000e+00> : vector<4x128xf32>
    %17 = tpu.matmul %7, %16, %cst_18 {dimension_numbers = #tpu.dot_dimension_numbers<[1], [0], [0], [1], [0, 0, 1, 1], [], []>} : vector<4x32xf32>, vector<32x128xf32>, vector<4x128xf32> -> vector<4x128xf32>
    %18 = vector.extract_strided_slice %9 {offsets = [0, 0], sizes = [16, 8], strides = [1, 1]} : vector<16x32xf32> to vector<16x8xf32>
    %19 = vector.shape_cast %18 : vector<16x8xf32> to vector<2x8x8xf32>
    %20 = vector.extract_strided_slice %9 {offsets = [0, 8], sizes = [16, 8], strides = [1, 1]} : vector<16x32xf32> to vector<16x8xf32>
    %21 = vector.shape_cast %20 : vector<16x8xf32> to vector<2x8x8xf32>
    %22 = vector.extract_strided_slice %9 {offsets = [0, 16], sizes = [16, 8], strides = [1, 1]} : vector<16x32xf32> to vector<16x8xf32>
    %23 = vector.shape_cast %22 : vector<16x8xf32> to vector<2x8x8xf32>
    %24 = vector.extract_strided_slice %9 {offsets = [0, 24], sizes = [16, 8], strides = [1, 1]} : vector<16x32xf32> to vector<16x8xf32>
    %25 = vector.shape_cast %24 : vector<16x8xf32> to vector<2x8x8xf32>
    %26 = tpu.concatenate %19, %21, %23, %25 in 0 : vector<2x8x8xf32>, vector<2x8x8xf32>, vector<2x8x8xf32>, vector<2x8x8xf32> -> vector<8x8x8xf32>
    %27 = vector.extract_strided_slice %11 {offsets = [0, 0], sizes = [16, 8], strides = [1, 1]} : vector<16x32xf32> to vector<16x8xf32>
    %28 = vector.shape_cast %27 : vector<16x8xf32> to vector<2x8x8xf32>
    %29 = vector.extract_strided_slice %11 {offsets = [0, 8], sizes = [16, 8], strides = [1, 1]} : vector<16x32xf32> to vector<16x8xf32>
    %30 = vector.shape_cast %29 : vector<16x8xf32> to vector<2x8x8xf32>
    %31 = vector.extract_strided_slice %11 {offsets = [0, 16], sizes = [16, 8], strides = [1, 1]} : vector<16x32xf32> to vector<16x8xf32>
    %32 = vector.shape_cast %31 : vector<16x8xf32> to vector<2x8x8xf32>
    %33 = vector.extract_strided_slice %11 {offsets = [0, 24], sizes = [16, 8], strides = [1, 1]} : vector<16x32xf32> to vector<16x8xf32>
    %34 = vector.shape_cast %33 : vector<16x8xf32> to vector<2x8x8xf32>
    %35 = tpu.concatenate %28, %30, %32, %34 in 0 : vector<2x8x8xf32>, vector<2x8x8xf32>, vector<2x8x8xf32>, vector<2x8x8xf32> -> vector<8x8x8xf32>
    %36 = vector.extract_strided_slice %13 {offsets = [0, 0], sizes = [16, 8], strides = [1, 1]} : vector<16x32xf32> to vector<16x8xf32>
    %37 = vector.shape_cast %36 : vector<16x8xf32> to vector<2x8x8xf32>
    %38 = vector.extract_strided_slice %13 {offsets = [0, 8], sizes = [16, 8], strides = [1, 1]} : vector<16x32xf32> to vector<16x8xf32>
    %39 = vector.shape_cast %38 : vector<16x8xf32> to vector<2x8x8xf32>
    %40 = vector.extract_strided_slice %13 {offsets = [0, 16], sizes = [16, 8], strides = [1, 1]} : vector<16x32xf32> to vector<16x8xf32>
    %41 = vector.shape_cast %40 : vector<16x8xf32> to vector<2x8x8xf32>
    %42 = vector.extract_strided_slice %13 {offsets = [0, 24], sizes = [16, 8], strides = [1, 1]} : vector<16x32xf32> to vector<16x8xf32>
    %43 = vector.shape_cast %42 : vector<16x8xf32> to vector<2x8x8xf32>
    %44 = tpu.concatenate %37, %39, %41, %43 in 0 : vector<2x8x8xf32>, vector<2x8x8xf32>, vector<2x8x8xf32>, vector<2x8x8xf32> -> vector<8x8x8xf32>
    %45 = vector.extract_strided_slice %15 {offsets = [0, 0], sizes = [4, 8], strides = [1, 1]} : vector<4x128xf32> to vector<4x8xf32>
    %46 = vector.shape_cast %45 : vector<4x8xf32> to vector<2x2x8xf32>
    %47 = vector.extract_strided_slice %15 {offsets = [0, 8], sizes = [4, 8], strides = [1, 1]} : vector<4x128xf32> to vector<4x8xf32>
    %48 = vector.shape_cast %47 : vector<4x8xf32> to vector<2x2x8xf32>
    %49 = vector.extract_strided_slice %15 {offsets = [0, 16], sizes = [4, 8], strides = [1, 1]} : vector<4x128xf32> to vector<4x8xf32>
    %50 = vector.shape_cast %49 : vector<4x8xf32> to vector<2x2x8xf32>
    %51 = vector.extract_strided_slice %15 {offsets = [0, 24], sizes = [4, 8], strides = [1, 1]} : vector<4x128xf32> to vector<4x8xf32>
    %52 = vector.shape_cast %51 : vector<4x8xf32> to vector<2x2x8xf32>
    %53 = tpu.concatenate %46, %48, %50, %52 in 0 : vector<2x2x8xf32>, vector<2x2x8xf32>, vector<2x2x8xf32>, vector<2x2x8xf32> -> vector<8x2x8xf32>
    %54 = vector.extract_strided_slice %15 {offsets = [0, 32], sizes = [4, 8], strides = [1, 1]} : vector<4x128xf32> to vector<4x8xf32>
    %55 = vector.shape_cast %54 : vector<4x8xf32> to vector<2x2x8xf32>
    %56 = vector.extract_strided_slice %15 {offsets = [0, 40], sizes = [4, 8], strides = [1, 1]} : vector<4x128xf32> to vector<4x8xf32>
    %57 = vector.shape_cast %56 : vector<4x8xf32> to vector<2x2x8xf32>
    %58 = vector.extract_strided_slice %15 {offsets = [0, 48], sizes = [4, 8], strides = [1, 1]} : vector<4x128xf32> to vector<4x8xf32>
    %59 = vector.shape_cast %58 : vector<4x8xf32> to vector<2x2x8xf32>
    %60 = vector.extract_strided_slice %15 {offsets = [0, 56], sizes = [4, 8], strides = [1, 1]} : vector<4x128xf32> to vector<4x8xf32>
    %61 = vector.shape_cast %60 : vector<4x8xf32> to vector<2x2x8xf32>
    %62 = tpu.concatenate %55, %57, %59, %61 in 0 : vector<2x2x8xf32>, vector<2x2x8xf32>, vector<2x2x8xf32>, vector<2x2x8xf32> -> vector<8x2x8xf32>
    %63 = vector.extract_strided_slice %15 {offsets = [0, 64], sizes = [4, 8], strides = [1, 1]} : vector<4x128xf32> to vector<4x8xf32>
    %64 = vector.shape_cast %63 : vector<4x8xf32> to vector<2x2x8xf32>
    %65 = vector.extract_strided_slice %15 {offsets = [0, 72], sizes = [4, 8], strides = [1, 1]} : vector<4x128xf32> to vector<4x8xf32>
    %66 = vector.shape_cast %65 : vector<4x8xf32> to vector<2x2x8xf32>
    %67 = vector.extract_strided_slice %15 {offsets = [0, 80], sizes = [4, 8], strides = [1, 1]} : vector<4x128xf32> to vector<4x8xf32>
    %68 = vector.shape_cast %67 : vector<4x8xf32> to vector<2x2x8xf32>
    %69 = vector.extract_strided_slice %15 {offsets = [0, 88], sizes = [4, 8], strides = [1, 1]} : vector<4x128xf32> to vector<4x8xf32>
    %70 = vector.shape_cast %69 : vector<4x8xf32> to vector<2x2x8xf32>
    %71 = tpu.concatenate %64, %66, %68, %70 in 0 : vector<2x2x8xf32>, vector<2x2x8xf32>, vector<2x2x8xf32>, vector<2x2x8xf32> -> vector<8x2x8xf32>
    %72 = vector.extract_strided_slice %15 {offsets = [0, 96], sizes = [4, 8], strides = [1, 1]} : vector<4x128xf32> to vector<4x8xf32>
    %73 = vector.shape_cast %72 : vector<4x8xf32> to vector<2x2x8xf32>
    %74 = vector.extract_strided_slice %15 {offsets = [0, 104], sizes = [4, 8], strides = [1, 1]} : vector<4x128xf32> to vector<4x8xf32>
    %75 = vector.shape_cast %74 : vector<4x8xf32> to vector<2x2x8xf32>
    %76 = vector.extract_strided_slice %15 {offsets = [0, 112], sizes = [4, 8], strides = [1, 1]} : vector<4x128xf32> to vector<4x8xf32>
    %77 = vector.shape_cast %76 : vector<4x8xf32> to vector<2x2x8xf32>
    %78 = vector.extract_strided_slice %15 {offsets = [0, 120], sizes = [4, 8], strides = [1, 1]} : vector<4x128xf32> to vector<4x8xf32>
    %79 = vector.shape_cast %78 : vector<4x8xf32> to vector<2x2x8xf32>
    %80 = tpu.concatenate %73, %75, %77, %79 in 0 : vector<2x2x8xf32>, vector<2x2x8xf32>, vector<2x2x8xf32>, vector<2x2x8xf32> -> vector<8x2x8xf32>
    %81 = vector.extract_strided_slice %17 {offsets = [0, 0], sizes = [4, 8], strides = [1, 1]} : vector<4x128xf32> to vector<4x8xf32>
    %82 = vector.shape_cast %81 : vector<4x8xf32> to vector<2x2x8xf32>
    %83 = vector.extract_strided_slice %17 {offsets = [0, 8], sizes = [4, 8], strides = [1, 1]} : vector<4x128xf32> to vector<4x8xf32>
    %84 = vector.shape_cast %83 : vector<4x8xf32> to vector<2x2x8xf32>
    %85 = vector.extract_strided_slice %17 {offsets = [0, 16], sizes = [4, 8], strides = [1, 1]} : vector<4x128xf32> to vector<4x8xf32>
    %86 = vector.shape_cast %85 : vector<4x8xf32> to vector<2x2x8xf32>
    %87 = vector.extract_strided_slice %17 {offsets = [0, 24], sizes = [4, 8], strides = [1, 1]} : vector<4x128xf32> to vector<4x8xf32>
    %88 = vector.shape_cast %87 : vector<4x8xf32> to vector<2x2x8xf32>
    %89 = tpu.concatenate %82, %84, %86, %88 in 0 : vector<2x2x8xf32>, vector<2x2x8xf32>, vector<2x2x8xf32>, vector<2x2x8xf32> -> vector<8x2x8xf32>
    %90 = vector.extract_strided_slice %17 {offsets = [0, 32], sizes = [4, 8], strides = [1, 1]} : vector<4x128xf32> to vector<4x8xf32>
    %91 = vector.shape_cast %90 : vector<4x8xf32> to vector<2x2x8xf32>
    %92 = vector.extract_strided_slice %17 {offsets = [0, 40], sizes = [4, 8], strides = [1, 1]} : vector<4x128xf32> to vector<4x8xf32>
    %93 = vector.shape_cast %92 : vector<4x8xf32> to vector<2x2x8xf32>
    %94 = vector.extract_strided_slice %17 {offsets = [0, 48], sizes = [4, 8], strides = [1, 1]} : vector<4x128xf32> to vector<4x8xf32>
    %95 = vector.shape_cast %94 : vector<4x8xf32> to vector<2x2x8xf32>
    %96 = vector.extract_strided_slice %17 {offsets = [0, 56], sizes = [4, 8], strides = [1, 1]} : vector<4x128xf32> to vector<4x8xf32>
    %97 = vector.shape_cast %96 : vector<4x8xf32> to vector<2x2x8xf32>
    %98 = tpu.concatenate %91, %93, %95, %97 in 0 : vector<2x2x8xf32>, vector<2x2x8xf32>, vector<2x2x8xf32>, vector<2x2x8xf32> -> vector<8x2x8xf32>
    %99 = vector.extract_strided_slice %17 {offsets = [0, 64], sizes = [4, 8], strides = [1, 1]} : vector<4x128xf32> to vector<4x8xf32>
    %100 = vector.shape_cast %99 : vector<4x8xf32> to vector<2x2x8xf32>
    %101 = vector.extract_strided_slice %17 {offsets = [0, 72], sizes = [4, 8], strides = [1, 1]} : vector<4x128xf32> to vector<4x8xf32>
    %102 = vector.shape_cast %101 : vector<4x8xf32> to vector<2x2x8xf32>
    %103 = vector.extract_strided_slice %17 {offsets = [0, 80], sizes = [4, 8], strides = [1, 1]} : vector<4x128xf32> to vector<4x8xf32>
    %104 = vector.shape_cast %103 : vector<4x8xf32> to vector<2x2x8xf32>
    %105 = vector.extract_strided_slice %17 {offsets = [0, 88], sizes = [4, 8], strides = [1, 1]} : vector<4x128xf32> to vector<4x8xf32>
    %106 = vector.shape_cast %105 : vector<4x8xf32> to vector<2x2x8xf32>
    %107 = tpu.concatenate %100, %102, %104, %106 in 0 : vector<2x2x8xf32>, vector<2x2x8xf32>, vector<2x2x8xf32>, vector<2x2x8xf32> -> vector<8x2x8xf32>
    %108 = vector.extract_strided_slice %17 {offsets = [0, 96], sizes = [4, 8], strides = [1, 1]} : vector<4x128xf32> to vector<4x8xf32>
    %109 = vector.shape_cast %108 : vector<4x8xf32> to vector<2x2x8xf32>
    %110 = vector.extract_strided_slice %17 {offsets = [0, 104], sizes = [4, 8], strides = [1, 1]} : vector<4x128xf32> to vector<4x8xf32>
    %111 = vector.shape_cast %110 : vector<4x8xf32> to vector<2x2x8xf32>
    %112 = vector.extract_strided_slice %17 {offsets = [0, 112], sizes = [4, 8], strides = [1, 1]} : vector<4x128xf32> to vector<4x8xf32>
    %113 = vector.shape_cast %112 : vector<4x8xf32> to vector<2x2x8xf32>
    %114 = vector.extract_strided_slice %17 {offsets = [0, 120], sizes = [4, 8], strides = [1, 1]} : vector<4x128xf32> to vector<4x8xf32>
    %115 = vector.shape_cast %114 : vector<4x8xf32> to vector<2x2x8xf32>
    %116 = tpu.concatenate %109, %111, %113, %115 in 0 : vector<2x2x8xf32>, vector<2x2x8xf32>, vector<2x2x8xf32>, vector<2x2x8xf32> -> vector<8x2x8xf32>
    %117 = vector.extract_strided_slice %35 {offsets = [0, 0, 0], sizes = [8, 2, 8], strides = [1, 1, 1]} : vector<8x8x8xf32> to vector<8x2x8xf32>
    %118 = vector.extract_strided_slice %35 {offsets = [0, 2, 0], sizes = [8, 2, 8], strides = [1, 1, 1]} : vector<8x8x8xf32> to vector<8x2x8xf32>
    %119 = vector.extract_strided_slice %35 {offsets = [0, 4, 0], sizes = [8, 3, 8], strides = [1, 1, 1]} : vector<8x8x8xf32> to vector<8x3x8xf32>
    "tpu.trace_start"() <{level = 10 : i32, message = "bik,bjk->bij"}> : () -> ()
    %cst_19 = arith.constant dense<0.000000e+00> : vector<8x8x8xf32>
    %120 = tpu.matmul %26, %35, %cst_19 {dimension_numbers = #tpu.dot_dimension_numbers<[2], [2], [1], [1], [0, 0, 0, 1, 1, 1], [0], [0]>} : vector<8x8x8xf32>, vector<8x8x8xf32>, vector<8x8x8xf32> -> vector<8x8x8xf32>
    %cst_20 = arith.constant dense<0.000000e+00> : vector<8x2x2xf32>
    %121 = tpu.matmul %62, %117, %cst_20 {dimension_numbers = #tpu.dot_dimension_numbers<[2], [2], [1], [1], [0, 0, 0, 1, 1, 1], [0], [0]>} : vector<8x2x8xf32>, vector<8x2x8xf32>, vector<8x2x2xf32> -> vector<8x2x2xf32>
    %cst_21 = arith.constant dense<0.000000e+00> : vector<8x2x2xf32>
    %122 = tpu.matmul %71, %118, %cst_21 {dimension_numbers = #tpu.dot_dimension_numbers<[2], [2], [1], [1], [0, 0, 0, 1, 1, 1], [0], [0]>} : vector<8x2x8xf32>, vector<8x2x8xf32>, vector<8x2x2xf32> -> vector<8x2x2xf32>
    %cst_22 = arith.constant dense<0.000000e+00> : vector<8x2x3xf32>
    %123 = tpu.matmul %80, %119, %cst_22 {dimension_numbers = #tpu.dot_dimension_numbers<[2], [2], [1], [1], [0, 0, 0, 1, 1, 1], [0], [0]>} : vector<8x2x8xf32>, vector<8x3x8xf32>, vector<8x2x3xf32> -> vector<8x2x3xf32>
    "tpu.trace_stop"() : () -> ()
    %124 = arith.mulf %53, %118 : vector<8x2x8xf32>
    %cst_23 = arith.constant dense<0.000000e+00> : vector<8x2xf32>
    %125 = vector.multi_reduction <add>, %124, %cst_23 [2] : vector<8x2x8xf32> to vector<8x2xf32>
    %126 = vector.shape_cast %125 : vector<8x2xf32> to vector<8x2x1xf32>
    "tpu.trace_start"() <{level = 10 : i32, message = "bik,bjk->bij"}> : () -> ()
    %cst_24 = arith.constant dense<0.000000e+00> : vector<8x2x2xf32>
    %127 = tpu.matmul %107, %117, %cst_24 {dimension_numbers = #tpu.dot_dimension_numbers<[2], [2], [1], [1], [0, 0, 0, 1, 1, 1], [0], [0]>} : vector<8x2x8xf32>, vector<8x2x8xf32>, vector<8x2x2xf32> -> vector<8x2x2xf32>
    %cst_25 = arith.constant dense<0.000000e+00> : vector<8x2x2xf32>
    %128 = tpu.matmul %98, %118, %cst_25 {dimension_numbers = #tpu.dot_dimension_numbers<[2], [2], [1], [1], [0, 0, 0, 1, 1, 1], [0], [0]>} : vector<8x2x8xf32>, vector<8x2x8xf32>, vector<8x2x2xf32> -> vector<8x2x2xf32>
    %cst_26 = arith.constant dense<0.000000e+00> : vector<8x2x3xf32>
    %129 = tpu.matmul %116, %119, %cst_26 {dimension_numbers = #tpu.dot_dimension_numbers<[2], [2], [1], [1], [0, 0, 0, 1, 1, 1], [0], [0]>} : vector<8x2x8xf32>, vector<8x3x8xf32>, vector<8x2x3xf32> -> vector<8x2x3xf32>
    "tpu.trace_stop"() : () -> ()
    %130 = arith.mulf %89, %117 : vector<8x2x8xf32>
    %cst_27 = arith.constant dense<0.000000e+00> : vector<8x2xf32>
    %131 = vector.multi_reduction <add>, %130, %cst_27 [2] : vector<8x2x8xf32> to vector<8x2xf32>
    %132 = vector.shape_cast %131 : vector<8x2xf32> to vector<8x2x1xf32>
    %133 = tpu.concatenate %121, %122, %123, %126 in 2 : vector<8x2x2xf32>, vector<8x2x2xf32>, vector<8x2x3xf32>, vector<8x2x1xf32> -> vector<8x2x8xf32>
    %134 = tpu.concatenate %127, %128, %129, %132 in 2 : vector<8x2x2xf32>, vector<8x2x2xf32>, vector<8x2x3xf32>, vector<8x2x1xf32> -> vector<8x2x8xf32>
    %135 = tpu.concatenate %133, %134 in 1 : vector<8x2x8xf32>, vector<8x2x8xf32> -> vector<8x4x8xf32>
    %cst_28 = arith.constant dense<0xFF800000> : vector<8x8xf32>
    %136 = vector.multi_reduction <maximumf>, %120, %cst_28 [2] : vector<8x8x8xf32> to vector<8x8xf32>
    %137 = vector.shape_cast %136 : vector<8x8xf32> to vector<8x8x1xf32>
    %cst_29 = arith.constant dense<0xFF800000> : vector<8x4xf32>
    %138 = vector.multi_reduction <maximumf>, %135, %cst_29 [2] : vector<8x4x8xf32> to vector<8x4xf32>
    %139 = vector.shape_cast %138 : vector<8x4xf32> to vector<8x4x1xf32>
    %140 = vector.extract_strided_slice %137 {offsets = [0, 0, 0], sizes = [8, 4, 1], strides = [1, 1, 1]} : vector<8x8x1xf32> to vector<8x4x1xf32>
    %141 = arith.maximumf %140, %139 : vector<8x4x1xf32>
    %142 = vector.extract_strided_slice %137 {offsets = [0, 4, 0], sizes = [8, 4, 1], strides = [1, 1, 1]} : vector<8x8x1xf32> to vector<8x4x1xf32>
    %143 = tpu.concatenate %141, %142 in 1 : vector<8x4x1xf32>, vector<8x4x1xf32> -> vector<8x8x1xf32>
    %144 = vector.broadcast %143 : vector<8x8x1xf32> to vector<8x8x8xf32>
    %145 = arith.subf %120, %144 : vector<8x8x8xf32>
    %146 = math.exp %145 : vector<8x8x8xf32>
    %147 = vector.broadcast %141 : vector<8x4x1xf32> to vector<8x4x8xf32>
    %148 = arith.subf %135, %147 : vector<8x4x8xf32>
    %149 = math.exp %148 : vector<8x4x8xf32>
    %cst_30 = arith.constant dense<0.000000e+00> : vector<8x8xf32>
    %150 = vector.multi_reduction <add>, %146, %cst_30 [2] : vector<8x8x8xf32> to vector<8x8xf32>
    %151 = vector.shape_cast %150 : vector<8x8xf32> to vector<8x8x1xf32>
    %cst_31 = arith.constant dense<0.000000e+00> : vector<8x4xf32>
    %152 = vector.multi_reduction <add>, %149, %cst_31 [2] : vector<8x4x8xf32> to vector<8x4xf32>
    %153 = vector.shape_cast %152 : vector<8x4xf32> to vector<8x4x1xf32>
    %154 = vector.extract_strided_slice %151 {offsets = [0, 0, 0], sizes = [8, 4, 1], strides = [1, 1, 1]} : vector<8x8x1xf32> to vector<8x4x1xf32>
    %155 = arith.addf %154, %153 : vector<8x4x1xf32>
    %156 = vector.extract_strided_slice %151 {offsets = [0, 4, 0], sizes = [8, 4, 1], strides = [1, 1, 1]} : vector<8x8x1xf32> to vector<8x4x1xf32>
    %157 = tpu.concatenate %155, %156 in 1 : vector<8x4x1xf32>, vector<8x4x1xf32> -> vector<8x8x1xf32>
    %158 = tpu.reciprocal %157 {approx = true} : vector<8x8x1xf32> -> vector<8x8x1xf32>
    %159 = vector.broadcast %158 : vector<8x8x1xf32> to vector<8x8x8xf32>
    %160 = arith.mulf %146, %159 : vector<8x8x8xf32>
    %161 = vector.extract_strided_slice %158 {offsets = [0, 0, 0], sizes = [8, 4, 1], strides = [1, 1, 1]} : vector<8x8x1xf32> to vector<8x4x1xf32>
    %162 = vector.broadcast %161 : vector<8x4x1xf32> to vector<8x4x8xf32>
    %163 = arith.mulf %149, %162 : vector<8x4x8xf32>
    %164 = tpu.iota {dimensions = array<i32: 0>} : vector<8x1xi32>
    %c7_i32 = arith.constant 7 : i32
    %165 = vector.broadcast %c7_i32 : i32 to vector<8x1xi32>
    %166 = arith.cmpi slt, %164, %165 : vector<8x1xi32>
    %167 = arith.extui %166 : vector<8x1xi1> to vector<8x1xi32>
    %168 = arith.sitofp %167 : vector<8x1xi32> to vector<8x1xf32>
    %169 = vector.shape_cast %168 : vector<8x1xf32> to vector<1x8x1xf32>
    %170 = vector.broadcast %169 : vector<1x8x1xf32> to vector<8x8x8xf32>
    %171 = arith.mulf %44, %170 : vector<8x8x8xf32>
    %172 = vector.extract_strided_slice %44 {offsets = [0, 2, 0], sizes = [8, 2, 8], strides = [1, 1, 1]} : vector<8x8x8xf32> to vector<8x2x8xf32>
    %173 = vector.extract_strided_slice %44 {offsets = [0, 0, 0], sizes = [8, 2, 8], strides = [1, 1, 1]} : vector<8x8x8xf32> to vector<8x2x8xf32>
    %174 = tpu.concatenate %172, %173 in 1 : vector<8x2x8xf32>, vector<8x2x8xf32> -> vector<8x4x8xf32>
    "tpu.trace_start"() <{level = 10 : i32, message = "bij,bjk->bik"}> : () -> ()
    %cst_32 = arith.constant dense<0.000000e+00> : vector<8x8x8xf32>
    %175 = tpu.matmul %160, %44, %cst_32 {dimension_numbers = #tpu.dot_dimension_numbers<[2], [1], [1], [2], [0, 0, 0, 1, 1, 2], [0], [0]>} : vector<8x8x8xf32>, vector<8x8x8xf32>, vector<8x8x8xf32> -> vector<8x8x8xf32>
    %cst_33 = arith.constant dense<0.000000e+00> : vector<8x4x8xf32>
    %176 = tpu.matmul %163, %171, %cst_33 {dimension_numbers = #tpu.dot_dimension_numbers<[2], [1], [1], [2], [0, 0, 0, 1, 1, 2], [0], [0]>} : vector<8x4x8xf32>, vector<8x8x8xf32>, vector<8x4x8xf32> -> vector<8x4x8xf32>
    "tpu.trace_stop"() : () -> ()
    %177 = vector.extract_strided_slice %163 {offsets = [0, 0, 7], sizes = [8, 4, 1], strides = [1, 1, 1]} : vector<8x4x8xf32> to vector<8x4x1xf32>
    %178 = vector.broadcast %177 : vector<8x4x1xf32> to vector<8x4x8xf32>
    %179 = arith.mulf %178, %174 : vector<8x4x8xf32>
    %180 = arith.addf %176, %179 : vector<8x4x8xf32>
    %cst_34 = arith.constant 0.000000e+00 : f32
    %181 = vector.broadcast %cst_34 : f32 to vector<8x4x8xf32>
    %182 = tpu.concatenate %180, %181 in 1 : vector<8x4x8xf32>, vector<8x4x8xf32> -> vector<8x8x8xf32>
    %183 = arith.addf %175, %182 : vector<8x8x8xf32>
    %184 = vector.extract_strided_slice %183 {offsets = [0, 0, 0], sizes = [2, 8, 8], strides = [1, 1, 1]} : vector<8x8x8xf32> to vector<2x8x8xf32>
    %185 = vector.shape_cast %184 : vector<2x8x8xf32> to vector<16x8xf32>
    %186 = vector.extract_strided_slice %183 {offsets = [2, 0, 0], sizes = [2, 8, 8], strides = [1, 1, 1]} : vector<8x8x8xf32> to vector<2x8x8xf32>
    %187 = vector.shape_cast %186 : vector<2x8x8xf32> to vector<16x8xf32>
    %188 = vector.extract_strided_slice %183 {offsets = [4, 0, 0], sizes = [2, 8, 8], strides = [1, 1, 1]} : vector<8x8x8xf32> to vector<2x8x8xf32>
    %189 = vector.shape_cast %188 : vector<2x8x8xf32> to vector<16x8xf32>
    %190 = vector.extract_strided_slice %183 {offsets = [6, 0, 0], sizes = [2, 8, 8], strides = [1, 1, 1]} : vector<8x8x8xf32> to vector<2x8x8xf32>
    %191 = vector.shape_cast %190 : vector<2x8x8xf32> to vector<16x8xf32>
    %192 = tpu.concatenate %185, %187, %189, %191 in 1 : vector<16x8xf32>, vector<16x8xf32>, vector<16x8xf32>, vector<16x8xf32> -> vector<16x32xf32>
    %c0_35 = arith.constant 0 : index
    %c0_36 = arith.constant 0 : index
    %193 = vector.load %arg8[%c0_35, %c0_36] : memref<32x128xf32, #tpu.memory_space<vmem>>, vector<32x128xf32>
    %cst_37 = arith.constant dense<0.000000e+00> : vector<16x128xf32>
    %194 = tpu.matmul %192, %193, %cst_37 {dimension_numbers = #tpu.dot_dimension_numbers<[1], [0], [0], [1], [0, 0, 1, 1], [], []>} : vector<16x32xf32>, vector<32x128xf32>, vector<16x128xf32> -> vector<16x128xf32>
    %c0_38 = arith.constant 0 : index
    %c0_39 = arith.constant 0 : index
    %195 = vector.load %arg9[%c0_38, %c0_39] : memref<16x128xf32, #tpu.memory_space<vmem>>, vector<16x128xf32>
    tpu.vector_store %arg9[%c0_38, %c0_39], %194 {strides = array<i32>} : memref<16x128xf32, #tpu.memory_space<vmem>>, vector<16x128xf32>,
    return
  }
  func.func @transform_0(%arg0: i32) -> (i32, i32, i32) {
    %c0_i32 = arith.constant 0 : i32
    %c0_i32_0 = arith.constant 0 : i32
    %c0_i32_1 = arith.constant 0 : i32
    return %arg0, %c0_i32, %c0_i32_0 : i32, i32, i32
  }
  func.func @transform_1(%arg0: i32) -> (i32, i32, i32) {
    %c0_i32 = arith.constant 0 : i32
    %c0_i32_0 = arith.constant 0 : i32
    %c0_i32_1 = arith.constant 0 : i32
    return %arg0, %c0_i32, %c0_i32_0 : i32, i32, i32
  }
  func.func @transform_2(%arg0: i32) -> (i32, i32) {
    %c0_i32 = arith.constant 0 : i32
    %c0_i32_0 = arith.constant 0 : i32
    %c0_i32_1 = arith.constant 0 : i32
    return %c0_i32, %c0_i32_0 : i32, i32
  }
  func.func @transform_3(%arg0: i32) -> (i32, i32) {
    %c0_i32 = arith.constant 0 : i32
    %c0_i32_0 = arith.constant 0 : i32
    %c0_i32_1 = arith.constant 0 : i32
    return %c0_i32, %c0_i32_0 : i32, i32
  }
  func.func @transform_4(%arg0: i32) -> (i32, i32) {
    %c0_i32 = arith.constant 0 : i32
    %c0_i32_0 = arith.constant 0 : i32
    %c0_i32_1 = arith.constant 0 : i32
    return %c0_i32, %c0_i32_0 : i32, i32
  }
  func.func @transform_5(%arg0: i32) -> (i32, i32) {
    %c0_i32 = arith.constant 0 : i32
    %c0_i32_0 = arith.constant 0 : i32
    %c0_i32_1 = arith.constant 0 : i32
    return %c0_i32, %c0_i32_0 : i32, i32
  }
  func.func @transform_6(%arg0: i32) -> (i32, i32) {
    %c0_i32 = arith.constant 0 : i32
    %c0_i32_0 = arith.constant 0 : i32
    %c0_i32_1 = arith.constant 0 : i32
    return %c0_i32, %c0_i32_0 : i32, i32
  }
  func.func @transform_7(%arg0: i32) -> (i32, i32) {
    %c0_i32 = arith.constant 0 : i32
    %c0_i32_0 = arith.constant 0 : i32
    %c0_i32_1 = arith.constant 0 : i32
    return %c0_i32, %c0_i32_0 : i32, i32
  }
  func.func @transform_8(%arg0: i32) -> (i32, i32) {
    %c0_i32 = arith.constant 0 : i32
    %c0_i32_0 = arith.constant 0 : i32
    return %arg0, %c0_i32 : i32, i32
  }
}

</mosaic_0001>

<llo_original>
// kernel: tpu_custom_call.1
$region0: #{tpu_custom_call.1}
  #allocation0 [shape = 'u32[]', space=smem, size = 0x4, offset = 0x4, fixed_abs, tag = 'smem constant byte address 0x4 - core index']
  #allocation1 [shape = 'u32[144,128]{1,0:T(1,128)}', space=vmem, size = 0x12000, scoped, tag = 'internal scratch']
  %s0 = inlined_call_operand.hbm [shape: f32[4,8,32], index: 0, kind: input, shape index: {}]
  %s1 = inlined_call_operand.hbm [shape: f32[4,8,32], index: 1, kind: input, shape index: {}]
  %s2 = inlined_call_operand.hbm [shape: f32[32,32], index: 2, kind: input, shape index: {}]
  %s3 = inlined_call_operand.hbm [shape: f32[32,32], index: 3, kind: input, shape index: {}]
  %s4 = inlined_call_operand.hbm [shape: f32[32,32], index: 4, kind: input, shape index: {}]
  %s5 = inlined_call_operand.hbm [shape: f32[32,128], index: 5, kind: input, shape index: {}]
  %s6 = inlined_call_operand.hbm [shape: f32[32,128], index: 6, kind: input, shape index: {}]
  %s7 = inlined_call_operand.hbm [shape: f32[32,128], index: 7, kind: input, shape index: {}]
  %s8 = inlined_call_operand.hbm [shape: f32[32,128], index: 8, kind: output, shape index: {}]
  %s9 = sld [smem:[#allocation0]]
  $region97: #{tpu_custom_call.1} parent=0
    _
  %s11 = ssub.s32 1, %s9
  %s12 = scalar_select 0, %s11, %s9
  $region1: #{tpu_custom_call.1} parent=0
    #allocation2 [shape = 'u8[16384]{0}', space=vmem, size = 0x4000, scoped, tag = 'input window, operand 0']
    #allocation3 [shape = 's32[2]{0}', space=sflag, size = 0x8, scoped, tag = 'scoped memory for tpu_custom_call.1']
    #allocation4 [shape = 's32[2]{0}', space=sflag, size = 0x8, scoped, tag = 'scoped memory for tpu_custom_call.1']
    #allocation5 [shape = 'u8[16384]{0}', space=vmem, size = 0x4000, scoped, tag = 'input window, operand 1']
    #allocation6 [shape = 's32[2]{0}', space=sflag, size = 0x8, scoped, tag = 'scoped memory for tpu_custom_call.1']
    #allocation7 [shape = 'u8[16384]{0}', space=vmem, size = 0x4000, scoped, tag = 'input window, operand 2, single buffered']
    #allocation8 [shape = 'u8[16384]{0}', space=vmem, size = 0x4000, scoped, tag = 'input window, operand 3, single buffered']
    #allocation9 [shape = 's32[1]{0}', space=sflag, size = 0x4, scoped, tag = 'scoped memory for tpu_custom_call.1']
    #allocation10 [shape = 'u8[16384]{0}', space=vmem, size = 0x4000, scoped, tag = 'input window, operand 4, single buffered']
    #allocation11 [shape = 'u8[16384]{0}', space=vmem, size = 0x4000, scoped, tag = 'input window, operand 5, single buffered']
    #allocation12 [shape = 's32[1]{0}', space=sflag, size = 0x4, scoped, tag = 'scoped memory for tpu_custom_call.1']
    #allocation13 [shape = 'u8[16384]{0}', space=vmem, size = 0x4000, scoped, tag = 'input window, operand 6, single buffered']
    #allocation14 [shape = 'u8[16384]{0}', space=vmem, size = 0x4000, scoped, tag = 'input window, operand 7, single buffered']
    #allocation15 [shape = 's32[1]{0}', space=sflag, size = 0x4, scoped, tag = 'scoped memory for tpu_custom_call.1']
    #allocation16 [shape = 'u8[16384]{0}', space=vmem, size = 0x4000, scoped, tag = 'output window, operand 0']
    %13 = vsyncpa [#allocation3], 0
    %s14 = scalar_lea.sflag [#allocation3], 1
    %15 = vsyncpa %s14, 0
    %16 = vsyncpa [#allocation6], 0
    %s17 = scalar_lea.sflag [#allocation6], 1
    %18 = vsyncpa %s17, 0
    %19 = vsyncpa [#allocation9], 0
    %20 = vsyncpa [#allocation12], 0
    %21 = vsyncpa [#allocation15], 0
    %22 = vsyncpa [#allocation4], 0
    %s23 = scalar_lea.sflag [#allocation4], 1
    %24 = vsyncpa %s23, 0
    loop: start=0, step=1, limit=4
    $region2: #{tpu_custom_call.1} parent=1 // loop_pre_header
      _
    $region3: #{tpu_custom_call.1} parent=1 // loop_header
      %s26 = sphi 0, %s30
      %p27 = scmp.ge.s32.totalorder %s26, 4
      %s36 = sphi 0, %s38
      %s39 = sphi 0, %s36
      %s40 = sphi 0, %s39
      %s56 = sphi 0, %s40
      %s62 = sphi 0, %s64
      %s65 = sphi 0, %s62
      %s66 = sphi 0, %s65
      %s82 = sphi 0, %s66
      %s86 = sphi 0, %s86
      %s88 = sphi 0, %s86
      %s89 = sphi 0, %s88
      %s103 = sphi 0, %s89
      %s107 = sphi 0, %s107
      %s109 = sphi 0, %s107
      %s110 = sphi 0, %s109
      %s124 = sphi 0, %s110
      %s128 = sphi 0, %s128
      %s130 = sphi 0, %s128
      %s131 = sphi 0, %s130
      %s145 = sphi 0, %s131
      %s149 = sphi 0, %s149
      %s151 = sphi 0, %s149
      %s152 = sphi 0, %s151
      %s166 = sphi 0, %s152
      %s170 = sphi 0, %s170
      %s172 = sphi 0, %s170
      %s173 = sphi 0, %s172
      %s187 = sphi 0, %s173
      %s191 = sphi 0, %s191
      %s193 = sphi 0, %s191
      %s194 = sphi 0, %s193
      %s208 = sphi 0, %s194
      %s214 = sphi 0, %s216
      %s217 = sphi 0, %s214
      %s218 = sphi 0, %s217
      %s234 = sphi 0, %s218
    $region4: #{tpu_custom_call.1} parent=1 // loop_header_branch
      %29 = sbr.rel (%p27) target = $region8
    $region5: #{tpu_custom_call.1} parent=1 // loop_body
      %s31 = ssub.s32 %s26, 1
      %s32 = ssub.s32 %s26, 2
      %s33 = sadd.s32 %s26, 1
      %s34 = ssub.s32 %s26, %s33
      %p35 = scmp.eq.s32.totalorder %s34, 0
      %s37 = sadd.s32 %s36, 1
      %s38 = scalar_select %p35, %s36, %s37
      %p41 = pneg %p35
      %p42 = scmp.eq.s32.totalorder %s26, 1
      %p43 = por %p41, %p42
      %p44 = scmp.ne.s32.totalorder %s36, %s39
      %p45 = scmp.eq.s32.totalorder %s26, 0
      %p46 = por %p44, %p45
      %p47 = scmp.ne.s32.totalorder %s36, %s39
      %p48 = scmp.eq.s32.totalorder %s31, 1
      %p49 = por %p47, %p48
      %p50 = scmp.ne.s32.totalorder %s39, %s40
      %p51 = scmp.eq.s32.totalorder %s31, 0
      %p52 = por %p50, %p51
      %p53 = scmp.ne.s32.totalorder %s39, %s40
      %p54 = scmp.eq.s32.totalorder %s32, 1
      %p55 = por %p53, %p54
      %p57 = scmp.ne.s32.totalorder %s40, %s56
      %p58 = scmp.eq.s32.totalorder %s32, 0
      %p59 = por %p57, %p58
      %s60 = ssub.s32 %s26, %s33
      %p61 = scmp.eq.s32.totalorder %s60, 0
      %s63 = sadd.s32 %s62, 1
      %s64 = scalar_select %p61, %s62, %s63
      %p67 = pneg %p61
      %p68 = scmp.eq.s32.totalorder %s26, 1
      %p69 = por %p67, %p68
      %p70 = scmp.ne.s32.totalorder %s62, %s65
      %p71 = scmp.eq.s32.totalorder %s26, 0
      %p72 = por %p70, %p71
      %p73 = scmp.ne.s32.totalorder %s62, %s65
      %p74 = scmp.eq.s32.totalorder %s31, 1
      %p75 = por %p73, %p74
      %p76 = scmp.ne.s32.totalorder %s65, %s66
      %p77 = scmp.eq.s32.totalorder %s31, 0
      %p78 = por %p76, %p77
      %p79 = scmp.ne.s32.totalorder %s65, %s66
      %p80 = scmp.eq.s32.totalorder %s32, 1
      %p81 = por %p79, %p80
      %p83 = scmp.ne.s32.totalorder %s66, %s82
      %p84 = scmp.eq.s32.totalorder %s32, 0
      %p85 = por %p83, %p84
      %s87 = sadd.s32 %s86, 1
      %p90 = scmp.eq.s32.totalorder %s26, 1
      %p91 = scmp.ne.s32.totalorder %s86, %s88
      %p92 = scmp.eq.s32.totalorder %s26, 0
      %p93 = por %p91, %p92
      %p94 = scmp.ne.s32.totalorder %s86, %s88
      %p95 = scmp.eq.s32.totalorder %s31, 1
      %p96 = por %p94, %p95
      %p97 = scmp.ne.s32.totalorder %s88, %s89
      %p98 = scmp.eq.s32.totalorder %s31, 0
      %p99 = por %p97, %p98
      %p100 = scmp.ne.s32.totalorder %s88, %s89
      %p101 = scmp.eq.s32.totalorder %s32, 1
      %p102 = por %p100, %p101
      %p104 = scmp.ne.s32.totalorder %s89, %s103
      %p105 = scmp.eq.s32.totalorder %s32, 0
      %p106 = por %p104, %p105
      %s108 = sadd.s32 %s107, 1
      %p111 = scmp.eq.s32.totalorder %s26, 1
      %p112 = scmp.ne.s32.totalorder %s107, %s109
      %p113 = scmp.eq.s32.totalorder %s26, 0
      %p114 = por %p112, %p113
      %p115 = scmp.ne.s32.totalorder %s107, %s109
      %p116 = scmp.eq.s32.totalorder %s31, 1
      %p117 = por %p115, %p116
      %p118 = scmp.ne.s32.totalorder %s109, %s110
      %p119 = scmp.eq.s32.totalorder %s31, 0
      %p120 = por %p118, %p119
      %p121 = scmp.ne.s32.totalorder %s109, %s110
      %p122 = scmp.eq.s32.totalorder %s32, 1
      %p123 = por %p121, %p122
      %p125 = scmp.ne.s32.totalorder %s110, %s124
      %p126 = scmp.eq.s32.totalorder %s32, 0
      %p127 = por %p125, %p126
      %s129 = sadd.s32 %s128, 1
      %p132 = scmp.eq.s32.totalorder %s26, 1
      %p133 = scmp.ne.s32.totalorder %s128, %s130
      %p134 = scmp.eq.s32.totalorder %s26, 0
      %p135 = por %p133, %p134
      %p136 = scmp.ne.s32.totalorder %s128, %s130
      %p137 = scmp.eq.s32.totalorder %s31, 1
      %p138 = por %p136, %p137
      %p139 = scmp.ne.s32.totalorder %s130, %s131
      %p140 = scmp.eq.s32.totalorder %s31, 0
      %p141 = por %p139, %p140
      %p142 = scmp.ne.s32.totalorder %s130, %s131
      %p143 = scmp.eq.s32.totalorder %s32, 1
      %p144 = por %p142, %p143
      %p146 = scmp.ne.s32.totalorder %s131, %s145
      %p147 = scmp.eq.s32.totalorder %s32, 0
      %p148 = por %p146, %p147
      %s150 = sadd.s32 %s149, 1
      %p153 = scmp.eq.s32.totalorder %s26, 1
      %p154 = scmp.ne.s32.totalorder %s149, %s151
      %p155 = scmp.eq.s32.totalorder %s26, 0
      %p156 = por %p154, %p155
      %p157 = scmp.ne.s32.totalorder %s149, %s151
      %p158 = scmp.eq.s32.totalorder %s31, 1
      %p159 = por %p157, %p158
      %p160 = scmp.ne.s32.totalorder %s151, %s152
      %p161 = scmp.eq.s32.totalorder %s31, 0
      %p162 = por %p160, %p161
      %p163 = scmp.ne.s32.totalorder %s151, %s152
      %p164 = scmp.eq.s32.totalorder %s32, 1
      %p165 = por %p163, %p164
      %p167 = scmp.ne.s32.totalorder %s152, %s166
      %p168 = scmp.eq.s32.totalorder %s32, 0
      %p169 = por %p167, %p168
      %s171 = sadd.s32 %s170, 1
      %p174 = scmp.eq.s32.totalorder %s26, 1
      %p175 = scmp.ne.s32.totalorder %s170, %s172
      %p176 = scmp.eq.s32.totalorder %s26, 0
      %p177 = por %p175, %p176
      %p178 = scmp.ne.s32.totalorder %s170, %s172
      %p179 = scmp.eq.s32.totalorder %s31, 1
      %p180 = por %p178, %p179
      %p181 = scmp.ne.s32.totalorder %s172, %s173
      %p182 = scmp.eq.s32.totalorder %s31, 0
      %p183 = por %p181, %p182
      %p184 = scmp.ne.s32.totalorder %s172, %s173
      %p185 = scmp.eq.s32.totalorder %s32, 1
      %p186 = por %p184, %p185
      %p188 = scmp.ne.s32.totalorder %s173, %s187
      %p189 = scmp.eq.s32.totalorder %s32, 0
      %p190 = por %p188, %p189
      %s192 = sadd.s32 %s191, 1
      %p195 = scmp.eq.s32.totalorder %s26, 1
      %p196 = scmp.ne.s32.totalorder %s191, %s193
      %p197 = scmp.eq.s32.totalorder %s26, 0
      %p198 = por %p196, %p197
      %p199 = scmp.ne.s32.totalorder %s191, %s193
      %p200 = scmp.eq.s32.totalorder %s31, 1
      %p201 = por %p199, %p200
      %p202 = scmp.ne.s32.totalorder %s193, %s194
      %p203 = scmp.eq.s32.totalorder %s31, 0
      %p204 = por %p202, %p203
      %p205 = scmp.ne.s32.totalorder %s193, %s194
      %p206 = scmp.eq.s32.totalorder %s32, 1
      %p207 = por %p205, %p206
      %p209 = scmp.ne.s32.totalorder %s194, %s208
      %p210 = scmp.eq.s32.totalorder %s32, 0
      %p211 = por %p209, %p210
      %s212 = ssub.s32 %s26, %s33
      %p213 = scmp.eq.s32.totalorder %s212, 0
      %s215 = sadd.s32 %s214, 1
      %s216 = scalar_select %p213, %s214, %s215
      %p219 = pneg %p213
      %p220 = scmp.eq.s32.totalorder %s26, 1
      %p221 = por %p219, %p220
      %p222 = scmp.ne.s32.totalorder %s214, %s217
      %p223 = scmp.eq.s32.totalorder %s26, 0
      %p224 = por %p222, %p223
      %p225 = scmp.ne.s32.totalorder %s214, %s217
      %p226 = scmp.eq.s32.totalorder %s31, 1
      %p227 = por %p225, %p226
      %p228 = scmp.ne.s32.totalorder %s217, %s218
      %p229 = scmp.eq.s32.totalorder %s31, 0
      %p230 = por %p228, %p229
      %p231 = scmp.ne.s32.totalorder %s217, %s218
      %p232 = scmp.eq.s32.totalorder %s32, 1
      %p233 = por %p231, %p232
      %p235 = scmp.ne.s32.totalorder %s218, %s234
      %p236 = scmp.eq.s32.totalorder %s32, 0
      %p237 = por %p235, %p236
      %p238 = scmp.le.s32.totalorder 1, %s26
      %p239 = scmp.lt.s32.totalorder %s26, 3
      %p240 = pnand %p238, %p239
      %p241 = pneg %p240
      // Predicated region
      $region9: #{tpu_custom_call.1} parent=5 // pred_check
        _
      $region10: #{tpu_custom_call.1} parent=5 // pred_check_branch
        %243 = sbr.rel (%p240) target = $region12
      $region11: #{tpu_custom_call.1} parent=5 // pred_region
        %s244 = ssub.s32 %s26, 1
        // Predicated region
        $region13: #{tpu_custom_call.1} parent=11 // pred_check
          %p245 = pneg %p99
        $region14: #{tpu_custom_call.1} parent=11 // pred_check_branch
          %247 = sbr.rel (%p245) target = $region16
        $region15: #{tpu_custom_call.1} parent=11 // pred_region
          %s249 = ssub.s32 512, 512
          %250 = vsyncadd [#allocation6], %s249
          %s251 = sshll.u32 [#allocation7], 4
          %s252 = int_to_ptr.vmem [resolvable:$true] %s251
          %257 = dma.hbm_to_vmem [thread:$0]  %s2, 512, %s252, [#allocation6], 128, 128, 8
        $region16: #{tpu_custom_call.1} parent=11 // pred_fallthru
          _
        // Predicated region
        $region17: #{tpu_custom_call.1} parent=11 // pred_check
          %p258 = pneg %p120
        $region18: #{tpu_custom_call.1} parent=11 // pred_check_branch
          %260 = sbr.rel (%p258) target = $region20
        $region19: #{tpu_custom_call.1} parent=11 // pred_region
          %s262 = ssub.s32 512, 512
          %263 = vsyncadd [#allocation9], %s262
          %s264 = sshll.u32 [#allocation8], 4
          %s265 = int_to_ptr.vmem [resolvable:$true] %s264
          %270 = dma.hbm_to_vmem [thread:$0]  %s3, 512, %s265, [#allocation9], 128, 128, 8
        $region20: #{tpu_custom_call.1} parent=11 // pred_fallthru
          _
        // Predicated region
        $region21: #{tpu_custom_call.1} parent=11 // pred_check
          %p271 = pneg %p141
        $region22: #{tpu_custom_call.1} parent=11 // pred_check_branch
          %273 = sbr.rel (%p271) target = $region24
        $region23: #{tpu_custom_call.1} parent=11 // pred_region
          %s275 = ssub.s32 512, 512
          %276 = vsyncadd [#allocation9], %s275
          %s277 = sshll.u32 [#allocation10], 4
          %s278 = int_to_ptr.vmem [resolvable:$true] %s277
          %283 = dma.hbm_to_vmem [thread:$0]  %s4, 512, %s278, [#allocation9], 128, 128, 8
        $region24: #{tpu_custom_call.1} parent=11 // pred_fallthru
          _
        // Predicated region
        $region25: #{tpu_custom_call.1} parent=11 // pred_check
          %p284 = pneg %p162
        $region26: #{tpu_custom_call.1} parent=11 // pred_check_branch
          %286 = sbr.rel (%p284) target = $region28
        $region27: #{tpu_custom_call.1} parent=11 // pred_region
          %s288 = ssub.s32 512, 512
          %289 = vsyncadd [#allocation12], %s288
          %s290 = sshll.u32 [#allocation11], 4
          %s291 = int_to_ptr.vmem [resolvable:$true] %s290
          %296 = dma.hbm_to_vmem [thread:$0]  %s5, 512, %s291, [#allocation12], 128, 128, 8
        $region28: #{tpu_custom_call.1} parent=11 // pred_fallthru
          _
        // Predicated region
        $region29: #{tpu_custom_call.1} parent=11 // pred_check
          %p297 = pneg %p183
        $region30: #{tpu_custom_call.1} parent=11 // pred_check_branch
          %299 = sbr.rel (%p297) target = $region32
        $region31: #{tpu_custom_call.1} parent=11 // pred_region
          %s301 = ssub.s32 512, 512
          %302 = vsyncadd [#allocation12], %s301
          %s303 = sshll.u32 [#allocation13], 4
          %s304 = int_to_ptr.vmem [resolvable:$true] %s303
          %309 = dma.hbm_to_vmem [thread:$0]  %s6, 512, %s304, [#allocation12], 128, 128, 8
        $region32: #{tpu_custom_call.1} parent=11 // pred_fallthru
          _
        // Predicated region
        $region33: #{tpu_custom_call.1} parent=11 // pred_check
          %p310 = pneg %p204
        $region34: #{tpu_custom_call.1} parent=11 // pred_check_branch
          %312 = sbr.rel (%p310) target = $region36
        $region35: #{tpu_custom_call.1} parent=11 // pred_region
          %s314 = ssub.s32 512, 512
          %315 = vsyncadd [#allocation15], %s314
          %s316 = sshll.u32 [#allocation14], 4
          %s317 = int_to_ptr.vmem [resolvable:$true] %s316
          %322 = dma.hbm_to_vmem [thread:$0]  %s7, 512, %s317, [#allocation15], 128, 128, 8
        $region36: #{tpu_custom_call.1} parent=11 // pred_fallthru
          _
      $region12: #{tpu_custom_call.1} parent=5 // pred_fallthru
        _
      %p323 = scmp.lt.s32.totalorder %s26, 2
      // Predicated region
      $region37: #{tpu_custom_call.1} parent=5 // pred_check
        %p324 = pneg %p323
      $region38: #{tpu_custom_call.1} parent=5 // pred_check_branch
        %326 = sbr.rel (%p324) target = $region40
      $region39: #{tpu_custom_call.1} parent=5 // pred_region
        // Predicated region
        $region41: #{tpu_custom_call.1} parent=39 // pred_check
          %p327 = pneg %p46
        $region42: #{tpu_custom_call.1} parent=39 // pred_check_branch
          %329 = sbr.rel (%p327) target = $region44
        $region43: #{tpu_custom_call.1} parent=39 // pred_region
          %s330 = sand.u32 %s36, 1
          %s331 = scalar_lea.sflag [#allocation3], %s330
          %s332 = sand.u32 %s36, 1
          %s333 = smul.addr %s332, 16
          %s334 = scalar_lea.vmem [#allocation2], %s333
          %s335 = smul.u32 2, %s26
          %s337 = ssub.s32 256, 256
          %338 = vsyncadd %s331, %s337
          %s339 = smul.addr %s335, 128
          %s340 = scalar_lea.hbm %s0, %s339
          %s341 = sshll.u32 %s334, 4
          %s342 = int_to_ptr.vmem [resolvable:$true] %s341
          %347 = dma.hbm_to_vmem [thread:$0]  %s340, 256, %s342, %s331, 128, 128, 8
        $region44: #{tpu_custom_call.1} parent=39 // pred_fallthru
          _
        // Predicated region
        $region45: #{tpu_custom_call.1} parent=39 // pred_check
          %p348 = pneg %p72
        $region46: #{tpu_custom_call.1} parent=39 // pred_check_branch
          %350 = sbr.rel (%p348) target = $region48
        $region47: #{tpu_custom_call.1} parent=39 // pred_region
          %s351 = sand.u32 %s26, 1
          %s352 = scalar_lea.sflag [#allocation6], %s351
          %s353 = sand.u32 %s62, 1
          %s354 = smul.addr %s353, 16
          %s355 = scalar_lea.vmem [#allocation5], %s354
          %s356 = smul.u32 2, %s26
          %s358 = ssub.s32 256, 256
          %359 = vsyncadd %s352, %s358
          %s360 = smul.addr %s356, 128
          %s361 = scalar_lea.hbm %s1, %s360
          %s362 = sshll.u32 %s355, 4
          %s363 = int_to_ptr.vmem [resolvable:$true] %s362
          %368 = dma.hbm_to_vmem [thread:$0]  %s361, 256, %s363, %s352, 128, 128, 8
        $region48: #{tpu_custom_call.1} parent=39 // pred_fallthru
          _
      $region40: #{tpu_custom_call.1} parent=5 // pred_fallthru
        _
      %p369 = scmp.le.s32.totalorder 1, %s26
      %p370 = scmp.lt.s32.totalorder %s26, 3
      %p371 = pnand %p369, %p370
      %p372 = pneg %p371
      // Predicated region
      $region49: #{tpu_custom_call.1} parent=5 // pred_check
        _
      $region50: #{tpu_custom_call.1} parent=5 // pred_check_branch
        %374 = sbr.rel (%p371) target = $region52
      $region51: #{tpu_custom_call.1} parent=5 // pred_region
        %s375 = ssub.s32 %s26, 1
        %s376 = sand.u32 %s39, 1
        %s377 = scalar_lea.sflag [#allocation3], %s376
        %s378 = sand.u32 %s39, 1
        %s379 = smul.addr %s378, 16
        %s380 = scalar_lea.vmem [#allocation2], %s379
        // Predicated region
        $region53: #{tpu_custom_call.1} parent=51 // pred_check
          %p381 = pneg %p52
        $region54: #{tpu_custom_call.1} parent=51 // pred_check_branch
          %383 = sbr.rel (%p381) target = $region56
        $region55: #{tpu_custom_call.1} parent=51 // pred_region
          %384 = dma.done %s377, 256
        $region56: #{tpu_custom_call.1} parent=51 // pred_fallthru
          _
        %s385 = sand.u32 %s31, 1
        %s386 = scalar_lea.sflag [#allocation6], %s385
        %s387 = sand.u32 %s65, 1
        %s388 = smul.addr %s387, 16
        %s389 = scalar_lea.vmem [#allocation5], %s388
        // Predicated region
        $region57: #{tpu_custom_call.1} parent=51 // pred_check
          %p390 = pneg %p78
        $region58: #{tpu_custom_call.1} parent=51 // pred_check_branch
          %392 = sbr.rel (%p390) target = $region60
        $region59: #{tpu_custom_call.1} parent=51 // pred_region
          %393 = dma.done %s386, 256
        $region60: #{tpu_custom_call.1} parent=51 // pred_fallthru
          _
        // Predicated region
        $region61: #{tpu_custom_call.1} parent=51 // pred_check
          %p394 = pneg %p99
        $region62: #{tpu_custom_call.1} parent=51 // pred_check_branch
          %396 = sbr.rel (%p394) target = $region64
        $region63: #{tpu_custom_call.1} parent=51 // pred_region
          %397 = dma.done [#allocation6], 512
        $region64: #{tpu_custom_call.1} parent=51 // pred_fallthru
          _
        // Predicated region
        $region65: #{tpu_custom_call.1} parent=51 // pred_check
          %p398 = pneg %p120
        $region66: #{tpu_custom_call.1} parent=51 // pred_check_branch
          %400 = sbr.rel (%p398) target = $region68
        $region67: #{tpu_custom_call.1} parent=51 // pred_region
          %401 = dma.done [#allocation9], 512
        $region68: #{tpu_custom_call.1} parent=51 // pred_fallthru
          _
        // Predicated region
        $region69: #{tpu_custom_call.1} parent=51 // pred_check
          %p402 = pneg %p141
        $region70: #{tpu_custom_call.1} parent=51 // pred_check_branch
          %404 = sbr.rel (%p402) target = $region72
        $region71: #{tpu_custom_call.1} parent=51 // pred_region
          %405 = dma.done [#allocation9], 512
        $region72: #{tpu_custom_call.1} parent=51 // pred_fallthru
          _
        // Predicated region
        $region73: #{tpu_custom_call.1} parent=51 // pred_check
          %p406 = pneg %p162
        $region74: #{tpu_custom_call.1} parent=51 // pred_check_branch
          %408 = sbr.rel (%p406) target = $region76
        $region75: #{tpu_custom_call.1} parent=51 // pred_region
          %409 = dma.done [#allocation12], 512
        $region76: #{tpu_custom_call.1} parent=51 // pred_fallthru
          _
        // Predicated region
        $region77: #{tpu_custom_call.1} parent=51 // pred_check
          %p410 = pneg %p183
        $region78: #{tpu_custom_call.1} parent=51 // pred_check_branch
          %412 = sbr.rel (%p410) target = $region80
        $region79: #{tpu_custom_call.1} parent=51 // pred_region
          %413 = dma.done [#allocation12], 512
        $region80: #{tpu_custom_call.1} parent=51 // pred_fallthru
          _
        // Predicated region
        $region81: #{tpu_custom_call.1} parent=51 // pred_check
          %p414 = pneg %p204
        $region82: #{tpu_custom_call.1} parent=51 // pred_check_branch
          %416 = sbr.rel (%p414) target = $region84
        $region83: #{tpu_custom_call.1} parent=51 // pred_region
          %417 = dma.done [#allocation15], 512
        $region84: #{tpu_custom_call.1} parent=51 // pred_fallthru
          _
        %s418 = sand.u32 %s39, 1
        %s419 = scalar_lea.sflag [#allocation3], %s418
        %s420 = sand.u32 %s39, 1
        %s421 = smul.addr %s420, 16
        %s422 = scalar_lea.vmem [#allocation2], %s421
        %p423 = pneg %p52
        %p424 = pneg %p49
        %s425 = sand.u32 %s31, 1
        %s426 = scalar_lea.sflag [#allocation6], %s425
        %s427 = sand.u32 %s65, 1
        %s428 = smul.addr %s427, 16
        %s429 = scalar_lea.vmem [#allocation5], %s428
        %p430 = pneg %p78
        %p431 = pneg %p75
        %p432 = pneg %p99
        %p433 = pneg %p96
        %p434 = pneg %p120
        %p435 = pneg %p117
        %p436 = pneg %p141
        %p437 = pneg %p138
        %p438 = pneg %p162
        %p439 = pneg %p159
        %p440 = pneg %p183
        %p441 = pneg %p180
        %p442 = pneg %p204
        %p443 = pneg %p201
        %p444 = pneg %p230
        %p445 = pneg %p227
        %s446 = sand.u32 %s217, 1
        %s447 = scalar_lea.sflag [#allocation4], %s446
        %s448 = sand.u32 %s217, 1
        %s449 = smul.addr %s448, 16
        %s450 = scalar_lea.vmem [#allocation16], %s449
        %s451 = smul.u32 2, %s31
        %s452 = smul.u32 2, %s31
        %s453 = smul.u32 2, %s31
        %v454 = vld [vmem:[%s380] sm:$0xff]
        %v455 = vld [vmem:[%s380 + $0x8] sm:$0xff]
        %v456 = vld [vmem:[%s389] sm:$0xff]
        %v457 = vld [vmem:[%s389 + $0x8] sm:$0xff]
        %v461 = vunpack.c.l.s4 1983009808
        %v462 = vunpack.c.0.s8 %v461
        %v463 = vlaneseq
        %v464 = vshrl.u32 %v463, 7
        %v465 = vsub.s32 %v462, %v464
        %v466 = vrot.slane %v456, %v465
        %v467 = vcombine.high %v466, %v466
        %v469 = vunpack.c.l.s4 1983009808
        %v470 = vunpack.c.0.s8 %v469
        %v471 = vlaneseq
        %v472 = vshrl.u32 %v471, 7
        %v473 = vsub.s32 %v470, %v472
        %v474 = vrot.slane %v457, %v473
        %v475 = vcombine.high %v474, %v474
        %v476 = vld [vmem:[#allocation7] sm:$0xff]
        %v477 = vld [vmem:[#allocation7 + $0x8] sm:$0xff]
        %v478 = vld [vmem:[#allocation7 + $0x10] sm:$0xff]
        %v479 = vld [vmem:[#allocation7 + $0x18] sm:$0xff]
        %vm480 = vcmask 261120
        %v482 = vsel %vm480, %v454, 0
        %v485 = vsel %vm480, %v455, 0
        %487 = vmatprep.subr.mxu0 0.0
        %488 = vmatpush1.msra.mxu0 %v476
        %489 = vmatprep.subr.mxu0 0.0
        %490 = vmatpush1.msra.mxu0 %v477
        %491 = vmatprep.subr.mxu0 0.0
        %492 = vmatpush1.msra.mxu0 %v478
        %493 = vmatprep.subr.mxu0 0.0
        %494 = vmatpush1.msra.mxu0 %v479
        %495 = vmatprep.subr.mxu0 0.0
        %496 = vmatpush1.msra.mxu0 0.0
        %497 = vmatprep.subr.mxu0 0.0
        %498 = vmatpush1.msra.mxu0 0.0
        %499 = vmatprep.subr.mxu0 0.0
        %500 = vmatpush1.msra.mxu0 0.0
        %501 = vmatprep.subr.mxu0 0.0
        %502 = vmatpush1.msra.mxu0 0.0
        %503 = vmatprep.subr.mxu0 0.0
        %504 = vmatpush1.msra.mxu0 0.0
        %505 = vmatprep.subr.mxu0 0.0
        %506 = vmatpush1.msra.mxu0 0.0
        %507 = vmatprep.subr.mxu0 0.0
        %508 = vmatpush1.msra.mxu0 0.0
        %509 = vmatprep.subr.mxu0 0.0
        %510 = vmatpush1.msra.mxu0 0.0
        %511 = vmatprep.subr.mxu0 0.0
        %512 = vmatpush1.msra.mxu0 0.0
        %513 = vmatprep.subr.mxu0 0.0
        %514 = vmatpush1.msra.mxu0 0.0
        %515 = vmatprep.subr.mxu0 0.0
        %516 = vmatpush1.msra.mxu0 0.0
        %517 = vmatprep.subr.mxu0 0.0
        %518 = vmatpush1.msra.mxu0 0.0
        %519 = vmatprep.subr.mxu0 0.0
        %520 = vmatpush1.msra.mxu0 0.0
        %521 = vmatprep.subr.mxu0 0.0
        %522 = vmatpush1.msra.mxu0 0.0
        %523 = vmatprep.subr.mxu0 0.0
        %524 = vmatpush1.msra.mxu0 0.0
        %525 = vmatprep.subr.mxu0 0.0
        %526 = vmatpush1.msra.mxu0 0.0
        %527 = vmatprep.subr.mxu0 0.0
        %528 = vmatpush1.msra.mxu0 0.0
        %529 = vmatprep.subr.mxu0 0.0
        %530 = vmatpush1.msra.mxu0 0.0
        %531 = vmatprep.subr.mxu0 0.0
        %532 = vmatpush1.msra.mxu0 0.0
        %533 = vmatprep.subr.mxu0 0.0
        %534 = vmatpush1.msra.mxu0 0.0
        %535 = vmatprep.subr.mxu0 0.0
        %536 = vmatpush1.msra.mxu0 0.0
        %537 = vmatprep.subr.mxu0 0.0
        %538 = vmatpush1.msra.mxu0 0.0
        %539 = vmatprep.subr.mxu0 0.0
        %540 = vmatpush1.msra.mxu0 0.0
        %541 = vmatprep.subr.mxu0 0.0
        %542 = vmatpush1.msra.mxu0 0.0
        %543 = vmatprep.subr.mxu0 0.0
        %544 = vmatpush1.msra.mxu0 0.0
        %545 = vmatprep.subr.mxu0 0.0
        %546 = vmatpush1.msra.mxu0 0.0
        %547 = vmatprep.subr.mxu0 0.0
        %548 = vmatpush1.msra.mxu0 0.0
        %549 = vmatprep.subr.mxu0 0.0
        %550 = vmatpush1.msra.mxu0 0.0
        %551 = vmatprep.mubr.f32.mxu0 0.0
        %552 = vmatmul.mubr.f32.gmra.mrb[0].mxu0 %v482
        %v553 = vpop.f32.mrb[0].mxu0
        %v554 = vadd.f32 0.0, %v553
        %v555 = vpop.f32.mrb[0].mxu0
        %556 = vmatprep.mubr.f32.mxu0 0.0
        %557 = vmatmul.mubr.f32.gmra.mrb[0].mxu0 %v485
        %v558 = vpop.f32.mrb[0].mxu0
        %v559 = vadd.f32 0.0, %v558
        %v560 = vpop.f32.mrb[0].mxu0
        %561 = vdwg.mxu0
        %v562 = vld [vmem:[#allocation8] sm:$0xff]
        %v563 = vld [vmem:[#allocation8 + $0x8] sm:$0xff]
        %v564 = vld [vmem:[#allocation8 + $0x10] sm:$0xff]
        %v565 = vld [vmem:[#allocation8 + $0x18] sm:$0xff]
        %v566 = vsel %vm480, %v456, 0
        %v568 = vsel %vm480, %v457, 0
        %570 = vmatprep.subr.mxu0 0.0
        %571 = vmatpush1.msra.mxu0 %v562
        %572 = vmatprep.subr.mxu0 0.0
        %573 = vmatpush1.msra.mxu0 %v563
        %574 = vmatprep.subr.mxu0 0.0
        %575 = vmatpush1.msra.mxu0 %v564
        %576 = vmatprep.subr.mxu0 0.0
        %577 = vmatpush1.msra.mxu0 %v565
        %578 = vmatprep.subr.mxu0 0.0
        %579 = vmatpush1.msra.mxu0 0.0
        %580 = vmatprep.subr.mxu0 0.0
        %581 = vmatpush1.msra.mxu0 0.0
        %582 = vmatprep.subr.mxu0 0.0
        %583 = vmatpush1.msra.mxu0 0.0
        %584 = vmatprep.subr.mxu0 0.0
        %585 = vmatpush1.msra.mxu0 0.0
        %586 = vmatprep.subr.mxu0 0.0
        %587 = vmatpush1.msra.mxu0 0.0
        %588 = vmatprep.subr.mxu0 0.0
        %589 = vmatpush1.msra.mxu0 0.0
        %590 = vmatprep.subr.mxu0 0.0
        %591 = vmatpush1.msra.mxu0 0.0
        %592 = vmatprep.subr.mxu0 0.0
        %593 = vmatpush1.msra.mxu0 0.0
        %594 = vmatprep.subr.mxu0 0.0
        %595 = vmatpush1.msra.mxu0 0.0
        %596 = vmatprep.subr.mxu0 0.0
        %597 = vmatpush1.msra.mxu0 0.0
        %598 = vmatprep.subr.mxu0 0.0
        %599 = vmatpush1.msra.mxu0 0.0
        %600 = vmatprep.subr.mxu0 0.0
        %601 = vmatpush1.msra.mxu0 0.0
        %602 = vmatprep.subr.mxu0 0.0
        %603 = vmatpush1.msra.mxu0 0.0
        %604 = vmatprep.subr.mxu0 0.0
        %605 = vmatpush1.msra.mxu0 0.0
        %606 = vmatprep.subr.mxu0 0.0
        %607 = vmatpush1.msra.mxu0 0.0
        %608 = vmatprep.subr.mxu0 0.0
        %609 = vmatpush1.msra.mxu0 0.0
        %610 = vmatprep.subr.mxu0 0.0
        %611 = vmatpush1.msra.mxu0 0.0
        %612 = vmatprep.subr.mxu0 0.0
        %613 = vmatpush1.msra.mxu0 0.0
        %614 = vmatprep.subr.mxu0 0.0
        %615 = vmatpush1.msra.mxu0 0.0
        %616 = vmatprep.subr.mxu0 0.0
        %617 = vmatpush1.msra.mxu0 0.0
        %618 = vmatprep.subr.mxu0 0.0
        %619 = vmatpush1.msra.mxu0 0.0
        %620 = vmatprep.subr.mxu0 0.0
        %621 = vmatpush1.msra.mxu0 0.0
        %622 = vmatprep.subr.mxu0 0.0
        %623 = vmatpush1.msra.mxu0 0.0
        %624 = vmatprep.subr.mxu0 0.0
        %625 = vmatpush1.msra.mxu0 0.0
        %626 = vmatprep.subr.mxu0 0.0
        %627 = vmatpush1.msra.mxu0 0.0
        %628 = vmatprep.subr.mxu0 0.0
        %629 = vmatpush1.msra.mxu0 0.0
        %630 = vmatprep.subr.mxu0 0.0
        %631 = vmatpush1.msra.mxu0 0.0
        %632 = vmatprep.subr.mxu0 0.0
        %633 = vmatpush1.msra.mxu0 0.0
        %634 = vmatprep.mubr.f32.mxu0 0.0
        %635 = vmatmul.mubr.f32.gmra.mrb[0].mxu0 %v566
        %v636 = vpop.f32.mrb[0].mxu0
        %v637 = vadd.f32 0.0, %v636
        %v638 = vpop.f32.mrb[0].mxu0
        %639 = vmatprep.mubr.f32.mxu0 0.0
        %640 = vmatmul.mubr.f32.gmra.mrb[0].mxu0 %v568
        %v641 = vpop.f32.mrb[0].mxu0
        %v642 = vadd.f32 0.0, %v641
        %v643 = vpop.f32.mrb[0].mxu0
        %644 = vdwg.mxu0
        %v645 = vld [vmem:[#allocation10] sm:$0xff]
        %v646 = vld [vmem:[#allocation10 + $0x8] sm:$0xff]
        %v647 = vld [vmem:[#allocation10 + $0x10] sm:$0xff]
        %v648 = vld [vmem:[#allocation10 + $0x18] sm:$0xff]
        %649 = vmatprep.subr.mxu0 0.0
        %650 = vmatpush1.msra.mxu0 %v645
        %651 = vmatprep.subr.mxu0 0.0
        %652 = vmatpush1.msra.mxu0 %v646
        %653 = vmatprep.subr.mxu0 0.0
        %654 = vmatpush1.msra.mxu0 %v647
        %655 = vmatprep.subr.mxu0 0.0
        %656 = vmatpush1.msra.mxu0 %v648
        %657 = vmatprep.subr.mxu0 0.0
        %658 = vmatpush1.msra.mxu0 0.0
        %659 = vmatprep.subr.mxu0 0.0
        %660 = vmatpush1.msra.mxu0 0.0
        %661 = vmatprep.subr.mxu0 0.0
        %662 = vmatpush1.msra.mxu0 0.0
        %663 = vmatprep.subr.mxu0 0.0
        %664 = vmatpush1.msra.mxu0 0.0
        %665 = vmatprep.subr.mxu0 0.0
        %666 = vmatpush1.msra.mxu0 0.0
        %667 = vmatprep.subr.mxu0 0.0
        %668 = vmatpush1.msra.mxu0 0.0
        %669 = vmatprep.subr.mxu0 0.0
        %670 = vmatpush1.msra.mxu0 0.0
        %671 = vmatprep.subr.mxu0 0.0
        %672 = vmatpush1.msra.mxu0 0.0
        %673 = vmatprep.subr.mxu0 0.0
        %674 = vmatpush1.msra.mxu0 0.0
        %675 = vmatprep.subr.mxu0 0.0
        %676 = vmatpush1.msra.mxu0 0.0
        %677 = vmatprep.subr.mxu0 0.0
        %678 = vmatpush1.msra.mxu0 0.0
        %679 = vmatprep.subr.mxu0 0.0
        %680 = vmatpush1.msra.mxu0 0.0
        %681 = vmatprep.subr.mxu0 0.0
        %682 = vmatpush1.msra.mxu0 0.0
        %683 = vmatprep.subr.mxu0 0.0
        %684 = vmatpush1.msra.mxu0 0.0
        %685 = vmatprep.subr.mxu0 0.0
        %686 = vmatpush1.msra.mxu0 0.0
        %687 = vmatprep.subr.mxu0 0.0
        %688 = vmatpush1.msra.mxu0 0.0
        %689 = vmatprep.subr.mxu0 0.0
        %690 = vmatpush1.msra.mxu0 0.0
        %691 = vmatprep.subr.mxu0 0.0
        %692 = vmatpush1.msra.mxu0 0.0
        %693 = vmatprep.subr.mxu0 0.0
        %694 = vmatpush1.msra.mxu0 0.0
        %695 = vmatprep.subr.mxu0 0.0
        %696 = vmatpush1.msra.mxu0 0.0
        %697 = vmatprep.subr.mxu0 0.0
        %698 = vmatpush1.msra.mxu0 0.0
        %699 = vmatprep.subr.mxu0 0.0
        %700 = vmatpush1.msra.mxu0 0.0
        %701 = vmatprep.subr.mxu0 0.0
        %702 = vmatpush1.msra.mxu0 0.0
        %703 = vmatprep.subr.mxu0 0.0
        %704 = vmatpush1.msra.mxu0 0.0
        %705 = vmatprep.subr.mxu0 0.0
        %706 = vmatpush1.msra.mxu0 0.0
        %707 = vmatprep.subr.mxu0 0.0
        %708 = vmatpush1.msra.mxu0 0.0
        %709 = vmatprep.subr.mxu0 0.0
        %710 = vmatpush1.msra.mxu0 0.0
        %711 = vmatprep.subr.mxu0 0.0
        %712 = vmatpush1.msra.mxu0 0.0
        %713 = vmatprep.mubr.f32.mxu0 0.0
        %714 = vmatmul.mubr.f32.gmra.mrb[0].mxu0 %v566
        %v715 = vpop.f32.mrb[0].mxu0
        %v716 = vadd.f32 0.0, %v715
        %v717 = vpop.f32.mrb[0].mxu0
        %718 = vmatprep.mubr.f32.mxu0 0.0
        %719 = vmatmul.mubr.f32.gmra.mrb[0].mxu0 %v568
        %v720 = vpop.f32.mrb[0].mxu0
        %v721 = vadd.f32 0.0, %v720
        %v722 = vpop.f32.mrb[0].mxu0
        %723 = vdwg.mxu0
        %v724 = vld [vmem:[#allocation11] sm:$0xff]
        %v725 = vld [vmem:[#allocation11 + $0x8] sm:$0xff]
        %v726 = vld [vmem:[#allocation11 + $0x10] sm:$0xff]
        %v727 = vld [vmem:[#allocation11 + $0x18] sm:$0xff]
        %v728 = vcombine.low %v456, %v457
        %v730 = vunpack.c.l.s4 1983009808
        %v731 = vunpack.c.0.s8 %v730
        %v732 = vlaneseq
        %v733 = vshrl.u32 %v732, 7
        %v734 = vsub.s32 %v731, %v733
        %v735 = vrot.slane %v728, %v734
        %v736 = vsel %vm480, %v735, 0
        %738 = vmatprep.subr.mxu0 0.0
        %739 = vmatpush1.msra.mxu0 %v724
        %740 = vmatprep.subr.mxu0 0.0
        %741 = vmatpush1.msra.mxu0 %v725
        %742 = vmatprep.subr.mxu0 0.0
        %743 = vmatpush1.msra.mxu0 %v726
        %744 = vmatprep.subr.mxu0 0.0
        %745 = vmatpush1.msra.mxu0 %v727
        %746 = vmatprep.subr.mxu0 0.0
        %747 = vmatpush1.msra.mxu0 0.0
        %748 = vmatprep.subr.mxu0 0.0
        %749 = vmatpush1.msra.mxu0 0.0
        %750 = vmatprep.subr.mxu0 0.0
        %751 = vmatpush1.msra.mxu0 0.0
        %752 = vmatprep.subr.mxu0 0.0
        %753 = vmatpush1.msra.mxu0 0.0
        %754 = vmatprep.subr.mxu0 0.0
        %755 = vmatpush1.msra.mxu0 0.0
        %756 = vmatprep.subr.mxu0 0.0
        %757 = vmatpush1.msra.mxu0 0.0
        %758 = vmatprep.subr.mxu0 0.0
        %759 = vmatpush1.msra.mxu0 0.0
        %760 = vmatprep.subr.mxu0 0.0
        %761 = vmatpush1.msra.mxu0 0.0
        %762 = vmatprep.subr.mxu0 0.0
        %763 = vmatpush1.msra.mxu0 0.0
        %764 = vmatprep.subr.mxu0 0.0
        %765 = vmatpush1.msra.mxu0 0.0
        %766 = vmatprep.subr.mxu0 0.0
        %767 = vmatpush1.msra.mxu0 0.0
        %768 = vmatprep.subr.mxu0 0.0
        %769 = vmatpush1.msra.mxu0 0.0
        %770 = vmatprep.subr.mxu0 0.0
        %771 = vmatpush1.msra.mxu0 0.0
        %772 = vmatprep.subr.mxu0 0.0
        %773 = vmatpush1.msra.mxu0 0.0
        %774 = vmatprep.subr.mxu0 0.0
        %775 = vmatpush1.msra.mxu0 0.0
        %776 = vmatprep.subr.mxu0 0.0
        %777 = vmatpush1.msra.mxu0 0.0
        %778 = vmatprep.subr.mxu0 0.0
        %779 = vmatpush1.msra.mxu0 0.0
        %780 = vmatprep.subr.mxu0 0.0
        %781 = vmatpush1.msra.mxu0 0.0
        %782 = vmatprep.subr.mxu0 0.0
        %783 = vmatpush1.msra.mxu0 0.0
        %784 = vmatprep.subr.mxu0 0.0
        %785 = vmatpush1.msra.mxu0 0.0
        %786 = vmatprep.subr.mxu0 0.0
        %787 = vmatpush1.msra.mxu0 0.0
        %788 = vmatprep.subr.mxu0 0.0
        %789 = vmatpush1.msra.mxu0 0.0
        %790 = vmatprep.subr.mxu0 0.0
        %791 = vmatpush1.msra.mxu0 0.0
        %792 = vmatprep.subr.mxu0 0.0
        %793 = vmatpush1.msra.mxu0 0.0
        %794 = vmatprep.subr.mxu0 0.0
        %795 = vmatpush1.msra.mxu0 0.0
        %796 = vmatprep.subr.mxu0 0.0
        %797 = vmatpush1.msra.mxu0 0.0
        %798 = vmatprep.subr.mxu0 0.0
        %799 = vmatpush1.msra.mxu0 0.0
        %800 = vmatprep.subr.mxu0 0.0
        %801 = vmatpush1.msra.mxu0 0.0
        %802 = vmatprep.mubr.f32.mxu0 0.0
        %803 = vmatmul.mubr.f32.gmra.mrb[0].mxu0 %v736
        %v804 = vpop.f32.mrb[0].mxu0
        %v805 = vadd.f32 0.0, %v804
        %v806 = vpop.f32.mrb[0].mxu0
        %807 = vdwg.mxu0
        %v808 = vld [vmem:[#allocation13] sm:$0xff]
        %v809 = vld [vmem:[#allocation13 + $0x8] sm:$0xff]
        %v810 = vld [vmem:[#allocation13 + $0x10] sm:$0xff]
        %v811 = vld [vmem:[#allocation13 + $0x18] sm:$0xff]
        %v812 = vcombine.low %v467, %v475
        %v814 = vunpack.c.l.s4 1983009808
        %v815 = vunpack.c.0.s8 %v814
        %v816 = vlaneseq
        %v817 = vshrl.u32 %v816, 7
        %v818 = vsub.s32 %v815, %v817
        %v819 = vrot.slane %v812, %v818
        %v820 = vsel %vm480, %v819, 0
        %822 = vmatprep.subr.mxu0 0.0
        %823 = vmatpush1.msra.mxu0 %v808
        %824 = vmatprep.subr.mxu0 0.0
        %825 = vmatpush1.msra.mxu0 %v809
        %826 = vmatprep.subr.mxu0 0.0
        %827 = vmatpush1.msra.mxu0 %v810
        %828 = vmatprep.subr.mxu0 0.0
        %829 = vmatpush1.msra.mxu0 %v811
        %830 = vmatprep.subr.mxu0 0.0
        %831 = vmatpush1.msra.mxu0 0.0
        %832 = vmatprep.subr.mxu0 0.0
        %833 = vmatpush1.msra.mxu0 0.0
        %834 = vmatprep.subr.mxu0 0.0
        %835 = vmatpush1.msra.mxu0 0.0
        %836 = vmatprep.subr.mxu0 0.0
        %837 = vmatpush1.msra.mxu0 0.0
        %838 = vmatprep.subr.mxu0 0.0
        %839 = vmatpush1.msra.mxu0 0.0
        %840 = vmatprep.subr.mxu0 0.0
        %841 = vmatpush1.msra.mxu0 0.0
        %842 = vmatprep.subr.mxu0 0.0
        %843 = vmatpush1.msra.mxu0 0.0
        %844 = vmatprep.subr.mxu0 0.0
        %845 = vmatpush1.msra.mxu0 0.0
        %846 = vmatprep.subr.mxu0 0.0
        %847 = vmatpush1.msra.mxu0 0.0
        %848 = vmatprep.subr.mxu0 0.0
        %849 = vmatpush1.msra.mxu0 0.0
        %850 = vmatprep.subr.mxu0 0.0
        %851 = vmatpush1.msra.mxu0 0.0
        %852 = vmatprep.subr.mxu0 0.0
        %853 = vmatpush1.msra.mxu0 0.0
        %854 = vmatprep.subr.mxu0 0.0
        %855 = vmatpush1.msra.mxu0 0.0
        %856 = vmatprep.subr.mxu0 0.0
        %857 = vmatpush1.msra.mxu0 0.0
        %858 = vmatprep.subr.mxu0 0.0
        %859 = vmatpush1.msra.mxu0 0.0
        %860 = vmatprep.subr.mxu0 0.0
        %861 = vmatpush1.msra.mxu0 0.0
        %862 = vmatprep.subr.mxu0 0.0
        %863 = vmatpush1.msra.mxu0 0.0
        %864 = vmatprep.subr.mxu0 0.0
        %865 = vmatpush1.msra.mxu0 0.0
        %866 = vmatprep.subr.mxu0 0.0
        %867 = vmatpush1.msra.mxu0 0.0
        %868 = vmatprep.subr.mxu0 0.0
        %869 = vmatpush1.msra.mxu0 0.0
        %870 = vmatprep.subr.mxu0 0.0
        %871 = vmatpush1.msra.mxu0 0.0
        %872 = vmatprep.subr.mxu0 0.0
        %873 = vmatpush1.msra.mxu0 0.0
        %874 = vmatprep.subr.mxu0 0.0
        %875 = vmatpush1.msra.mxu0 0.0
        %876 = vmatprep.subr.mxu0 0.0
        %877 = vmatpush1.msra.mxu0 0.0
        %878 = vmatprep.subr.mxu0 0.0
        %879 = vmatpush1.msra.mxu0 0.0
        %880 = vmatprep.subr.mxu0 0.0
        %881 = vmatpush1.msra.mxu0 0.0
        %882 = vmatprep.subr.mxu0 0.0
        %883 = vmatpush1.msra.mxu0 0.0
        %884 = vmatprep.subr.mxu0 0.0
        %885 = vmatpush1.msra.mxu0 0.0
        %886 = vmatprep.mubr.f32.mxu0 0.0
        %887 = vmatmul.mubr.f32.gmra.mrb[0].mxu0 %v820
        %v888 = vpop.f32.mrb[0].mxu0
        %v889 = vadd.f32 0.0, %v888
        %v890 = vpop.f32.mrb[0].mxu0
        %891 = vdwg.mxu0
        %894 = vrot.lane.b32.xlu0 %v554, 120
        %v895 = vpop.permute.xlu0 %894
        %896 = vrot.lane.b32.xlu0 %v559, 120
        %v897 = vpop.permute.xlu0 %896
        %898 = vrot.lane.b32.xlu0 %v554, 112
        %v899 = vpop.permute.xlu0 %898
        %900 = vrot.lane.b32.xlu0 %v559, 112
        %v901 = vpop.permute.xlu0 %900
        %902 = vrot.lane.b32.xlu0 %v554, 104
        %v903 = vpop.permute.xlu0 %902
        %904 = vrot.lane.b32.xlu0 %v559, 104
        %v905 = vpop.permute.xlu0 %904
        %908 = vrot.lane.b32.xlu0 %v637, 120
        %v909 = vpop.permute.xlu0 %908
        %910 = vrot.lane.b32.xlu0 %v642, 120
        %v911 = vpop.permute.xlu0 %910
        %914 = vrot.lane.b32.xlu0 %v637, 112
        %v915 = vpop.permute.xlu0 %914
        %916 = vrot.lane.b32.xlu0 %v642, 112
        %v917 = vpop.permute.xlu0 %916
        %920 = vrot.lane.b32.xlu0 %v637, 104
        %v921 = vpop.permute.xlu0 %920
        %922 = vrot.lane.b32.xlu0 %v642, 104
        %v923 = vpop.permute.xlu0 %922
        %928 = vrot.lane.b32.xlu0 %v716, 120
        %v929 = vpop.permute.xlu0 %928
        %930 = vrot.lane.b32.xlu0 %v721, 120
        %v931 = vpop.permute.xlu0 %930
        %934 = vrot.lane.b32.xlu0 %v716, 112
        %v935 = vpop.permute.xlu0 %934
        %936 = vrot.lane.b32.xlu0 %v721, 112
        %v937 = vpop.permute.xlu0 %936
        %940 = vrot.lane.b32.xlu0 %v716, 104
        %v941 = vpop.permute.xlu0 %940
        %942 = vrot.lane.b32.xlu0 %v721, 104
        %v943 = vpop.permute.xlu0 %942
        %v948 = vunpack.c.l.s4 1983009808
        %v949 = vunpack.c.0.s8 %v948
        %v950 = vlaneseq
        %v951 = vshrl.u32 %v950, 7
        %v952 = vsub.s32 %v949, %v951
        %v953 = vrot.slane %v805, %v952
        %v954 = vcombine.high %v953, %v953
        %957 = vrot.lane.b32.xlu0 %v953, 120
        %v958 = vpop.permute.xlu0 %957
        %959 = vrot.lane.b32.xlu0 %v954, 120
        %v960 = vpop.permute.xlu0 %959
        %963 = vrot.lane.b32.xlu0 %v953, 112
        %v964 = vpop.permute.xlu0 %963
        %965 = vrot.lane.b32.xlu0 %v954, 112
        %v966 = vpop.permute.xlu0 %965
        %969 = vrot.lane.b32.xlu0 %v953, 104
        %v970 = vpop.permute.xlu0 %969
        %971 = vrot.lane.b32.xlu0 %v954, 104
        %v972 = vpop.permute.xlu0 %971
        %v977 = vunpack.c.l.s4 1983009808
        %v978 = vunpack.c.0.s8 %v977
        %v979 = vlaneseq
        %v980 = vshrl.u32 %v979, 7
        %v981 = vsub.s32 %v978, %v980
        %v982 = vrot.slane %v889, %v981
        %v983 = vcombine.high %v982, %v982
        %986 = vrot.lane.b32.xlu0 %v982, 120
        %v987 = vpop.permute.xlu0 %986
        %988 = vrot.lane.b32.xlu0 %v983, 120
        %v989 = vpop.permute.xlu0 %988
        %992 = vrot.lane.b32.xlu0 %v982, 112
        %v993 = vpop.permute.xlu0 %992
        %994 = vrot.lane.b32.xlu0 %v983, 112
        %v995 = vpop.permute.xlu0 %994
        %998 = vrot.lane.b32.xlu0 %v982, 104
        %v999 = vpop.permute.xlu0 %998
        %1000 = vrot.lane.b32.xlu0 %v983, 104
        %v1001 = vpop.permute.xlu0 %1000
        %vm1004 = vcmask 64512
        %v1005 = vsel %vm1004, %v554, 0
        %v1007 = vsel %vm1004, %v637, 0
        %1009 = vmatprep.subr.mxu0 0.0
        %1010 = vmatpush1.xpose.msra.mxu0 %v1007
        %1011 = vmatprep.subr.mxu0 0.0
        %1012 = vmatpush1.xpose.msra.mxu0 0.0
        %1013 = vmatprep.subr.mxu0 0.0
        %1014 = vmatpush1.xpose.msra.mxu0 0.0
        %1015 = vmatprep.subr.mxu0 0.0
        %1016 = vmatpush1.xpose.msra.mxu0 0.0
        %1017 = vmatprep.subr.mxu0 0.0
        %1018 = vmatpush1.xpose.msra.mxu0 0.0
        %1019 = vmatprep.subr.mxu0 0.0
        %1020 = vmatpush1.xpose.msra.mxu0 0.0
        %1021 = vmatprep.subr.mxu0 0.0
        %1022 = vmatpush1.xpose.msra.mxu0 0.0
        %1023 = vmatprep.subr.mxu0 0.0
        %1024 = vmatpush1.xpose.msra.mxu0 0.0
        %1025 = vmatprep.subr.mxu0 0.0
        %1026 = vmatpush1.xpose.msra.mxu0 0.0
        %1027 = vmatprep.subr.mxu0 0.0
        %1028 = vmatpush1.xpose.msra.mxu0 0.0
        %1029 = vmatprep.subr.mxu0 0.0
        %1030 = vmatpush1.xpose.msra.mxu0 0.0
        %1031 = vmatprep.subr.mxu0 0.0
        %1032 = vmatpush1.xpose.msra.mxu0 0.0
        %1033 = vmatprep.subr.mxu0 0.0
        %1034 = vmatpush1.xpose.msra.mxu0 0.0
        %1035 = vmatprep.subr.mxu0 0.0
        %1036 = vmatpush1.xpose.msra.mxu0 0.0
        %1037 = vmatprep.subr.mxu0 0.0
        %1038 = vmatpush1.xpose.msra.mxu0 0.0
        %1039 = vmatprep.subr.mxu0 0.0
        %1040 = vmatpush1.xpose.msra.mxu0 0.0
        %1041 = vmatprep.subr.mxu0 0.0
        %1042 = vmatpush1.xpose.msra.mxu0 0.0
        %1043 = vmatprep.subr.mxu0 0.0
        %1044 = vmatpush1.xpose.msra.mxu0 0.0
        %1045 = vmatprep.subr.mxu0 0.0
        %1046 = vmatpush1.xpose.msra.mxu0 0.0
        %1047 = vmatprep.subr.mxu0 0.0
        %1048 = vmatpush1.xpose.msra.mxu0 0.0
        %1049 = vmatprep.subr.mxu0 0.0
        %1050 = vmatpush1.xpose.msra.mxu0 0.0
        %1051 = vmatprep.subr.mxu0 0.0
        %1052 = vmatpush1.xpose.msra.mxu0 0.0
        %1053 = vmatprep.subr.mxu0 0.0
        %1054 = vmatpush1.xpose.msra.mxu0 0.0
        %1055 = vmatprep.subr.mxu0 0.0
        %1056 = vmatpush1.xpose.msra.mxu0 0.0
        %1057 = vmatprep.subr.mxu0 0.0
        %1058 = vmatpush1.xpose.msra.mxu0 0.0
        %1059 = vmatprep.subr.mxu0 0.0
        %1060 = vmatpush1.xpose.msra.mxu0 0.0
        %1061 = vmatprep.subr.mxu0 0.0
        %1062 = vmatpush1.xpose.msra.mxu0 0.0
        %1063 = vmatprep.subr.mxu0 0.0
        %1064 = vmatpush1.xpose.msra.mxu0 0.0
        %1065 = vmatprep.subr.mxu0 0.0
        %1066 = vmatpush1.xpose.msra.mxu0 0.0
        %1067 = vmatprep.subr.mxu0 0.0
        %1068 = vmatpush1.xpose.msra.mxu0 0.0
        %1069 = vmatprep.subr.mxu0 0.0
        %1070 = vmatpush1.xpose.msra.mxu0 0.0
        %1071 = vmatprep.subr.mxu0 0.0
        %1072 = vmatpush1.xpose.msra.mxu0 0.0
        %1073 = vmatprep.mubr.f32.mxu0 0.0
        %1074 = vmatmul.mubr.f32.gmra.mrb[0].mxu0 %v1005
        %v1075 = vpop.f32.mrb[0].mxu0
        %v1076 = vadd.f32 0.0, %v1075
        %v1077 = vpop.f32.mrb[0].mxu0
        %1078 = vdwg.mxu0
        %v1079 = vsel %vm1004, %v559, 0
        %v1081 = vsel %vm1004, %v642, 0
        %1083 = vmatprep.subr.mxu0 0.0
        %1084 = vmatpush1.xpose.msra.mxu0 %v1081
        %1085 = vmatprep.subr.mxu0 0.0
        %1086 = vmatpush1.xpose.msra.mxu0 0.0
        %1087 = vmatprep.subr.mxu0 0.0
        %1088 = vmatpush1.xpose.msra.mxu0 0.0
        %1089 = vmatprep.subr.mxu0 0.0
        %1090 = vmatpush1.xpose.msra.mxu0 0.0
        %1091 = vmatprep.subr.mxu0 0.0
        %1092 = vmatpush1.xpose.msra.mxu0 0.0
        %1093 = vmatprep.subr.mxu0 0.0
        %1094 = vmatpush1.xpose.msra.mxu0 0.0
        %1095 = vmatprep.subr.mxu0 0.0
        %1096 = vmatpush1.xpose.msra.mxu0 0.0
        %1097 = vmatprep.subr.mxu0 0.0
        %1098 = vmatpush1.xpose.msra.mxu0 0.0
        %1099 = vmatprep.subr.mxu0 0.0
        %1100 = vmatpush1.xpose.msra.mxu0 0.0
        %1101 = vmatprep.subr.mxu0 0.0
        %1102 = vmatpush1.xpose.msra.mxu0 0.0
        %1103 = vmatprep.subr.mxu0 0.0
        %1104 = vmatpush1.xpose.msra.mxu0 0.0
        %1105 = vmatprep.subr.mxu0 0.0
        %1106 = vmatpush1.xpose.msra.mxu0 0.0
        %1107 = vmatprep.subr.mxu0 0.0
        %1108 = vmatpush1.xpose.msra.mxu0 0.0
        %1109 = vmatprep.subr.mxu0 0.0
        %1110 = vmatpush1.xpose.msra.mxu0 0.0
        %1111 = vmatprep.subr.mxu0 0.0
        %1112 = vmatpush1.xpose.msra.mxu0 0.0
        %1113 = vmatprep.subr.mxu0 0.0
        %1114 = vmatpush1.xpose.msra.mxu0 0.0
        %1115 = vmatprep.subr.mxu0 0.0
        %1116 = vmatpush1.xpose.msra.mxu0 0.0
        %1117 = vmatprep.subr.mxu0 0.0
        %1118 = vmatpush1.xpose.msra.mxu0 0.0
        %1119 = vmatprep.subr.mxu0 0.0
        %1120 = vmatpush1.xpose.msra.mxu0 0.0
        %1121 = vmatprep.subr.mxu0 0.0
        %1122 = vmatpush1.xpose.msra.mxu0 0.0
        %1123 = vmatprep.subr.mxu0 0.0
        %1124 = vmatpush1.xpose.msra.mxu0 0.0
        %1125 = vmatprep.subr.mxu0 0.0
        %1126 = vmatpush1.xpose.msra.mxu0 0.0
        %1127 = vmatprep.subr.mxu0 0.0
        %1128 = vmatpush1.xpose.msra.mxu0 0.0
        %1129 = vmatprep.subr.mxu0 0.0
        %1130 = vmatpush1.xpose.msra.mxu0 0.0
        %1131 = vmatprep.subr.mxu0 0.0
        %1132 = vmatpush1.xpose.msra.mxu0 0.0
        %1133 = vmatprep.subr.mxu0 0.0
        %1134 = vmatpush1.xpose.msra.mxu0 0.0
        %1135 = vmatprep.subr.mxu0 0.0
        %1136 = vmatpush1.xpose.msra.mxu0 0.0
        %1137 = vmatprep.subr.mxu0 0.0
        %1138 = vmatpush1.xpose.msra.mxu0 0.0
        %1139 = vmatprep.subr.mxu0 0.0
        %1140 = vmatpush1.xpose.msra.mxu0 0.0
        %1141 = vmatprep.subr.mxu0 0.0
        %1142 = vmatpush1.xpose.msra.mxu0 0.0
        %1143 = vmatprep.subr.mxu0 0.0
        %1144 = vmatpush1.xpose.msra.mxu0 0.0
        %1145 = vmatprep.subr.mxu0 0.0
        %1146 = vmatpush1.xpose.msra.mxu0 0.0
        %1147 = vmatprep.mubr.f32.mxu0 0.0
        %1148 = vmatmul.mubr.f32.gmra.mrb[0].mxu0 %v1079
        %v1149 = vpop.f32.mrb[0].mxu0
        %v1150 = vadd.f32 0.0, %v1149
        %v1151 = vpop.f32.mrb[0].mxu0
        %1152 = vdwg.mxu0
        %v1153 = vsel %vm1004, %v895, 0
        %v1155 = vsel %vm1004, %v909, 0
        %1157 = vmatprep.subr.mxu0 0.0
        %1158 = vmatpush1.xpose.msra.mxu0 %v1155
        %1159 = vmatprep.subr.mxu0 0.0
        %1160 = vmatpush1.xpose.msra.mxu0 0.0
        %1161 = vmatprep.subr.mxu0 0.0
        %1162 = vmatpush1.xpose.msra.mxu0 0.0
        %1163 = vmatprep.subr.mxu0 0.0
        %1164 = vmatpush1.xpose.msra.mxu0 0.0
        %1165 = vmatprep.subr.mxu0 0.0
        %1166 = vmatpush1.xpose.msra.mxu0 0.0
        %1167 = vmatprep.subr.mxu0 0.0
        %1168 = vmatpush1.xpose.msra.mxu0 0.0
        %1169 = vmatprep.subr.mxu0 0.0
        %1170 = vmatpush1.xpose.msra.mxu0 0.0
        %1171 = vmatprep.subr.mxu0 0.0
        %1172 = vmatpush1.xpose.msra.mxu0 0.0
        %1173 = vmatprep.subr.mxu0 0.0
        %1174 = vmatpush1.xpose.msra.mxu0 0.0
        %1175 = vmatprep.subr.mxu0 0.0
        %1176 = vmatpush1.xpose.msra.mxu0 0.0
        %1177 = vmatprep.subr.mxu0 0.0
        %1178 = vmatpush1.xpose.msra.mxu0 0.0
        %1179 = vmatprep.subr.mxu0 0.0
        %1180 = vmatpush1.xpose.msra.mxu0 0.0
        %1181 = vmatprep.subr.mxu0 0.0
        %1182 = vmatpush1.xpose.msra.mxu0 0.0
        %1183 = vmatprep.subr.mxu0 0.0
        %1184 = vmatpush1.xpose.msra.mxu0 0.0
        %1185 = vmatprep.subr.mxu0 0.0
        %1186 = vmatpush1.xpose.msra.mxu0 0.0
        %1187 = vmatprep.subr.mxu0 0.0
        %1188 = vmatpush1.xpose.msra.mxu0 0.0
        %1189 = vmatprep.subr.mxu0 0.0
        %1190 = vmatpush1.xpose.msra.mxu0 0.0
        %1191 = vmatprep.subr.mxu0 0.0
        %1192 = vmatpush1.xpose.msra.mxu0 0.0
        %1193 = vmatprep.subr.mxu0 0.0
        %1194 = vmatpush1.xpose.msra.mxu0 0.0
        %1195 = vmatprep.subr.mxu0 0.0
        %1196 = vmatpush1.xpose.msra.mxu0 0.0
        %1197 = vmatprep.subr.mxu0 0.0
        %1198 = vmatpush1.xpose.msra.mxu0 0.0
        %1199 = vmatprep.subr.mxu0 0.0
        %1200 = vmatpush1.xpose.msra.mxu0 0.0
        %1201 = vmatprep.subr.mxu0 0.0
        %1202 = vmatpush1.xpose.msra.mxu0 0.0
        %1203 = vmatprep.subr.mxu0 0.0
        %1204 = vmatpush1.xpose.msra.mxu0 0.0
        %1205 = vmatprep.subr.mxu0 0.0
        %1206 = vmatpush1.xpose.msra.mxu0 0.0
        %1207 = vmatprep.subr.mxu0 0.0
        %1208 = vmatpush1.xpose.msra.mxu0 0.0
        %1209 = vmatprep.subr.mxu0 0.0
        %1210 = vmatpush1.xpose.msra.mxu0 0.0
        %1211 = vmatprep.subr.mxu0 0.0
        %1212 = vmatpush1.xpose.msra.mxu0 0.0
        %1213 = vmatprep.subr.mxu0 0.0
        %1214 = vmatpush1.xpose.msra.mxu0 0.0
        %1215 = vmatprep.subr.mxu0 0.0
        %1216 = vmatpush1.xpose.msra.mxu0 0.0
        %1217 = vmatprep.subr.mxu0 0.0
        %1218 = vmatpush1.xpose.msra.mxu0 0.0
        %1219 = vmatprep.subr.mxu0 0.0
        %1220 = vmatpush1.xpose.msra.mxu0 0.0
        %1221 = vmatprep.mubr.f32.mxu0 0.0
        %1222 = vmatmul.mubr.f32.gmra.mrb[0].mxu0 %v1153
        %v1223 = vpop.f32.mrb[0].mxu0
        %v1224 = vadd.f32 0.0, %v1223
        %v1225 = vpop.f32.mrb[0].mxu0
        %1226 = vdwg.mxu0
        %v1227 = vsel %vm1004, %v897, 0
        %v1229 = vsel %vm1004, %v911, 0
        %1231 = vmatprep.subr.mxu0 0.0
        %1232 = vmatpush1.xpose.msra.mxu0 %v1229
        %1233 = vmatprep.subr.mxu0 0.0
        %1234 = vmatpush1.xpose.msra.mxu0 0.0
        %1235 = vmatprep.subr.mxu0 0.0
        %1236 = vmatpush1.xpose.msra.mxu0 0.0
        %1237 = vmatprep.subr.mxu0 0.0
        %1238 = vmatpush1.xpose.msra.mxu0 0.0
        %1239 = vmatprep.subr.mxu0 0.0
        %1240 = vmatpush1.xpose.msra.mxu0 0.0
        %1241 = vmatprep.subr.mxu0 0.0
        %1242 = vmatpush1.xpose.msra.mxu0 0.0
        %1243 = vmatprep.subr.mxu0 0.0
        %1244 = vmatpush1.xpose.msra.mxu0 0.0
        %1245 = vmatprep.subr.mxu0 0.0
        %1246 = vmatpush1.xpose.msra.mxu0 0.0
        %1247 = vmatprep.subr.mxu0 0.0
        %1248 = vmatpush1.xpose.msra.mxu0 0.0
        %1249 = vmatprep.subr.mxu0 0.0
        %1250 = vmatpush1.xpose.msra.mxu0 0.0
        %1251 = vmatprep.subr.mxu0 0.0
        %1252 = vmatpush1.xpose.msra.mxu0 0.0
        %1253 = vmatprep.subr.mxu0 0.0
        %1254 = vmatpush1.xpose.msra.mxu0 0.0
        %1255 = vmatprep.subr.mxu0 0.0
        %1256 = vmatpush1.xpose.msra.mxu0 0.0
        %1257 = vmatprep.subr.mxu0 0.0
        %1258 = vmatpush1.xpose.msra.mxu0 0.0
        %1259 = vmatprep.subr.mxu0 0.0
        %1260 = vmatpush1.xpose.msra.mxu0 0.0
        %1261 = vmatprep.subr.mxu0 0.0
        %1262 = vmatpush1.xpose.msra.mxu0 0.0
        %1263 = vmatprep.subr.mxu0 0.0
        %1264 = vmatpush1.xpose.msra.mxu0 0.0
        %1265 = vmatprep.subr.mxu0 0.0
        %1266 = vmatpush1.xpose.msra.mxu0 0.0
        %1267 = vmatprep.subr.mxu0 0.0
        %1268 = vmatpush1.xpose.msra.mxu0 0.0
        %1269 = vmatprep.subr.mxu0 0.0
        %1270 = vmatpush1.xpose.msra.mxu0 0.0
        %1271 = vmatprep.subr.mxu0 0.0
        %1272 = vmatpush1.xpose.msra.mxu0 0.0
        %1273 = vmatprep.subr.mxu0 0.0
        %1274 = vmatpush1.xpose.msra.mxu0 0.0
        %1275 = vmatprep.subr.mxu0 0.0
        %1276 = vmatpush1.xpose.msra.mxu0 0.0
        %1277 = vmatprep.subr.mxu0 0.0
        %1278 = vmatpush1.xpose.msra.mxu0 0.0
        %1279 = vmatprep.subr.mxu0 0.0
        %1280 = vmatpush1.xpose.msra.mxu0 0.0
        %1281 = vmatprep.subr.mxu0 0.0
        %1282 = vmatpush1.xpose.msra.mxu0 0.0
        %1283 = vmatprep.subr.mxu0 0.0
        %1284 = vmatpush1.xpose.msra.mxu0 0.0
        %1285 = vmatprep.subr.mxu0 0.0
        %1286 = vmatpush1.xpose.msra.mxu0 0.0
        %1287 = vmatprep.subr.mxu0 0.0
        %1288 = vmatpush1.xpose.msra.mxu0 0.0
        %1289 = vmatprep.subr.mxu0 0.0
        %1290 = vmatpush1.xpose.msra.mxu0 0.0
        %1291 = vmatprep.subr.mxu0 0.0
        %1292 = vmatpush1.xpose.msra.mxu0 0.0
        %1293 = vmatprep.subr.mxu0 0.0
        %1294 = vmatpush1.xpose.msra.mxu0 0.0
        %1295 = vmatprep.mubr.f32.mxu0 0.0
        %1296 = vmatmul.mubr.f32.gmra.mrb[0].mxu0 %v1227
        %v1297 = vpop.f32.mrb[0].mxu0
        %v1298 = vadd.f32 0.0, %v1297
        %v1299 = vpop.f32.mrb[0].mxu0
        %1300 = vdwg.mxu0
        %v1301 = vsel %vm1004, %v899, 0
        %v1303 = vsel %vm1004, %v915, 0
        %1305 = vmatprep.subr.mxu0 0.0
        %1306 = vmatpush1.xpose.msra.mxu0 %v1303
        %1307 = vmatprep.subr.mxu0 0.0
        %1308 = vmatpush1.xpose.msra.mxu0 0.0
        %1309 = vmatprep.subr.mxu0 0.0
        %1310 = vmatpush1.xpose.msra.mxu0 0.0
        %1311 = vmatprep.subr.mxu0 0.0
        %1312 = vmatpush1.xpose.msra.mxu0 0.0
        %1313 = vmatprep.subr.mxu0 0.0
        %1314 = vmatpush1.xpose.msra.mxu0 0.0
        %1315 = vmatprep.subr.mxu0 0.0
        %1316 = vmatpush1.xpose.msra.mxu0 0.0
        %1317 = vmatprep.subr.mxu0 0.0
        %1318 = vmatpush1.xpose.msra.mxu0 0.0
        %1319 = vmatprep.subr.mxu0 0.0
        %1320 = vmatpush1.xpose.msra.mxu0 0.0
        %1321 = vmatprep.subr.mxu0 0.0
        %1322 = vmatpush1.xpose.msra.mxu0 0.0
        %1323 = vmatprep.subr.mxu0 0.0
        %1324 = vmatpush1.xpose.msra.mxu0 0.0
        %1325 = vmatprep.subr.mxu0 0.0
        %1326 = vmatpush1.xpose.msra.mxu0 0.0
        %1327 = vmatprep.subr.mxu0 0.0
        %1328 = vmatpush1.xpose.msra.mxu0 0.0
        %1329 = vmatprep.subr.mxu0 0.0
        %1330 = vmatpush1.xpose.msra.mxu0 0.0
        %1331 = vmatprep.subr.mxu0 0.0
        %1332 = vmatpush1.xpose.msra.mxu0 0.0
        %1333 = vmatprep.subr.mxu0 0.0
        %1334 = vmatpush1.xpose.msra.mxu0 0.0
        %1335 = vmatprep.subr.mxu0 0.0
        %1336 = vmatpush1.xpose.msra.mxu0 0.0
        %1337 = vmatprep.subr.mxu0 0.0
        %1338 = vmatpush1.xpose.msra.mxu0 0.0
        %1339 = vmatprep.subr.mxu0 0.0
        %1340 = vmatpush1.xpose.msra.mxu0 0.0
        %1341 = vmatprep.subr.mxu0 0.0
        %1342 = vmatpush1.xpose.msra.mxu0 0.0
        %1343 = vmatprep.subr.mxu0 0.0
        %1344 = vmatpush1.xpose.msra.mxu0 0.0
        %1345 = vmatprep.subr.mxu0 0.0
        %1346 = vmatpush1.xpose.msra.mxu0 0.0
        %1347 = vmatprep.subr.mxu0 0.0
        %1348 = vmatpush1.xpose.msra.mxu0 0.0
        %1349 = vmatprep.subr.mxu0 0.0
        %1350 = vmatpush1.xpose.msra.mxu0 0.0
        %1351 = vmatprep.subr.mxu0 0.0
        %1352 = vmatpush1.xpose.msra.mxu0 0.0
        %1353 = vmatprep.subr.mxu0 0.0
        %1354 = vmatpush1.xpose.msra.mxu0 0.0
        %1355 = vmatprep.subr.mxu0 0.0
        %1356 = vmatpush1.xpose.msra.mxu0 0.0
        %1357 = vmatprep.subr.mxu0 0.0
        %1358 = vmatpush1.xpose.msra.mxu0 0.0
        %1359 = vmatprep.subr.mxu0 0.0
        %1360 = vmatpush1.xpose.msra.mxu0 0.0
        %1361 = vmatprep.subr.mxu0 0.0
        %1362 = vmatpush1.xpose.msra.mxu0 0.0
        %1363 = vmatprep.subr.mxu0 0.0
        %1364 = vmatpush1.xpose.msra.mxu0 0.0
        %1365 = vmatprep.subr.mxu0 0.0
        %1366 = vmatpush1.xpose.msra.mxu0 0.0
        %1367 = vmatprep.subr.mxu0 0.0
        %1368 = vmatpush1.xpose.msra.mxu0 0.0
        %1369 = vmatprep.mubr.f32.mxu0 0.0
        %1370 = vmatmul.mubr.f32.gmra.mrb[0].mxu0 %v1301
        %v1371 = vpop.f32.mrb[0].mxu0
        %v1372 = vadd.f32 0.0, %v1371
        %v1373 = vpop.f32.mrb[0].mxu0
        %1374 = vdwg.mxu0
        %v1375 = vsel %vm1004, %v901, 0
        %v1377 = vsel %vm1004, %v917, 0
        %1379 = vmatprep.subr.mxu0 0.0
        %1380 = vmatpush1.xpose.msra.mxu0 %v1377
        %1381 = vmatprep.subr.mxu0 0.0
        %1382 = vmatpush1.xpose.msra.mxu0 0.0
        %1383 = vmatprep.subr.mxu0 0.0
        %1384 = vmatpush1.xpose.msra.mxu0 0.0
        %1385 = vmatprep.subr.mxu0 0.0
        %1386 = vmatpush1.xpose.msra.mxu0 0.0
        %1387 = vmatprep.subr.mxu0 0.0
        %1388 = vmatpush1.xpose.msra.mxu0 0.0
        %1389 = vmatprep.subr.mxu0 0.0
        %1390 = vmatpush1.xpose.msra.mxu0 0.0
        %1391 = vmatprep.subr.mxu0 0.0
        %1392 = vmatpush1.xpose.msra.mxu0 0.0
        %1393 = vmatprep.subr.mxu0 0.0
        %1394 = vmatpush1.xpose.msra.mxu0 0.0
        %1395 = vmatprep.subr.mxu0 0.0
        %1396 = vmatpush1.xpose.msra.mxu0 0.0
        %1397 = vmatprep.subr.mxu0 0.0
        %1398 = vmatpush1.xpose.msra.mxu0 0.0
        %1399 = vmatprep.subr.mxu0 0.0
        %1400 = vmatpush1.xpose.msra.mxu0 0.0
        %1401 = vmatprep.subr.mxu0 0.0
        %1402 = vmatpush1.xpose.msra.mxu0 0.0
        %1403 = vmatprep.subr.mxu0 0.0
        %1404 = vmatpush1.xpose.msra.mxu0 0.0
        %1405 = vmatprep.subr.mxu0 0.0
        %1406 = vmatpush1.xpose.msra.mxu0 0.0
        %1407 = vmatprep.subr.mxu0 0.0
        %1408 = vmatpush1.xpose.msra.mxu0 0.0
        %1409 = vmatprep.subr.mxu0 0.0
        %1410 = vmatpush1.xpose.msra.mxu0 0.0
        %1411 = vmatprep.subr.mxu0 0.0
        %1412 = vmatpush1.xpose.msra.mxu0 0.0
        %1413 = vmatprep.subr.mxu0 0.0
        %1414 = vmatpush1.xpose.msra.mxu0 0.0
        %1415 = vmatprep.subr.mxu0 0.0
        %1416 = vmatpush1.xpose.msra.mxu0 0.0
        %1417 = vmatprep.subr.mxu0 0.0
        %1418 = vmatpush1.xpose.msra.mxu0 0.0
        %1419 = vmatprep.subr.mxu0 0.0
        %1420 = vmatpush1.xpose.msra.mxu0 0.0
        %1421 = vmatprep.subr.mxu0 0.0
        %1422 = vmatpush1.xpose.msra.mxu0 0.0
        %1423 = vmatprep.subr.mxu0 0.0
        %1424 = vmatpush1.xpose.msra.mxu0 0.0
        %1425 = vmatprep.subr.mxu0 0.0
        %1426 = vmatpush1.xpose.msra.mxu0 0.0
        %1427 = vmatprep.subr.mxu0 0.0
        %1428 = vmatpush1.xpose.msra.mxu0 0.0
        %1429 = vmatprep.subr.mxu0 0.0
        %1430 = vmatpush1.xpose.msra.mxu0 0.0
        %1431 = vmatprep.subr.mxu0 0.0
        %1432 = vmatpush1.xpose.msra.mxu0 0.0
        %1433 = vmatprep.subr.mxu0 0.0
        %1434 = vmatpush1.xpose.msra.mxu0 0.0
        %1435 = vmatprep.subr.mxu0 0.0
        %1436 = vmatpush1.xpose.msra.mxu0 0.0
        %1437 = vmatprep.subr.mxu0 0.0
        %1438 = vmatpush1.xpose.msra.mxu0 0.0
        %1439 = vmatprep.subr.mxu0 0.0
        %1440 = vmatpush1.xpose.msra.mxu0 0.0
        %1441 = vmatprep.subr.mxu0 0.0
        %1442 = vmatpush1.xpose.msra.mxu0 0.0
        %1443 = vmatprep.mubr.f32.mxu0 0.0
        %1444 = vmatmul.mubr.f32.gmra.mrb[0].mxu0 %v1375
        %v1445 = vpop.f32.mrb[0].mxu0
        %v1446 = vadd.f32 0.0, %v1445
        %v1447 = vpop.f32.mrb[0].mxu0
        %1448 = vdwg.mxu0
        %v1449 = vsel %vm1004, %v903, 0
        %v1451 = vsel %vm1004, %v921, 0
        %1453 = vmatprep.subr.mxu0 0.0
        %1454 = vmatpush1.xpose.msra.mxu0 %v1451
        %1455 = vmatprep.subr.mxu0 0.0
        %1456 = vmatpush1.xpose.msra.mxu0 0.0
        %1457 = vmatprep.subr.mxu0 0.0
        %1458 = vmatpush1.xpose.msra.mxu0 0.0
        %1459 = vmatprep.subr.mxu0 0.0
        %1460 = vmatpush1.xpose.msra.mxu0 0.0
        %1461 = vmatprep.subr.mxu0 0.0
        %1462 = vmatpush1.xpose.msra.mxu0 0.0
        %1463 = vmatprep.subr.mxu0 0.0
        %1464 = vmatpush1.xpose.msra.mxu0 0.0
        %1465 = vmatprep.subr.mxu0 0.0
        %1466 = vmatpush1.xpose.msra.mxu0 0.0
        %1467 = vmatprep.subr.mxu0 0.0
        %1468 = vmatpush1.xpose.msra.mxu0 0.0
        %1469 = vmatprep.subr.mxu0 0.0
        %1470 = vmatpush1.xpose.msra.mxu0 0.0
        %1471 = vmatprep.subr.mxu0 0.0
        %1472 = vmatpush1.xpose.msra.mxu0 0.0
        %1473 = vmatprep.subr.mxu0 0.0
        %1474 = vmatpush1.xpose.msra.mxu0 0.0
        %1475 = vmatprep.subr.mxu0 0.0
        %1476 = vmatpush1.xpose.msra.mxu0 0.0
        %1477 = vmatprep.subr.mxu0 0.0
        %1478 = vmatpush1.xpose.msra.mxu0 0.0
        %1479 = vmatprep.subr.mxu0 0.0
        %1480 = vmatpush1.xpose.msra.mxu0 0.0
        %1481 = vmatprep.subr.mxu0 0.0
        %1482 = vmatpush1.xpose.msra.mxu0 0.0
        %1483 = vmatprep.subr.mxu0 0.0
        %1484 = vmatpush1.xpose.msra.mxu0 0.0
        %1485 = vmatprep.subr.mxu0 0.0
        %1486 = vmatpush1.xpose.msra.mxu0 0.0
        %1487 = vmatprep.subr.mxu0 0.0
        %1488 = vmatpush1.xpose.msra.mxu0 0.0
        %1489 = vmatprep.subr.mxu0 0.0
        %1490 = vmatpush1.xpose.msra.mxu0 0.0
        %1491 = vmatprep.subr.mxu0 0.0
        %1492 = vmatpush1.xpose.msra.mxu0 0.0
        %1493 = vmatprep.subr.mxu0 0.0
        %1494 = vmatpush1.xpose.msra.mxu0 0.0
        %1495 = vmatprep.subr.mxu0 0.0
        %1496 = vmatpush1.xpose.msra.mxu0 0.0
        %1497 = vmatprep.subr.mxu0 0.0
        %1498 = vmatpush1.xpose.msra.mxu0 0.0
        %1499 = vmatprep.subr.mxu0 0.0
        %1500 = vmatpush1.xpose.msra.mxu0 0.0
        %1501 = vmatprep.subr.mxu0 0.0
        %1502 = vmatpush1.xpose.msra.mxu0 0.0
        %1503 = vmatprep.subr.mxu0 0.0
        %1504 = vmatpush1.xpose.msra.mxu0 0.0
        %1505 = vmatprep.subr.mxu0 0.0
        %1506 = vmatpush1.xpose.msra.mxu0 0.0
        %1507 = vmatprep.subr.mxu0 0.0
        %1508 = vmatpush1.xpose.msra.mxu0 0.0
        %1509 = vmatprep.subr.mxu0 0.0
        %1510 = vmatpush1.xpose.msra.mxu0 0.0
        %1511 = vmatprep.subr.mxu0 0.0
        %1512 = vmatpush1.xpose.msra.mxu0 0.0
        %1513 = vmatprep.subr.mxu0 0.0
        %1514 = vmatpush1.xpose.msra.mxu0 0.0
        %1515 = vmatprep.subr.mxu0 0.0
        %1516 = vmatpush1.xpose.msra.mxu0 0.0
        %1517 = vmatprep.mubr.f32.mxu0 0.0
        %1518 = vmatmul.mubr.f32.gmra.mrb[0].mxu0 %v1449
        %v1519 = vpop.f32.mrb[0].mxu0
        %v1520 = vadd.f32 0.0, %v1519
        %v1521 = vpop.f32.mrb[0].mxu0
        %1522 = vdwg.mxu0
        %v1523 = vsel %vm1004, %v905, 0
        %v1525 = vsel %vm1004, %v923, 0
        %1527 = vmatprep.subr.mxu0 0.0
        %1528 = vmatpush1.xpose.msra.mxu0 %v1525
        %1529 = vmatprep.subr.mxu0 0.0
        %1530 = vmatpush1.xpose.msra.mxu0 0.0
        %1531 = vmatprep.subr.mxu0 0.0
        %1532 = vmatpush1.xpose.msra.mxu0 0.0
        %1533 = vmatprep.subr.mxu0 0.0
        %1534 = vmatpush1.xpose.msra.mxu0 0.0
        %1535 = vmatprep.subr.mxu0 0.0
        %1536 = vmatpush1.xpose.msra.mxu0 0.0
        %1537 = vmatprep.subr.mxu0 0.0
        %1538 = vmatpush1.xpose.msra.mxu0 0.0
        %1539 = vmatprep.subr.mxu0 0.0
        %1540 = vmatpush1.xpose.msra.mxu0 0.0
        %1541 = vmatprep.subr.mxu0 0.0
        %1542 = vmatpush1.xpose.msra.mxu0 0.0
        %1543 = vmatprep.subr.mxu0 0.0
        %1544 = vmatpush1.xpose.msra.mxu0 0.0
        %1545 = vmatprep.subr.mxu0 0.0
        %1546 = vmatpush1.xpose.msra.mxu0 0.0
        %1547 = vmatprep.subr.mxu0 0.0
        %1548 = vmatpush1.xpose.msra.mxu0 0.0
        %1549 = vmatprep.subr.mxu0 0.0
        %1550 = vmatpush1.xpose.msra.mxu0 0.0
        %1551 = vmatprep.subr.mxu0 0.0
        %1552 = vmatpush1.xpose.msra.mxu0 0.0
        %1553 = vmatprep.subr.mxu0 0.0
        %1554 = vmatpush1.xpose.msra.mxu0 0.0
        %1555 = vmatprep.subr.mxu0 0.0
        %1556 = vmatpush1.xpose.msra.mxu0 0.0
        %1557 = vmatprep.subr.mxu0 0.0
        %1558 = vmatpush1.xpose.msra.mxu0 0.0
        %1559 = vmatprep.subr.mxu0 0.0
        %1560 = vmatpush1.xpose.msra.mxu0 0.0
        %1561 = vmatprep.subr.mxu0 0.0
        %1562 = vmatpush1.xpose.msra.mxu0 0.0
        %1563 = vmatprep.subr.mxu0 0.0
        %1564 = vmatpush1.xpose.msra.mxu0 0.0
        %1565 = vmatprep.subr.mxu0 0.0
        %1566 = vmatpush1.xpose.msra.mxu0 0.0
        %1567 = vmatprep.subr.mxu0 0.0
        %1568 = vmatpush1.xpose.msra.mxu0 0.0
        %1569 = vmatprep.subr.mxu0 0.0
        %1570 = vmatpush1.xpose.msra.mxu0 0.0
        %1571 = vmatprep.subr.mxu0 0.0
        %1572 = vmatpush1.xpose.msra.mxu0 0.0
        %1573 = vmatprep.subr.mxu0 0.0
        %1574 = vmatpush1.xpose.msra.mxu0 0.0
        %1575 = vmatprep.subr.mxu0 0.0
        %1576 = vmatpush1.xpose.msra.mxu0 0.0
        %1577 = vmatprep.subr.mxu0 0.0
        %1578 = vmatpush1.xpose.msra.mxu0 0.0
        %1579 = vmatprep.subr.mxu0 0.0
        %1580 = vmatpush1.xpose.msra.mxu0 0.0
        %1581 = vmatprep.subr.mxu0 0.0
        %1582 = vmatpush1.xpose.msra.mxu0 0.0
        %1583 = vmatprep.subr.mxu0 0.0
        %1584 = vmatpush1.xpose.msra.mxu0 0.0
        %1585 = vmatprep.subr.mxu0 0.0
        %1586 = vmatpush1.xpose.msra.mxu0 0.0
        %1587 = vmatprep.subr.mxu0 0.0
        %1588 = vmatpush1.xpose.msra.mxu0 0.0
        %1589 = vmatprep.subr.mxu0 0.0
        %1590 = vmatpush1.xpose.msra.mxu0 0.0
        %1591 = vmatprep.mubr.f32.mxu0 0.0
        %1592 = vmatmul.mubr.f32.gmra.mrb[0].mxu0 %v1523
        %v1593 = vpop.f32.mrb[0].mxu0
        %v1594 = vadd.f32 0.0, %v1593
        %v1595 = vpop.f32.mrb[0].mxu0
        %1596 = vdwg.mxu0
        %v1598 = vunpack.c.l.s4 1983009808
        %v1599 = vunpack.c.0.s8 %v1598
        %v1600 = vlaneseq
        %v1601 = vshrl.u32 %v1600, 7
        %v1602 = vsub.s32 %v1599, %v1601
        %v1603 = vrot.slane %v953, %v1602
        %1604 = vrot.lane.b32.xlu0 %v1603, 96
        %v1605 = vpop.permute.xlu0 %1604
        %v1606 = vsel %vm1004, %v1605, 0
        %1608 = vmatprep.subr.mxu0 0.0
        %1609 = vmatpush1.xpose.msra.mxu0 %v1007
        %1610 = vmatprep.subr.mxu0 0.0
        %1611 = vmatpush1.xpose.msra.mxu0 0.0
        %1612 = vmatprep.subr.mxu0 0.0
        %1613 = vmatpush1.xpose.msra.mxu0 0.0
        %1614 = vmatprep.subr.mxu0 0.0
        %1615 = vmatpush1.xpose.msra.mxu0 0.0
        %1616 = vmatprep.subr.mxu0 0.0
        %1617 = vmatpush1.xpose.msra.mxu0 0.0
        %1618 = vmatprep.subr.mxu0 0.0
        %1619 = vmatpush1.xpose.msra.mxu0 0.0
        %1620 = vmatprep.subr.mxu0 0.0
        %1621 = vmatpush1.xpose.msra.mxu0 0.0
        %1622 = vmatprep.subr.mxu0 0.0
        %1623 = vmatpush1.xpose.msra.mxu0 0.0
        %1624 = vmatprep.subr.mxu0 0.0
        %1625 = vmatpush1.xpose.msra.mxu0 0.0
        %1626 = vmatprep.subr.mxu0 0.0
        %1627 = vmatpush1.xpose.msra.mxu0 0.0
        %1628 = vmatprep.subr.mxu0 0.0
        %1629 = vmatpush1.xpose.msra.mxu0 0.0
        %1630 = vmatprep.subr.mxu0 0.0
        %1631 = vmatpush1.xpose.msra.mxu0 0.0
        %1632 = vmatprep.subr.mxu0 0.0
        %1633 = vmatpush1.xpose.msra.mxu0 0.0
        %1634 = vmatprep.subr.mxu0 0.0
        %1635 = vmatpush1.xpose.msra.mxu0 0.0
        %1636 = vmatprep.subr.mxu0 0.0
        %1637 = vmatpush1.xpose.msra.mxu0 0.0
        %1638 = vmatprep.subr.mxu0 0.0
        %1639 = vmatpush1.xpose.msra.mxu0 0.0
        %1640 = vmatprep.subr.mxu0 0.0
        %1641 = vmatpush1.xpose.msra.mxu0 0.0
        %1642 = vmatprep.subr.mxu0 0.0
        %1643 = vmatpush1.xpose.msra.mxu0 0.0
        %1644 = vmatprep.subr.mxu0 0.0
        %1645 = vmatpush1.xpose.msra.mxu0 0.0
        %1646 = vmatprep.subr.mxu0 0.0
        %1647 = vmatpush1.xpose.msra.mxu0 0.0
        %1648 = vmatprep.subr.mxu0 0.0
        %1649 = vmatpush1.xpose.msra.mxu0 0.0
        %1650 = vmatprep.subr.mxu0 0.0
        %1651 = vmatpush1.xpose.msra.mxu0 0.0
        %1652 = vmatprep.subr.mxu0 0.0
        %1653 = vmatpush1.xpose.msra.mxu0 0.0
        %1654 = vmatprep.subr.mxu0 0.0
        %1655 = vmatpush1.xpose.msra.mxu0 0.0
        %1656 = vmatprep.subr.mxu0 0.0
        %1657 = vmatpush1.xpose.msra.mxu0 0.0
        %1658 = vmatprep.subr.mxu0 0.0
        %1659 = vmatpush1.xpose.msra.mxu0 0.0
        %1660 = vmatprep.subr.mxu0 0.0
        %1661 = vmatpush1.xpose.msra.mxu0 0.0
        %1662 = vmatprep.subr.mxu0 0.0
        %1663 = vmatpush1.xpose.msra.mxu0 0.0
        %1664 = vmatprep.subr.mxu0 0.0
        %1665 = vmatpush1.xpose.msra.mxu0 0.0
        %1666 = vmatprep.subr.mxu0 0.0
        %1667 = vmatpush1.xpose.msra.mxu0 0.0
        %1668 = vmatprep.subr.mxu0 0.0
        %1669 = vmatpush1.xpose.msra.mxu0 0.0
        %1670 = vmatprep.subr.mxu0 0.0
        %1671 = vmatpush1.xpose.msra.mxu0 0.0
        %1672 = vmatprep.mubr.f32.mxu0 0.0
        %1673 = vmatmul.mubr.f32.gmra.mrb[0].mxu0 %v1606
        %v1674 = vpop.f32.mrb[0].mxu0
        %v1675 = vadd.f32 0.0, %v1674
        %v1676 = vpop.f32.mrb[0].mxu0
        %1677 = vdwg.mxu0
        %v1679 = vunpack.c.l.s4 1983009808
        %v1680 = vunpack.c.0.s8 %v1679
        %v1681 = vlaneseq
        %v1682 = vshrl.u32 %v1681, 7
        %v1683 = vsub.s32 %v1680, %v1682
        %v1684 = vrot.slane %v954, %v1683
        %1685 = vrot.lane.b32.xlu0 %v1684, 96
        %v1686 = vpop.permute.xlu0 %1685
        %v1687 = vsel %vm1004, %v1686, 0
        %1689 = vmatprep.subr.mxu0 0.0
        %1690 = vmatpush1.xpose.msra.mxu0 %v1081
        %1691 = vmatprep.subr.mxu0 0.0
        %1692 = vmatpush1.xpose.msra.mxu0 0.0
        %1693 = vmatprep.subr.mxu0 0.0
        %1694 = vmatpush1.xpose.msra.mxu0 0.0
        %1695 = vmatprep.subr.mxu0 0.0
        %1696 = vmatpush1.xpose.msra.mxu0 0.0
        %1697 = vmatprep.subr.mxu0 0.0
        %1698 = vmatpush1.xpose.msra.mxu0 0.0
        %1699 = vmatprep.subr.mxu0 0.0
        %1700 = vmatpush1.xpose.msra.mxu0 0.0
        %1701 = vmatprep.subr.mxu0 0.0
        %1702 = vmatpush1.xpose.msra.mxu0 0.0
        %1703 = vmatprep.subr.mxu0 0.0
        %1704 = vmatpush1.xpose.msra.mxu0 0.0
        %1705 = vmatprep.subr.mxu0 0.0
        %1706 = vmatpush1.xpose.msra.mxu0 0.0
        %1707 = vmatprep.subr.mxu0 0.0
        %1708 = vmatpush1.xpose.msra.mxu0 0.0
        %1709 = vmatprep.subr.mxu0 0.0
        %1710 = vmatpush1.xpose.msra.mxu0 0.0
        %1711 = vmatprep.subr.mxu0 0.0
        %1712 = vmatpush1.xpose.msra.mxu0 0.0
        %1713 = vmatprep.subr.mxu0 0.0
        %1714 = vmatpush1.xpose.msra.mxu0 0.0
        %1715 = vmatprep.subr.mxu0 0.0
        %1716 = vmatpush1.xpose.msra.mxu0 0.0
        %1717 = vmatprep.subr.mxu0 0.0
        %1718 = vmatpush1.xpose.msra.mxu0 0.0
        %1719 = vmatprep.subr.mxu0 0.0
        %1720 = vmatpush1.xpose.msra.mxu0 0.0
        %1721 = vmatprep.subr.mxu0 0.0
        %1722 = vmatpush1.xpose.msra.mxu0 0.0
        %1723 = vmatprep.subr.mxu0 0.0
        %1724 = vmatpush1.xpose.msra.mxu0 0.0
        %1725 = vmatprep.subr.mxu0 0.0
        %1726 = vmatpush1.xpose.msra.mxu0 0.0
        %1727 = vmatprep.subr.mxu0 0.0
        %1728 = vmatpush1.xpose.msra.mxu0 0.0
        %1729 = vmatprep.subr.mxu0 0.0
        %1730 = vmatpush1.xpose.msra.mxu0 0.0
        %1731 = vmatprep.subr.mxu0 0.0
        %1732 = vmatpush1.xpose.msra.mxu0 0.0
        %1733 = vmatprep.subr.mxu0 0.0
        %1734 = vmatpush1.xpose.msra.mxu0 0.0
        %1735 = vmatprep.subr.mxu0 0.0
        %1736 = vmatpush1.xpose.msra.mxu0 0.0
        %1737 = vmatprep.subr.mxu0 0.0
        %1738 = vmatpush1.xpose.msra.mxu0 0.0
        %1739 = vmatprep.subr.mxu0 0.0
        %1740 = vmatpush1.xpose.msra.mxu0 0.0
        %1741 = vmatprep.subr.mxu0 0.0
        %1742 = vmatpush1.xpose.msra.mxu0 0.0
        %1743 = vmatprep.subr.mxu0 0.0
        %1744 = vmatpush1.xpose.msra.mxu0 0.0
        %1745 = vmatprep.subr.mxu0 0.0
        %1746 = vmatpush1.xpose.msra.mxu0 0.0
        %1747 = vmatprep.subr.mxu0 0.0
        %1748 = vmatpush1.xpose.msra.mxu0 0.0
        %1749 = vmatprep.subr.mxu0 0.0
        %1750 = vmatpush1.xpose.msra.mxu0 0.0
        %1751 = vmatprep.subr.mxu0 0.0
        %1752 = vmatpush1.xpose.msra.mxu0 0.0
        %1753 = vmatprep.mubr.f32.mxu0 0.0
        %1754 = vmatmul.mubr.f32.gmra.mrb[0].mxu0 %v1687
        %v1755 = vpop.f32.mrb[0].mxu0
        %v1756 = vadd.f32 0.0, %v1755
        %v1757 = vpop.f32.mrb[0].mxu0
        %1758 = vdwg.mxu0
        %v1760 = vunpack.c.l.s4 1983009808
        %v1761 = vunpack.c.0.s8 %v1760
        %v1762 = vlaneseq
        %v1763 = vshrl.u32 %v1762, 7
        %v1764 = vsub.s32 %v1761, %v1763
        %v1765 = vrot.slane %v958, %v1764
        %1766 = vrot.lane.b32.xlu0 %v1765, 96
        %v1767 = vpop.permute.xlu0 %1766
        %v1768 = vsel %vm1004, %v1767, 0
        %1770 = vmatprep.subr.mxu0 0.0
        %1771 = vmatpush1.xpose.msra.mxu0 %v1155
        %1772 = vmatprep.subr.mxu0 0.0
        %1773 = vmatpush1.xpose.msra.mxu0 0.0
        %1774 = vmatprep.subr.mxu0 0.0
        %1775 = vmatpush1.xpose.msra.mxu0 0.0
        %1776 = vmatprep.subr.mxu0 0.0
        %1777 = vmatpush1.xpose.msra.mxu0 0.0
        %1778 = vmatprep.subr.mxu0 0.0
        %1779 = vmatpush1.xpose.msra.mxu0 0.0
        %1780 = vmatprep.subr.mxu0 0.0
        %1781 = vmatpush1.xpose.msra.mxu0 0.0
        %1782 = vmatprep.subr.mxu0 0.0
        %1783 = vmatpush1.xpose.msra.mxu0 0.0
        %1784 = vmatprep.subr.mxu0 0.0
        %1785 = vmatpush1.xpose.msra.mxu0 0.0
        %1786 = vmatprep.subr.mxu0 0.0
        %1787 = vmatpush1.xpose.msra.mxu0 0.0
        %1788 = vmatprep.subr.mxu0 0.0
        %1789 = vmatpush1.xpose.msra.mxu0 0.0
        %1790 = vmatprep.subr.mxu0 0.0
        %1791 = vmatpush1.xpose.msra.mxu0 0.0
        %1792 = vmatprep.subr.mxu0 0.0
        %1793 = vmatpush1.xpose.msra.mxu0 0.0
        %1794 = vmatprep.subr.mxu0 0.0
        %1795 = vmatpush1.xpose.msra.mxu0 0.0
        %1796 = vmatprep.subr.mxu0 0.0
        %1797 = vmatpush1.xpose.msra.mxu0 0.0
        %1798 = vmatprep.subr.mxu0 0.0
        %1799 = vmatpush1.xpose.msra.mxu0 0.0
        %1800 = vmatprep.subr.mxu0 0.0
        %1801 = vmatpush1.xpose.msra.mxu0 0.0
        %1802 = vmatprep.subr.mxu0 0.0
        %1803 = vmatpush1.xpose.msra.mxu0 0.0
        %1804 = vmatprep.subr.mxu0 0.0
        %1805 = vmatpush1.xpose.msra.mxu0 0.0
        %1806 = vmatprep.subr.mxu0 0.0
        %1807 = vmatpush1.xpose.msra.mxu0 0.0
        %1808 = vmatprep.subr.mxu0 0.0
        %1809 = vmatpush1.xpose.msra.mxu0 0.0
        %1810 = vmatprep.subr.mxu0 0.0
        %1811 = vmatpush1.xpose.msra.mxu0 0.0
        %1812 = vmatprep.subr.mxu0 0.0
        %1813 = vmatpush1.xpose.msra.mxu0 0.0
        %1814 = vmatprep.subr.mxu0 0.0
        %1815 = vmatpush1.xpose.msra.mxu0 0.0
        %1816 = vmatprep.subr.mxu0 0.0
        %1817 = vmatpush1.xpose.msra.mxu0 0.0
        %1818 = vmatprep.subr.mxu0 0.0
        %1819 = vmatpush1.xpose.msra.mxu0 0.0
        %1820 = vmatprep.subr.mxu0 0.0
        %1821 = vmatpush1.xpose.msra.mxu0 0.0
        %1822 = vmatprep.subr.mxu0 0.0
        %1823 = vmatpush1.xpose.msra.mxu0 0.0
        %1824 = vmatprep.subr.mxu0 0.0
        %1825 = vmatpush1.xpose.msra.mxu0 0.0
        %1826 = vmatprep.subr.mxu0 0.0
        %1827 = vmatpush1.xpose.msra.mxu0 0.0
        %1828 = vmatprep.subr.mxu0 0.0
        %1829 = vmatpush1.xpose.msra.mxu0 0.0
        %1830 = vmatprep.subr.mxu0 0.0
        %1831 = vmatpush1.xpose.msra.mxu0 0.0
        %1832 = vmatprep.subr.mxu0 0.0
        %1833 = vmatpush1.xpose.msra.mxu0 0.0
        %1834 = vmatprep.mubr.f32.mxu0 0.0
        %1835 = vmatmul.mubr.f32.gmra.mrb[0].mxu0 %v1768
        %v1836 = vpop.f32.mrb[0].mxu0
        %v1837 = vadd.f32 0.0, %v1836
        %v1838 = vpop.f32.mrb[0].mxu0
        %1839 = vdwg.mxu0
        %v1841 = vunpack.c.l.s4 1983009808
        %v1842 = vunpack.c.0.s8 %v1841
        %v1843 = vlaneseq
        %v1844 = vshrl.u32 %v1843, 7
        %v1845 = vsub.s32 %v1842, %v1844
        %v1846 = vrot.slane %v960, %v1845
        %1847 = vrot.lane.b32.xlu0 %v1846, 96
        %v1848 = vpop.permute.xlu0 %1847
        %v1849 = vsel %vm1004, %v1848, 0
        %1851 = vmatprep.subr.mxu0 0.0
        %1852 = vmatpush1.xpose.msra.mxu0 %v1229
        %1853 = vmatprep.subr.mxu0 0.0
        %1854 = vmatpush1.xpose.msra.mxu0 0.0
        %1855 = vmatprep.subr.mxu0 0.0
        %1856 = vmatpush1.xpose.msra.mxu0 0.0
        %1857 = vmatprep.subr.mxu0 0.0
        %1858 = vmatpush1.xpose.msra.mxu0 0.0
        %1859 = vmatprep.subr.mxu0 0.0
        %1860 = vmatpush1.xpose.msra.mxu0 0.0
        %1861 = vmatprep.subr.mxu0 0.0
        %1862 = vmatpush1.xpose.msra.mxu0 0.0
        %1863 = vmatprep.subr.mxu0 0.0
        %1864 = vmatpush1.xpose.msra.mxu0 0.0
        %1865 = vmatprep.subr.mxu0 0.0
        %1866 = vmatpush1.xpose.msra.mxu0 0.0
        %1867 = vmatprep.subr.mxu0 0.0
        %1868 = vmatpush1.xpose.msra.mxu0 0.0
        %1869 = vmatprep.subr.mxu0 0.0
        %1870 = vmatpush1.xpose.msra.mxu0 0.0
        %1871 = vmatprep.subr.mxu0 0.0
        %1872 = vmatpush1.xpose.msra.mxu0 0.0
        %1873 = vmatprep.subr.mxu0 0.0
        %1874 = vmatpush1.xpose.msra.mxu0 0.0
        %1875 = vmatprep.subr.mxu0 0.0
        %1876 = vmatpush1.xpose.msra.mxu0 0.0
        %1877 = vmatprep.subr.mxu0 0.0
        %1878 = vmatpush1.xpose.msra.mxu0 0.0
        %1879 = vmatprep.subr.mxu0 0.0
        %1880 = vmatpush1.xpose.msra.mxu0 0.0
        %1881 = vmatprep.subr.mxu0 0.0
        %1882 = vmatpush1.xpose.msra.mxu0 0.0
        %1883 = vmatprep.subr.mxu0 0.0
        %1884 = vmatpush1.xpose.msra.mxu0 0.0
        %1885 = vmatprep.subr.mxu0 0.0
        %1886 = vmatpush1.xpose.msra.mxu0 0.0
        %1887 = vmatprep.subr.mxu0 0.0
        %1888 = vmatpush1.xpose.msra.mxu0 0.0
        %1889 = vmatprep.subr.mxu0 0.0
        %1890 = vmatpush1.xpose.msra.mxu0 0.0
        %1891 = vmatprep.subr.mxu0 0.0
        %1892 = vmatpush1.xpose.msra.mxu0 0.0
        %1893 = vmatprep.subr.mxu0 0.0
        %1894 = vmatpush1.xpose.msra.mxu0 0.0
        %1895 = vmatprep.subr.mxu0 0.0
        %1896 = vmatpush1.xpose.msra.mxu0 0.0
        %1897 = vmatprep.subr.mxu0 0.0
        %1898 = vmatpush1.xpose.msra.mxu0 0.0
        %1899 = vmatprep.subr.mxu0 0.0
        %1900 = vmatpush1.xpose.msra.mxu0 0.0
        %1901 = vmatprep.subr.mxu0 0.0
        %1902 = vmatpush1.xpose.msra.mxu0 0.0
        %1903 = vmatprep.subr.mxu0 0.0
        %1904 = vmatpush1.xpose.msra.mxu0 0.0
        %1905 = vmatprep.subr.mxu0 0.0
        %1906 = vmatpush1.xpose.msra.mxu0 0.0
        %1907 = vmatprep.subr.mxu0 0.0
        %1908 = vmatpush1.xpose.msra.mxu0 0.0
        %1909 = vmatprep.subr.mxu0 0.0
        %1910 = vmatpush1.xpose.msra.mxu0 0.0
        %1911 = vmatprep.subr.mxu0 0.0
        %1912 = vmatpush1.xpose.msra.mxu0 0.0
        %1913 = vmatprep.subr.mxu0 0.0
        %1914 = vmatpush1.xpose.msra.mxu0 0.0
        %1915 = vmatprep.mubr.f32.mxu0 0.0
        %1916 = vmatmul.mubr.f32.gmra.mrb[0].mxu0 %v1849
        %v1917 = vpop.f32.mrb[0].mxu0
        %v1918 = vadd.f32 0.0, %v1917
        %v1919 = vpop.f32.mrb[0].mxu0
        %1920 = vdwg.mxu0
        %v1922 = vunpack.c.l.s4 1983009808
        %v1923 = vunpack.c.0.s8 %v1922
        %v1924 = vlaneseq
        %v1925 = vshrl.u32 %v1924, 7
        %v1926 = vsub.s32 %v1923, %v1925
        %v1927 = vrot.slane %v964, %v1926
        %1928 = vrot.lane.b32.xlu0 %v1927, 96
        %v1929 = vpop.permute.xlu0 %1928
        %v1930 = vsel %vm1004, %v1929, 0
        %1932 = vmatprep.subr.mxu0 0.0
        %1933 = vmatpush1.xpose.msra.mxu0 %v1303
        %1934 = vmatprep.subr.mxu0 0.0
        %1935 = vmatpush1.xpose.msra.mxu0 0.0
        %1936 = vmatprep.subr.mxu0 0.0
        %1937 = vmatpush1.xpose.msra.mxu0 0.0
        %1938 = vmatprep.subr.mxu0 0.0
        %1939 = vmatpush1.xpose.msra.mxu0 0.0
        %1940 = vmatprep.subr.mxu0 0.0
        %1941 = vmatpush1.xpose.msra.mxu0 0.0
        %1942 = vmatprep.subr.mxu0 0.0
        %1943 = vmatpush1.xpose.msra.mxu0 0.0
        %1944 = vmatprep.subr.mxu0 0.0
        %1945 = vmatpush1.xpose.msra.mxu0 0.0
        %1946 = vmatprep.subr.mxu0 0.0
        %1947 = vmatpush1.xpose.msra.mxu0 0.0
        %1948 = vmatprep.subr.mxu0 0.0
        %1949 = vmatpush1.xpose.msra.mxu0 0.0
        %1950 = vmatprep.subr.mxu0 0.0
        %1951 = vmatpush1.xpose.msra.mxu0 0.0
        %1952 = vmatprep.subr.mxu0 0.0
        %1953 = vmatpush1.xpose.msra.mxu0 0.0
        %1954 = vmatprep.subr.mxu0 0.0
        %1955 = vmatpush1.xpose.msra.mxu0 0.0
        %1956 = vmatprep.subr.mxu0 0.0
        %1957 = vmatpush1.xpose.msra.mxu0 0.0
        %1958 = vmatprep.subr.mxu0 0.0
        %1959 = vmatpush1.xpose.msra.mxu0 0.0
        %1960 = vmatprep.subr.mxu0 0.0
        %1961 = vmatpush1.xpose.msra.mxu0 0.0
        %1962 = vmatprep.subr.mxu0 0.0
        %1963 = vmatpush1.xpose.msra.mxu0 0.0
        %1964 = vmatprep.subr.mxu0 0.0
        %1965 = vmatpush1.xpose.msra.mxu0 0.0
        %1966 = vmatprep.subr.mxu0 0.0
        %1967 = vmatpush1.xpose.msra.mxu0 0.0
        %1968 = vmatprep.subr.mxu0 0.0
        %1969 = vmatpush1.xpose.msra.mxu0 0.0
        %1970 = vmatprep.subr.mxu0 0.0
        %1971 = vmatpush1.xpose.msra.mxu0 0.0
        %1972 = vmatprep.subr.mxu0 0.0
        %1973 = vmatpush1.xpose.msra.mxu0 0.0
        %1974 = vmatprep.subr.mxu0 0.0
        %1975 = vmatpush1.xpose.msra.mxu0 0.0
        %1976 = vmatprep.subr.mxu0 0.0
        %1977 = vmatpush1.xpose.msra.mxu0 0.0
        %1978 = vmatprep.subr.mxu0 0.0
        %1979 = vmatpush1.xpose.msra.mxu0 0.0
        %1980 = vmatprep.subr.mxu0 0.0
        %1981 = vmatpush1.xpose.msra.mxu0 0.0
        %1982 = vmatprep.subr.mxu0 0.0
        %1983 = vmatpush1.xpose.msra.mxu0 0.0
        %1984 = vmatprep.subr.mxu0 0.0
        %1985 = vmatpush1.xpose.msra.mxu0 0.0
        %1986 = vmatprep.subr.mxu0 0.0
        %1987 = vmatpush1.xpose.msra.mxu0 0.0
        %1988 = vmatprep.subr.mxu0 0.0
        %1989 = vmatpush1.xpose.msra.mxu0 0.0
        %1990 = vmatprep.subr.mxu0 0.0
        %1991 = vmatpush1.xpose.msra.mxu0 0.0
        %1992 = vmatprep.subr.mxu0 0.0
        %1993 = vmatpush1.xpose.msra.mxu0 0.0
        %1994 = vmatprep.subr.mxu0 0.0
        %1995 = vmatpush1.xpose.msra.mxu0 0.0
        %1996 = vmatprep.mubr.f32.mxu0 0.0
        %1997 = vmatmul.mubr.f32.gmra.mrb[0].mxu0 %v1930
        %v1998 = vpop.f32.mrb[0].mxu0
        %v1999 = vadd.f32 0.0, %v1998
        %v2000 = vpop.f32.mrb[0].mxu0
        %2001 = vdwg.mxu0
        %v2003 = vunpack.c.l.s4 1983009808
        %v2004 = vunpack.c.0.s8 %v2003
        %v2005 = vlaneseq
        %v2006 = vshrl.u32 %v2005, 7
        %v2007 = vsub.s32 %v2004, %v2006
        %v2008 = vrot.slane %v966, %v2007
        %2009 = vrot.lane.b32.xlu0 %v2008, 96
        %v2010 = vpop.permute.xlu0 %2009
        %v2011 = vsel %vm1004, %v2010, 0
        %2013 = vmatprep.subr.mxu0 0.0
        %2014 = vmatpush1.xpose.msra.mxu0 %v1377
        %2015 = vmatprep.subr.mxu0 0.0
        %2016 = vmatpush1.xpose.msra.mxu0 0.0
        %2017 = vmatprep.subr.mxu0 0.0
        %2018 = vmatpush1.xpose.msra.mxu0 0.0
        %2019 = vmatprep.subr.mxu0 0.0
        %2020 = vmatpush1.xpose.msra.mxu0 0.0
        %2021 = vmatprep.subr.mxu0 0.0
        %2022 = vmatpush1.xpose.msra.mxu0 0.0
        %2023 = vmatprep.subr.mxu0 0.0
        %2024 = vmatpush1.xpose.msra.mxu0 0.0
        %2025 = vmatprep.subr.mxu0 0.0
        %2026 = vmatpush1.xpose.msra.mxu0 0.0
        %2027 = vmatprep.subr.mxu0 0.0
        %2028 = vmatpush1.xpose.msra.mxu0 0.0
        %2029 = vmatprep.subr.mxu0 0.0
        %2030 = vmatpush1.xpose.msra.mxu0 0.0
        %2031 = vmatprep.subr.mxu0 0.0
        %2032 = vmatpush1.xpose.msra.mxu0 0.0
        %2033 = vmatprep.subr.mxu0 0.0
        %2034 = vmatpush1.xpose.msra.mxu0 0.0
        %2035 = vmatprep.subr.mxu0 0.0
        %2036 = vmatpush1.xpose.msra.mxu0 0.0
        %2037 = vmatprep.subr.mxu0 0.0
        %2038 = vmatpush1.xpose.msra.mxu0 0.0
        %2039 = vmatprep.subr.mxu0 0.0
        %2040 = vmatpush1.xpose.msra.mxu0 0.0
        %2041 = vmatprep.subr.mxu0 0.0
        %2042 = vmatpush1.xpose.msra.mxu0 0.0
        %2043 = vmatprep.subr.mxu0 0.0
        %2044 = vmatpush1.xpose.msra.mxu0 0.0
        %2045 = vmatprep.subr.mxu0 0.0
        %2046 = vmatpush1.xpose.msra.mxu0 0.0
        %2047 = vmatprep.subr.mxu0 0.0
        %2048 = vmatpush1.xpose.msra.mxu0 0.0
        %2049 = vmatprep.subr.mxu0 0.0
        %2050 = vmatpush1.xpose.msra.mxu0 0.0
        %2051 = vmatprep.subr.mxu0 0.0
        %2052 = vmatpush1.xpose.msra.mxu0 0.0
        %2053 = vmatprep.subr.mxu0 0.0
        %2054 = vmatpush1.xpose.msra.mxu0 0.0
        %2055 = vmatprep.subr.mxu0 0.0
        %2056 = vmatpush1.xpose.msra.mxu0 0.0
        %2057 = vmatprep.subr.mxu0 0.0
        %2058 = vmatpush1.xpose.msra.mxu0 0.0
        %2059 = vmatprep.subr.mxu0 0.0
        %2060 = vmatpush1.xpose.msra.mxu0 0.0
        %2061 = vmatprep.subr.mxu0 0.0
        %2062 = vmatpush1.xpose.msra.mxu0 0.0
        %2063 = vmatprep.subr.mxu0 0.0
        %2064 = vmatpush1.xpose.msra.mxu0 0.0
        %2065 = vmatprep.subr.mxu0 0.0
        %2066 = vmatpush1.xpose.msra.mxu0 0.0
        %2067 = vmatprep.subr.mxu0 0.0
        %2068 = vmatpush1.xpose.msra.mxu0 0.0
        %2069 = vmatprep.subr.mxu0 0.0
        %2070 = vmatpush1.xpose.msra.mxu0 0.0
        %2071 = vmatprep.subr.mxu0 0.0
        %2072 = vmatpush1.xpose.msra.mxu0 0.0
        %2073 = vmatprep.subr.mxu0 0.0
        %2074 = vmatpush1.xpose.msra.mxu0 0.0
        %2075 = vmatprep.subr.mxu0 0.0
        %2076 = vmatpush1.xpose.msra.mxu0 0.0
        %2077 = vmatprep.mubr.f32.mxu0 0.0
        %2078 = vmatmul.mubr.f32.gmra.mrb[0].mxu0 %v2011
        %v2079 = vpop.f32.mrb[0].mxu0
        %v2080 = vadd.f32 0.0, %v2079
        %v2081 = vpop.f32.mrb[0].mxu0
        %2082 = vdwg.mxu0
        %v2084 = vunpack.c.l.s4 1983009808
        %v2085 = vunpack.c.0.s8 %v2084
        %v2086 = vlaneseq
        %v2087 = vshrl.u32 %v2086, 7
        %v2088 = vsub.s32 %v2085, %v2087
        %v2089 = vrot.slane %v970, %v2088
        %2090 = vrot.lane.b32.xlu0 %v2089, 96
        %v2091 = vpop.permute.xlu0 %2090
        %v2092 = vsel %vm1004, %v2091, 0
        %2094 = vmatprep.subr.mxu0 0.0
        %2095 = vmatpush1.xpose.msra.mxu0 %v1451
        %2096 = vmatprep.subr.mxu0 0.0
        %2097 = vmatpush1.xpose.msra.mxu0 0.0
        %2098 = vmatprep.subr.mxu0 0.0
        %2099 = vmatpush1.xpose.msra.mxu0 0.0
        %2100 = vmatprep.subr.mxu0 0.0
        %2101 = vmatpush1.xpose.msra.mxu0 0.0
        %2102 = vmatprep.subr.mxu0 0.0
        %2103 = vmatpush1.xpose.msra.mxu0 0.0
        %2104 = vmatprep.subr.mxu0 0.0
        %2105 = vmatpush1.xpose.msra.mxu0 0.0
        %2106 = vmatprep.subr.mxu0 0.0
        %2107 = vmatpush1.xpose.msra.mxu0 0.0
        %2108 = vmatprep.subr.mxu0 0.0
        %2109 = vmatpush1.xpose.msra.mxu0 0.0
        %2110 = vmatprep.subr.mxu0 0.0
        %2111 = vmatpush1.xpose.msra.mxu0 0.0
        %2112 = vmatprep.subr.mxu0 0.0
        %2113 = vmatpush1.xpose.msra.mxu0 0.0
        %2114 = vmatprep.subr.mxu0 0.0
        %2115 = vmatpush1.xpose.msra.mxu0 0.0
        %2116 = vmatprep.subr.mxu0 0.0
        %2117 = vmatpush1.xpose.msra.mxu0 0.0
        %2118 = vmatprep.subr.mxu0 0.0
        %2119 = vmatpush1.xpose.msra.mxu0 0.0
        %2120 = vmatprep.subr.mxu0 0.0
        %2121 = vmatpush1.xpose.msra.mxu0 0.0
        %2122 = vmatprep.subr.mxu0 0.0
        %2123 = vmatpush1.xpose.msra.mxu0 0.0
        %2124 = vmatprep.subr.mxu0 0.0
        %2125 = vmatpush1.xpose.msra.mxu0 0.0
        %2126 = vmatprep.subr.mxu0 0.0
        %2127 = vmatpush1.xpose.msra.mxu0 0.0
        %2128 = vmatprep.subr.mxu0 0.0
        %2129 = vmatpush1.xpose.msra.mxu0 0.0
        %2130 = vmatprep.subr.mxu0 0.0
        %2131 = vmatpush1.xpose.msra.mxu0 0.0
        %2132 = vmatprep.subr.mxu0 0.0
        %2133 = vmatpush1.xpose.msra.mxu0 0.0
        %2134 = vmatprep.subr.mxu0 0.0
        %2135 = vmatpush1.xpose.msra.mxu0 0.0
        %2136 = vmatprep.subr.mxu0 0.0
        %2137 = vmatpush1.xpose.msra.mxu0 0.0
        %2138 = vmatprep.subr.mxu0 0.0
        %2139 = vmatpush1.xpose.msra.mxu0 0.0
        %2140 = vmatprep.subr.mxu0 0.0
        %2141 = vmatpush1.xpose.msra.mxu0 0.0
        %2142 = vmatprep.subr.mxu0 0.0
        %2143 = vmatpush1.xpose.msra.mxu0 0.0
        %2144 = vmatprep.subr.mxu0 0.0
        %2145 = vmatpush1.xpose.msra.mxu0 0.0
        %2146 = vmatprep.subr.mxu0 0.0
        %2147 = vmatpush1.xpose.msra.mxu0 0.0
        %2148 = vmatprep.subr.mxu0 0.0
        %2149 = vmatpush1.xpose.msra.mxu0 0.0
        %2150 = vmatprep.subr.mxu0 0.0
        %2151 = vmatpush1.xpose.msra.mxu0 0.0
        %2152 = vmatprep.subr.mxu0 0.0
        %2153 = vmatpush1.xpose.msra.mxu0 0.0
        %2154 = vmatprep.subr.mxu0 0.0
        %2155 = vmatpush1.xpose.msra.mxu0 0.0
        %2156 = vmatprep.subr.mxu0 0.0
        %2157 = vmatpush1.xpose.msra.mxu0 0.0
        %2158 = vmatprep.mubr.f32.mxu0 0.0
        %2159 = vmatmul.mubr.f32.gmra.mrb[0].mxu0 %v2092
        %v2160 = vpop.f32.mrb[0].mxu0
        %v2161 = vadd.f32 0.0, %v2160
        %v2162 = vpop.f32.mrb[0].mxu0
        %2163 = vdwg.mxu0
        %v2165 = vunpack.c.l.s4 1983009808
        %v2166 = vunpack.c.0.s8 %v2165
        %v2167 = vlaneseq
        %v2168 = vshrl.u32 %v2167, 7
        %v2169 = vsub.s32 %v2166, %v2168
        %v2170 = vrot.slane %v972, %v2169
        %2171 = vrot.lane.b32.xlu0 %v2170, 96
        %v2172 = vpop.permute.xlu0 %2171
        %v2173 = vsel %vm1004, %v2172, 0
        %2175 = vmatprep.subr.mxu0 0.0
        %2176 = vmatpush1.xpose.msra.mxu0 %v1525
        %2177 = vmatprep.subr.mxu0 0.0
        %2178 = vmatpush1.xpose.msra.mxu0 0.0
        %2179 = vmatprep.subr.mxu0 0.0
        %2180 = vmatpush1.xpose.msra.mxu0 0.0
        %2181 = vmatprep.subr.mxu0 0.0
        %2182 = vmatpush1.xpose.msra.mxu0 0.0
        %2183 = vmatprep.subr.mxu0 0.0
        %2184 = vmatpush1.xpose.msra.mxu0 0.0
        %2185 = vmatprep.subr.mxu0 0.0
        %2186 = vmatpush1.xpose.msra.mxu0 0.0
        %2187 = vmatprep.subr.mxu0 0.0
        %2188 = vmatpush1.xpose.msra.mxu0 0.0
        %2189 = vmatprep.subr.mxu0 0.0
        %2190 = vmatpush1.xpose.msra.mxu0 0.0
        %2191 = vmatprep.subr.mxu0 0.0
        %2192 = vmatpush1.xpose.msra.mxu0 0.0
        %2193 = vmatprep.subr.mxu0 0.0
        %2194 = vmatpush1.xpose.msra.mxu0 0.0
        %2195 = vmatprep.subr.mxu0 0.0
        %2196 = vmatpush1.xpose.msra.mxu0 0.0
        %2197 = vmatprep.subr.mxu0 0.0
        %2198 = vmatpush1.xpose.msra.mxu0 0.0
        %2199 = vmatprep.subr.mxu0 0.0
        %2200 = vmatpush1.xpose.msra.mxu0 0.0
        %2201 = vmatprep.subr.mxu0 0.0
        %2202 = vmatpush1.xpose.msra.mxu0 0.0
        %2203 = vmatprep.subr.mxu0 0.0
        %2204 = vmatpush1.xpose.msra.mxu0 0.0
        %2205 = vmatprep.subr.mxu0 0.0
        %2206 = vmatpush1.xpose.msra.mxu0 0.0
        %2207 = vmatprep.subr.mxu0 0.0
        %2208 = vmatpush1.xpose.msra.mxu0 0.0
        %2209 = vmatprep.subr.mxu0 0.0
        %2210 = vmatpush1.xpose.msra.mxu0 0.0
        %2211 = vmatprep.subr.mxu0 0.0
        %2212 = vmatpush1.xpose.msra.mxu0 0.0
        %2213 = vmatprep.subr.mxu0 0.0
        %2214 = vmatpush1.xpose.msra.mxu0 0.0
        %2215 = vmatprep.subr.mxu0 0.0
        %2216 = vmatpush1.xpose.msra.mxu0 0.0
        %2217 = vmatprep.subr.mxu0 0.0
        %2218 = vmatpush1.xpose.msra.mxu0 0.0
        %2219 = vmatprep.subr.mxu0 0.0
        %2220 = vmatpush1.xpose.msra.mxu0 0.0
        %2221 = vmatprep.subr.mxu0 0.0
        %2222 = vmatpush1.xpose.msra.mxu0 0.0
        %2223 = vmatprep.subr.mxu0 0.0
        %2224 = vmatpush1.xpose.msra.mxu0 0.0
        %2225 = vmatprep.subr.mxu0 0.0
        %2226 = vmatpush1.xpose.msra.mxu0 0.0
        %2227 = vmatprep.subr.mxu0 0.0
        %2228 = vmatpush1.xpose.msra.mxu0 0.0
        %2229 = vmatprep.subr.mxu0 0.0
        %2230 = vmatpush1.xpose.msra.mxu0 0.0
        %2231 = vmatprep.subr.mxu0 0.0
        %2232 = vmatpush1.xpose.msra.mxu0 0.0
        %2233 = vmatprep.subr.mxu0 0.0
        %2234 = vmatpush1.xpose.msra.mxu0 0.0
        %2235 = vmatprep.subr.mxu0 0.0
        %2236 = vmatpush1.xpose.msra.mxu0 0.0
        %2237 = vmatprep.subr.mxu0 0.0
        %2238 = vmatpush1.xpose.msra.mxu0 0.0
        %2239 = vmatprep.mubr.f32.mxu0 0.0
        %2240 = vmatmul.mubr.f32.gmra.mrb[0].mxu0 %v2173
        %v2241 = vpop.f32.mrb[0].mxu0
        %v2242 = vadd.f32 0.0, %v2241
        %v2243 = vpop.f32.mrb[0].mxu0
        %2244 = vdwg.mxu0
        %2245 = vrot.lane.b32.xlu0 %v1603, 64
        %v2246 = vpop.permute.xlu0 %2245
        %v2247 = vrot.slane %v637, 2
        %v2248 = vsel %vm1004, %v2246, 0
        %v2250 = vsel %vm1004, %v2247, 0
        %2252 = vmatprep.subr.mxu0 0.0
        %2253 = vmatpush1.xpose.msra.mxu0 %v2250
        %2254 = vmatprep.subr.mxu0 0.0
        %2255 = vmatpush1.xpose.msra.mxu0 0.0
        %2256 = vmatprep.subr.mxu0 0.0
        %2257 = vmatpush1.xpose.msra.mxu0 0.0
        %2258 = vmatprep.subr.mxu0 0.0
        %2259 = vmatpush1.xpose.msra.mxu0 0.0
        %2260 = vmatprep.subr.mxu0 0.0
        %2261 = vmatpush1.xpose.msra.mxu0 0.0
        %2262 = vmatprep.subr.mxu0 0.0
        %2263 = vmatpush1.xpose.msra.mxu0 0.0
        %2264 = vmatprep.subr.mxu0 0.0
        %2265 = vmatpush1.xpose.msra.mxu0 0.0
        %2266 = vmatprep.subr.mxu0 0.0
        %2267 = vmatpush1.xpose.msra.mxu0 0.0
        %2268 = vmatprep.subr.mxu0 0.0
        %2269 = vmatpush1.xpose.msra.mxu0 0.0
        %2270 = vmatprep.subr.mxu0 0.0
        %2271 = vmatpush1.xpose.msra.mxu0 0.0
        %2272 = vmatprep.subr.mxu0 0.0
        %2273 = vmatpush1.xpose.msra.mxu0 0.0
        %2274 = vmatprep.subr.mxu0 0.0
        %2275 = vmatpush1.xpose.msra.mxu0 0.0
        %2276 = vmatprep.subr.mxu0 0.0
        %2277 = vmatpush1.xpose.msra.mxu0 0.0
        %2278 = vmatprep.subr.mxu0 0.0
        %2279 = vmatpush1.xpose.msra.mxu0 0.0
        %2280 = vmatprep.subr.mxu0 0.0
        %2281 = vmatpush1.xpose.msra.mxu0 0.0
        %2282 = vmatprep.subr.mxu0 0.0
        %2283 = vmatpush1.xpose.msra.mxu0 0.0
        %2284 = vmatprep.subr.mxu0 0.0
        %2285 = vmatpush1.xpose.msra.mxu0 0.0
        %2286 = vmatprep.subr.mxu0 0.0
        %2287 = vmatpush1.xpose.msra.mxu0 0.0
        %2288 = vmatprep.subr.mxu0 0.0
        %2289 = vmatpush1.xpose.msra.mxu0 0.0
        %2290 = vmatprep.subr.mxu0 0.0
        %2291 = vmatpush1.xpose.msra.mxu0 0.0
        %2292 = vmatprep.subr.mxu0 0.0
        %2293 = vmatpush1.xpose.msra.mxu0 0.0
        %2294 = vmatprep.subr.mxu0 0.0
        %2295 = vmatpush1.xpose.msra.mxu0 0.0
        %2296 = vmatprep.subr.mxu0 0.0
        %2297 = vmatpush1.xpose.msra.mxu0 0.0
        %2298 = vmatprep.subr.mxu0 0.0
        %2299 = vmatpush1.xpose.msra.mxu0 0.0
        %2300 = vmatprep.subr.mxu0 0.0
        %2301 = vmatpush1.xpose.msra.mxu0 0.0
        %2302 = vmatprep.subr.mxu0 0.0
        %2303 = vmatpush1.xpose.msra.mxu0 0.0
        %2304 = vmatprep.subr.mxu0 0.0
        %2305 = vmatpush1.xpose.msra.mxu0 0.0
        %2306 = vmatprep.subr.mxu0 0.0
        %2307 = vmatpush1.xpose.msra.mxu0 0.0
        %2308 = vmatprep.subr.mxu0 0.0
        %2309 = vmatpush1.xpose.msra.mxu0 0.0
        %2310 = vmatprep.subr.mxu0 0.0
        %2311 = vmatpush1.xpose.msra.mxu0 0.0
        %2312 = vmatprep.subr.mxu0 0.0
        %2313 = vmatpush1.xpose.msra.mxu0 0.0
        %2314 = vmatprep.subr.mxu0 0.0
        %2315 = vmatpush1.xpose.msra.mxu0 0.0
        %2316 = vmatprep.mubr.f32.mxu0 0.0
        %2317 = vmatmul.mubr.f32.gmra.mrb[0].mxu0 %v2248
        %v2318 = vpop.f32.mrb[0].mxu0
        %v2319 = vadd.f32 0.0, %v2318
        %v2320 = vpop.f32.mrb[0].mxu0
        %2321 = vdwg.mxu0
        %2322 = vrot.lane.b32.xlu0 %v1684, 64
        %v2323 = vpop.permute.xlu0 %2322
        %v2324 = vrot.slane %v642, 2
        %v2325 = vsel %vm1004, %v2323, 0
        %v2327 = vsel %vm1004, %v2324, 0
        %2329 = vmatprep.subr.mxu0 0.0
        %2330 = vmatpush1.xpose.msra.mxu0 %v2327
        %2331 = vmatprep.subr.mxu0 0.0
        %2332 = vmatpush1.xpose.msra.mxu0 0.0
        %2333 = vmatprep.subr.mxu0 0.0
        %2334 = vmatpush1.xpose.msra.mxu0 0.0
        %2335 = vmatprep.subr.mxu0 0.0
        %2336 = vmatpush1.xpose.msra.mxu0 0.0
        %2337 = vmatprep.subr.mxu0 0.0
        %2338 = vmatpush1.xpose.msra.mxu0 0.0
        %2339 = vmatprep.subr.mxu0 0.0
        %2340 = vmatpush1.xpose.msra.mxu0 0.0
        %2341 = vmatprep.subr.mxu0 0.0
        %2342 = vmatpush1.xpose.msra.mxu0 0.0
        %2343 = vmatprep.subr.mxu0 0.0
        %2344 = vmatpush1.xpose.msra.mxu0 0.0
        %2345 = vmatprep.subr.mxu0 0.0
        %2346 = vmatpush1.xpose.msra.mxu0 0.0
        %2347 = vmatprep.subr.mxu0 0.0
        %2348 = vmatpush1.xpose.msra.mxu0 0.0
        %2349 = vmatprep.subr.mxu0 0.0
        %2350 = vmatpush1.xpose.msra.mxu0 0.0
        %2351 = vmatprep.subr.mxu0 0.0
        %2352 = vmatpush1.xpose.msra.mxu0 0.0
        %2353 = vmatprep.subr.mxu0 0.0
        %2354 = vmatpush1.xpose.msra.mxu0 0.0
        %2355 = vmatprep.subr.mxu0 0.0
        %2356 = vmatpush1.xpose.msra.mxu0 0.0
        %2357 = vmatprep.subr.mxu0 0.0
        %2358 = vmatpush1.xpose.msra.mxu0 0.0
        %2359 = vmatprep.subr.mxu0 0.0
        %2360 = vmatpush1.xpose.msra.mxu0 0.0
        %2361 = vmatprep.subr.mxu0 0.0
        %2362 = vmatpush1.xpose.msra.mxu0 0.0
        %2363 = vmatprep.subr.mxu0 0.0
        %2364 = vmatpush1.xpose.msra.mxu0 0.0
        %2365 = vmatprep.subr.mxu0 0.0
        %2366 = vmatpush1.xpose.msra.mxu0 0.0
        %2367 = vmatprep.subr.mxu0 0.0
        %2368 = vmatpush1.xpose.msra.mxu0 0.0
        %2369 = vmatprep.subr.mxu0 0.0
        %2370 = vmatpush1.xpose.msra.mxu0 0.0
        %2371 = vmatprep.subr.mxu0 0.0
        %2372 = vmatpush1.xpose.msra.mxu0 0.0
        %2373 = vmatprep.subr.mxu0 0.0
        %2374 = vmatpush1.xpose.msra.mxu0 0.0
        %2375 = vmatprep.subr.mxu0 0.0
        %2376 = vmatpush1.xpose.msra.mxu0 0.0
        %2377 = vmatprep.subr.mxu0 0.0
        %2378 = vmatpush1.xpose.msra.mxu0 0.0
        %2379 = vmatprep.subr.mxu0 0.0
        %2380 = vmatpush1.xpose.msra.mxu0 0.0
        %2381 = vmatprep.subr.mxu0 0.0
        %2382 = vmatpush1.xpose.msra.mxu0 0.0
        %2383 = vmatprep.subr.mxu0 0.0
        %2384 = vmatpush1.xpose.msra.mxu0 0.0
        %2385 = vmatprep.subr.mxu0 0.0
        %2386 = vmatpush1.xpose.msra.mxu0 0.0
        %2387 = vmatprep.subr.mxu0 0.0
        %2388 = vmatpush1.xpose.msra.mxu0 0.0
        %2389 = vmatprep.subr.mxu0 0.0
        %2390 = vmatpush1.xpose.msra.mxu0 0.0
        %2391 = vmatprep.subr.mxu0 0.0
        %2392 = vmatpush1.xpose.msra.mxu0 0.0
        %2393 = vmatprep.mubr.f32.mxu0 0.0
        %2394 = vmatmul.mubr.f32.gmra.mrb[0].mxu0 %v2325
        %v2395 = vpop.f32.mrb[0].mxu0
        %v2396 = vadd.f32 0.0, %v2395
        %v2397 = vpop.f32.mrb[0].mxu0
        %2398 = vdwg.mxu0
        %2399 = vrot.lane.b32.xlu0 %v1765, 64
        %v2400 = vpop.permute.xlu0 %2399
        %v2401 = vrot.slane %v909, 2
        %v2402 = vsel %vm1004, %v2400, 0
        %v2404 = vsel %vm1004, %v2401, 0
        %2406 = vmatprep.subr.mxu0 0.0
        %2407 = vmatpush1.xpose.msra.mxu0 %v2404
        %2408 = vmatprep.subr.mxu0 0.0
        %2409 = vmatpush1.xpose.msra.mxu0 0.0
        %2410 = vmatprep.subr.mxu0 0.0
        %2411 = vmatpush1.xpose.msra.mxu0 0.0
        %2412 = vmatprep.subr.mxu0 0.0
        %2413 = vmatpush1.xpose.msra.mxu0 0.0
        %2414 = vmatprep.subr.mxu0 0.0
        %2415 = vmatpush1.xpose.msra.mxu0 0.0
        %2416 = vmatprep.subr.mxu0 0.0
        %2417 = vmatpush1.xpose.msra.mxu0 0.0
        %2418 = vmatprep.subr.mxu0 0.0
        %2419 = vmatpush1.xpose.msra.mxu0 0.0
        %2420 = vmatprep.subr.mxu0 0.0
        %2421 = vmatpush1.xpose.msra.mxu0 0.0
        %2422 = vmatprep.subr.mxu0 0.0
        %2423 = vmatpush1.xpose.msra.mxu0 0.0
        %2424 = vmatprep.subr.mxu0 0.0
        %2425 = vmatpush1.xpose.msra.mxu0 0.0
        %2426 = vmatprep.subr.mxu0 0.0
        %2427 = vmatpush1.xpose.msra.mxu0 0.0
        %2428 = vmatprep.subr.mxu0 0.0
        %2429 = vmatpush1.xpose.msra.mxu0 0.0
        %2430 = vmatprep.subr.mxu0 0.0
        %2431 = vmatpush1.xpose.msra.mxu0 0.0
        %2432 = vmatprep.subr.mxu0 0.0
        %2433 = vmatpush1.xpose.msra.mxu0 0.0
        %2434 = vmatprep.subr.mxu0 0.0
        %2435 = vmatpush1.xpose.msra.mxu0 0.0
        %2436 = vmatprep.subr.mxu0 0.0
        %2437 = vmatpush1.xpose.msra.mxu0 0.0
        %2438 = vmatprep.subr.mxu0 0.0
        %2439 = vmatpush1.xpose.msra.mxu0 0.0
        %2440 = vmatprep.subr.mxu0 0.0
        %2441 = vmatpush1.xpose.msra.mxu0 0.0
        %2442 = vmatprep.subr.mxu0 0.0
        %2443 = vmatpush1.xpose.msra.mxu0 0.0
        %2444 = vmatprep.subr.mxu0 0.0
        %2445 = vmatpush1.xpose.msra.mxu0 0.0
        %2446 = vmatprep.subr.mxu0 0.0
        %2447 = vmatpush1.xpose.msra.mxu0 0.0
        %2448 = vmatprep.subr.mxu0 0.0
        %2449 = vmatpush1.xpose.msra.mxu0 0.0
        %2450 = vmatprep.subr.mxu0 0.0
        %2451 = vmatpush1.xpose.msra.mxu0 0.0
        %2452 = vmatprep.subr.mxu0 0.0
        %2453 = vmatpush1.xpose.msra.mxu0 0.0
        %2454 = vmatprep.subr.mxu0 0.0
        %2455 = vmatpush1.xpose.msra.mxu0 0.0
        %2456 = vmatprep.subr.mxu0 0.0
        %2457 = vmatpush1.xpose.msra.mxu0 0.0
        %2458 = vmatprep.subr.mxu0 0.0
        %2459 = vmatpush1.xpose.msra.mxu0 0.0
        %2460 = vmatprep.subr.mxu0 0.0
        %2461 = vmatpush1.xpose.msra.mxu0 0.0
        %2462 = vmatprep.subr.mxu0 0.0
        %2463 = vmatpush1.xpose.msra.mxu0 0.0
        %2464 = vmatprep.subr.mxu0 0.0
        %2465 = vmatpush1.xpose.msra.mxu0 0.0
        %2466 = vmatprep.subr.mxu0 0.0
        %2467 = vmatpush1.xpose.msra.mxu0 0.0
        %2468 = vmatprep.subr.mxu0 0.0
        %2469 = vmatpush1.xpose.msra.mxu0 0.0
        %2470 = vmatprep.mubr.f32.mxu0 0.0
        %2471 = vmatmul.mubr.f32.gmra.mrb[0].mxu0 %v2402
        %v2472 = vpop.f32.mrb[0].mxu0
        %v2473 = vadd.f32 0.0, %v2472
        %v2474 = vpop.f32.mrb[0].mxu0
        %2475 = vdwg.mxu0
        %2476 = vrot.lane.b32.xlu0 %v1846, 64
        %v2477 = vpop.permute.xlu0 %2476
        %v2478 = vrot.slane %v911, 2
        %v2479 = vsel %vm1004, %v2477, 0
        %v2481 = vsel %vm1004, %v2478, 0
        %2483 = vmatprep.subr.mxu0 0.0
        %2484 = vmatpush1.xpose.msra.mxu0 %v2481
        %2485 = vmatprep.subr.mxu0 0.0
        %2486 = vmatpush1.xpose.msra.mxu0 0.0
        %2487 = vmatprep.subr.mxu0 0.0
        %2488 = vmatpush1.xpose.msra.mxu0 0.0
        %2489 = vmatprep.subr.mxu0 0.0
        %2490 = vmatpush1.xpose.msra.mxu0 0.0
        %2491 = vmatprep.subr.mxu0 0.0
        %2492 = vmatpush1.xpose.msra.mxu0 0.0
        %2493 = vmatprep.subr.mxu0 0.0
        %2494 = vmatpush1.xpose.msra.mxu0 0.0
        %2495 = vmatprep.subr.mxu0 0.0
        %2496 = vmatpush1.xpose.msra.mxu0 0.0
        %2497 = vmatprep.subr.mxu0 0.0
        %2498 = vmatpush1.xpose.msra.mxu0 0.0
        %2499 = vmatprep.subr.mxu0 0.0
        %2500 = vmatpush1.xpose.msra.mxu0 0.0
        %2501 = vmatprep.subr.mxu0 0.0
        %2502 = vmatpush1.xpose.msra.mxu0 0.0
        %2503 = vmatprep.subr.mxu0 0.0
        %2504 = vmatpush1.xpose.msra.mxu0 0.0
        %2505 = vmatprep.subr.mxu0 0.0
        %2506 = vmatpush1.xpose.msra.mxu0 0.0
        %2507 = vmatprep.subr.mxu0 0.0
        %2508 = vmatpush1.xpose.msra.mxu0 0.0
        %2509 = vmatprep.subr.mxu0 0.0
        %2510 = vmatpush1.xpose.msra.mxu0 0.0
        %2511 = vmatprep.subr.mxu0 0.0
        %2512 = vmatpush1.xpose.msra.mxu0 0.0
        %2513 = vmatprep.subr.mxu0 0.0
        %2514 = vmatpush1.xpose.msra.mxu0 0.0
        %2515 = vmatprep.subr.mxu0 0.0
        %2516 = vmatpush1.xpose.msra.mxu0 0.0
        %2517 = vmatprep.subr.mxu0 0.0
        %2518 = vmatpush1.xpose.msra.mxu0 0.0
        %2519 = vmatprep.subr.mxu0 0.0
        %2520 = vmatpush1.xpose.msra.mxu0 0.0
        %2521 = vmatprep.subr.mxu0 0.0
        %2522 = vmatpush1.xpose.msra.mxu0 0.0
        %2523 = vmatprep.subr.mxu0 0.0
        %2524 = vmatpush1.xpose.msra.mxu0 0.0
        %2525 = vmatprep.subr.mxu0 0.0
        %2526 = vmatpush1.xpose.msra.mxu0 0.0
        %2527 = vmatprep.subr.mxu0 0.0
        %2528 = vmatpush1.xpose.msra.mxu0 0.0
        %2529 = vmatprep.subr.mxu0 0.0
        %2530 = vmatpush1.xpose.msra.mxu0 0.0
        %2531 = vmatprep.subr.mxu0 0.0
        %2532 = vmatpush1.xpose.msra.mxu0 0.0
        %2533 = vmatprep.subr.mxu0 0.0
        %2534 = vmatpush1.xpose.msra.mxu0 0.0
        %2535 = vmatprep.subr.mxu0 0.0
        %2536 = vmatpush1.xpose.msra.mxu0 0.0
        %2537 = vmatprep.subr.mxu0 0.0
        %2538 = vmatpush1.xpose.msra.mxu0 0.0
        %2539 = vmatprep.subr.mxu0 0.0
        %2540 = vmatpush1.xpose.msra.mxu0 0.0
        %2541 = vmatprep.subr.mxu0 0.0
        %2542 = vmatpush1.xpose.msra.mxu0 0.0
        %2543 = vmatprep.subr.mxu0 0.0
        %2544 = vmatpush1.xpose.msra.mxu0 0.0
        %2545 = vmatprep.subr.mxu0 0.0
        %2546 = vmatpush1.xpose.msra.mxu0 0.0
        %2547 = vmatprep.mubr.f32.mxu0 0.0
        %2548 = vmatmul.mubr.f32.gmra.mrb[0].mxu0 %v2479
        %v2549 = vpop.f32.mrb[0].mxu0
        %v2550 = vadd.f32 0.0, %v2549
        %v2551 = vpop.f32.mrb[0].mxu0
        %2552 = vdwg.mxu0
        %2553 = vrot.lane.b32.xlu0 %v1927, 64
        %v2554 = vpop.permute.xlu0 %2553
        %v2555 = vrot.slane %v915, 2
        %v2556 = vsel %vm1004, %v2554, 0
        %v2558 = vsel %vm1004, %v2555, 0
        %2560 = vmatprep.subr.mxu0 0.0
        %2561 = vmatpush1.xpose.msra.mxu0 %v2558
        %2562 = vmatprep.subr.mxu0 0.0
        %2563 = vmatpush1.xpose.msra.mxu0 0.0
        %2564 = vmatprep.subr.mxu0 0.0
        %2565 = vmatpush1.xpose.msra.mxu0 0.0
        %2566 = vmatprep.subr.mxu0 0.0
        %2567 = vmatpush1.xpose.msra.mxu0 0.0
        %2568 = vmatprep.subr.mxu0 0.0
        %2569 = vmatpush1.xpose.msra.mxu0 0.0
        %2570 = vmatprep.subr.mxu0 0.0
        %2571 = vmatpush1.xpose.msra.mxu0 0.0
        %2572 = vmatprep.subr.mxu0 0.0
        %2573 = vmatpush1.xpose.msra.mxu0 0.0
        %2574 = vmatprep.subr.mxu0 0.0
        %2575 = vmatpush1.xpose.msra.mxu0 0.0
        %2576 = vmatprep.subr.mxu0 0.0
        %2577 = vmatpush1.xpose.msra.mxu0 0.0
        %2578 = vmatprep.subr.mxu0 0.0
        %2579 = vmatpush1.xpose.msra.mxu0 0.0
        %2580 = vmatprep.subr.mxu0 0.0
        %2581 = vmatpush1.xpose.msra.mxu0 0.0
        %2582 = vmatprep.subr.mxu0 0.0
        %2583 = vmatpush1.xpose.msra.mxu0 0.0
        %2584 = vmatprep.subr.mxu0 0.0
        %2585 = vmatpush1.xpose.msra.mxu0 0.0
        %2586 = vmatprep.subr.mxu0 0.0
        %2587 = vmatpush1.xpose.msra.mxu0 0.0
        %2588 = vmatprep.subr.mxu0 0.0
        %2589 = vmatpush1.xpose.msra.mxu0 0.0
        %2590 = vmatprep.subr.mxu0 0.0
        %2591 = vmatpush1.xpose.msra.mxu0 0.0
        %2592 = vmatprep.subr.mxu0 0.0
        %2593 = vmatpush1.xpose.msra.mxu0 0.0
        %2594 = vmatprep.subr.mxu0 0.0
        %2595 = vmatpush1.xpose.msra.mxu0 0.0
        %2596 = vmatprep.subr.mxu0 0.0
        %2597 = vmatpush1.xpose.msra.mxu0 0.0
        %2598 = vmatprep.subr.mxu0 0.0
        %2599 = vmatpush1.xpose.msra.mxu0 0.0
        %2600 = vmatprep.subr.mxu0 0.0
        %2601 = vmatpush1.xpose.msra.mxu0 0.0
        %2602 = vmatprep.subr.mxu0 0.0
        %2603 = vmatpush1.xpose.msra.mxu0 0.0
        %2604 = vmatprep.subr.mxu0 0.0
        %2605 = vmatpush1.xpose.msra.mxu0 0.0
        %2606 = vmatprep.subr.mxu0 0.0
        %2607 = vmatpush1.xpose.msra.mxu0 0.0
        %2608 = vmatprep.subr.mxu0 0.0
        %2609 = vmatpush1.xpose.msra.mxu0 0.0
        %2610 = vmatprep.subr.mxu0 0.0
        %2611 = vmatpush1.xpose.msra.mxu0 0.0
        %2612 = vmatprep.subr.mxu0 0.0
        %2613 = vmatpush1.xpose.msra.mxu0 0.0
        %2614 = vmatprep.subr.mxu0 0.0
        %2615 = vmatpush1.xpose.msra.mxu0 0.0
        %2616 = vmatprep.subr.mxu0 0.0
        %2617 = vmatpush1.xpose.msra.mxu0 0.0
        %2618 = vmatprep.subr.mxu0 0.0
        %2619 = vmatpush1.xpose.msra.mxu0 0.0
        %2620 = vmatprep.subr.mxu0 0.0
        %2621 = vmatpush1.xpose.msra.mxu0 0.0
        %2622 = vmatprep.subr.mxu0 0.0
        %2623 = vmatpush1.xpose.msra.mxu0 0.0
        %2624 = vmatprep.mubr.f32.mxu0 0.0
        %2625 = vmatmul.mubr.f32.gmra.mrb[0].mxu0 %v2556
        %v2626 = vpop.f32.mrb[0].mxu0
        %v2627 = vadd.f32 0.0, %v2626
        %v2628 = vpop.f32.mrb[0].mxu0
        %2629 = vdwg.mxu0
        %2630 = vrot.lane.b32.xlu0 %v2008, 64
        %v2631 = vpop.permute.xlu0 %2630
        %v2632 = vrot.slane %v917, 2
        %v2633 = vsel %vm1004, %v2631, 0
        %v2635 = vsel %vm1004, %v2632, 0
        %2637 = vmatprep.subr.mxu0 0.0
        %2638 = vmatpush1.xpose.msra.mxu0 %v2635
        %2639 = vmatprep.subr.mxu0 0.0
        %2640 = vmatpush1.xpose.msra.mxu0 0.0
        %2641 = vmatprep.subr.mxu0 0.0
        %2642 = vmatpush1.xpose.msra.mxu0 0.0
        %2643 = vmatprep.subr.mxu0 0.0
        %2644 = vmatpush1.xpose.msra.mxu0 0.0
        %2645 = vmatprep.subr.mxu0 0.0
        %2646 = vmatpush1.xpose.msra.mxu0 0.0
        %2647 = vmatprep.subr.mxu0 0.0
        %2648 = vmatpush1.xpose.msra.mxu0 0.0
        %2649 = vmatprep.subr.mxu0 0.0
        %2650 = vmatpush1.xpose.msra.mxu0 0.0
        %2651 = vmatprep.subr.mxu0 0.0
        %2652 = vmatpush1.xpose.msra.mxu0 0.0
        %2653 = vmatprep.subr.mxu0 0.0
        %2654 = vmatpush1.xpose.msra.mxu0 0.0
        %2655 = vmatprep.subr.mxu0 0.0
        %2656 = vmatpush1.xpose.msra.mxu0 0.0
        %2657 = vmatprep.subr.mxu0 0.0
        %2658 = vmatpush1.xpose.msra.mxu0 0.0
        %2659 = vmatprep.subr.mxu0 0.0
        %2660 = vmatpush1.xpose.msra.mxu0 0.0
        %2661 = vmatprep.subr.mxu0 0.0
        %2662 = vmatpush1.xpose.msra.mxu0 0.0
        %2663 = vmatprep.subr.mxu0 0.0
        %2664 = vmatpush1.xpose.msra.mxu0 0.0
        %2665 = vmatprep.subr.mxu0 0.0
        %2666 = vmatpush1.xpose.msra.mxu0 0.0
        %2667 = vmatprep.subr.mxu0 0.0
        %2668 = vmatpush1.xpose.msra.mxu0 0.0
        %2669 = vmatprep.subr.mxu0 0.0
        %2670 = vmatpush1.xpose.msra.mxu0 0.0
        %2671 = vmatprep.subr.mxu0 0.0
        %2672 = vmatpush1.xpose.msra.mxu0 0.0
        %2673 = vmatprep.subr.mxu0 0.0
        %2674 = vmatpush1.xpose.msra.mxu0 0.0
        %2675 = vmatprep.subr.mxu0 0.0
        %2676 = vmatpush1.xpose.msra.mxu0 0.0
        %2677 = vmatprep.subr.mxu0 0.0
        %2678 = vmatpush1.xpose.msra.mxu0 0.0
        %2679 = vmatprep.subr.mxu0 0.0
        %2680 = vmatpush1.xpose.msra.mxu0 0.0
        %2681 = vmatprep.subr.mxu0 0.0
        %2682 = vmatpush1.xpose.msra.mxu0 0.0
        %2683 = vmatprep.subr.mxu0 0.0
        %2684 = vmatpush1.xpose.msra.mxu0 0.0
        %2685 = vmatprep.subr.mxu0 0.0
        %2686 = vmatpush1.xpose.msra.mxu0 0.0
        %2687 = vmatprep.subr.mxu0 0.0
        %2688 = vmatpush1.xpose.msra.mxu0 0.0
        %2689 = vmatprep.subr.mxu0 0.0
        %2690 = vmatpush1.xpose.msra.mxu0 0.0
        %2691 = vmatprep.subr.mxu0 0.0
        %2692 = vmatpush1.xpose.msra.mxu0 0.0
        %2693 = vmatprep.subr.mxu0 0.0
        %2694 = vmatpush1.xpose.msra.mxu0 0.0
        %2695 = vmatprep.subr.mxu0 0.0
        %2696 = vmatpush1.xpose.msra.mxu0 0.0
        %2697 = vmatprep.subr.mxu0 0.0
        %2698 = vmatpush1.xpose.msra.mxu0 0.0
        %2699 = vmatprep.subr.mxu0 0.0
        %2700 = vmatpush1.xpose.msra.mxu0 0.0
        %2701 = vmatprep.mubr.f32.mxu0 0.0
        %2702 = vmatmul.mubr.f32.gmra.mrb[0].mxu0 %v2633
        %v2703 = vpop.f32.mrb[0].mxu0
        %v2704 = vadd.f32 0.0, %v2703
        %v2705 = vpop.f32.mrb[0].mxu0
        %2706 = vdwg.mxu0
        %2707 = vrot.lane.b32.xlu0 %v2089, 64
        %v2708 = vpop.permute.xlu0 %2707
        %v2709 = vrot.slane %v921, 2
        %v2710 = vsel %vm1004, %v2708, 0
        %v2712 = vsel %vm1004, %v2709, 0
        %2714 = vmatprep.subr.mxu0 0.0
        %2715 = vmatpush1.xpose.msra.mxu0 %v2712
        %2716 = vmatprep.subr.mxu0 0.0
        %2717 = vmatpush1.xpose.msra.mxu0 0.0
        %2718 = vmatprep.subr.mxu0 0.0
        %2719 = vmatpush1.xpose.msra.mxu0 0.0
        %2720 = vmatprep.subr.mxu0 0.0
        %2721 = vmatpush1.xpose.msra.mxu0 0.0
        %2722 = vmatprep.subr.mxu0 0.0
        %2723 = vmatpush1.xpose.msra.mxu0 0.0
        %2724 = vmatprep.subr.mxu0 0.0
        %2725 = vmatpush1.xpose.msra.mxu0 0.0
        %2726 = vmatprep.subr.mxu0 0.0
        %2727 = vmatpush1.xpose.msra.mxu0 0.0
        %2728 = vmatprep.subr.mxu0 0.0
        %2729 = vmatpush1.xpose.msra.mxu0 0.0
        %2730 = vmatprep.subr.mxu0 0.0
        %2731 = vmatpush1.xpose.msra.mxu0 0.0
        %2732 = vmatprep.subr.mxu0 0.0
        %2733 = vmatpush1.xpose.msra.mxu0 0.0
        %2734 = vmatprep.subr.mxu0 0.0
        %2735 = vmatpush1.xpose.msra.mxu0 0.0
        %2736 = vmatprep.subr.mxu0 0.0
        %2737 = vmatpush1.xpose.msra.mxu0 0.0
        %2738 = vmatprep.subr.mxu0 0.0
        %2739 = vmatpush1.xpose.msra.mxu0 0.0
        %2740 = vmatprep.subr.mxu0 0.0
        %2741 = vmatpush1.xpose.msra.mxu0 0.0
        %2742 = vmatprep.subr.mxu0 0.0
        %2743 = vmatpush1.xpose.msra.mxu0 0.0
        %2744 = vmatprep.subr.mxu0 0.0
        %2745 = vmatpush1.xpose.msra.mxu0 0.0
        %2746 = vmatprep.subr.mxu0 0.0
        %2747 = vmatpush1.xpose.msra.mxu0 0.0
        %2748 = vmatprep.subr.mxu0 0.0
        %2749 = vmatpush1.xpose.msra.mxu0 0.0
        %2750 = vmatprep.subr.mxu0 0.0
        %2751 = vmatpush1.xpose.msra.mxu0 0.0
        %2752 = vmatprep.subr.mxu0 0.0
        %2753 = vmatpush1.xpose.msra.mxu0 0.0
        %2754 = vmatprep.subr.mxu0 0.0
        %2755 = vmatpush1.xpose.msra.mxu0 0.0
        %2756 = vmatprep.subr.mxu0 0.0
        %2757 = vmatpush1.xpose.msra.mxu0 0.0
        %2758 = vmatprep.subr.mxu0 0.0
        %2759 = vmatpush1.xpose.msra.mxu0 0.0
        %2760 = vmatprep.subr.mxu0 0.0
        %2761 = vmatpush1.xpose.msra.mxu0 0.0
        %2762 = vmatprep.subr.mxu0 0.0
        %2763 = vmatpush1.xpose.msra.mxu0 0.0
        %2764 = vmatprep.subr.mxu0 0.0
        %2765 = vmatpush1.xpose.msra.mxu0 0.0
        %2766 = vmatprep.subr.mxu0 0.0
        %2767 = vmatpush1.xpose.msra.mxu0 0.0
        %2768 = vmatprep.subr.mxu0 0.0
        %2769 = vmatpush1.xpose.msra.mxu0 0.0
        %2770 = vmatprep.subr.mxu0 0.0
        %2771 = vmatpush1.xpose.msra.mxu0 0.0
        %2772 = vmatprep.subr.mxu0 0.0
        %2773 = vmatpush1.xpose.msra.mxu0 0.0
        %2774 = vmatprep.subr.mxu0 0.0
        %2775 = vmatpush1.xpose.msra.mxu0 0.0
        %2776 = vmatprep.subr.mxu0 0.0
        %2777 = vmatpush1.xpose.msra.mxu0 0.0
        %2778 = vmatprep.mubr.f32.mxu0 0.0
        %2779 = vmatmul.mubr.f32.gmra.mrb[0].mxu0 %v2710
        %v2780 = vpop.f32.mrb[0].mxu0
        %v2781 = vadd.f32 0.0, %v2780
        %v2782 = vpop.f32.mrb[0].mxu0
        %2783 = vdwg.mxu0
        %2784 = vrot.lane.b32.xlu0 %v2170, 64
        %v2785 = vpop.permute.xlu0 %2784
        %v2786 = vrot.slane %v923, 2
        %v2787 = vsel %vm1004, %v2785, 0
        %v2789 = vsel %vm1004, %v2786, 0
        %2791 = vmatprep.subr.mxu0 0.0
        %2792 = vmatpush1.xpose.msra.mxu0 %v2789
        %2793 = vmatprep.subr.mxu0 0.0
        %2794 = vmatpush1.xpose.msra.mxu0 0.0
        %2795 = vmatprep.subr.mxu0 0.0
        %2796 = vmatpush1.xpose.msra.mxu0 0.0
        %2797 = vmatprep.subr.mxu0 0.0
        %2798 = vmatpush1.xpose.msra.mxu0 0.0
        %2799 = vmatprep.subr.mxu0 0.0
        %2800 = vmatpush1.xpose.msra.mxu0 0.0
        %2801 = vmatprep.subr.mxu0 0.0
        %2802 = vmatpush1.xpose.msra.mxu0 0.0
        %2803 = vmatprep.subr.mxu0 0.0
        %2804 = vmatpush1.xpose.msra.mxu0 0.0
        %2805 = vmatprep.subr.mxu0 0.0
        %2806 = vmatpush1.xpose.msra.mxu0 0.0
        %2807 = vmatprep.subr.mxu0 0.0
        %2808 = vmatpush1.xpose.msra.mxu0 0.0
        %2809 = vmatprep.subr.mxu0 0.0
        %2810 = vmatpush1.xpose.msra.mxu0 0.0
        %2811 = vmatprep.subr.mxu0 0.0
        %2812 = vmatpush1.xpose.msra.mxu0 0.0
        %2813 = vmatprep.subr.mxu0 0.0
        %2814 = vmatpush1.xpose.msra.mxu0 0.0
        %2815 = vmatprep.subr.mxu0 0.0
        %2816 = vmatpush1.xpose.msra.mxu0 0.0
        %2817 = vmatprep.subr.mxu0 0.0
        %2818 = vmatpush1.xpose.msra.mxu0 0.0
        %2819 = vmatprep.subr.mxu0 0.0
        %2820 = vmatpush1.xpose.msra.mxu0 0.0
        %2821 = vmatprep.subr.mxu0 0.0
        %2822 = vmatpush1.xpose.msra.mxu0 0.0
        %2823 = vmatprep.subr.mxu0 0.0
        %2824 = vmatpush1.xpose.msra.mxu0 0.0
        %2825 = vmatprep.subr.mxu0 0.0
        %2826 = vmatpush1.xpose.msra.mxu0 0.0
        %2827 = vmatprep.subr.mxu0 0.0
        %2828 = vmatpush1.xpose.msra.mxu0 0.0
        %2829 = vmatprep.subr.mxu0 0.0
        %2830 = vmatpush1.xpose.msra.mxu0 0.0
        %2831 = vmatprep.subr.mxu0 0.0
        %2832 = vmatpush1.xpose.msra.mxu0 0.0
        %2833 = vmatprep.subr.mxu0 0.0
        %2834 = vmatpush1.xpose.msra.mxu0 0.0
        %2835 = vmatprep.subr.mxu0 0.0
        %2836 = vmatpush1.xpose.msra.mxu0 0.0
        %2837 = vmatprep.subr.mxu0 0.0
        %2838 = vmatpush1.xpose.msra.mxu0 0.0
        %2839 = vmatprep.subr.mxu0 0.0
        %2840 = vmatpush1.xpose.msra.mxu0 0.0
        %2841 = vmatprep.subr.mxu0 0.0
        %2842 = vmatpush1.xpose.msra.mxu0 0.0
        %2843 = vmatprep.subr.mxu0 0.0
        %2844 = vmatpush1.xpose.msra.mxu0 0.0
        %2845 = vmatprep.subr.mxu0 0.0
        %2846 = vmatpush1.xpose.msra.mxu0 0.0
        %2847 = vmatprep.subr.mxu0 0.0
        %2848 = vmatpush1.xpose.msra.mxu0 0.0
        %2849 = vmatprep.subr.mxu0 0.0
        %2850 = vmatpush1.xpose.msra.mxu0 0.0
        %2851 = vmatprep.subr.mxu0 0.0
        %2852 = vmatpush1.xpose.msra.mxu0 0.0
        %2853 = vmatprep.subr.mxu0 0.0
        %2854 = vmatpush1.xpose.msra.mxu0 0.0
        %2855 = vmatprep.mubr.f32.mxu0 0.0
        %2856 = vmatmul.mubr.f32.gmra.mrb[0].mxu0 %v2787
        %v2857 = vpop.f32.mrb[0].mxu0
        %v2858 = vadd.f32 0.0, %v2857
        %v2859 = vpop.f32.mrb[0].mxu0
        %2860 = vdwg.mxu0
        %2861 = vrot.lane.b32.xlu0 %v1603, 32
        %v2862 = vpop.permute.xlu0 %2861
        %v2863 = vrot.slane %v637, 4
        %v2864 = vsel %vm1004, %v2862, 0
        %v2866 = vsel %vm1004, %v2863, 0
        %2868 = vmatprep.subr.mxu0 0.0
        %2869 = vmatpush1.xpose.msra.mxu0 %v2866
        %2870 = vmatprep.subr.mxu0 0.0
        %2871 = vmatpush1.xpose.msra.mxu0 0.0
        %2872 = vmatprep.subr.mxu0 0.0
        %2873 = vmatpush1.xpose.msra.mxu0 0.0
        %2874 = vmatprep.subr.mxu0 0.0
        %2875 = vmatpush1.xpose.msra.mxu0 0.0
        %2876 = vmatprep.subr.mxu0 0.0
        %2877 = vmatpush1.xpose.msra.mxu0 0.0
        %2878 = vmatprep.subr.mxu0 0.0
        %2879 = vmatpush1.xpose.msra.mxu0 0.0
        %2880 = vmatprep.subr.mxu0 0.0
        %2881 = vmatpush1.xpose.msra.mxu0 0.0
        %2882 = vmatprep.subr.mxu0 0.0
        %2883 = vmatpush1.xpose.msra.mxu0 0.0
        %2884 = vmatprep.subr.mxu0 0.0
        %2885 = vmatpush1.xpose.msra.mxu0 0.0
        %2886 = vmatprep.subr.mxu0 0.0
        %2887 = vmatpush1.xpose.msra.mxu0 0.0
        %2888 = vmatprep.subr.mxu0 0.0
        %2889 = vmatpush1.xpose.msra.mxu0 0.0
        %2890 = vmatprep.subr.mxu0 0.0
        %2891 = vmatpush1.xpose.msra.mxu0 0.0
        %2892 = vmatprep.subr.mxu0 0.0
        %2893 = vmatpush1.xpose.msra.mxu0 0.0
        %2894 = vmatprep.subr.mxu0 0.0
        %2895 = vmatpush1.xpose.msra.mxu0 0.0
        %2896 = vmatprep.subr.mxu0 0.0
        %2897 = vmatpush1.xpose.msra.mxu0 0.0
        %2898 = vmatprep.subr.mxu0 0.0
        %2899 = vmatpush1.xpose.msra.mxu0 0.0
        %2900 = vmatprep.subr.mxu0 0.0
        %2901 = vmatpush1.xpose.msra.mxu0 0.0
        %2902 = vmatprep.subr.mxu0 0.0
        %2903 = vmatpush1.xpose.msra.mxu0 0.0
        %2904 = vmatprep.subr.mxu0 0.0
        %2905 = vmatpush1.xpose.msra.mxu0 0.0
        %2906 = vmatprep.subr.mxu0 0.0
        %2907 = vmatpush1.xpose.msra.mxu0 0.0
        %2908 = vmatprep.subr.mxu0 0.0
        %2909 = vmatpush1.xpose.msra.mxu0 0.0
        %2910 = vmatprep.subr.mxu0 0.0
        %2911 = vmatpush1.xpose.msra.mxu0 0.0
        %2912 = vmatprep.subr.mxu0 0.0
        %2913 = vmatpush1.xpose.msra.mxu0 0.0
        %2914 = vmatprep.subr.mxu0 0.0
        %2915 = vmatpush1.xpose.msra.mxu0 0.0
        %2916 = vmatprep.subr.mxu0 0.0
        %2917 = vmatpush1.xpose.msra.mxu0 0.0
        %2918 = vmatprep.subr.mxu0 0.0
        %2919 = vmatpush1.xpose.msra.mxu0 0.0
        %2920 = vmatprep.subr.mxu0 0.0
        %2921 = vmatpush1.xpose.msra.mxu0 0.0
        %2922 = vmatprep.subr.mxu0 0.0
        %2923 = vmatpush1.xpose.msra.mxu0 0.0
        %2924 = vmatprep.subr.mxu0 0.0
        %2925 = vmatpush1.xpose.msra.mxu0 0.0
        %2926 = vmatprep.subr.mxu0 0.0
        %2927 = vmatpush1.xpose.msra.mxu0 0.0
        %2928 = vmatprep.subr.mxu0 0.0
        %2929 = vmatpush1.xpose.msra.mxu0 0.0
        %2930 = vmatprep.subr.mxu0 0.0
        %2931 = vmatpush1.xpose.msra.mxu0 0.0
        %2932 = vmatprep.mubr.f32.mxu0 0.0
        %2933 = vmatmul.mubr.f32.gmra.mrb[0].mxu0 %v2864
        %v2934 = vpop.f32.mrb[0].mxu0
        %v2935 = vadd.f32 0.0, %v2934
        %v2936 = vpop.f32.mrb[0].mxu0
        %2937 = vdwg.mxu0
        %2938 = vrot.lane.b32.xlu0 %v1684, 32
        %v2939 = vpop.permute.xlu0 %2938
        %v2940 = vrot.slane %v642, 4
        %v2941 = vsel %vm1004, %v2939, 0
        %v2943 = vsel %vm1004, %v2940, 0
        %2945 = vmatprep.subr.mxu0 0.0
        %2946 = vmatpush1.xpose.msra.mxu0 %v2943
        %2947 = vmatprep.subr.mxu0 0.0
        %2948 = vmatpush1.xpose.msra.mxu0 0.0
        %2949 = vmatprep.subr.mxu0 0.0
        %2950 = vmatpush1.xpose.msra.mxu0 0.0
        %2951 = vmatprep.subr.mxu0 0.0
        %2952 = vmatpush1.xpose.msra.mxu0 0.0
        %2953 = vmatprep.subr.mxu0 0.0
        %2954 = vmatpush1.xpose.msra.mxu0 0.0
        %2955 = vmatprep.subr.mxu0 0.0
        %2956 = vmatpush1.xpose.msra.mxu0 0.0
        %2957 = vmatprep.subr.mxu0 0.0
        %2958 = vmatpush1.xpose.msra.mxu0 0.0
        %2959 = vmatprep.subr.mxu0 0.0
        %2960 = vmatpush1.xpose.msra.mxu0 0.0
        %2961 = vmatprep.subr.mxu0 0.0
        %2962 = vmatpush1.xpose.msra.mxu0 0.0
        %2963 = vmatprep.subr.mxu0 0.0
        %2964 = vmatpush1.xpose.msra.mxu0 0.0
        %2965 = vmatprep.subr.mxu0 0.0
        %2966 = vmatpush1.xpose.msra.mxu0 0.0
        %2967 = vmatprep.subr.mxu0 0.0
        %2968 = vmatpush1.xpose.msra.mxu0 0.0
        %2969 = vmatprep.subr.mxu0 0.0
        %2970 = vmatpush1.xpose.msra.mxu0 0.0
        %2971 = vmatprep.subr.mxu0 0.0
        %2972 = vmatpush1.xpose.msra.mxu0 0.0
        %2973 = vmatprep.subr.mxu0 0.0
        %2974 = vmatpush1.xpose.msra.mxu0 0.0
        %2975 = vmatprep.subr.mxu0 0.0
        %2976 = vmatpush1.xpose.msra.mxu0 0.0
        %2977 = vmatprep.subr.mxu0 0.0
        %2978 = vmatpush1.xpose.msra.mxu0 0.0
        %2979 = vmatprep.subr.mxu0 0.0
        %2980 = vmatpush1.xpose.msra.mxu0 0.0
        %2981 = vmatprep.subr.mxu0 0.0
        %2982 = vmatpush1.xpose.msra.mxu0 0.0
        %2983 = vmatprep.subr.mxu0 0.0
        %2984 = vmatpush1.xpose.msra.mxu0 0.0
        %2985 = vmatprep.subr.mxu0 0.0
        %2986 = vmatpush1.xpose.msra.mxu0 0.0
        %2987 = vmatprep.subr.mxu0 0.0
        %2988 = vmatpush1.xpose.msra.mxu0 0.0
        %2989 = vmatprep.subr.mxu0 0.0
        %2990 = vmatpush1.xpose.msra.mxu0 0.0
        %2991 = vmatprep.subr.mxu0 0.0
        %2992 = vmatpush1.xpose.msra.mxu0 0.0
        %2993 = vmatprep.subr.mxu0 0.0
        %2994 = vmatpush1.xpose.msra.mxu0 0.0
        %2995 = vmatprep.subr.mxu0 0.0
        %2996 = vmatpush1.xpose.msra.mxu0 0.0
        %2997 = vmatprep.subr.mxu0 0.0
        %2998 = vmatpush1.xpose.msra.mxu0 0.0
        %2999 = vmatprep.subr.mxu0 0.0
        %3000 = vmatpush1.xpose.msra.mxu0 0.0
        %3001 = vmatprep.subr.mxu0 0.0
        %3002 = vmatpush1.xpose.msra.mxu0 0.0
        %3003 = vmatprep.subr.mxu0 0.0
        %3004 = vmatpush1.xpose.msra.mxu0 0.0
        %3005 = vmatprep.subr.mxu0 0.0
        %3006 = vmatpush1.xpose.msra.mxu0 0.0
        %3007 = vmatprep.subr.mxu0 0.0
        %3008 = vmatpush1.xpose.msra.mxu0 0.0
        %3009 = vmatprep.mubr.f32.mxu0 0.0
        %3010 = vmatmul.mubr.f32.gmra.mrb[0].mxu0 %v2941
        %v3011 = vpop.f32.mrb[0].mxu0
        %v3012 = vadd.f32 0.0, %v3011
        %v3013 = vpop.f32.mrb[0].mxu0
        %3014 = vdwg.mxu0
        %3015 = vrot.lane.b32.xlu0 %v1765, 32
        %v3016 = vpop.permute.xlu0 %3015
        %v3017 = vrot.slane %v909, 4
        %v3018 = vsel %vm1004, %v3016, 0
        %v3020 = vsel %vm1004, %v3017, 0
        %3022 = vmatprep.subr.mxu0 0.0
        %3023 = vmatpush1.xpose.msra.mxu0 %v3020
        %3024 = vmatprep.subr.mxu0 0.0
        %3025 = vmatpush1.xpose.msra.mxu0 0.0
        %3026 = vmatprep.subr.mxu0 0.0
        %3027 = vmatpush1.xpose.msra.mxu0 0.0
        %3028 = vmatprep.subr.mxu0 0.0
        %3029 = vmatpush1.xpose.msra.mxu0 0.0
        %3030 = vmatprep.subr.mxu0 0.0
        %3031 = vmatpush1.xpose.msra.mxu0 0.0
        %3032 = vmatprep.subr.mxu0 0.0
        %3033 = vmatpush1.xpose.msra.mxu0 0.0
        %3034 = vmatprep.subr.mxu0 0.0
        %3035 = vmatpush1.xpose.msra.mxu0 0.0
        %3036 = vmatprep.subr.mxu0 0.0
        %3037 = vmatpush1.xpose.msra.mxu0 0.0
        %3038 = vmatprep.subr.mxu0 0.0
        %3039 = vmatpush1.xpose.msra.mxu0 0.0
        %3040 = vmatprep.subr.mxu0 0.0
        %3041 = vmatpush1.xpose.msra.mxu0 0.0
        %3042 = vmatprep.subr.mxu0 0.0
        %3043 = vmatpush1.xpose.msra.mxu0 0.0
        %3044 = vmatprep.subr.mxu0 0.0
        %3045 = vmatpush1.xpose.msra.mxu0 0.0
        %3046 = vmatprep.subr.mxu0 0.0
        %3047 = vmatpush1.xpose.msra.mxu0 0.0
        %3048 = vmatprep.subr.mxu0 0.0
        %3049 = vmatpush1.xpose.msra.mxu0 0.0
        %3050 = vmatprep.subr.mxu0 0.0
        %3051 = vmatpush1.xpose.msra.mxu0 0.0
        %3052 = vmatprep.subr.mxu0 0.0
        %3053 = vmatpush1.xpose.msra.mxu0 0.0
        %3054 = vmatprep.subr.mxu0 0.0
        %3055 = vmatpush1.xpose.msra.mxu0 0.0
        %3056 = vmatprep.subr.mxu0 0.0
        %3057 = vmatpush1.xpose.msra.mxu0 0.0
        %3058 = vmatprep.subr.mxu0 0.0
        %3059 = vmatpush1.xpose.msra.mxu0 0.0
        %3060 = vmatprep.subr.mxu0 0.0
        %3061 = vmatpush1.xpose.msra.mxu0 0.0
        %3062 = vmatprep.subr.mxu0 0.0
        %3063 = vmatpush1.xpose.msra.mxu0 0.0
        %3064 = vmatprep.subr.mxu0 0.0
        %3065 = vmatpush1.xpose.msra.mxu0 0.0
        %3066 = vmatprep.subr.mxu0 0.0
        %3067 = vmatpush1.xpose.msra.mxu0 0.0
        %3068 = vmatprep.subr.mxu0 0.0
        %3069 = vmatpush1.xpose.msra.mxu0 0.0
        %3070 = vmatprep.subr.mxu0 0.0
        %3071 = vmatpush1.xpose.msra.mxu0 0.0
        %3072 = vmatprep.subr.mxu0 0.0
        %3073 = vmatpush1.xpose.msra.mxu0 0.0
        %3074 = vmatprep.subr.mxu0 0.0
        %3075 = vmatpush1.xpose.msra.mxu0 0.0
        %3076 = vmatprep.subr.mxu0 0.0
        %3077 = vmatpush1.xpose.msra.mxu0 0.0
        %3078 = vmatprep.subr.mxu0 0.0
        %3079 = vmatpush1.xpose.msra.mxu0 0.0
        %3080 = vmatprep.subr.mxu0 0.0
        %3081 = vmatpush1.xpose.msra.mxu0 0.0
        %3082 = vmatprep.subr.mxu0 0.0
        %3083 = vmatpush1.xpose.msra.mxu0 0.0
        %3084 = vmatprep.subr.mxu0 0.0
        %3085 = vmatpush1.xpose.msra.mxu0 0.0
        %3086 = vmatprep.mubr.f32.mxu0 0.0
        %3087 = vmatmul.mubr.f32.gmra.mrb[0].mxu0 %v3018
        %v3088 = vpop.f32.mrb[0].mxu0
        %v3089 = vadd.f32 0.0, %v3088
        %v3090 = vpop.f32.mrb[0].mxu0
        %3091 = vdwg.mxu0
        %3092 = vrot.lane.b32.xlu0 %v1846, 32
        %v3093 = vpop.permute.xlu0 %3092
        %v3094 = vrot.slane %v911, 4
        %v3095 = vsel %vm1004, %v3093, 0
        %v3097 = vsel %vm1004, %v3094, 0
        %3099 = vmatprep.subr.mxu0 0.0
        %3100 = vmatpush1.xpose.msra.mxu0 %v3097
        %3101 = vmatprep.subr.mxu0 0.0
        %3102 = vmatpush1.xpose.msra.mxu0 0.0
        %3103 = vmatprep.subr.mxu0 0.0
        %3104 = vmatpush1.xpose.msra.mxu0 0.0
        %3105 = vmatprep.subr.mxu0 0.0
        %3106 = vmatpush1.xpose.msra.mxu0 0.0
        %3107 = vmatprep.subr.mxu0 0.0
        %3108 = vmatpush1.xpose.msra.mxu0 0.0
        %3109 = vmatprep.subr.mxu0 0.0
        %3110 = vmatpush1.xpose.msra.mxu0 0.0
        %3111 = vmatprep.subr.mxu0 0.0
        %3112 = vmatpush1.xpose.msra.mxu0 0.0
        %3113 = vmatprep.subr.mxu0 0.0
        %3114 = vmatpush1.xpose.msra.mxu0 0.0
        %3115 = vmatprep.subr.mxu0 0.0
        %3116 = vmatpush1.xpose.msra.mxu0 0.0
        %3117 = vmatprep.subr.mxu0 0.0
        %3118 = vmatpush1.xpose.msra.mxu0 0.0
        %3119 = vmatprep.subr.mxu0 0.0
        %3120 = vmatpush1.xpose.msra.mxu0 0.0
        %3121 = vmatprep.subr.mxu0 0.0
        %3122 = vmatpush1.xpose.msra.mxu0 0.0
        %3123 = vmatprep.subr.mxu0 0.0
        %3124 = vmatpush1.xpose.msra.mxu0 0.0
        %3125 = vmatprep.subr.mxu0 0.0
        %3126 = vmatpush1.xpose.msra.mxu0 0.0
        %3127 = vmatprep.subr.mxu0 0.0
        %3128 = vmatpush1.xpose.msra.mxu0 0.0
        %3129 = vmatprep.subr.mxu0 0.0
        %3130 = vmatpush1.xpose.msra.mxu0 0.0
        %3131 = vmatprep.subr.mxu0 0.0
        %3132 = vmatpush1.xpose.msra.mxu0 0.0
        %3133 = vmatprep.subr.mxu0 0.0
        %3134 = vmatpush1.xpose.msra.mxu0 0.0
        %3135 = vmatprep.subr.mxu0 0.0
        %3136 = vmatpush1.xpose.msra.mxu0 0.0
        %3137 = vmatprep.subr.mxu0 0.0
        %3138 = vmatpush1.xpose.msra.mxu0 0.0
        %3139 = vmatprep.subr.mxu0 0.0
        %3140 = vmatpush1.xpose.msra.mxu0 0.0
        %3141 = vmatprep.subr.mxu0 0.0
        %3142 = vmatpush1.xpose.msra.mxu0 0.0
        %3143 = vmatprep.subr.mxu0 0.0
        %3144 = vmatpush1.xpose.msra.mxu0 0.0
        %3145 = vmatprep.subr.mxu0 0.0
        %3146 = vmatpush1.xpose.msra.mxu0 0.0
        %3147 = vmatprep.subr.mxu0 0.0
        %3148 = vmatpush1.xpose.msra.mxu0 0.0
        %3149 = vmatprep.subr.mxu0 0.0
        %3150 = vmatpush1.xpose.msra.mxu0 0.0
        %3151 = vmatprep.subr.mxu0 0.0
        %3152 = vmatpush1.xpose.msra.mxu0 0.0
        %3153 = vmatprep.subr.mxu0 0.0
        %3154 = vmatpush1.xpose.msra.mxu0 0.0
        %3155 = vmatprep.subr.mxu0 0.0
        %3156 = vmatpush1.xpose.msra.mxu0 0.0
        %3157 = vmatprep.subr.mxu0 0.0
        %3158 = vmatpush1.xpose.msra.mxu0 0.0
        %3159 = vmatprep.subr.mxu0 0.0
        %3160 = vmatpush1.xpose.msra.mxu0 0.0
        %3161 = vmatprep.subr.mxu0 0.0
        %3162 = vmatpush1.xpose.msra.mxu0 0.0
        %3163 = vmatprep.mubr.f32.mxu0 0.0
        %3164 = vmatmul.mubr.f32.gmra.mrb[0].mxu0 %v3095
        %v3165 = vpop.f32.mrb[0].mxu0
        %v3166 = vadd.f32 0.0, %v3165
        %v3167 = vpop.f32.mrb[0].mxu0
        %3168 = vdwg.mxu0
        %3169 = vrot.lane.b32.xlu0 %v1927, 32
        %v3170 = vpop.permute.xlu0 %3169
        %v3171 = vrot.slane %v915, 4
        %v3172 = vsel %vm1004, %v3170, 0
        %v3174 = vsel %vm1004, %v3171, 0
        %3176 = vmatprep.subr.mxu0 0.0
        %3177 = vmatpush1.xpose.msra.mxu0 %v3174
        %3178 = vmatprep.subr.mxu0 0.0
        %3179 = vmatpush1.xpose.msra.mxu0 0.0
        %3180 = vmatprep.subr.mxu0 0.0
        %3181 = vmatpush1.xpose.msra.mxu0 0.0
        %3182 = vmatprep.subr.mxu0 0.0
        %3183 = vmatpush1.xpose.msra.mxu0 0.0
        %3184 = vmatprep.subr.mxu0 0.0
        %3185 = vmatpush1.xpose.msra.mxu0 0.0
        %3186 = vmatprep.subr.mxu0 0.0
        %3187 = vmatpush1.xpose.msra.mxu0 0.0
        %3188 = vmatprep.subr.mxu0 0.0
        %3189 = vmatpush1.xpose.msra.mxu0 0.0
        %3190 = vmatprep.subr.mxu0 0.0
        %3191 = vmatpush1.xpose.msra.mxu0 0.0
        %3192 = vmatprep.subr.mxu0 0.0
        %3193 = vmatpush1.xpose.msra.mxu0 0.0
        %3194 = vmatprep.subr.mxu0 0.0
        %3195 = vmatpush1.xpose.msra.mxu0 0.0
        %3196 = vmatprep.subr.mxu0 0.0
        %3197 = vmatpush1.xpose.msra.mxu0 0.0
        %3198 = vmatprep.subr.mxu0 0.0
        %3199 = vmatpush1.xpose.msra.mxu0 0.0
        %3200 = vmatprep.subr.mxu0 0.0
        %3201 = vmatpush1.xpose.msra.mxu0 0.0
        %3202 = vmatprep.subr.mxu0 0.0
        %3203 = vmatpush1.xpose.msra.mxu0 0.0
        %3204 = vmatprep.subr.mxu0 0.0
        %3205 = vmatpush1.xpose.msra.mxu0 0.0
        %3206 = vmatprep.subr.mxu0 0.0
        %3207 = vmatpush1.xpose.msra.mxu0 0.0
        %3208 = vmatprep.subr.mxu0 0.0
        %3209 = vmatpush1.xpose.msra.mxu0 0.0
        %3210 = vmatprep.subr.mxu0 0.0
        %3211 = vmatpush1.xpose.msra.mxu0 0.0
        %3212 = vmatprep.subr.mxu0 0.0
        %3213 = vmatpush1.xpose.msra.mxu0 0.0
        %3214 = vmatprep.subr.mxu0 0.0
        %3215 = vmatpush1.xpose.msra.mxu0 0.0
        %3216 = vmatprep.subr.mxu0 0.0
        %3217 = vmatpush1.xpose.msra.mxu0 0.0
        %3218 = vmatprep.subr.mxu0 0.0
        %3219 = vmatpush1.xpose.msra.mxu0 0.0
        %3220 = vmatprep.subr.mxu0 0.0
        %3221 = vmatpush1.xpose.msra.mxu0 0.0
        %3222 = vmatprep.subr.mxu0 0.0
        %3223 = vmatpush1.xpose.msra.mxu0 0.0
        %3224 = vmatprep.subr.mxu0 0.0
        %3225 = vmatpush1.xpose.msra.mxu0 0.0
        %3226 = vmatprep.subr.mxu0 0.0
        %3227 = vmatpush1.xpose.msra.mxu0 0.0
        %3228 = vmatprep.subr.mxu0 0.0
        %3229 = vmatpush1.xpose.msra.mxu0 0.0
        %3230 = vmatprep.subr.mxu0 0.0
        %3231 = vmatpush1.xpose.msra.mxu0 0.0
        %3232 = vmatprep.subr.mxu0 0.0
        %3233 = vmatpush1.xpose.msra.mxu0 0.0
        %3234 = vmatprep.subr.mxu0 0.0
        %3235 = vmatpush1.xpose.msra.mxu0 0.0
        %3236 = vmatprep.subr.mxu0 0.0
        %3237 = vmatpush1.xpose.msra.mxu0 0.0
        %3238 = vmatprep.subr.mxu0 0.0
        %3239 = vmatpush1.xpose.msra.mxu0 0.0
        %3240 = vmatprep.mubr.f32.mxu0 0.0
        %3241 = vmatmul.mubr.f32.gmra.mrb[0].mxu0 %v3172
        %v3242 = vpop.f32.mrb[0].mxu0
        %v3243 = vadd.f32 0.0, %v3242
        %v3244 = vpop.f32.mrb[0].mxu0
        %3245 = vdwg.mxu0
        %3246 = vrot.lane.b32.xlu0 %v2008, 32
        %v3247 = vpop.permute.xlu0 %3246
        %v3248 = vrot.slane %v917, 4
        %v3249 = vsel %vm1004, %v3247, 0
        %v3251 = vsel %vm1004, %v3248, 0
        %3253 = vmatprep.subr.mxu0 0.0
        %3254 = vmatpush1.xpose.msra.mxu0 %v3251
        %3255 = vmatprep.subr.mxu0 0.0
        %3256 = vmatpush1.xpose.msra.mxu0 0.0
        %3257 = vmatprep.subr.mxu0 0.0
        %3258 = vmatpush1.xpose.msra.mxu0 0.0
        %3259 = vmatprep.subr.mxu0 0.0
        %3260 = vmatpush1.xpose.msra.mxu0 0.0
        %3261 = vmatprep.subr.mxu0 0.0
        %3262 = vmatpush1.xpose.msra.mxu0 0.0
        %3263 = vmatprep.subr.mxu0 0.0
        %3264 = vmatpush1.xpose.msra.mxu0 0.0
        %3265 = vmatprep.subr.mxu0 0.0
        %3266 = vmatpush1.xpose.msra.mxu0 0.0
        %3267 = vmatprep.subr.mxu0 0.0
        %3268 = vmatpush1.xpose.msra.mxu0 0.0
        %3269 = vmatprep.subr.mxu0 0.0
        %3270 = vmatpush1.xpose.msra.mxu0 0.0
        %3271 = vmatprep.subr.mxu0 0.0
        %3272 = vmatpush1.xpose.msra.mxu0 0.0
        %3273 = vmatprep.subr.mxu0 0.0
        %3274 = vmatpush1.xpose.msra.mxu0 0.0
        %3275 = vmatprep.subr.mxu0 0.0
        %3276 = vmatpush1.xpose.msra.mxu0 0.0
        %3277 = vmatprep.subr.mxu0 0.0
        %3278 = vmatpush1.xpose.msra.mxu0 0.0
        %3279 = vmatprep.subr.mxu0 0.0
        %3280 = vmatpush1.xpose.msra.mxu0 0.0
        %3281 = vmatprep.subr.mxu0 0.0
        %3282 = vmatpush1.xpose.msra.mxu0 0.0
        %3283 = vmatprep.subr.mxu0 0.0
        %3284 = vmatpush1.xpose.msra.mxu0 0.0
        %3285 = vmatprep.subr.mxu0 0.0
        %3286 = vmatpush1.xpose.msra.mxu0 0.0
        %3287 = vmatprep.subr.mxu0 0.0
        %3288 = vmatpush1.xpose.msra.mxu0 0.0
        %3289 = vmatprep.subr.mxu0 0.0
        %3290 = vmatpush1.xpose.msra.mxu0 0.0
        %3291 = vmatprep.subr.mxu0 0.0
        %3292 = vmatpush1.xpose.msra.mxu0 0.0
        %3293 = vmatprep.subr.mxu0 0.0
        %3294 = vmatpush1.xpose.msra.mxu0 0.0
        %3295 = vmatprep.subr.mxu0 0.0
        %3296 = vmatpush1.xpose.msra.mxu0 0.0
        %3297 = vmatprep.subr.mxu0 0.0
        %3298 = vmatpush1.xpose.msra.mxu0 0.0
        %3299 = vmatprep.subr.mxu0 0.0
        %3300 = vmatpush1.xpose.msra.mxu0 0.0
        %3301 = vmatprep.subr.mxu0 0.0
        %3302 = vmatpush1.xpose.msra.mxu0 0.0
        %3303 = vmatprep.subr.mxu0 0.0
        %3304 = vmatpush1.xpose.msra.mxu0 0.0
        %3305 = vmatprep.subr.mxu0 0.0
        %3306 = vmatpush1.xpose.msra.mxu0 0.0
        %3307 = vmatprep.subr.mxu0 0.0
        %3308 = vmatpush1.xpose.msra.mxu0 0.0
        %3309 = vmatprep.subr.mxu0 0.0
        %3310 = vmatpush1.xpose.msra.mxu0 0.0
        %3311 = vmatprep.subr.mxu0 0.0
        %3312 = vmatpush1.xpose.msra.mxu0 0.0
        %3313 = vmatprep.subr.mxu0 0.0
        %3314 = vmatpush1.xpose.msra.mxu0 0.0
        %3315 = vmatprep.subr.mxu0 0.0
        %3316 = vmatpush1.xpose.msra.mxu0 0.0
        %3317 = vmatprep.mubr.f32.mxu0 0.0
        %3318 = vmatmul.mubr.f32.gmra.mrb[0].mxu0 %v3249
        %v3319 = vpop.f32.mrb[0].mxu0
        %v3320 = vadd.f32 0.0, %v3319
        %v3321 = vpop.f32.mrb[0].mxu0
        %3322 = vdwg.mxu0
        %3323 = vrot.lane.b32.xlu0 %v2089, 32
        %v3324 = vpop.permute.xlu0 %3323
        %v3325 = vrot.slane %v921, 4
        %v3326 = vsel %vm1004, %v3324, 0
        %v3328 = vsel %vm1004, %v3325, 0
        %3330 = vmatprep.subr.mxu0 0.0
        %3331 = vmatpush1.xpose.msra.mxu0 %v3328
        %3332 = vmatprep.subr.mxu0 0.0
        %3333 = vmatpush1.xpose.msra.mxu0 0.0
        %3334 = vmatprep.subr.mxu0 0.0
        %3335 = vmatpush1.xpose.msra.mxu0 0.0
        %3336 = vmatprep.subr.mxu0 0.0
        %3337 = vmatpush1.xpose.msra.mxu0 0.0
        %3338 = vmatprep.subr.mxu0 0.0
        %3339 = vmatpush1.xpose.msra.mxu0 0.0
        %3340 = vmatprep.subr.mxu0 0.0
        %3341 = vmatpush1.xpose.msra.mxu0 0.0
        %3342 = vmatprep.subr.mxu0 0.0
        %3343 = vmatpush1.xpose.msra.mxu0 0.0
        %3344 = vmatprep.subr.mxu0 0.0
        %3345 = vmatpush1.xpose.msra.mxu0 0.0
        %3346 = vmatprep.subr.mxu0 0.0
        %3347 = vmatpush1.xpose.msra.mxu0 0.0
        %3348 = vmatprep.subr.mxu0 0.0
        %3349 = vmatpush1.xpose.msra.mxu0 0.0
        %3350 = vmatprep.subr.mxu0 0.0
        %3351 = vmatpush1.xpose.msra.mxu0 0.0
        %3352 = vmatprep.subr.mxu0 0.0
        %3353 = vmatpush1.xpose.msra.mxu0 0.0
        %3354 = vmatprep.subr.mxu0 0.0
        %3355 = vmatpush1.xpose.msra.mxu0 0.0
        %3356 = vmatprep.subr.mxu0 0.0
        %3357 = vmatpush1.xpose.msra.mxu0 0.0
        %3358 = vmatprep.subr.mxu0 0.0
        %3359 = vmatpush1.xpose.msra.mxu0 0.0
        %3360 = vmatprep.subr.mxu0 0.0
        %3361 = vmatpush1.xpose.msra.mxu0 0.0
        %3362 = vmatprep.subr.mxu0 0.0
        %3363 = vmatpush1.xpose.msra.mxu0 0.0
        %3364 = vmatprep.subr.mxu0 0.0
        %3365 = vmatpush1.xpose.msra.mxu0 0.0
        %3366 = vmatprep.subr.mxu0 0.0
        %3367 = vmatpush1.xpose.msra.mxu0 0.0
        %3368 = vmatprep.subr.mxu0 0.0
        %3369 = vmatpush1.xpose.msra.mxu0 0.0
        %3370 = vmatprep.subr.mxu0 0.0
        %3371 = vmatpush1.xpose.msra.mxu0 0.0
        %3372 = vmatprep.subr.mxu0 0.0
        %3373 = vmatpush1.xpose.msra.mxu0 0.0
        %3374 = vmatprep.subr.mxu0 0.0
        %3375 = vmatpush1.xpose.msra.mxu0 0.0
        %3376 = vmatprep.subr.mxu0 0.0
        %3377 = vmatpush1.xpose.msra.mxu0 0.0
        %3378 = vmatprep.subr.mxu0 0.0
        %3379 = vmatpush1.xpose.msra.mxu0 0.0
        %3380 = vmatprep.subr.mxu0 0.0
        %3381 = vmatpush1.xpose.msra.mxu0 0.0
        %3382 = vmatprep.subr.mxu0 0.0
        %3383 = vmatpush1.xpose.msra.mxu0 0.0
        %3384 = vmatprep.subr.mxu0 0.0
        %3385 = vmatpush1.xpose.msra.mxu0 0.0
        %3386 = vmatprep.subr.mxu0 0.0
        %3387 = vmatpush1.xpose.msra.mxu0 0.0
        %3388 = vmatprep.subr.mxu0 0.0
        %3389 = vmatpush1.xpose.msra.mxu0 0.0
        %3390 = vmatprep.subr.mxu0 0.0
        %3391 = vmatpush1.xpose.msra.mxu0 0.0
        %3392 = vmatprep.subr.mxu0 0.0
        %3393 = vmatpush1.xpose.msra.mxu0 0.0
        %3394 = vmatprep.mubr.f32.mxu0 0.0
        %3395 = vmatmul.mubr.f32.gmra.mrb[0].mxu0 %v3326
        %v3396 = vpop.f32.mrb[0].mxu0
        %v3397 = vadd.f32 0.0, %v3396
        %v3398 = vpop.f32.mrb[0].mxu0
        %3399 = vdwg.mxu0
        %3400 = vrot.lane.b32.xlu0 %v2170, 32
        %v3401 = vpop.permute.xlu0 %3400
        %v3402 = vrot.slane %v923, 4
        %v3403 = vsel %vm1004, %v3401, 0
        %v3405 = vsel %vm1004, %v3402, 0
        %3407 = vmatprep.subr.mxu0 0.0
        %3408 = vmatpush1.xpose.msra.mxu0 %v3405
        %3409 = vmatprep.subr.mxu0 0.0
        %3410 = vmatpush1.xpose.msra.mxu0 0.0
        %3411 = vmatprep.subr.mxu0 0.0
        %3412 = vmatpush1.xpose.msra.mxu0 0.0
        %3413 = vmatprep.subr.mxu0 0.0
        %3414 = vmatpush1.xpose.msra.mxu0 0.0
        %3415 = vmatprep.subr.mxu0 0.0
        %3416 = vmatpush1.xpose.msra.mxu0 0.0
        %3417 = vmatprep.subr.mxu0 0.0
        %3418 = vmatpush1.xpose.msra.mxu0 0.0
        %3419 = vmatprep.subr.mxu0 0.0
        %3420 = vmatpush1.xpose.msra.mxu0 0.0
        %3421 = vmatprep.subr.mxu0 0.0
        %3422 = vmatpush1.xpose.msra.mxu0 0.0
        %3423 = vmatprep.subr.mxu0 0.0
        %3424 = vmatpush1.xpose.msra.mxu0 0.0
        %3425 = vmatprep.subr.mxu0 0.0
        %3426 = vmatpush1.xpose.msra.mxu0 0.0
        %3427 = vmatprep.subr.mxu0 0.0
        %3428 = vmatpush1.xpose.msra.mxu0 0.0
        %3429 = vmatprep.subr.mxu0 0.0
        %3430 = vmatpush1.xpose.msra.mxu0 0.0
        %3431 = vmatprep.subr.mxu0 0.0
        %3432 = vmatpush1.xpose.msra.mxu0 0.0
        %3433 = vmatprep.subr.mxu0 0.0
        %3434 = vmatpush1.xpose.msra.mxu0 0.0
        %3435 = vmatprep.subr.mxu0 0.0
        %3436 = vmatpush1.xpose.msra.mxu0 0.0
        %3437 = vmatprep.subr.mxu0 0.0
        %3438 = vmatpush1.xpose.msra.mxu0 0.0
        %3439 = vmatprep.subr.mxu0 0.0
        %3440 = vmatpush1.xpose.msra.mxu0 0.0
        %3441 = vmatprep.subr.mxu0 0.0
        %3442 = vmatpush1.xpose.msra.mxu0 0.0
        %3443 = vmatprep.subr.mxu0 0.0
        %3444 = vmatpush1.xpose.msra.mxu0 0.0
        %3445 = vmatprep.subr.mxu0 0.0
        %3446 = vmatpush1.xpose.msra.mxu0 0.0
        %3447 = vmatprep.subr.mxu0 0.0
        %3448 = vmatpush1.xpose.msra.mxu0 0.0
        %3449 = vmatprep.subr.mxu0 0.0
        %3450 = vmatpush1.xpose.msra.mxu0 0.0
        %3451 = vmatprep.subr.mxu0 0.0
        %3452 = vmatpush1.xpose.msra.mxu0 0.0
        %3453 = vmatprep.subr.mxu0 0.0
        %3454 = vmatpush1.xpose.msra.mxu0 0.0
        %3455 = vmatprep.subr.mxu0 0.0
        %3456 = vmatpush1.xpose.msra.mxu0 0.0
        %3457 = vmatprep.subr.mxu0 0.0
        %3458 = vmatpush1.xpose.msra.mxu0 0.0
        %3459 = vmatprep.subr.mxu0 0.0
        %3460 = vmatpush1.xpose.msra.mxu0 0.0
        %3461 = vmatprep.subr.mxu0 0.0
        %3462 = vmatpush1.xpose.msra.mxu0 0.0
        %3463 = vmatprep.subr.mxu0 0.0
        %3464 = vmatpush1.xpose.msra.mxu0 0.0
        %3465 = vmatprep.subr.mxu0 0.0
        %3466 = vmatpush1.xpose.msra.mxu0 0.0
        %3467 = vmatprep.subr.mxu0 0.0
        %3468 = vmatpush1.xpose.msra.mxu0 0.0
        %3469 = vmatprep.subr.mxu0 0.0
        %3470 = vmatpush1.xpose.msra.mxu0 0.0
        %3471 = vmatprep.mubr.f32.mxu0 0.0
        %3472 = vmatmul.mubr.f32.gmra.mrb[0].mxu0 %v3403
        %v3473 = vpop.f32.mrb[0].mxu0
        %v3474 = vadd.f32 0.0, %v3473
        %v3475 = vpop.f32.mrb[0].mxu0
        %3476 = vdwg.mxu0
        %v3478 = vunpack.c.l.s4 1983009808
        %v3479 = vunpack.c.0.s8 %v3478
        %v3480 = vlaneseq
        %v3481 = vshrl.u32 %v3480, 7
        %v3482 = vsub.s32 %v3479, %v3481
        %v3483 = vrot.slane %v637, %v3482
        %v3484 = vcombine.high %v3483, %v3483
        %v3486 = vunpack.c.l.s4 1983009808
        %v3487 = vunpack.c.0.s8 %v3486
        %v3488 = vlaneseq
        %v3489 = vshrl.u32 %v3488, 7
        %v3490 = vsub.s32 %v3487, %v3489
        %v3491 = vrot.slane %v642, %v3490
        %v3492 = vcombine.high %v3491, %v3491
        %v3494 = vunpack.c.l.s4 1983009808
        %v3495 = vunpack.c.0.s8 %v3494
        %v3496 = vlaneseq
        %v3497 = vshrl.u32 %v3496, 7
        %v3498 = vsub.s32 %v3495, %v3497
        %v3499 = vrot.slane %v909, %v3498
        %v3500 = vcombine.high %v3499, %v3499
        %v3502 = vunpack.c.l.s4 1983009808
        %v3503 = vunpack.c.0.s8 %v3502
        %v3504 = vlaneseq
        %v3505 = vshrl.u32 %v3504, 7
        %v3506 = vsub.s32 %v3503, %v3505
        %v3507 = vrot.slane %v911, %v3506
        %v3508 = vcombine.high %v3507, %v3507
        %v3510 = vunpack.c.l.s4 1983009808
        %v3511 = vunpack.c.0.s8 %v3510
        %v3512 = vlaneseq
        %v3513 = vshrl.u32 %v3512, 7
        %v3514 = vsub.s32 %v3511, %v3513
        %v3515 = vrot.slane %v915, %v3514
        %v3516 = vcombine.high %v3515, %v3515
        %v3518 = vunpack.c.l.s4 1983009808
        %v3519 = vunpack.c.0.s8 %v3518
        %v3520 = vlaneseq
        %v3521 = vshrl.u32 %v3520, 7
        %v3522 = vsub.s32 %v3519, %v3521
        %v3523 = vrot.slane %v917, %v3522
        %v3524 = vcombine.high %v3523, %v3523
        %v3526 = vunpack.c.l.s4 1983009808
        %v3527 = vunpack.c.0.s8 %v3526
        %v3528 = vlaneseq
        %v3529 = vshrl.u32 %v3528, 7
        %v3530 = vsub.s32 %v3527, %v3529
        %v3531 = vrot.slane %v921, %v3530
        %v3532 = vcombine.high %v3531, %v3531
        %v3534 = vunpack.c.l.s4 1983009808
        %v3535 = vunpack.c.0.s8 %v3534
        %v3536 = vlaneseq
        %v3537 = vshrl.u32 %v3536, 7
        %v3538 = vsub.s32 %v3535, %v3537
        %v3539 = vrot.slane %v923, %v3538
        %v3540 = vcombine.high %v3539, %v3539
        %v3549 = vmul.f32 %v953, %v3484
        %v3550 = vmul.f32 %v954, %v3492
        %v3551 = vmul.f32 %v958, %v3500
        %v3552 = vmul.f32 %v960, %v3508
        %v3553 = vmul.f32 %v964, %v3516
        %v3554 = vmul.f32 %v966, %v3524
        %v3555 = vmul.f32 %v970, %v3532
        %v3556 = vmul.f32 %v972, %v3540
        %vm3557 = vcmask 58368
        %v3558 = vsel %vm3557, %v3549, 0.0
        %3559 = vadd.xlane.f32.xlu0 %v3558
        %v3560 = vpop.xlane.xlu0 %3559
        %v3561 = vsel %vm3557, %v3550, 0.0
        %3562 = vadd.xlane.f32.xlu0 %v3561
        %v3563 = vpop.xlane.xlu0 %3562
        %v3564 = vsel %vm3557, %v3551, 0.0
        %3565 = vadd.xlane.f32.xlu0 %v3564
        %v3566 = vpop.xlane.xlu0 %3565
        %v3567 = vsel %vm3557, %v3552, 0.0
        %3568 = vadd.xlane.f32.xlu0 %v3567
        %v3569 = vpop.xlane.xlu0 %3568
        %v3570 = vsel %vm3557, %v3553, 0.0
        %3571 = vadd.xlane.f32.xlu0 %v3570
        %v3572 = vpop.xlane.xlu0 %3571
        %v3573 = vsel %vm3557, %v3554, 0.0
        %3574 = vadd.xlane.f32.xlu0 %v3573
        %v3575 = vpop.xlane.xlu0 %3574
        %v3576 = vsel %vm3557, %v3555, 0.0
        %3577 = vadd.xlane.f32.xlu0 %v3576
        %v3578 = vpop.xlane.xlu0 %3577
        %v3579 = vsel %vm3557, %v3556, 0.0
        %3580 = vadd.xlane.f32.xlu0 %v3579
        %v3581 = vpop.xlane.xlu0 %3580
        %v3583 = vunpack.c.l.s4 1983009808
        %v3584 = vunpack.c.0.s8 %v3583
        %v3585 = vlaneseq
        %v3586 = vshrl.u32 %v3585, 7
        %v3587 = vsub.s32 %v3584, %v3586
        %v3588 = vrot.slane %v982, %v3587
        %3589 = vrot.lane.b32.xlu0 %v3588, 64
        %v3590 = vpop.permute.xlu0 %3589
        %v3591 = vsel %vm1004, %v3590, 0
        %3593 = vmatprep.subr.mxu0 0.0
        %3594 = vmatpush1.xpose.msra.mxu0 %v1007
        %3595 = vmatprep.subr.mxu0 0.0
        %3596 = vmatpush1.xpose.msra.mxu0 0.0
        %3597 = vmatprep.subr.mxu0 0.0
        %3598 = vmatpush1.xpose.msra.mxu0 0.0
        %3599 = vmatprep.subr.mxu0 0.0
        %3600 = vmatpush1.xpose.msra.mxu0 0.0
        %3601 = vmatprep.subr.mxu0 0.0
        %3602 = vmatpush1.xpose.msra.mxu0 0.0
        %3603 = vmatprep.subr.mxu0 0.0
        %3604 = vmatpush1.xpose.msra.mxu0 0.0
        %3605 = vmatprep.subr.mxu0 0.0
        %3606 = vmatpush1.xpose.msra.mxu0 0.0
        %3607 = vmatprep.subr.mxu0 0.0
        %3608 = vmatpush1.xpose.msra.mxu0 0.0
        %3609 = vmatprep.subr.mxu0 0.0
        %3610 = vmatpush1.xpose.msra.mxu0 0.0
        %3611 = vmatprep.subr.mxu0 0.0
        %3612 = vmatpush1.xpose.msra.mxu0 0.0
        %3613 = vmatprep.subr.mxu0 0.0
        %3614 = vmatpush1.xpose.msra.mxu0 0.0
        %3615 = vmatprep.subr.mxu0 0.0
        %3616 = vmatpush1.xpose.msra.mxu0 0.0
        %3617 = vmatprep.subr.mxu0 0.0
        %3618 = vmatpush1.xpose.msra.mxu0 0.0
        %3619 = vmatprep.subr.mxu0 0.0
        %3620 = vmatpush1.xpose.msra.mxu0 0.0
        %3621 = vmatprep.subr.mxu0 0.0
        %3622 = vmatpush1.xpose.msra.mxu0 0.0
        %3623 = vmatprep.subr.mxu0 0.0
        %3624 = vmatpush1.xpose.msra.mxu0 0.0
        %3625 = vmatprep.subr.mxu0 0.0
        %3626 = vmatpush1.xpose.msra.mxu0 0.0
        %3627 = vmatprep.subr.mxu0 0.0
        %3628 = vmatpush1.xpose.msra.mxu0 0.0
        %3629 = vmatprep.subr.mxu0 0.0
        %3630 = vmatpush1.xpose.msra.mxu0 0.0
        %3631 = vmatprep.subr.mxu0 0.0
        %3632 = vmatpush1.xpose.msra.mxu0 0.0
        %3633 = vmatprep.subr.mxu0 0.0
        %3634 = vmatpush1.xpose.msra.mxu0 0.0
        %3635 = vmatprep.subr.mxu0 0.0
        %3636 = vmatpush1.xpose.msra.mxu0 0.0
        %3637 = vmatprep.subr.mxu0 0.0
        %3638 = vmatpush1.xpose.msra.mxu0 0.0
        %3639 = vmatprep.subr.mxu0 0.0
        %3640 = vmatpush1.xpose.msra.mxu0 0.0
        %3641 = vmatprep.subr.mxu0 0.0
        %3642 = vmatpush1.xpose.msra.mxu0 0.0
        %3643 = vmatprep.subr.mxu0 0.0
        %3644 = vmatpush1.xpose.msra.mxu0 0.0
        %3645 = vmatprep.subr.mxu0 0.0
        %3646 = vmatpush1.xpose.msra.mxu0 0.0
        %3647 = vmatprep.subr.mxu0 0.0
        %3648 = vmatpush1.xpose.msra.mxu0 0.0
        %3649 = vmatprep.subr.mxu0 0.0
        %3650 = vmatpush1.xpose.msra.mxu0 0.0
        %3651 = vmatprep.subr.mxu0 0.0
        %3652 = vmatpush1.xpose.msra.mxu0 0.0
        %3653 = vmatprep.subr.mxu0 0.0
        %3654 = vmatpush1.xpose.msra.mxu0 0.0
        %3655 = vmatprep.subr.mxu0 0.0
        %3656 = vmatpush1.xpose.msra.mxu0 0.0
        %3657 = vmatprep.mubr.f32.mxu0 0.0
        %3658 = vmatmul.mubr.f32.gmra.mrb[0].mxu0 %v3591
        %v3659 = vpop.f32.mrb[0].mxu0
        %v3660 = vadd.f32 0.0, %v3659
        %v3661 = vpop.f32.mrb[0].mxu0
        %3662 = vdwg.mxu0
        %v3664 = vunpack.c.l.s4 1983009808
        %v3665 = vunpack.c.0.s8 %v3664
        %v3666 = vlaneseq
        %v3667 = vshrl.u32 %v3666, 7
        %v3668 = vsub.s32 %v3665, %v3667
        %v3669 = vrot.slane %v983, %v3668
        %3670 = vrot.lane.b32.xlu0 %v3669, 64
        %v3671 = vpop.permute.xlu0 %3670
        %v3672 = vsel %vm1004, %v3671, 0
        %3674 = vmatprep.subr.mxu0 0.0
        %3675 = vmatpush1.xpose.msra.mxu0 %v1081
        %3676 = vmatprep.subr.mxu0 0.0
        %3677 = vmatpush1.xpose.msra.mxu0 0.0
        %3678 = vmatprep.subr.mxu0 0.0
        %3679 = vmatpush1.xpose.msra.mxu0 0.0
        %3680 = vmatprep.subr.mxu0 0.0
        %3681 = vmatpush1.xpose.msra.mxu0 0.0
        %3682 = vmatprep.subr.mxu0 0.0
        %3683 = vmatpush1.xpose.msra.mxu0 0.0
        %3684 = vmatprep.subr.mxu0 0.0
        %3685 = vmatpush1.xpose.msra.mxu0 0.0
        %3686 = vmatprep.subr.mxu0 0.0
        %3687 = vmatpush1.xpose.msra.mxu0 0.0
        %3688 = vmatprep.subr.mxu0 0.0
        %3689 = vmatpush1.xpose.msra.mxu0 0.0
        %3690 = vmatprep.subr.mxu0 0.0
        %3691 = vmatpush1.xpose.msra.mxu0 0.0
        %3692 = vmatprep.subr.mxu0 0.0
        %3693 = vmatpush1.xpose.msra.mxu0 0.0
        %3694 = vmatprep.subr.mxu0 0.0
        %3695 = vmatpush1.xpose.msra.mxu0 0.0
        %3696 = vmatprep.subr.mxu0 0.0
        %3697 = vmatpush1.xpose.msra.mxu0 0.0
        %3698 = vmatprep.subr.mxu0 0.0
        %3699 = vmatpush1.xpose.msra.mxu0 0.0
        %3700 = vmatprep.subr.mxu0 0.0
        %3701 = vmatpush1.xpose.msra.mxu0 0.0
        %3702 = vmatprep.subr.mxu0 0.0
        %3703 = vmatpush1.xpose.msra.mxu0 0.0
        %3704 = vmatprep.subr.mxu0 0.0
        %3705 = vmatpush1.xpose.msra.mxu0 0.0
        %3706 = vmatprep.subr.mxu0 0.0
        %3707 = vmatpush1.xpose.msra.mxu0 0.0
        %3708 = vmatprep.subr.mxu0 0.0
        %3709 = vmatpush1.xpose.msra.mxu0 0.0
        %3710 = vmatprep.subr.mxu0 0.0
        %3711 = vmatpush1.xpose.msra.mxu0 0.0
        %3712 = vmatprep.subr.mxu0 0.0
        %3713 = vmatpush1.xpose.msra.mxu0 0.0
        %3714 = vmatprep.subr.mxu0 0.0
        %3715 = vmatpush1.xpose.msra.mxu0 0.0
        %3716 = vmatprep.subr.mxu0 0.0
        %3717 = vmatpush1.xpose.msra.mxu0 0.0
        %3718 = vmatprep.subr.mxu0 0.0
        %3719 = vmatpush1.xpose.msra.mxu0 0.0
        %3720 = vmatprep.subr.mxu0 0.0
        %3721 = vmatpush1.xpose.msra.mxu0 0.0
        %3722 = vmatprep.subr.mxu0 0.0
        %3723 = vmatpush1.xpose.msra.mxu0 0.0
        %3724 = vmatprep.subr.mxu0 0.0
        %3725 = vmatpush1.xpose.msra.mxu0 0.0
        %3726 = vmatprep.subr.mxu0 0.0
        %3727 = vmatpush1.xpose.msra.mxu0 0.0
        %3728 = vmatprep.subr.mxu0 0.0
        %3729 = vmatpush1.xpose.msra.mxu0 0.0
        %3730 = vmatprep.subr.mxu0 0.0
        %3731 = vmatpush1.xpose.msra.mxu0 0.0
        %3732 = vmatprep.subr.mxu0 0.0
        %3733 = vmatpush1.xpose.msra.mxu0 0.0
        %3734 = vmatprep.subr.mxu0 0.0
        %3735 = vmatpush1.xpose.msra.mxu0 0.0
        %3736 = vmatprep.subr.mxu0 0.0
        %3737 = vmatpush1.xpose.msra.mxu0 0.0
        %3738 = vmatprep.mubr.f32.mxu0 0.0
        %3739 = vmatmul.mubr.f32.gmra.mrb[0].mxu0 %v3672
        %v3740 = vpop.f32.mrb[0].mxu0
        %v3741 = vadd.f32 0.0, %v3740
        %v3742 = vpop.f32.mrb[0].mxu0
        %3743 = vdwg.mxu0
        %v3745 = vunpack.c.l.s4 1983009808
        %v3746 = vunpack.c.0.s8 %v3745
        %v3747 = vlaneseq
        %v3748 = vshrl.u32 %v3747, 7
        %v3749 = vsub.s32 %v3746, %v3748
        %v3750 = vrot.slane %v987, %v3749
        %3751 = vrot.lane.b32.xlu0 %v3750, 64
        %v3752 = vpop.permute.xlu0 %3751
        %v3753 = vsel %vm1004, %v3752, 0
        %3755 = vmatprep.subr.mxu0 0.0
        %3756 = vmatpush1.xpose.msra.mxu0 %v1155
        %3757 = vmatprep.subr.mxu0 0.0
        %3758 = vmatpush1.xpose.msra.mxu0 0.0
        %3759 = vmatprep.subr.mxu0 0.0
        %3760 = vmatpush1.xpose.msra.mxu0 0.0
        %3761 = vmatprep.subr.mxu0 0.0
        %3762 = vmatpush1.xpose.msra.mxu0 0.0
        %3763 = vmatprep.subr.mxu0 0.0
        %3764 = vmatpush1.xpose.msra.mxu0 0.0
        %3765 = vmatprep.subr.mxu0 0.0
        %3766 = vmatpush1.xpose.msra.mxu0 0.0
        %3767 = vmatprep.subr.mxu0 0.0
        %3768 = vmatpush1.xpose.msra.mxu0 0.0
        %3769 = vmatprep.subr.mxu0 0.0
        %3770 = vmatpush1.xpose.msra.mxu0 0.0
        %3771 = vmatprep.subr.mxu0 0.0
        %3772 = vmatpush1.xpose.msra.mxu0 0.0
        %3773 = vmatprep.subr.mxu0 0.0
        %3774 = vmatpush1.xpose.msra.mxu0 0.0
        %3775 = vmatprep.subr.mxu0 0.0
        %3776 = vmatpush1.xpose.msra.mxu0 0.0
        %3777 = vmatprep.subr.mxu0 0.0
        %3778 = vmatpush1.xpose.msra.mxu0 0.0
        %3779 = vmatprep.subr.mxu0 0.0
        %3780 = vmatpush1.xpose.msra.mxu0 0.0
        %3781 = vmatprep.subr.mxu0 0.0
        %3782 = vmatpush1.xpose.msra.mxu0 0.0
        %3783 = vmatprep.subr.mxu0 0.0
        %3784 = vmatpush1.xpose.msra.mxu0 0.0
        %3785 = vmatprep.subr.mxu0 0.0
        %3786 = vmatpush1.xpose.msra.mxu0 0.0
        %3787 = vmatprep.subr.mxu0 0.0
        %3788 = vmatpush1.xpose.msra.mxu0 0.0
        %3789 = vmatprep.subr.mxu0 0.0
        %3790 = vmatpush1.xpose.msra.mxu0 0.0
        %3791 = vmatprep.subr.mxu0 0.0
        %3792 = vmatpush1.xpose.msra.mxu0 0.0
        %3793 = vmatprep.subr.mxu0 0.0
        %3794 = vmatpush1.xpose.msra.mxu0 0.0
        %3795 = vmatprep.subr.mxu0 0.0
        %3796 = vmatpush1.xpose.msra.mxu0 0.0
        %3797 = vmatprep.subr.mxu0 0.0
        %3798 = vmatpush1.xpose.msra.mxu0 0.0
        %3799 = vmatprep.subr.mxu0 0.0
        %3800 = vmatpush1.xpose.msra.mxu0 0.0
        %3801 = vmatprep.subr.mxu0 0.0
        %3802 = vmatpush1.xpose.msra.mxu0 0.0
        %3803 = vmatprep.subr.mxu0 0.0
        %3804 = vmatpush1.xpose.msra.mxu0 0.0
        %3805 = vmatprep.subr.mxu0 0.0
        %3806 = vmatpush1.xpose.msra.mxu0 0.0
        %3807 = vmatprep.subr.mxu0 0.0
        %3808 = vmatpush1.xpose.msra.mxu0 0.0
        %3809 = vmatprep.subr.mxu0 0.0
        %3810 = vmatpush1.xpose.msra.mxu0 0.0
        %3811 = vmatprep.subr.mxu0 0.0
        %3812 = vmatpush1.xpose.msra.mxu0 0.0
        %3813 = vmatprep.subr.mxu0 0.0
        %3814 = vmatpush1.xpose.msra.mxu0 0.0
        %3815 = vmatprep.subr.mxu0 0.0
        %3816 = vmatpush1.xpose.msra.mxu0 0.0
        %3817 = vmatprep.subr.mxu0 0.0
        %3818 = vmatpush1.xpose.msra.mxu0 0.0
        %3819 = vmatprep.mubr.f32.mxu0 0.0
        %3820 = vmatmul.mubr.f32.gmra.mrb[0].mxu0 %v3753
        %v3821 = vpop.f32.mrb[0].mxu0
        %v3822 = vadd.f32 0.0, %v3821
        %v3823 = vpop.f32.mrb[0].mxu0
        %3824 = vdwg.mxu0
        %v3826 = vunpack.c.l.s4 1983009808
        %v3827 = vunpack.c.0.s8 %v3826
        %v3828 = vlaneseq
        %v3829 = vshrl.u32 %v3828, 7
        %v3830 = vsub.s32 %v3827, %v3829
        %v3831 = vrot.slane %v989, %v3830
        %3832 = vrot.lane.b32.xlu0 %v3831, 64
        %v3833 = vpop.permute.xlu0 %3832
        %v3834 = vsel %vm1004, %v3833, 0
        %3836 = vmatprep.subr.mxu0 0.0
        %3837 = vmatpush1.xpose.msra.mxu0 %v1229
        %3838 = vmatprep.subr.mxu0 0.0
        %3839 = vmatpush1.xpose.msra.mxu0 0.0
        %3840 = vmatprep.subr.mxu0 0.0
        %3841 = vmatpush1.xpose.msra.mxu0 0.0
        %3842 = vmatprep.subr.mxu0 0.0
        %3843 = vmatpush1.xpose.msra.mxu0 0.0
        %3844 = vmatprep.subr.mxu0 0.0
        %3845 = vmatpush1.xpose.msra.mxu0 0.0
        %3846 = vmatprep.subr.mxu0 0.0
        %3847 = vmatpush1.xpose.msra.mxu0 0.0
        %3848 = vmatprep.subr.mxu0 0.0
        %3849 = vmatpush1.xpose.msra.mxu0 0.0
        %3850 = vmatprep.subr.mxu0 0.0
        %3851 = vmatpush1.xpose.msra.mxu0 0.0
        %3852 = vmatprep.subr.mxu0 0.0
        %3853 = vmatpush1.xpose.msra.mxu0 0.0
        %3854 = vmatprep.subr.mxu0 0.0
        %3855 = vmatpush1.xpose.msra.mxu0 0.0
        %3856 = vmatprep.subr.mxu0 0.0
        %3857 = vmatpush1.xpose.msra.mxu0 0.0
        %3858 = vmatprep.subr.mxu0 0.0
        %3859 = vmatpush1.xpose.msra.mxu0 0.0
        %3860 = vmatprep.subr.mxu0 0.0
        %3861 = vmatpush1.xpose.msra.mxu0 0.0
        %3862 = vmatprep.subr.mxu0 0.0
        %3863 = vmatpush1.xpose.msra.mxu0 0.0
        %3864 = vmatprep.subr.mxu0 0.0
        %3865 = vmatpush1.xpose.msra.mxu0 0.0
        %3866 = vmatprep.subr.mxu0 0.0
        %3867 = vmatpush1.xpose.msra.mxu0 0.0
        %3868 = vmatprep.subr.mxu0 0.0
        %3869 = vmatpush1.xpose.msra.mxu0 0.0
        %3870 = vmatprep.subr.mxu0 0.0
        %3871 = vmatpush1.xpose.msra.mxu0 0.0
        %3872 = vmatprep.subr.mxu0 0.0
        %3873 = vmatpush1.xpose.msra.mxu0 0.0
        %3874 = vmatprep.subr.mxu0 0.0
        %3875 = vmatpush1.xpose.msra.mxu0 0.0
        %3876 = vmatprep.subr.mxu0 0.0
        %3877 = vmatpush1.xpose.msra.mxu0 0.0
        %3878 = vmatprep.subr.mxu0 0.0
        %3879 = vmatpush1.xpose.msra.mxu0 0.0
        %3880 = vmatprep.subr.mxu0 0.0
        %3881 = vmatpush1.xpose.msra.mxu0 0.0
        %3882 = vmatprep.subr.mxu0 0.0
        %3883 = vmatpush1.xpose.msra.mxu0 0.0
        %3884 = vmatprep.subr.mxu0 0.0
        %3885 = vmatpush1.xpose.msra.mxu0 0.0
        %3886 = vmatprep.subr.mxu0 0.0
        %3887 = vmatpush1.xpose.msra.mxu0 0.0
        %3888 = vmatprep.subr.mxu0 0.0
        %3889 = vmatpush1.xpose.msra.mxu0 0.0
        %3890 = vmatprep.subr.mxu0 0.0
        %3891 = vmatpush1.xpose.msra.mxu0 0.0
        %3892 = vmatprep.subr.mxu0 0.0
        %3893 = vmatpush1.xpose.msra.mxu0 0.0
        %3894 = vmatprep.subr.mxu0 0.0
        %3895 = vmatpush1.xpose.msra.mxu0 0.0
        %3896 = vmatprep.subr.mxu0 0.0
        %3897 = vmatpush1.xpose.msra.mxu0 0.0
        %3898 = vmatprep.subr.mxu0 0.0
        %3899 = vmatpush1.xpose.msra.mxu0 0.0
        %3900 = vmatprep.mubr.f32.mxu0 0.0
        %3901 = vmatmul.mubr.f32.gmra.mrb[0].mxu0 %v3834
        %v3902 = vpop.f32.mrb[0].mxu0
        %v3903 = vadd.f32 0.0, %v3902
        %v3904 = vpop.f32.mrb[0].mxu0
        %3905 = vdwg.mxu0
        %v3907 = vunpack.c.l.s4 1983009808
        %v3908 = vunpack.c.0.s8 %v3907
        %v3909 = vlaneseq
        %v3910 = vshrl.u32 %v3909, 7
        %v3911 = vsub.s32 %v3908, %v3910
        %v3912 = vrot.slane %v993, %v3911
        %3913 = vrot.lane.b32.xlu0 %v3912, 64
        %v3914 = vpop.permute.xlu0 %3913
        %v3915 = vsel %vm1004, %v3914, 0
        %3917 = vmatprep.subr.mxu0 0.0
        %3918 = vmatpush1.xpose.msra.mxu0 %v1303
        %3919 = vmatprep.subr.mxu0 0.0
        %3920 = vmatpush1.xpose.msra.mxu0 0.0
        %3921 = vmatprep.subr.mxu0 0.0
        %3922 = vmatpush1.xpose.msra.mxu0 0.0
        %3923 = vmatprep.subr.mxu0 0.0
        %3924 = vmatpush1.xpose.msra.mxu0 0.0
        %3925 = vmatprep.subr.mxu0 0.0
        %3926 = vmatpush1.xpose.msra.mxu0 0.0
        %3927 = vmatprep.subr.mxu0 0.0
        %3928 = vmatpush1.xpose.msra.mxu0 0.0
        %3929 = vmatprep.subr.mxu0 0.0
        %3930 = vmatpush1.xpose.msra.mxu0 0.0
        %3931 = vmatprep.subr.mxu0 0.0
        %3932 = vmatpush1.xpose.msra.mxu0 0.0
        %3933 = vmatprep.subr.mxu0 0.0
        %3934 = vmatpush1.xpose.msra.mxu0 0.0
        %3935 = vmatprep.subr.mxu0 0.0
        %3936 = vmatpush1.xpose.msra.mxu0 0.0
        %3937 = vmatprep.subr.mxu0 0.0
        %3938 = vmatpush1.xpose.msra.mxu0 0.0
        %3939 = vmatprep.subr.mxu0 0.0
        %3940 = vmatpush1.xpose.msra.mxu0 0.0
        %3941 = vmatprep.subr.mxu0 0.0
        %3942 = vmatpush1.xpose.msra.mxu0 0.0
        %3943 = vmatprep.subr.mxu0 0.0
        %3944 = vmatpush1.xpose.msra.mxu0 0.0
        %3945 = vmatprep.subr.mxu0 0.0
        %3946 = vmatpush1.xpose.msra.mxu0 0.0
        %3947 = vmatprep.subr.mxu0 0.0
        %3948 = vmatpush1.xpose.msra.mxu0 0.0
        %3949 = vmatprep.subr.mxu0 0.0
        %3950 = vmatpush1.xpose.msra.mxu0 0.0
        %3951 = vmatprep.subr.mxu0 0.0
        %3952 = vmatpush1.xpose.msra.mxu0 0.0
        %3953 = vmatprep.subr.mxu0 0.0
        %3954 = vmatpush1.xpose.msra.mxu0 0.0
        %3955 = vmatprep.subr.mxu0 0.0
        %3956 = vmatpush1.xpose.msra.mxu0 0.0
        %3957 = vmatprep.subr.mxu0 0.0
        %3958 = vmatpush1.xpose.msra.mxu0 0.0
        %3959 = vmatprep.subr.mxu0 0.0
        %3960 = vmatpush1.xpose.msra.mxu0 0.0
        %3961 = vmatprep.subr.mxu0 0.0
        %3962 = vmatpush1.xpose.msra.mxu0 0.0
        %3963 = vmatprep.subr.mxu0 0.0
        %3964 = vmatpush1.xpose.msra.mxu0 0.0
        %3965 = vmatprep.subr.mxu0 0.0
        %3966 = vmatpush1.xpose.msra.mxu0 0.0
        %3967 = vmatprep.subr.mxu0 0.0
        %3968 = vmatpush1.xpose.msra.mxu0 0.0
        %3969 = vmatprep.subr.mxu0 0.0
        %3970 = vmatpush1.xpose.msra.mxu0 0.0
        %3971 = vmatprep.subr.mxu0 0.0
        %3972 = vmatpush1.xpose.msra.mxu0 0.0
        %3973 = vmatprep.subr.mxu0 0.0
        %3974 = vmatpush1.xpose.msra.mxu0 0.0
        %3975 = vmatprep.subr.mxu0 0.0
        %3976 = vmatpush1.xpose.msra.mxu0 0.0
        %3977 = vmatprep.subr.mxu0 0.0
        %3978 = vmatpush1.xpose.msra.mxu0 0.0
        %3979 = vmatprep.subr.mxu0 0.0
        %3980 = vmatpush1.xpose.msra.mxu0 0.0
        %3981 = vmatprep.mubr.f32.mxu0 0.0
        %3982 = vmatmul.mubr.f32.gmra.mrb[0].mxu0 %v3915
        %v3983 = vpop.f32.mrb[0].mxu0
        %v3984 = vadd.f32 0.0, %v3983
        %v3985 = vpop.f32.mrb[0].mxu0
        %3986 = vdwg.mxu0
        %v3988 = vunpack.c.l.s4 1983009808
        %v3989 = vunpack.c.0.s8 %v3988
        %v3990 = vlaneseq
        %v3991 = vshrl.u32 %v3990, 7
        %v3992 = vsub.s32 %v3989, %v3991
        %v3993 = vrot.slane %v995, %v3992
        %3994 = vrot.lane.b32.xlu0 %v3993, 64
        %v3995 = vpop.permute.xlu0 %3994
        %v3996 = vsel %vm1004, %v3995, 0
        %3998 = vmatprep.subr.mxu0 0.0
        %3999 = vmatpush1.xpose.msra.mxu0 %v1377
        %4000 = vmatprep.subr.mxu0 0.0
        %4001 = vmatpush1.xpose.msra.mxu0 0.0
        %4002 = vmatprep.subr.mxu0 0.0
        %4003 = vmatpush1.xpose.msra.mxu0 0.0
        %4004 = vmatprep.subr.mxu0 0.0
        %4005 = vmatpush1.xpose.msra.mxu0 0.0
        %4006 = vmatprep.subr.mxu0 0.0
        %4007 = vmatpush1.xpose.msra.mxu0 0.0
        %4008 = vmatprep.subr.mxu0 0.0
        %4009 = vmatpush1.xpose.msra.mxu0 0.0
        %4010 = vmatprep.subr.mxu0 0.0
        %4011 = vmatpush1.xpose.msra.mxu0 0.0
        %4012 = vmatprep.subr.mxu0 0.0
        %4013 = vmatpush1.xpose.msra.mxu0 0.0
        %4014 = vmatprep.subr.mxu0 0.0
        %4015 = vmatpush1.xpose.msra.mxu0 0.0
        %4016 = vmatprep.subr.mxu0 0.0
        %4017 = vmatpush1.xpose.msra.mxu0 0.0
        %4018 = vmatprep.subr.mxu0 0.0
        %4019 = vmatpush1.xpose.msra.mxu0 0.0
        %4020 = vmatprep.subr.mxu0 0.0
        %4021 = vmatpush1.xpose.msra.mxu0 0.0
        %4022 = vmatprep.subr.mxu0 0.0
        %4023 = vmatpush1.xpose.msra.mxu0 0.0
        %4024 = vmatprep.subr.mxu0 0.0
        %4025 = vmatpush1.xpose.msra.mxu0 0.0
        %4026 = vmatprep.subr.mxu0 0.0
        %4027 = vmatpush1.xpose.msra.mxu0 0.0
        %4028 = vmatprep.subr.mxu0 0.0
        %4029 = vmatpush1.xpose.msra.mxu0 0.0
        %4030 = vmatprep.subr.mxu0 0.0
        %4031 = vmatpush1.xpose.msra.mxu0 0.0
        %4032 = vmatprep.subr.mxu0 0.0
        %4033 = vmatpush1.xpose.msra.mxu0 0.0
        %4034 = vmatprep.subr.mxu0 0.0
        %4035 = vmatpush1.xpose.msra.mxu0 0.0
        %4036 = vmatprep.subr.mxu0 0.0
        %4037 = vmatpush1.xpose.msra.mxu0 0.0
        %4038 = vmatprep.subr.mxu0 0.0
        %4039 = vmatpush1.xpose.msra.mxu0 0.0
        %4040 = vmatprep.subr.mxu0 0.0
        %4041 = vmatpush1.xpose.msra.mxu0 0.0
        %4042 = vmatprep.subr.mxu0 0.0
        %4043 = vmatpush1.xpose.msra.mxu0 0.0
        %4044 = vmatprep.subr.mxu0 0.0
        %4045 = vmatpush1.xpose.msra.mxu0 0.0
        %4046 = vmatprep.subr.mxu0 0.0
        %4047 = vmatpush1.xpose.msra.mxu0 0.0
        %4048 = vmatprep.subr.mxu0 0.0
        %4049 = vmatpush1.xpose.msra.mxu0 0.0
        %4050 = vmatprep.subr.mxu0 0.0
        %4051 = vmatpush1.xpose.msra.mxu0 0.0
        %4052 = vmatprep.subr.mxu0 0.0
        %4053 = vmatpush1.xpose.msra.mxu0 0.0
        %4054 = vmatprep.subr.mxu0 0.0
        %4055 = vmatpush1.xpose.msra.mxu0 0.0
        %4056 = vmatprep.subr.mxu0 0.0
        %4057 = vmatpush1.xpose.msra.mxu0 0.0
        %4058 = vmatprep.subr.mxu0 0.0
        %4059 = vmatpush1.xpose.msra.mxu0 0.0
        %4060 = vmatprep.subr.mxu0 0.0
        %4061 = vmatpush1.xpose.msra.mxu0 0.0
        %4062 = vmatprep.mubr.f32.mxu0 0.0
        %4063 = vmatmul.mubr.f32.gmra.mrb[0].mxu0 %v3996
        %v4064 = vpop.f32.mrb[0].mxu0
        %v4065 = vadd.f32 0.0, %v4064
        %v4066 = vpop.f32.mrb[0].mxu0
        %4067 = vdwg.mxu0
        %v4069 = vunpack.c.l.s4 1983009808
        %v4070 = vunpack.c.0.s8 %v4069
        %v4071 = vlaneseq
        %v4072 = vshrl.u32 %v4071, 7
        %v4073 = vsub.s32 %v4070, %v4072
        %v4074 = vrot.slane %v999, %v4073
        %4075 = vrot.lane.b32.xlu0 %v4074, 64
        %v4076 = vpop.permute.xlu0 %4075
        %v4077 = vsel %vm1004, %v4076, 0
        %4079 = vmatprep.subr.mxu0 0.0
        %4080 = vmatpush1.xpose.msra.mxu0 %v1451
        %4081 = vmatprep.subr.mxu0 0.0
        %4082 = vmatpush1.xpose.msra.mxu0 0.0
        %4083 = vmatprep.subr.mxu0 0.0
        %4084 = vmatpush1.xpose.msra.mxu0 0.0
        %4085 = vmatprep.subr.mxu0 0.0
        %4086 = vmatpush1.xpose.msra.mxu0 0.0
        %4087 = vmatprep.subr.mxu0 0.0
        %4088 = vmatpush1.xpose.msra.mxu0 0.0
        %4089 = vmatprep.subr.mxu0 0.0
        %4090 = vmatpush1.xpose.msra.mxu0 0.0
        %4091 = vmatprep.subr.mxu0 0.0
        %4092 = vmatpush1.xpose.msra.mxu0 0.0
        %4093 = vmatprep.subr.mxu0 0.0
        %4094 = vmatpush1.xpose.msra.mxu0 0.0
        %4095 = vmatprep.subr.mxu0 0.0
        %4096 = vmatpush1.xpose.msra.mxu0 0.0
        %4097 = vmatprep.subr.mxu0 0.0
        %4098 = vmatpush1.xpose.msra.mxu0 0.0
        %4099 = vmatprep.subr.mxu0 0.0
        %4100 = vmatpush1.xpose.msra.mxu0 0.0
        %4101 = vmatprep.subr.mxu0 0.0
        %4102 = vmatpush1.xpose.msra.mxu0 0.0
        %4103 = vmatprep.subr.mxu0 0.0
        %4104 = vmatpush1.xpose.msra.mxu0 0.0
        %4105 = vmatprep.subr.mxu0 0.0
        %4106 = vmatpush1.xpose.msra.mxu0 0.0
        %4107 = vmatprep.subr.mxu0 0.0
        %4108 = vmatpush1.xpose.msra.mxu0 0.0
        %4109 = vmatprep.subr.mxu0 0.0
        %4110 = vmatpush1.xpose.msra.mxu0 0.0
        %4111 = vmatprep.subr.mxu0 0.0
        %4112 = vmatpush1.xpose.msra.mxu0 0.0
        %4113 = vmatprep.subr.mxu0 0.0
        %4114 = vmatpush1.xpose.msra.mxu0 0.0
        %4115 = vmatprep.subr.mxu0 0.0
        %4116 = vmatpush1.xpose.msra.mxu0 0.0
        %4117 = vmatprep.subr.mxu0 0.0
        %4118 = vmatpush1.xpose.msra.mxu0 0.0
        %4119 = vmatprep.subr.mxu0 0.0
        %4120 = vmatpush1.xpose.msra.mxu0 0.0
        %4121 = vmatprep.subr.mxu0 0.0
        %4122 = vmatpush1.xpose.msra.mxu0 0.0
        %4123 = vmatprep.subr.mxu0 0.0
        %4124 = vmatpush1.xpose.msra.mxu0 0.0
        %4125 = vmatprep.subr.mxu0 0.0
        %4126 = vmatpush1.xpose.msra.mxu0 0.0
        %4127 = vmatprep.subr.mxu0 0.0
        %4128 = vmatpush1.xpose.msra.mxu0 0.0
        %4129 = vmatprep.subr.mxu0 0.0
        %4130 = vmatpush1.xpose.msra.mxu0 0.0
        %4131 = vmatprep.subr.mxu0 0.0
        %4132 = vmatpush1.xpose.msra.mxu0 0.0
        %4133 = vmatprep.subr.mxu0 0.0
        %4134 = vmatpush1.xpose.msra.mxu0 0.0
        %4135 = vmatprep.subr.mxu0 0.0
        %4136 = vmatpush1.xpose.msra.mxu0 0.0
        %4137 = vmatprep.subr.mxu0 0.0
        %4138 = vmatpush1.xpose.msra.mxu0 0.0
        %4139 = vmatprep.subr.mxu0 0.0
        %4140 = vmatpush1.xpose.msra.mxu0 0.0
        %4141 = vmatprep.subr.mxu0 0.0
        %4142 = vmatpush1.xpose.msra.mxu0 0.0
        %4143 = vmatprep.mubr.f32.mxu0 0.0
        %4144 = vmatmul.mubr.f32.gmra.mrb[0].mxu0 %v4077
        %v4145 = vpop.f32.mrb[0].mxu0
        %v4146 = vadd.f32 0.0, %v4145
        %v4147 = vpop.f32.mrb[0].mxu0
        %4148 = vdwg.mxu0
        %v4150 = vunpack.c.l.s4 1983009808
        %v4151 = vunpack.c.0.s8 %v4150
        %v4152 = vlaneseq
        %v4153 = vshrl.u32 %v4152, 7
        %v4154 = vsub.s32 %v4151, %v4153
        %v4155 = vrot.slane %v1001, %v4154
        %4156 = vrot.lane.b32.xlu0 %v4155, 64
        %v4157 = vpop.permute.xlu0 %4156
        %v4158 = vsel %vm1004, %v4157, 0
        %4160 = vmatprep.subr.mxu0 0.0
        %4161 = vmatpush1.xpose.msra.mxu0 %v1525
        %4162 = vmatprep.subr.mxu0 0.0
        %4163 = vmatpush1.xpose.msra.mxu0 0.0
        %4164 = vmatprep.subr.mxu0 0.0
        %4165 = vmatpush1.xpose.msra.mxu0 0.0
        %4166 = vmatprep.subr.mxu0 0.0
        %4167 = vmatpush1.xpose.msra.mxu0 0.0
        %4168 = vmatprep.subr.mxu0 0.0
        %4169 = vmatpush1.xpose.msra.mxu0 0.0
        %4170 = vmatprep.subr.mxu0 0.0
        %4171 = vmatpush1.xpose.msra.mxu0 0.0
        %4172 = vmatprep.subr.mxu0 0.0
        %4173 = vmatpush1.xpose.msra.mxu0 0.0
        %4174 = vmatprep.subr.mxu0 0.0
        %4175 = vmatpush1.xpose.msra.mxu0 0.0
        %4176 = vmatprep.subr.mxu0 0.0
        %4177 = vmatpush1.xpose.msra.mxu0 0.0
        %4178 = vmatprep.subr.mxu0 0.0
        %4179 = vmatpush1.xpose.msra.mxu0 0.0
        %4180 = vmatprep.subr.mxu0 0.0
        %4181 = vmatpush1.xpose.msra.mxu0 0.0
        %4182 = vmatprep.subr.mxu0 0.0
        %4183 = vmatpush1.xpose.msra.mxu0 0.0
        %4184 = vmatprep.subr.mxu0 0.0
        %4185 = vmatpush1.xpose.msra.mxu0 0.0
        %4186 = vmatprep.subr.mxu0 0.0
        %4187 = vmatpush1.xpose.msra.mxu0 0.0
        %4188 = vmatprep.subr.mxu0 0.0
        %4189 = vmatpush1.xpose.msra.mxu0 0.0
        %4190 = vmatprep.subr.mxu0 0.0
        %4191 = vmatpush1.xpose.msra.mxu0 0.0
        %4192 = vmatprep.subr.mxu0 0.0
        %4193 = vmatpush1.xpose.msra.mxu0 0.0
        %4194 = vmatprep.subr.mxu0 0.0
        %4195 = vmatpush1.xpose.msra.mxu0 0.0
        %4196 = vmatprep.subr.mxu0 0.0
        %4197 = vmatpush1.xpose.msra.mxu0 0.0
        %4198 = vmatprep.subr.mxu0 0.0
        %4199 = vmatpush1.xpose.msra.mxu0 0.0
        %4200 = vmatprep.subr.mxu0 0.0
        %4201 = vmatpush1.xpose.msra.mxu0 0.0
        %4202 = vmatprep.subr.mxu0 0.0
        %4203 = vmatpush1.xpose.msra.mxu0 0.0
        %4204 = vmatprep.subr.mxu0 0.0
        %4205 = vmatpush1.xpose.msra.mxu0 0.0
        %4206 = vmatprep.subr.mxu0 0.0
        %4207 = vmatpush1.xpose.msra.mxu0 0.0
        %4208 = vmatprep.subr.mxu0 0.0
        %4209 = vmatpush1.xpose.msra.mxu0 0.0
        %4210 = vmatprep.subr.mxu0 0.0
        %4211 = vmatpush1.xpose.msra.mxu0 0.0
        %4212 = vmatprep.subr.mxu0 0.0
        %4213 = vmatpush1.xpose.msra.mxu0 0.0
        %4214 = vmatprep.subr.mxu0 0.0
        %4215 = vmatpush1.xpose.msra.mxu0 0.0
        %4216 = vmatprep.subr.mxu0 0.0
        %4217 = vmatpush1.xpose.msra.mxu0 0.0
        %4218 = vmatprep.subr.mxu0 0.0
        %4219 = vmatpush1.xpose.msra.mxu0 0.0
        %4220 = vmatprep.subr.mxu0 0.0
        %4221 = vmatpush1.xpose.msra.mxu0 0.0
        %4222 = vmatprep.subr.mxu0 0.0
        %4223 = vmatpush1.xpose.msra.mxu0 0.0
        %4224 = vmatprep.mubr.f32.mxu0 0.0
        %4225 = vmatmul.mubr.f32.gmra.mrb[0].mxu0 %v4158
        %v4226 = vpop.f32.mrb[0].mxu0
        %v4227 = vadd.f32 0.0, %v4226
        %v4228 = vpop.f32.mrb[0].mxu0
        %4229 = vdwg.mxu0
        %4230 = vrot.lane.b32.xlu0 %v3588, 96
        %v4231 = vpop.permute.xlu0 %4230
        %v4232 = vsel %vm1004, %v4231, 0
        %4234 = vmatprep.subr.mxu0 0.0
        %4235 = vmatpush1.xpose.msra.mxu0 %v2250
        %4236 = vmatprep.subr.mxu0 0.0
        %4237 = vmatpush1.xpose.msra.mxu0 0.0
        %4238 = vmatprep.subr.mxu0 0.0
        %4239 = vmatpush1.xpose.msra.mxu0 0.0
        %4240 = vmatprep.subr.mxu0 0.0
        %4241 = vmatpush1.xpose.msra.mxu0 0.0
        %4242 = vmatprep.subr.mxu0 0.0
        %4243 = vmatpush1.xpose.msra.mxu0 0.0
        %4244 = vmatprep.subr.mxu0 0.0
        %4245 = vmatpush1.xpose.msra.mxu0 0.0
        %4246 = vmatprep.subr.mxu0 0.0
        %4247 = vmatpush1.xpose.msra.mxu0 0.0
        %4248 = vmatprep.subr.mxu0 0.0
        %4249 = vmatpush1.xpose.msra.mxu0 0.0
        %4250 = vmatprep.subr.mxu0 0.0
        %4251 = vmatpush1.xpose.msra.mxu0 0.0
        %4252 = vmatprep.subr.mxu0 0.0
        %4253 = vmatpush1.xpose.msra.mxu0 0.0
        %4254 = vmatprep.subr.mxu0 0.0
        %4255 = vmatpush1.xpose.msra.mxu0 0.0
        %4256 = vmatprep.subr.mxu0 0.0
        %4257 = vmatpush1.xpose.msra.mxu0 0.0
        %4258 = vmatprep.subr.mxu0 0.0
        %4259 = vmatpush1.xpose.msra.mxu0 0.0
        %4260 = vmatprep.subr.mxu0 0.0
        %4261 = vmatpush1.xpose.msra.mxu0 0.0
        %4262 = vmatprep.subr.mxu0 0.0
        %4263 = vmatpush1.xpose.msra.mxu0 0.0
        %4264 = vmatprep.subr.mxu0 0.0
        %4265 = vmatpush1.xpose.msra.mxu0 0.0
        %4266 = vmatprep.subr.mxu0 0.0
        %4267 = vmatpush1.xpose.msra.mxu0 0.0
        %4268 = vmatprep.subr.mxu0 0.0
        %4269 = vmatpush1.xpose.msra.mxu0 0.0
        %4270 = vmatprep.subr.mxu0 0.0
        %4271 = vmatpush1.xpose.msra.mxu0 0.0
        %4272 = vmatprep.subr.mxu0 0.0
        %4273 = vmatpush1.xpose.msra.mxu0 0.0
        %4274 = vmatprep.subr.mxu0 0.0
        %4275 = vmatpush1.xpose.msra.mxu0 0.0
        %4276 = vmatprep.subr.mxu0 0.0
        %4277 = vmatpush1.xpose.msra.mxu0 0.0
        %4278 = vmatprep.subr.mxu0 0.0
        %4279 = vmatpush1.xpose.msra.mxu0 0.0
        %4280 = vmatprep.subr.mxu0 0.0
        %4281 = vmatpush1.xpose.msra.mxu0 0.0
        %4282 = vmatprep.subr.mxu0 0.0
        %4283 = vmatpush1.xpose.msra.mxu0 0.0
        %4284 = vmatprep.subr.mxu0 0.0
        %4285 = vmatpush1.xpose.msra.mxu0 0.0
        %4286 = vmatprep.subr.mxu0 0.0
        %4287 = vmatpush1.xpose.msra.mxu0 0.0
        %4288 = vmatprep.subr.mxu0 0.0
        %4289 = vmatpush1.xpose.msra.mxu0 0.0
        %4290 = vmatprep.subr.mxu0 0.0
        %4291 = vmatpush1.xpose.msra.mxu0 0.0
        %4292 = vmatprep.subr.mxu0 0.0
        %4293 = vmatpush1.xpose.msra.mxu0 0.0
        %4294 = vmatprep.subr.mxu0 0.0
        %4295 = vmatpush1.xpose.msra.mxu0 0.0
        %4296 = vmatprep.subr.mxu0 0.0
        %4297 = vmatpush1.xpose.msra.mxu0 0.0
        %4298 = vmatprep.mubr.f32.mxu0 0.0
        %4299 = vmatmul.mubr.f32.gmra.mrb[0].mxu0 %v4232
        %v4300 = vpop.f32.mrb[0].mxu0
        %v4301 = vadd.f32 0.0, %v4300
        %v4302 = vpop.f32.mrb[0].mxu0
        %4303 = vdwg.mxu0
        %4304 = vrot.lane.b32.xlu0 %v3669, 96
        %v4305 = vpop.permute.xlu0 %4304
        %v4306 = vsel %vm1004, %v4305, 0
        %4308 = vmatprep.subr.mxu0 0.0
        %4309 = vmatpush1.xpose.msra.mxu0 %v2327
        %4310 = vmatprep.subr.mxu0 0.0
        %4311 = vmatpush1.xpose.msra.mxu0 0.0
        %4312 = vmatprep.subr.mxu0 0.0
        %4313 = vmatpush1.xpose.msra.mxu0 0.0
        %4314 = vmatprep.subr.mxu0 0.0
        %4315 = vmatpush1.xpose.msra.mxu0 0.0
        %4316 = vmatprep.subr.mxu0 0.0
        %4317 = vmatpush1.xpose.msra.mxu0 0.0
        %4318 = vmatprep.subr.mxu0 0.0
        %4319 = vmatpush1.xpose.msra.mxu0 0.0
        %4320 = vmatprep.subr.mxu0 0.0
        %4321 = vmatpush1.xpose.msra.mxu0 0.0
        %4322 = vmatprep.subr.mxu0 0.0
        %4323 = vmatpush1.xpose.msra.mxu0 0.0
        %4324 = vmatprep.subr.mxu0 0.0
        %4325 = vmatpush1.xpose.msra.mxu0 0.0
        %4326 = vmatprep.subr.mxu0 0.0
        %4327 = vmatpush1.xpose.msra.mxu0 0.0
        %4328 = vmatprep.subr.mxu0 0.0
        %4329 = vmatpush1.xpose.msra.mxu0 0.0
        %4330 = vmatprep.subr.mxu0 0.0
        %4331 = vmatpush1.xpose.msra.mxu0 0.0
        %4332 = vmatprep.subr.mxu0 0.0
        %4333 = vmatpush1.xpose.msra.mxu0 0.0
        %4334 = vmatprep.subr.mxu0 0.0
        %4335 = vmatpush1.xpose.msra.mxu0 0.0
        %4336 = vmatprep.subr.mxu0 0.0
        %4337 = vmatpush1.xpose.msra.mxu0 0.0
        %4338 = vmatprep.subr.mxu0 0.0
        %4339 = vmatpush1.xpose.msra.mxu0 0.0
        %4340 = vmatprep.subr.mxu0 0.0
        %4341 = vmatpush1.xpose.msra.mxu0 0.0
        %4342 = vmatprep.subr.mxu0 0.0
        %4343 = vmatpush1.xpose.msra.mxu0 0.0
        %4344 = vmatprep.subr.mxu0 0.0
        %4345 = vmatpush1.xpose.msra.mxu0 0.0
        %4346 = vmatprep.subr.mxu0 0.0
        %4347 = vmatpush1.xpose.msra.mxu0 0.0
        %4348 = vmatprep.subr.mxu0 0.0
        %4349 = vmatpush1.xpose.msra.mxu0 0.0
        %4350 = vmatprep.subr.mxu0 0.0
        %4351 = vmatpush1.xpose.msra.mxu0 0.0
        %4352 = vmatprep.subr.mxu0 0.0
        %4353 = vmatpush1.xpose.msra.mxu0 0.0
        %4354 = vmatprep.subr.mxu0 0.0
        %4355 = vmatpush1.xpose.msra.mxu0 0.0
        %4356 = vmatprep.subr.mxu0 0.0
        %4357 = vmatpush1.xpose.msra.mxu0 0.0
        %4358 = vmatprep.subr.mxu0 0.0
        %4359 = vmatpush1.xpose.msra.mxu0 0.0
        %4360 = vmatprep.subr.mxu0 0.0
        %4361 = vmatpush1.xpose.msra.mxu0 0.0
        %4362 = vmatprep.subr.mxu0 0.0
        %4363 = vmatpush1.xpose.msra.mxu0 0.0
        %4364 = vmatprep.subr.mxu0 0.0
        %4365 = vmatpush1.xpose.msra.mxu0 0.0
        %4366 = vmatprep.subr.mxu0 0.0
        %4367 = vmatpush1.xpose.msra.mxu0 0.0
        %4368 = vmatprep.subr.mxu0 0.0
        %4369 = vmatpush1.xpose.msra.mxu0 0.0
        %4370 = vmatprep.subr.mxu0 0.0
        %4371 = vmatpush1.xpose.msra.mxu0 0.0
        %4372 = vmatprep.mubr.f32.mxu0 0.0
        %4373 = vmatmul.mubr.f32.gmra.mrb[0].mxu0 %v4306
        %v4374 = vpop.f32.mrb[0].mxu0
        %v4375 = vadd.f32 0.0, %v4374
        %v4376 = vpop.f32.mrb[0].mxu0
        %4377 = vdwg.mxu0
        %4378 = vrot.lane.b32.xlu0 %v3750, 96
        %v4379 = vpop.permute.xlu0 %4378
        %v4380 = vsel %vm1004, %v4379, 0
        %4382 = vmatprep.subr.mxu0 0.0
        %4383 = vmatpush1.xpose.msra.mxu0 %v2404
        %4384 = vmatprep.subr.mxu0 0.0
        %4385 = vmatpush1.xpose.msra.mxu0 0.0
        %4386 = vmatprep.subr.mxu0 0.0
        %4387 = vmatpush1.xpose.msra.mxu0 0.0
        %4388 = vmatprep.subr.mxu0 0.0
        %4389 = vmatpush1.xpose.msra.mxu0 0.0
        %4390 = vmatprep.subr.mxu0 0.0
        %4391 = vmatpush1.xpose.msra.mxu0 0.0
        %4392 = vmatprep.subr.mxu0 0.0
        %4393 = vmatpush1.xpose.msra.mxu0 0.0
        %4394 = vmatprep.subr.mxu0 0.0
        %4395 = vmatpush1.xpose.msra.mxu0 0.0
        %4396 = vmatprep.subr.mxu0 0.0
        %4397 = vmatpush1.xpose.msra.mxu0 0.0
        %4398 = vmatprep.subr.mxu0 0.0
        %4399 = vmatpush1.xpose.msra.mxu0 0.0
        %4400 = vmatprep.subr.mxu0 0.0
        %4401 = vmatpush1.xpose.msra.mxu0 0.0
        %4402 = vmatprep.subr.mxu0 0.0
        %4403 = vmatpush1.xpose.msra.mxu0 0.0
        %4404 = vmatprep.subr.mxu0 0.0
        %4405 = vmatpush1.xpose.msra.mxu0 0.0
        %4406 = vmatprep.subr.mxu0 0.0
        %4407 = vmatpush1.xpose.msra.mxu0 0.0
        %4408 = vmatprep.subr.mxu0 0.0
        %4409 = vmatpush1.xpose.msra.mxu0 0.0
        %4410 = vmatprep.subr.mxu0 0.0
        %4411 = vmatpush1.xpose.msra.mxu0 0.0
        %4412 = vmatprep.subr.mxu0 0.0
        %4413 = vmatpush1.xpose.msra.mxu0 0.0
        %4414 = vmatprep.subr.mxu0 0.0
        %4415 = vmatpush1.xpose.msra.mxu0 0.0
        %4416 = vmatprep.subr.mxu0 0.0
        %4417 = vmatpush1.xpose.msra.mxu0 0.0
        %4418 = vmatprep.subr.mxu0 0.0
        %4419 = vmatpush1.xpose.msra.mxu0 0.0
        %4420 = vmatprep.subr.mxu0 0.0
        %4421 = vmatpush1.xpose.msra.mxu0 0.0
        %4422 = vmatprep.subr.mxu0 0.0
        %4423 = vmatpush1.xpose.msra.mxu0 0.0
        %4424 = vmatprep.subr.mxu0 0.0
        %4425 = vmatpush1.xpose.msra.mxu0 0.0
        %4426 = vmatprep.subr.mxu0 0.0
        %4427 = vmatpush1.xpose.msra.mxu0 0.0
        %4428 = vmatprep.subr.mxu0 0.0
        %4429 = vmatpush1.xpose.msra.mxu0 0.0
        %4430 = vmatprep.subr.mxu0 0.0
        %4431 = vmatpush1.xpose.msra.mxu0 0.0
        %4432 = vmatprep.subr.mxu0 0.0
        %4433 = vmatpush1.xpose.msra.mxu0 0.0
        %4434 = vmatprep.subr.mxu0 0.0
        %4435 = vmatpush1.xpose.msra.mxu0 0.0
        %4436 = vmatprep.subr.mxu0 0.0
        %4437 = vmatpush1.xpose.msra.mxu0 0.0
        %4438 = vmatprep.subr.mxu0 0.0
        %4439 = vmatpush1.xpose.msra.mxu0 0.0
        %4440 = vmatprep.subr.mxu0 0.0
        %4441 = vmatpush1.xpose.msra.mxu0 0.0
        %4442 = vmatprep.subr.mxu0 0.0
        %4443 = vmatpush1.xpose.msra.mxu0 0.0
        %4444 = vmatprep.subr.mxu0 0.0
        %4445 = vmatpush1.xpose.msra.mxu0 0.0
        %4446 = vmatprep.mubr.f32.mxu0 0.0
        %4447 = vmatmul.mubr.f32.gmra.mrb[0].mxu0 %v4380
        %v4448 = vpop.f32.mrb[0].mxu0
        %v4449 = vadd.f32 0.0, %v4448
        %v4450 = vpop.f32.mrb[0].mxu0
        %4451 = vdwg.mxu0
        %4452 = vrot.lane.b32.xlu0 %v3831, 96
        %v4453 = vpop.permute.xlu0 %4452
        %v4454 = vsel %vm1004, %v4453, 0
        %4456 = vmatprep.subr.mxu0 0.0
        %4457 = vmatpush1.xpose.msra.mxu0 %v2481
        %4458 = vmatprep.subr.mxu0 0.0
        %4459 = vmatpush1.xpose.msra.mxu0 0.0
        %4460 = vmatprep.subr.mxu0 0.0
        %4461 = vmatpush1.xpose.msra.mxu0 0.0
        %4462 = vmatprep.subr.mxu0 0.0
        %4463 = vmatpush1.xpose.msra.mxu0 0.0
        %4464 = vmatprep.subr.mxu0 0.0
        %4465 = vmatpush1.xpose.msra.mxu0 0.0
        %4466 = vmatprep.subr.mxu0 0.0
        %4467 = vmatpush1.xpose.msra.mxu0 0.0
        %4468 = vmatprep.subr.mxu0 0.0
        %4469 = vmatpush1.xpose.msra.mxu0 0.0
        %4470 = vmatprep.subr.mxu0 0.0
        %4471 = vmatpush1.xpose.msra.mxu0 0.0
        %4472 = vmatprep.subr.mxu0 0.0
        %4473 = vmatpush1.xpose.msra.mxu0 0.0
        %4474 = vmatprep.subr.mxu0 0.0
        %4475 = vmatpush1.xpose.msra.mxu0 0.0
        %4476 = vmatprep.subr.mxu0 0.0
        %4477 = vmatpush1.xpose.msra.mxu0 0.0
        %4478 = vmatprep.subr.mxu0 0.0
        %4479 = vmatpush1.xpose.msra.mxu0 0.0
        %4480 = vmatprep.subr.mxu0 0.0
        %4481 = vmatpush1.xpose.msra.mxu0 0.0
        %4482 = vmatprep.subr.mxu0 0.0
        %4483 = vmatpush1.xpose.msra.mxu0 0.0
        %4484 = vmatprep.subr.mxu0 0.0
        %4485 = vmatpush1.xpose.msra.mxu0 0.0
        %4486 = vmatprep.subr.mxu0 0.0
        %4487 = vmatpush1.xpose.msra.mxu0 0.0
        %4488 = vmatprep.subr.mxu0 0.0
        %4489 = vmatpush1.xpose.msra.mxu0 0.0
        %4490 = vmatprep.subr.mxu0 0.0
        %4491 = vmatpush1.xpose.msra.mxu0 0.0
        %4492 = vmatprep.subr.mxu0 0.0
        %4493 = vmatpush1.xpose.msra.mxu0 0.0
        %4494 = vmatprep.subr.mxu0 0.0
        %4495 = vmatpush1.xpose.msra.mxu0 0.0
        %4496 = vmatprep.subr.mxu0 0.0
        %4497 = vmatpush1.xpose.msra.mxu0 0.0
        %4498 = vmatprep.subr.mxu0 0.0
        %4499 = vmatpush1.xpose.msra.mxu0 0.0
        %4500 = vmatprep.subr.mxu0 0.0
        %4501 = vmatpush1.xpose.msra.mxu0 0.0
        %4502 = vmatprep.subr.mxu0 0.0
        %4503 = vmatpush1.xpose.msra.mxu0 0.0
        %4504 = vmatprep.subr.mxu0 0.0
        %4505 = vmatpush1.xpose.msra.mxu0 0.0
        %4506 = vmatprep.subr.mxu0 0.0
        %4507 = vmatpush1.xpose.msra.mxu0 0.0
        %4508 = vmatprep.subr.mxu0 0.0
        %4509 = vmatpush1.xpose.msra.mxu0 0.0
        %4510 = vmatprep.subr.mxu0 0.0
        %4511 = vmatpush1.xpose.msra.mxu0 0.0
        %4512 = vmatprep.subr.mxu0 0.0
        %4513 = vmatpush1.xpose.msra.mxu0 0.0
        %4514 = vmatprep.subr.mxu0 0.0
        %4515 = vmatpush1.xpose.msra.mxu0 0.0
        %4516 = vmatprep.subr.mxu0 0.0
        %4517 = vmatpush1.xpose.msra.mxu0 0.0
        %4518 = vmatprep.subr.mxu0 0.0
        %4519 = vmatpush1.xpose.msra.mxu0 0.0
        %4520 = vmatprep.mubr.f32.mxu0 0.0
        %4521 = vmatmul.mubr.f32.gmra.mrb[0].mxu0 %v4454
        %v4522 = vpop.f32.mrb[0].mxu0
        %v4523 = vadd.f32 0.0, %v4522
        %v4524 = vpop.f32.mrb[0].mxu0
        %4525 = vdwg.mxu0
        %4526 = vrot.lane.b32.xlu0 %v3912, 96
        %v4527 = vpop.permute.xlu0 %4526
        %v4528 = vsel %vm1004, %v4527, 0
        %4530 = vmatprep.subr.mxu0 0.0
        %4531 = vmatpush1.xpose.msra.mxu0 %v2558
        %4532 = vmatprep.subr.mxu0 0.0
        %4533 = vmatpush1.xpose.msra.mxu0 0.0
        %4534 = vmatprep.subr.mxu0 0.0
        %4535 = vmatpush1.xpose.msra.mxu0 0.0
        %4536 = vmatprep.subr.mxu0 0.0
        %4537 = vmatpush1.xpose.msra.mxu0 0.0
        %4538 = vmatprep.subr.mxu0 0.0
        %4539 = vmatpush1.xpose.msra.mxu0 0.0
        %4540 = vmatprep.subr.mxu0 0.0
        %4541 = vmatpush1.xpose.msra.mxu0 0.0
        %4542 = vmatprep.subr.mxu0 0.0
        %4543 = vmatpush1.xpose.msra.mxu0 0.0
        %4544 = vmatprep.subr.mxu0 0.0
        %4545 = vmatpush1.xpose.msra.mxu0 0.0
        %4546 = vmatprep.subr.mxu0 0.0
        %4547 = vmatpush1.xpose.msra.mxu0 0.0
        %4548 = vmatprep.subr.mxu0 0.0
        %4549 = vmatpush1.xpose.msra.mxu0 0.0
        %4550 = vmatprep.subr.mxu0 0.0
        %4551 = vmatpush1.xpose.msra.mxu0 0.0
        %4552 = vmatprep.subr.mxu0 0.0
        %4553 = vmatpush1.xpose.msra.mxu0 0.0
        %4554 = vmatprep.subr.mxu0 0.0
        %4555 = vmatpush1.xpose.msra.mxu0 0.0
        %4556 = vmatprep.subr.mxu0 0.0
        %4557 = vmatpush1.xpose.msra.mxu0 0.0
        %4558 = vmatprep.subr.mxu0 0.0
        %4559 = vmatpush1.xpose.msra.mxu0 0.0
        %4560 = vmatprep.subr.mxu0 0.0
        %4561 = vmatpush1.xpose.msra.mxu0 0.0
        %4562 = vmatprep.subr.mxu0 0.0
        %4563 = vmatpush1.xpose.msra.mxu0 0.0
        %4564 = vmatprep.subr.mxu0 0.0
        %4565 = vmatpush1.xpose.msra.mxu0 0.0
        %4566 = vmatprep.subr.mxu0 0.0
        %4567 = vmatpush1.xpose.msra.mxu0 0.0
        %4568 = vmatprep.subr.mxu0 0.0
        %4569 = vmatpush1.xpose.msra.mxu0 0.0
        %4570 = vmatprep.subr.mxu0 0.0
        %4571 = vmatpush1.xpose.msra.mxu0 0.0
        %4572 = vmatprep.subr.mxu0 0.0
        %4573 = vmatpush1.xpose.msra.mxu0 0.0
        %4574 = vmatprep.subr.mxu0 0.0
        %4575 = vmatpush1.xpose.msra.mxu0 0.0
        %4576 = vmatprep.subr.mxu0 0.0
        %4577 = vmatpush1.xpose.msra.mxu0 0.0
        %4578 = vmatprep.subr.mxu0 0.0
        %4579 = vmatpush1.xpose.msra.mxu0 0.0
        %4580 = vmatprep.subr.mxu0 0.0
        %4581 = vmatpush1.xpose.msra.mxu0 0.0
        %4582 = vmatprep.subr.mxu0 0.0
        %4583 = vmatpush1.xpose.msra.mxu0 0.0
        %4584 = vmatprep.subr.mxu0 0.0
        %4585 = vmatpush1.xpose.msra.mxu0 0.0
        %4586 = vmatprep.subr.mxu0 0.0
        %4587 = vmatpush1.xpose.msra.mxu0 0.0
        %4588 = vmatprep.subr.mxu0 0.0
        %4589 = vmatpush1.xpose.msra.mxu0 0.0
        %4590 = vmatprep.subr.mxu0 0.0
        %4591 = vmatpush1.xpose.msra.mxu0 0.0
        %4592 = vmatprep.subr.mxu0 0.0
        %4593 = vmatpush1.xpose.msra.mxu0 0.0
        %4594 = vmatprep.mubr.f32.mxu0 0.0
        %4595 = vmatmul.mubr.f32.gmra.mrb[0].mxu0 %v4528
        %v4596 = vpop.f32.mrb[0].mxu0
        %v4597 = vadd.f32 0.0, %v4596
        %v4598 = vpop.f32.mrb[0].mxu0
        %4599 = vdwg.mxu0
        %4600 = vrot.lane.b32.xlu0 %v3993, 96
        %v4601 = vpop.permute.xlu0 %4600
        %v4602 = vsel %vm1004, %v4601, 0
        %4604 = vmatprep.subr.mxu0 0.0
        %4605 = vmatpush1.xpose.msra.mxu0 %v2635
        %4606 = vmatprep.subr.mxu0 0.0
        %4607 = vmatpush1.xpose.msra.mxu0 0.0
        %4608 = vmatprep.subr.mxu0 0.0
        %4609 = vmatpush1.xpose.msra.mxu0 0.0
        %4610 = vmatprep.subr.mxu0 0.0
        %4611 = vmatpush1.xpose.msra.mxu0 0.0
        %4612 = vmatprep.subr.mxu0 0.0
        %4613 = vmatpush1.xpose.msra.mxu0 0.0
        %4614 = vmatprep.subr.mxu0 0.0
        %4615 = vmatpush1.xpose.msra.mxu0 0.0
        %4616 = vmatprep.subr.mxu0 0.0
        %4617 = vmatpush1.xpose.msra.mxu0 0.0
        %4618 = vmatprep.subr.mxu0 0.0
        %4619 = vmatpush1.xpose.msra.mxu0 0.0
        %4620 = vmatprep.subr.mxu0 0.0
        %4621 = vmatpush1.xpose.msra.mxu0 0.0
        %4622 = vmatprep.subr.mxu0 0.0
        %4623 = vmatpush1.xpose.msra.mxu0 0.0
        %4624 = vmatprep.subr.mxu0 0.0
        %4625 = vmatpush1.xpose.msra.mxu0 0.0
        %4626 = vmatprep.subr.mxu0 0.0
        %4627 = vmatpush1.xpose.msra.mxu0 0.0
        %4628 = vmatprep.subr.mxu0 0.0
        %4629 = vmatpush1.xpose.msra.mxu0 0.0
        %4630 = vmatprep.subr.mxu0 0.0
        %4631 = vmatpush1.xpose.msra.mxu0 0.0
        %4632 = vmatprep.subr.mxu0 0.0
        %4633 = vmatpush1.xpose.msra.mxu0 0.0
        %4634 = vmatprep.subr.mxu0 0.0
        %4635 = vmatpush1.xpose.msra.mxu0 0.0
        %4636 = vmatprep.subr.mxu0 0.0
        %4637 = vmatpush1.xpose.msra.mxu0 0.0
        %4638 = vmatprep.subr.mxu0 0.0
        %4639 = vmatpush1.xpose.msra.mxu0 0.0
        %4640 = vmatprep.subr.mxu0 0.0
        %4641 = vmatpush1.xpose.msra.mxu0 0.0
        %4642 = vmatprep.subr.mxu0 0.0
        %4643 = vmatpush1.xpose.msra.mxu0 0.0
        %4644 = vmatprep.subr.mxu0 0.0
        %4645 = vmatpush1.xpose.msra.mxu0 0.0
        %4646 = vmatprep.subr.mxu0 0.0
        %4647 = vmatpush1.xpose.msra.mxu0 0.0
        %4648 = vmatprep.subr.mxu0 0.0
        %4649 = vmatpush1.xpose.msra.mxu0 0.0
        %4650 = vmatprep.subr.mxu0 0.0
        %4651 = vmatpush1.xpose.msra.mxu0 0.0
        %4652 = vmatprep.subr.mxu0 0.0
        %4653 = vmatpush1.xpose.msra.mxu0 0.0
        %4654 = vmatprep.subr.mxu0 0.0
        %4655 = vmatpush1.xpose.msra.mxu0 0.0
        %4656 = vmatprep.subr.mxu0 0.0
        %4657 = vmatpush1.xpose.msra.mxu0 0.0
        %4658 = vmatprep.subr.mxu0 0.0
        %4659 = vmatpush1.xpose.msra.mxu0 0.0
        %4660 = vmatprep.subr.mxu0 0.0
        %4661 = vmatpush1.xpose.msra.mxu0 0.0
        %4662 = vmatprep.subr.mxu0 0.0
        %4663 = vmatpush1.xpose.msra.mxu0 0.0
        %4664 = vmatprep.subr.mxu0 0.0
        %4665 = vmatpush1.xpose.msra.mxu0 0.0
        %4666 = vmatprep.subr.mxu0 0.0
        %4667 = vmatpush1.xpose.msra.mxu0 0.0
        %4668 = vmatprep.mubr.f32.mxu0 0.0
        %4669 = vmatmul.mubr.f32.gmra.mrb[0].mxu0 %v4602
        %v4670 = vpop.f32.mrb[0].mxu0
        %v4671 = vadd.f32 0.0, %v4670
        %v4672 = vpop.f32.mrb[0].mxu0
        %4673 = vdwg.mxu0
        %4674 = vrot.lane.b32.xlu0 %v4074, 96
        %v4675 = vpop.permute.xlu0 %4674
        %v4676 = vsel %vm1004, %v4675, 0
        %4678 = vmatprep.subr.mxu0 0.0
        %4679 = vmatpush1.xpose.msra.mxu0 %v2712
        %4680 = vmatprep.subr.mxu0 0.0
        %4681 = vmatpush1.xpose.msra.mxu0 0.0
        %4682 = vmatprep.subr.mxu0 0.0
        %4683 = vmatpush1.xpose.msra.mxu0 0.0
        %4684 = vmatprep.subr.mxu0 0.0
        %4685 = vmatpush1.xpose.msra.mxu0 0.0
        %4686 = vmatprep.subr.mxu0 0.0
        %4687 = vmatpush1.xpose.msra.mxu0 0.0
        %4688 = vmatprep.subr.mxu0 0.0
        %4689 = vmatpush1.xpose.msra.mxu0 0.0
        %4690 = vmatprep.subr.mxu0 0.0
        %4691 = vmatpush1.xpose.msra.mxu0 0.0
        %4692 = vmatprep.subr.mxu0 0.0
        %4693 = vmatpush1.xpose.msra.mxu0 0.0
        %4694 = vmatprep.subr.mxu0 0.0
        %4695 = vmatpush1.xpose.msra.mxu0 0.0
        %4696 = vmatprep.subr.mxu0 0.0
        %4697 = vmatpush1.xpose.msra.mxu0 0.0
        %4698 = vmatprep.subr.mxu0 0.0
        %4699 = vmatpush1.xpose.msra.mxu0 0.0
        %4700 = vmatprep.subr.mxu0 0.0
        %4701 = vmatpush1.xpose.msra.mxu0 0.0
        %4702 = vmatprep.subr.mxu0 0.0
        %4703 = vmatpush1.xpose.msra.mxu0 0.0
        %4704 = vmatprep.subr.mxu0 0.0
        %4705 = vmatpush1.xpose.msra.mxu0 0.0
        %4706 = vmatprep.subr.mxu0 0.0
        %4707 = vmatpush1.xpose.msra.mxu0 0.0
        %4708 = vmatprep.subr.mxu0 0.0
        %4709 = vmatpush1.xpose.msra.mxu0 0.0
        %4710 = vmatprep.subr.mxu0 0.0
        %4711 = vmatpush1.xpose.msra.mxu0 0.0
        %4712 = vmatprep.subr.mxu0 0.0
        %4713 = vmatpush1.xpose.msra.mxu0 0.0
        %4714 = vmatprep.subr.mxu0 0.0
        %4715 = vmatpush1.xpose.msra.mxu0 0.0
        %4716 = vmatprep.subr.mxu0 0.0
        %4717 = vmatpush1.xpose.msra.mxu0 0.0
        %4718 = vmatprep.subr.mxu0 0.0
        %4719 = vmatpush1.xpose.msra.mxu0 0.0
        %4720 = vmatprep.subr.mxu0 0.0
        %4721 = vmatpush1.xpose.msra.mxu0 0.0
        %4722 = vmatprep.subr.mxu0 0.0
        %4723 = vmatpush1.xpose.msra.mxu0 0.0
        %4724 = vmatprep.subr.mxu0 0.0
        %4725 = vmatpush1.xpose.msra.mxu0 0.0
        %4726 = vmatprep.subr.mxu0 0.0
        %4727 = vmatpush1.xpose.msra.mxu0 0.0
        %4728 = vmatprep.subr.mxu0 0.0
        %4729 = vmatpush1.xpose.msra.mxu0 0.0
        %4730 = vmatprep.subr.mxu0 0.0
        %4731 = vmatpush1.xpose.msra.mxu0 0.0
        %4732 = vmatprep.subr.mxu0 0.0
        %4733 = vmatpush1.xpose.msra.mxu0 0.0
        %4734 = vmatprep.subr.mxu0 0.0
        %4735 = vmatpush1.xpose.msra.mxu0 0.0
        %4736 = vmatprep.subr.mxu0 0.0
        %4737 = vmatpush1.xpose.msra.mxu0 0.0
        %4738 = vmatprep.subr.mxu0 0.0
        %4739 = vmatpush1.xpose.msra.mxu0 0.0
        %4740 = vmatprep.subr.mxu0 0.0
        %4741 = vmatpush1.xpose.msra.mxu0 0.0
        %4742 = vmatprep.mubr.f32.mxu0 0.0
        %4743 = vmatmul.mubr.f32.gmra.mrb[0].mxu0 %v4676
        %v4744 = vpop.f32.mrb[0].mxu0
        %v4745 = vadd.f32 0.0, %v4744
        %v4746 = vpop.f32.mrb[0].mxu0
        %4747 = vdwg.mxu0
        %4748 = vrot.lane.b32.xlu0 %v4155, 96
        %v4749 = vpop.permute.xlu0 %4748
        %v4750 = vsel %vm1004, %v4749, 0
        %4752 = vmatprep.subr.mxu0 0.0
        %4753 = vmatpush1.xpose.msra.mxu0 %v2789
        %4754 = vmatprep.subr.mxu0 0.0
        %4755 = vmatpush1.xpose.msra.mxu0 0.0
        %4756 = vmatprep.subr.mxu0 0.0
        %4757 = vmatpush1.xpose.msra.mxu0 0.0
        %4758 = vmatprep.subr.mxu0 0.0
        %4759 = vmatpush1.xpose.msra.mxu0 0.0
        %4760 = vmatprep.subr.mxu0 0.0
        %4761 = vmatpush1.xpose.msra.mxu0 0.0
        %4762 = vmatprep.subr.mxu0 0.0
        %4763 = vmatpush1.xpose.msra.mxu0 0.0
        %4764 = vmatprep.subr.mxu0 0.0
        %4765 = vmatpush1.xpose.msra.mxu0 0.0
        %4766 = vmatprep.subr.mxu0 0.0
        %4767 = vmatpush1.xpose.msra.mxu0 0.0
        %4768 = vmatprep.subr.mxu0 0.0
        %4769 = vmatpush1.xpose.msra.mxu0 0.0
        %4770 = vmatprep.subr.mxu0 0.0
        %4771 = vmatpush1.xpose.msra.mxu0 0.0
        %4772 = vmatprep.subr.mxu0 0.0
        %4773 = vmatpush1.xpose.msra.mxu0 0.0
        %4774 = vmatprep.subr.mxu0 0.0
        %4775 = vmatpush1.xpose.msra.mxu0 0.0
        %4776 = vmatprep.subr.mxu0 0.0
        %4777 = vmatpush1.xpose.msra.mxu0 0.0
        %4778 = vmatprep.subr.mxu0 0.0
        %4779 = vmatpush1.xpose.msra.mxu0 0.0
        %4780 = vmatprep.subr.mxu0 0.0
        %4781 = vmatpush1.xpose.msra.mxu0 0.0
        %4782 = vmatprep.subr.mxu0 0.0
        %4783 = vmatpush1.xpose.msra.mxu0 0.0
        %4784 = vmatprep.subr.mxu0 0.0
        %4785 = vmatpush1.xpose.msra.mxu0 0.0
        %4786 = vmatprep.subr.mxu0 0.0
        %4787 = vmatpush1.xpose.msra.mxu0 0.0
        %4788 = vmatprep.subr.mxu0 0.0
        %4789 = vmatpush1.xpose.msra.mxu0 0.0
        %4790 = vmatprep.subr.mxu0 0.0
        %4791 = vmatpush1.xpose.msra.mxu0 0.0
        %4792 = vmatprep.subr.mxu0 0.0
        %4793 = vmatpush1.xpose.msra.mxu0 0.0
        %4794 = vmatprep.subr.mxu0 0.0
        %4795 = vmatpush1.xpose.msra.mxu0 0.0
        %4796 = vmatprep.subr.mxu0 0.0
        %4797 = vmatpush1.xpose.msra.mxu0 0.0
        %4798 = vmatprep.subr.mxu0 0.0
        %4799 = vmatpush1.xpose.msra.mxu0 0.0
        %4800 = vmatprep.subr.mxu0 0.0
        %4801 = vmatpush1.xpose.msra.mxu0 0.0
        %4802 = vmatprep.subr.mxu0 0.0
        %4803 = vmatpush1.xpose.msra.mxu0 0.0
        %4804 = vmatprep.subr.mxu0 0.0
        %4805 = vmatpush1.xpose.msra.mxu0 0.0
        %4806 = vmatprep.subr.mxu0 0.0
        %4807 = vmatpush1.xpose.msra.mxu0 0.0
        %4808 = vmatprep.subr.mxu0 0.0
        %4809 = vmatpush1.xpose.msra.mxu0 0.0
        %4810 = vmatprep.subr.mxu0 0.0
        %4811 = vmatpush1.xpose.msra.mxu0 0.0
        %4812 = vmatprep.subr.mxu0 0.0
        %4813 = vmatpush1.xpose.msra.mxu0 0.0
        %4814 = vmatprep.subr.mxu0 0.0
        %4815 = vmatpush1.xpose.msra.mxu0 0.0
        %4816 = vmatprep.mubr.f32.mxu0 0.0
        %4817 = vmatmul.mubr.f32.gmra.mrb[0].mxu0 %v4750
        %v4818 = vpop.f32.mrb[0].mxu0
        %v4819 = vadd.f32 0.0, %v4818
        %v4820 = vpop.f32.mrb[0].mxu0
        %4821 = vdwg.mxu0
        %4822 = vrot.lane.b32.xlu0 %v3588, 32
        %v4823 = vpop.permute.xlu0 %4822
        %v4824 = vsel %vm1004, %v4823, 0
        %4826 = vmatprep.subr.mxu0 0.0
        %4827 = vmatpush1.xpose.msra.mxu0 %v2866
        %4828 = vmatprep.subr.mxu0 0.0
        %4829 = vmatpush1.xpose.msra.mxu0 0.0
        %4830 = vmatprep.subr.mxu0 0.0
        %4831 = vmatpush1.xpose.msra.mxu0 0.0
        %4832 = vmatprep.subr.mxu0 0.0
        %4833 = vmatpush1.xpose.msra.mxu0 0.0
        %4834 = vmatprep.subr.mxu0 0.0
        %4835 = vmatpush1.xpose.msra.mxu0 0.0
        %4836 = vmatprep.subr.mxu0 0.0
        %4837 = vmatpush1.xpose.msra.mxu0 0.0
        %4838 = vmatprep.subr.mxu0 0.0
        %4839 = vmatpush1.xpose.msra.mxu0 0.0
        %4840 = vmatprep.subr.mxu0 0.0
        %4841 = vmatpush1.xpose.msra.mxu0 0.0
        %4842 = vmatprep.subr.mxu0 0.0
        %4843 = vmatpush1.xpose.msra.mxu0 0.0
        %4844 = vmatprep.subr.mxu0 0.0
        %4845 = vmatpush1.xpose.msra.mxu0 0.0
        %4846 = vmatprep.subr.mxu0 0.0
        %4847 = vmatpush1.xpose.msra.mxu0 0.0
        %4848 = vmatprep.subr.mxu0 0.0
        %4849 = vmatpush1.xpose.msra.mxu0 0.0
        %4850 = vmatprep.subr.mxu0 0.0
        %4851 = vmatpush1.xpose.msra.mxu0 0.0
        %4852 = vmatprep.subr.mxu0 0.0
        %4853 = vmatpush1.xpose.msra.mxu0 0.0
        %4854 = vmatprep.subr.mxu0 0.0
        %4855 = vmatpush1.xpose.msra.mxu0 0.0
        %4856 = vmatprep.subr.mxu0 0.0
        %4857 = vmatpush1.xpose.msra.mxu0 0.0
        %4858 = vmatprep.subr.mxu0 0.0
        %4859 = vmatpush1.xpose.msra.mxu0 0.0
        %4860 = vmatprep.subr.mxu0 0.0
        %4861 = vmatpush1.xpose.msra.mxu0 0.0
        %4862 = vmatprep.subr.mxu0 0.0
        %4863 = vmatpush1.xpose.msra.mxu0 0.0
        %4864 = vmatprep.subr.mxu0 0.0
        %4865 = vmatpush1.xpose.msra.mxu0 0.0
        %4866 = vmatprep.subr.mxu0 0.0
        %4867 = vmatpush1.xpose.msra.mxu0 0.0
        %4868 = vmatprep.subr.mxu0 0.0
        %4869 = vmatpush1.xpose.msra.mxu0 0.0
        %4870 = vmatprep.subr.mxu0 0.0
        %4871 = vmatpush1.xpose.msra.mxu0 0.0
        %4872 = vmatprep.subr.mxu0 0.0
        %4873 = vmatpush1.xpose.msra.mxu0 0.0
        %4874 = vmatprep.subr.mxu0 0.0
        %4875 = vmatpush1.xpose.msra.mxu0 0.0
        %4876 = vmatprep.subr.mxu0 0.0
        %4877 = vmatpush1.xpose.msra.mxu0 0.0
        %4878 = vmatprep.subr.mxu0 0.0
        %4879 = vmatpush1.xpose.msra.mxu0 0.0
        %4880 = vmatprep.subr.mxu0 0.0
        %4881 = vmatpush1.xpose.msra.mxu0 0.0
        %4882 = vmatprep.subr.mxu0 0.0
        %4883 = vmatpush1.xpose.msra.mxu0 0.0
        %4884 = vmatprep.subr.mxu0 0.0
        %4885 = vmatpush1.xpose.msra.mxu0 0.0
        %4886 = vmatprep.subr.mxu0 0.0
        %4887 = vmatpush1.xpose.msra.mxu0 0.0
        %4888 = vmatprep.subr.mxu0 0.0
        %4889 = vmatpush1.xpose.msra.mxu0 0.0
        %4890 = vmatprep.mubr.f32.mxu0 0.0
        %4891 = vmatmul.mubr.f32.gmra.mrb[0].mxu0 %v4824
        %v4892 = vpop.f32.mrb[0].mxu0
        %v4893 = vadd.f32 0.0, %v4892
        %v4894 = vpop.f32.mrb[0].mxu0
        %4895 = vdwg.mxu0
        %4896 = vrot.lane.b32.xlu0 %v3669, 32
        %v4897 = vpop.permute.xlu0 %4896
        %v4898 = vsel %vm1004, %v4897, 0
        %4900 = vmatprep.subr.mxu0 0.0
        %4901 = vmatpush1.xpose.msra.mxu0 %v2943
        %4902 = vmatprep.subr.mxu0 0.0
        %4903 = vmatpush1.xpose.msra.mxu0 0.0
        %4904 = vmatprep.subr.mxu0 0.0
        %4905 = vmatpush1.xpose.msra.mxu0 0.0
        %4906 = vmatprep.subr.mxu0 0.0
        %4907 = vmatpush1.xpose.msra.mxu0 0.0
        %4908 = vmatprep.subr.mxu0 0.0
        %4909 = vmatpush1.xpose.msra.mxu0 0.0
        %4910 = vmatprep.subr.mxu0 0.0
        %4911 = vmatpush1.xpose.msra.mxu0 0.0
        %4912 = vmatprep.subr.mxu0 0.0
        %4913 = vmatpush1.xpose.msra.mxu0 0.0
        %4914 = vmatprep.subr.mxu0 0.0
        %4915 = vmatpush1.xpose.msra.mxu0 0.0
        %4916 = vmatprep.subr.mxu0 0.0
        %4917 = vmatpush1.xpose.msra.mxu0 0.0
        %4918 = vmatprep.subr.mxu0 0.0
        %4919 = vmatpush1.xpose.msra.mxu0 0.0
        %4920 = vmatprep.subr.mxu0 0.0
        %4921 = vmatpush1.xpose.msra.mxu0 0.0
        %4922 = vmatprep.subr.mxu0 0.0
        %4923 = vmatpush1.xpose.msra.mxu0 0.0
        %4924 = vmatprep.subr.mxu0 0.0
        %4925 = vmatpush1.xpose.msra.mxu0 0.0
        %4926 = vmatprep.subr.mxu0 0.0
        %4927 = vmatpush1.xpose.msra.mxu0 0.0
        %4928 = vmatprep.subr.mxu0 0.0
        %4929 = vmatpush1.xpose.msra.mxu0 0.0
        %4930 = vmatprep.subr.mxu0 0.0
        %4931 = vmatpush1.xpose.msra.mxu0 0.0
        %4932 = vmatprep.subr.mxu0 0.0
        %4933 = vmatpush1.xpose.msra.mxu0 0.0
        %4934 = vmatprep.subr.mxu0 0.0
        %4935 = vmatpush1.xpose.msra.mxu0 0.0
        %4936 = vmatprep.subr.mxu0 0.0
        %4937 = vmatpush1.xpose.msra.mxu0 0.0
        %4938 = vmatprep.subr.mxu0 0.0
        %4939 = vmatpush1.xpose.msra.mxu0 0.0
        %4940 = vmatprep.subr.mxu0 0.0
        %4941 = vmatpush1.xpose.msra.mxu0 0.0
        %4942 = vmatprep.subr.mxu0 0.0
        %4943 = vmatpush1.xpose.msra.mxu0 0.0
        %4944 = vmatprep.subr.mxu0 0.0
        %4945 = vmatpush1.xpose.msra.mxu0 0.0
        %4946 = vmatprep.subr.mxu0 0.0
        %4947 = vmatpush1.xpose.msra.mxu0 0.0
        %4948 = vmatprep.subr.mxu0 0.0
        %4949 = vmatpush1.xpose.msra.mxu0 0.0
        %4950 = vmatprep.subr.mxu0 0.0
        %4951 = vmatpush1.xpose.msra.mxu0 0.0
        %4952 = vmatprep.subr.mxu0 0.0
        %4953 = vmatpush1.xpose.msra.mxu0 0.0
        %4954 = vmatprep.subr.mxu0 0.0
        %4955 = vmatpush1.xpose.msra.mxu0 0.0
        %4956 = vmatprep.subr.mxu0 0.0
        %4957 = vmatpush1.xpose.msra.mxu0 0.0
        %4958 = vmatprep.subr.mxu0 0.0
        %4959 = vmatpush1.xpose.msra.mxu0 0.0
        %4960 = vmatprep.subr.mxu0 0.0
        %4961 = vmatpush1.xpose.msra.mxu0 0.0
        %4962 = vmatprep.subr.mxu0 0.0
        %4963 = vmatpush1.xpose.msra.mxu0 0.0
        %4964 = vmatprep.mubr.f32.mxu0 0.0
        %4965 = vmatmul.mubr.f32.gmra.mrb[0].mxu0 %v4898
        %v4966 = vpop.f32.mrb[0].mxu0
        %v4967 = vadd.f32 0.0, %v4966
        %v4968 = vpop.f32.mrb[0].mxu0
        %4969 = vdwg.mxu0
        %4970 = vrot.lane.b32.xlu0 %v3750, 32
        %v4971 = vpop.permute.xlu0 %4970
        %v4972 = vsel %vm1004, %v4971, 0
        %4974 = vmatprep.subr.mxu0 0.0
        %4975 = vmatpush1.xpose.msra.mxu0 %v3020
        %4976 = vmatprep.subr.mxu0 0.0
        %4977 = vmatpush1.xpose.msra.mxu0 0.0
        %4978 = vmatprep.subr.mxu0 0.0
        %4979 = vmatpush1.xpose.msra.mxu0 0.0
        %4980 = vmatprep.subr.mxu0 0.0
        %4981 = vmatpush1.xpose.msra.mxu0 0.0
        %4982 = vmatprep.subr.mxu0 0.0
        %4983 = vmatpush1.xpose.msra.mxu0 0.0
        %4984 = vmatprep.subr.mxu0 0.0
        %4985 = vmatpush1.xpose.msra.mxu0 0.0
        %4986 = vmatprep.subr.mxu0 0.0
        %4987 = vmatpush1.xpose.msra.mxu0 0.0
        %4988 = vmatprep.subr.mxu0 0.0
        %4989 = vmatpush1.xpose.msra.mxu0 0.0
        %4990 = vmatprep.subr.mxu0 0.0
        %4991 = vmatpush1.xpose.msra.mxu0 0.0
        %4992 = vmatprep.subr.mxu0 0.0
        %4993 = vmatpush1.xpose.msra.mxu0 0.0
        %4994 = vmatprep.subr.mxu0 0.0
        %4995 = vmatpush1.xpose.msra.mxu0 0.0
        %4996 = vmatprep.subr.mxu0 0.0
        %4997 = vmatpush1.xpose.msra.mxu0 0.0
        %4998 = vmatprep.subr.mxu0 0.0
        %4999 = vmatpush1.xpose.msra.mxu0 0.0
        %5000 = vmatprep.subr.mxu0 0.0
        %5001 = vmatpush1.xpose.msra.mxu0 0.0
        %5002 = vmatprep.subr.mxu0 0.0
        %5003 = vmatpush1.xpose.msra.mxu0 0.0
        %5004 = vmatprep.subr.mxu0 0.0
        %5005 = vmatpush1.xpose.msra.mxu0 0.0
        %5006 = vmatprep.subr.mxu0 0.0
        %5007 = vmatpush1.xpose.msra.mxu0 0.0
        %5008 = vmatprep.subr.mxu0 0.0
        %5009 = vmatpush1.xpose.msra.mxu0 0.0
        %5010 = vmatprep.subr.mxu0 0.0
        %5011 = vmatpush1.xpose.msra.mxu0 0.0
        %5012 = vmatprep.subr.mxu0 0.0
        %5013 = vmatpush1.xpose.msra.mxu0 0.0
        %5014 = vmatprep.subr.mxu0 0.0
        %5015 = vmatpush1.xpose.msra.mxu0 0.0
        %5016 = vmatprep.subr.mxu0 0.0
        %5017 = vmatpush1.xpose.msra.mxu0 0.0
        %5018 = vmatprep.subr.mxu0 0.0
        %5019 = vmatpush1.xpose.msra.mxu0 0.0
        %5020 = vmatprep.subr.mxu0 0.0
        %5021 = vmatpush1.xpose.msra.mxu0 0.0
        %5022 = vmatprep.subr.mxu0 0.0
        %5023 = vmatpush1.xpose.msra.mxu0 0.0
        %5024 = vmatprep.subr.mxu0 0.0
        %5025 = vmatpush1.xpose.msra.mxu0 0.0
        %5026 = vmatprep.subr.mxu0 0.0
        %5027 = vmatpush1.xpose.msra.mxu0 0.0
        %5028 = vmatprep.subr.mxu0 0.0
        %5029 = vmatpush1.xpose.msra.mxu0 0.0
        %5030 = vmatprep.subr.mxu0 0.0
        %5031 = vmatpush1.xpose.msra.mxu0 0.0
        %5032 = vmatprep.subr.mxu0 0.0
        %5033 = vmatpush1.xpose.msra.mxu0 0.0
        %5034 = vmatprep.subr.mxu0 0.0
        %5035 = vmatpush1.xpose.msra.mxu0 0.0
        %5036 = vmatprep.subr.mxu0 0.0
        %5037 = vmatpush1.xpose.msra.mxu0 0.0
        %5038 = vmatprep.mubr.f32.mxu0 0.0
        %5039 = vmatmul.mubr.f32.gmra.mrb[0].mxu0 %v4972
        %v5040 = vpop.f32.mrb[0].mxu0
        %v5041 = vadd.f32 0.0, %v5040
        %v5042 = vpop.f32.mrb[0].mxu0
        %5043 = vdwg.mxu0
        %5044 = vrot.lane.b32.xlu0 %v3831, 32
        %v5045 = vpop.permute.xlu0 %5044
        %v5046 = vsel %vm1004, %v5045, 0
        %5048 = vmatprep.subr.mxu0 0.0
        %5049 = vmatpush1.xpose.msra.mxu0 %v3097
        %5050 = vmatprep.subr.mxu0 0.0
        %5051 = vmatpush1.xpose.msra.mxu0 0.0
        %5052 = vmatprep.subr.mxu0 0.0
        %5053 = vmatpush1.xpose.msra.mxu0 0.0
        %5054 = vmatprep.subr.mxu0 0.0
        %5055 = vmatpush1.xpose.msra.mxu0 0.0
        %5056 = vmatprep.subr.mxu0 0.0
        %5057 = vmatpush1.xpose.msra.mxu0 0.0
        %5058 = vmatprep.subr.mxu0 0.0
        %5059 = vmatpush1.xpose.msra.mxu0 0.0
        %5060 = vmatprep.subr.mxu0 0.0
        %5061 = vmatpush1.xpose.msra.mxu0 0.0
        %5062 = vmatprep.subr.mxu0 0.0
        %5063 = vmatpush1.xpose.msra.mxu0 0.0
        %5064 = vmatprep.subr.mxu0 0.0
        %5065 = vmatpush1.xpose.msra.mxu0 0.0
        %5066 = vmatprep.subr.mxu0 0.0
        %5067 = vmatpush1.xpose.msra.mxu0 0.0
        %5068 = vmatprep.subr.mxu0 0.0
        %5069 = vmatpush1.xpose.msra.mxu0 0.0
        %5070 = vmatprep.subr.mxu0 0.0
        %5071 = vmatpush1.xpose.msra.mxu0 0.0
        %5072 = vmatprep.subr.mxu0 0.0
        %5073 = vmatpush1.xpose.msra.mxu0 0.0
        %5074 = vmatprep.subr.mxu0 0.0
        %5075 = vmatpush1.xpose.msra.mxu0 0.0
        %5076 = vmatprep.subr.mxu0 0.0
        %5077 = vmatpush1.xpose.msra.mxu0 0.0
        %5078 = vmatprep.subr.mxu0 0.0
        %5079 = vmatpush1.xpose.msra.mxu0 0.0
        %5080 = vmatprep.subr.mxu0 0.0
        %5081 = vmatpush1.xpose.msra.mxu0 0.0
        %5082 = vmatprep.subr.mxu0 0.0
        %5083 = vmatpush1.xpose.msra.mxu0 0.0
        %5084 = vmatprep.subr.mxu0 0.0
        %5085 = vmatpush1.xpose.msra.mxu0 0.0
        %5086 = vmatprep.subr.mxu0 0.0
        %5087 = vmatpush1.xpose.msra.mxu0 0.0
        %5088 = vmatprep.subr.mxu0 0.0
        %5089 = vmatpush1.xpose.msra.mxu0 0.0
        %5090 = vmatprep.subr.mxu0 0.0
        %5091 = vmatpush1.xpose.msra.mxu0 0.0
        %5092 = vmatprep.subr.mxu0 0.0
        %5093 = vmatpush1.xpose.msra.mxu0 0.0
        %5094 = vmatprep.subr.mxu0 0.0
        %5095 = vmatpush1.xpose.msra.mxu0 0.0
        %5096 = vmatprep.subr.mxu0 0.0
        %5097 = vmatpush1.xpose.msra.mxu0 0.0
        %5098 = vmatprep.subr.mxu0 0.0
        %5099 = vmatpush1.xpose.msra.mxu0 0.0
        %5100 = vmatprep.subr.mxu0 0.0
        %5101 = vmatpush1.xpose.msra.mxu0 0.0
        %5102 = vmatprep.subr.mxu0 0.0
        %5103 = vmatpush1.xpose.msra.mxu0 0.0
        %5104 = vmatprep.subr.mxu0 0.0
        %5105 = vmatpush1.xpose.msra.mxu0 0.0
        %5106 = vmatprep.subr.mxu0 0.0
        %5107 = vmatpush1.xpose.msra.mxu0 0.0
        %5108 = vmatprep.subr.mxu0 0.0
        %5109 = vmatpush1.xpose.msra.mxu0 0.0
        %5110 = vmatprep.subr.mxu0 0.0
        %5111 = vmatpush1.xpose.msra.mxu0 0.0
        %5112 = vmatprep.mubr.f32.mxu0 0.0
        %5113 = vmatmul.mubr.f32.gmra.mrb[0].mxu0 %v5046
        %v5114 = vpop.f32.mrb[0].mxu0
        %v5115 = vadd.f32 0.0, %v5114
        %v5116 = vpop.f32.mrb[0].mxu0
        %5117 = vdwg.mxu0
        %5118 = vrot.lane.b32.xlu0 %v3912, 32
        %v5119 = vpop.permute.xlu0 %5118
        %v5120 = vsel %vm1004, %v5119, 0
        %5122 = vmatprep.subr.mxu0 0.0
        %5123 = vmatpush1.xpose.msra.mxu0 %v3174
        %5124 = vmatprep.subr.mxu0 0.0
        %5125 = vmatpush1.xpose.msra.mxu0 0.0
        %5126 = vmatprep.subr.mxu0 0.0
        %5127 = vmatpush1.xpose.msra.mxu0 0.0
        %5128 = vmatprep.subr.mxu0 0.0
        %5129 = vmatpush1.xpose.msra.mxu0 0.0
        %5130 = vmatprep.subr.mxu0 0.0
        %5131 = vmatpush1.xpose.msra.mxu0 0.0
        %5132 = vmatprep.subr.mxu0 0.0
        %5133 = vmatpush1.xpose.msra.mxu0 0.0
        %5134 = vmatprep.subr.mxu0 0.0
        %5135 = vmatpush1.xpose.msra.mxu0 0.0
        %5136 = vmatprep.subr.mxu0 0.0
        %5137 = vmatpush1.xpose.msra.mxu0 0.0
        %5138 = vmatprep.subr.mxu0 0.0
        %5139 = vmatpush1.xpose.msra.mxu0 0.0
        %5140 = vmatprep.subr.mxu0 0.0
        %5141 = vmatpush1.xpose.msra.mxu0 0.0
        %5142 = vmatprep.subr.mxu0 0.0
        %5143 = vmatpush1.xpose.msra.mxu0 0.0
        %5144 = vmatprep.subr.mxu0 0.0
        %5145 = vmatpush1.xpose.msra.mxu0 0.0
        %5146 = vmatprep.subr.mxu0 0.0
        %5147 = vmatpush1.xpose.msra.mxu0 0.0
        %5148 = vmatprep.subr.mxu0 0.0
        %5149 = vmatpush1.xpose.msra.mxu0 0.0
        %5150 = vmatprep.subr.mxu0 0.0
        %5151 = vmatpush1.xpose.msra.mxu0 0.0
        %5152 = vmatprep.subr.mxu0 0.0
        %5153 = vmatpush1.xpose.msra.mxu0 0.0
        %5154 = vmatprep.subr.mxu0 0.0
        %5155 = vmatpush1.xpose.msra.mxu0 0.0
        %5156 = vmatprep.subr.mxu0 0.0
        %5157 = vmatpush1.xpose.msra.mxu0 0.0
        %5158 = vmatprep.subr.mxu0 0.0
        %5159 = vmatpush1.xpose.msra.mxu0 0.0
        %5160 = vmatprep.subr.mxu0 0.0
        %5161 = vmatpush1.xpose.msra.mxu0 0.0
        %5162 = vmatprep.subr.mxu0 0.0
        %5163 = vmatpush1.xpose.msra.mxu0 0.0
        %5164 = vmatprep.subr.mxu0 0.0
        %5165 = vmatpush1.xpose.msra.mxu0 0.0
        %5166 = vmatprep.subr.mxu0 0.0
        %5167 = vmatpush1.xpose.msra.mxu0 0.0
        %5168 = vmatprep.subr.mxu0 0.0
        %5169 = vmatpush1.xpose.msra.mxu0 0.0
        %5170 = vmatprep.subr.mxu0 0.0
        %5171 = vmatpush1.xpose.msra.mxu0 0.0
        %5172 = vmatprep.subr.mxu0 0.0
        %5173 = vmatpush1.xpose.msra.mxu0 0.0
        %5174 = vmatprep.subr.mxu0 0.0
        %5175 = vmatpush1.xpose.msra.mxu0 0.0
        %5176 = vmatprep.subr.mxu0 0.0
        %5177 = vmatpush1.xpose.msra.mxu0 0.0
        %5178 = vmatprep.subr.mxu0 0.0
        %5179 = vmatpush1.xpose.msra.mxu0 0.0
        %5180 = vmatprep.subr.mxu0 0.0
        %5181 = vmatpush1.xpose.msra.mxu0 0.0
        %5182 = vmatprep.subr.mxu0 0.0
        %5183 = vmatpush1.xpose.msra.mxu0 0.0
        %5184 = vmatprep.subr.mxu0 0.0
        %5185 = vmatpush1.xpose.msra.mxu0 0.0
        %5186 = vmatprep.mubr.f32.mxu0 0.0
        %5187 = vmatmul.mubr.f32.gmra.mrb[0].mxu0 %v5120
        %v5188 = vpop.f32.mrb[0].mxu0
        %v5189 = vadd.f32 0.0, %v5188
        %v5190 = vpop.f32.mrb[0].mxu0
        %5191 = vdwg.mxu0
        %5192 = vrot.lane.b32.xlu0 %v3993, 32
        %v5193 = vpop.permute.xlu0 %5192
        %v5194 = vsel %vm1004, %v5193, 0
        %5196 = vmatprep.subr.mxu0 0.0
        %5197 = vmatpush1.xpose.msra.mxu0 %v3251
        %5198 = vmatprep.subr.mxu0 0.0
        %5199 = vmatpush1.xpose.msra.mxu0 0.0
        %5200 = vmatprep.subr.mxu0 0.0
        %5201 = vmatpush1.xpose.msra.mxu0 0.0
        %5202 = vmatprep.subr.mxu0 0.0
        %5203 = vmatpush1.xpose.msra.mxu0 0.0
        %5204 = vmatprep.subr.mxu0 0.0
        %5205 = vmatpush1.xpose.msra.mxu0 0.0
        %5206 = vmatprep.subr.mxu0 0.0
        %5207 = vmatpush1.xpose.msra.mxu0 0.0
        %5208 = vmatprep.subr.mxu0 0.0
        %5209 = vmatpush1.xpose.msra.mxu0 0.0
        %5210 = vmatprep.subr.mxu0 0.0
        %5211 = vmatpush1.xpose.msra.mxu0 0.0
        %5212 = vmatprep.subr.mxu0 0.0
        %5213 = vmatpush1.xpose.msra.mxu0 0.0
        %5214 = vmatprep.subr.mxu0 0.0
        %5215 = vmatpush1.xpose.msra.mxu0 0.0
        %5216 = vmatprep.subr.mxu0 0.0
        %5217 = vmatpush1.xpose.msra.mxu0 0.0
        %5218 = vmatprep.subr.mxu0 0.0
        %5219 = vmatpush1.xpose.msra.mxu0 0.0
        %5220 = vmatprep.subr.mxu0 0.0
        %5221 = vmatpush1.xpose.msra.mxu0 0.0
        %5222 = vmatprep.subr.mxu0 0.0
        %5223 = vmatpush1.xpose.msra.mxu0 0.0
        %5224 = vmatprep.subr.mxu0 0.0
        %5225 = vmatpush1.xpose.msra.mxu0 0.0
        %5226 = vmatprep.subr.mxu0 0.0
        %5227 = vmatpush1.xpose.msra.mxu0 0.0
        %5228 = vmatprep.subr.mxu0 0.0
        %5229 = vmatpush1.xpose.msra.mxu0 0.0
        %5230 = vmatprep.subr.mxu0 0.0
        %5231 = vmatpush1.xpose.msra.mxu0 0.0
        %5232 = vmatprep.subr.mxu0 0.0
        %5233 = vmatpush1.xpose.msra.mxu0 0.0
        %5234 = vmatprep.subr.mxu0 0.0
        %5235 = vmatpush1.xpose.msra.mxu0 0.0
        %5236 = vmatprep.subr.mxu0 0.0
        %5237 = vmatpush1.xpose.msra.mxu0 0.0
        %5238 = vmatprep.subr.mxu0 0.0
        %5239 = vmatpush1.xpose.msra.mxu0 0.0
        %5240 = vmatprep.subr.mxu0 0.0
        %5241 = vmatpush1.xpose.msra.mxu0 0.0
        %5242 = vmatprep.subr.mxu0 0.0
        %5243 = vmatpush1.xpose.msra.mxu0 0.0
        %5244 = vmatprep.subr.mxu0 0.0
        %5245 = vmatpush1.xpose.msra.mxu0 0.0
        %5246 = vmatprep.subr.mxu0 0.0
        %5247 = vmatpush1.xpose.msra.mxu0 0.0
        %5248 = vmatprep.subr.mxu0 0.0
        %5249 = vmatpush1.xpose.msra.mxu0 0.0
        %5250 = vmatprep.subr.mxu0 0.0
        %5251 = vmatpush1.xpose.msra.mxu0 0.0
        %5252 = vmatprep.subr.mxu0 0.0
        %5253 = vmatpush1.xpose.msra.mxu0 0.0
        %5254 = vmatprep.subr.mxu0 0.0
        %5255 = vmatpush1.xpose.msra.mxu0 0.0
        %5256 = vmatprep.subr.mxu0 0.0
        %5257 = vmatpush1.xpose.msra.mxu0 0.0
        %5258 = vmatprep.subr.mxu0 0.0
        %5259 = vmatpush1.xpose.msra.mxu0 0.0
        %5260 = vmatprep.mubr.f32.mxu0 0.0
        %5261 = vmatmul.mubr.f32.gmra.mrb[0].mxu0 %v5194
        %v5262 = vpop.f32.mrb[0].mxu0
        %v5263 = vadd.f32 0.0, %v5262
        %v5264 = vpop.f32.mrb[0].mxu0
        %5265 = vdwg.mxu0
        %5266 = vrot.lane.b32.xlu0 %v4074, 32
        %v5267 = vpop.permute.xlu0 %5266
        %v5268 = vsel %vm1004, %v5267, 0
        %5270 = vmatprep.subr.mxu0 0.0
        %5271 = vmatpush1.xpose.msra.mxu0 %v3328
        %5272 = vmatprep.subr.mxu0 0.0
        %5273 = vmatpush1.xpose.msra.mxu0 0.0
        %5274 = vmatprep.subr.mxu0 0.0
        %5275 = vmatpush1.xpose.msra.mxu0 0.0
        %5276 = vmatprep.subr.mxu0 0.0
        %5277 = vmatpush1.xpose.msra.mxu0 0.0
        %5278 = vmatprep.subr.mxu0 0.0
        %5279 = vmatpush1.xpose.msra.mxu0 0.0
        %5280 = vmatprep.subr.mxu0 0.0
        %5281 = vmatpush1.xpose.msra.mxu0 0.0
        %5282 = vmatprep.subr.mxu0 0.0
        %5283 = vmatpush1.xpose.msra.mxu0 0.0
        %5284 = vmatprep.subr.mxu0 0.0
        %5285 = vmatpush1.xpose.msra.mxu0 0.0
        %5286 = vmatprep.subr.mxu0 0.0
        %5287 = vmatpush1.xpose.msra.mxu0 0.0
        %5288 = vmatprep.subr.mxu0 0.0
        %5289 = vmatpush1.xpose.msra.mxu0 0.0
        %5290 = vmatprep.subr.mxu0 0.0
        %5291 = vmatpush1.xpose.msra.mxu0 0.0
        %5292 = vmatprep.subr.mxu0 0.0
        %5293 = vmatpush1.xpose.msra.mxu0 0.0
        %5294 = vmatprep.subr.mxu0 0.0
        %5295 = vmatpush1.xpose.msra.mxu0 0.0
        %5296 = vmatprep.subr.mxu0 0.0
        %5297 = vmatpush1.xpose.msra.mxu0 0.0
        %5298 = vmatprep.subr.mxu0 0.0
        %5299 = vmatpush1.xpose.msra.mxu0 0.0
        %5300 = vmatprep.subr.mxu0 0.0
        %5301 = vmatpush1.xpose.msra.mxu0 0.0
        %5302 = vmatprep.subr.mxu0 0.0
        %5303 = vmatpush1.xpose.msra.mxu0 0.0
        %5304 = vmatprep.subr.mxu0 0.0
        %5305 = vmatpush1.xpose.msra.mxu0 0.0
        %5306 = vmatprep.subr.mxu0 0.0
        %5307 = vmatpush1.xpose.msra.mxu0 0.0
        %5308 = vmatprep.subr.mxu0 0.0
        %5309 = vmatpush1.xpose.msra.mxu0 0.0
        %5310 = vmatprep.subr.mxu0 0.0
        %5311 = vmatpush1.xpose.msra.mxu0 0.0
        %5312 = vmatprep.subr.mxu0 0.0
        %5313 = vmatpush1.xpose.msra.mxu0 0.0
        %5314 = vmatprep.subr.mxu0 0.0
        %5315 = vmatpush1.xpose.msra.mxu0 0.0
        %5316 = vmatprep.subr.mxu0 0.0
        %5317 = vmatpush1.xpose.msra.mxu0 0.0
        %5318 = vmatprep.subr.mxu0 0.0
        %5319 = vmatpush1.xpose.msra.mxu0 0.0
        %5320 = vmatprep.subr.mxu0 0.0
        %5321 = vmatpush1.xpose.msra.mxu0 0.0
        %5322 = vmatprep.subr.mxu0 0.0
        %5323 = vmatpush1.xpose.msra.mxu0 0.0
        %5324 = vmatprep.subr.mxu0 0.0
        %5325 = vmatpush1.xpose.msra.mxu0 0.0
        %5326 = vmatprep.subr.mxu0 0.0
        %5327 = vmatpush1.xpose.msra.mxu0 0.0
        %5328 = vmatprep.subr.mxu0 0.0
        %5329 = vmatpush1.xpose.msra.mxu0 0.0
        %5330 = vmatprep.subr.mxu0 0.0
        %5331 = vmatpush1.xpose.msra.mxu0 0.0
        %5332 = vmatprep.subr.mxu0 0.0
        %5333 = vmatpush1.xpose.msra.mxu0 0.0
        %5334 = vmatprep.mubr.f32.mxu0 0.0
        %5335 = vmatmul.mubr.f32.gmra.mrb[0].mxu0 %v5268
        %v5336 = vpop.f32.mrb[0].mxu0
        %v5337 = vadd.f32 0.0, %v5336
        %v5338 = vpop.f32.mrb[0].mxu0
        %5339 = vdwg.mxu0
        %5340 = vrot.lane.b32.xlu0 %v4155, 32
        %v5341 = vpop.permute.xlu0 %5340
        %v5342 = vsel %vm1004, %v5341, 0
        %5344 = vmatprep.subr.mxu0 0.0
        %5345 = vmatpush1.xpose.msra.mxu0 %v3405
        %5346 = vmatprep.subr.mxu0 0.0
        %5347 = vmatpush1.xpose.msra.mxu0 0.0
        %5348 = vmatprep.subr.mxu0 0.0
        %5349 = vmatpush1.xpose.msra.mxu0 0.0
        %5350 = vmatprep.subr.mxu0 0.0
        %5351 = vmatpush1.xpose.msra.mxu0 0.0
        %5352 = vmatprep.subr.mxu0 0.0
        %5353 = vmatpush1.xpose.msra.mxu0 0.0
        %5354 = vmatprep.subr.mxu0 0.0
        %5355 = vmatpush1.xpose.msra.mxu0 0.0
        %5356 = vmatprep.subr.mxu0 0.0
        %5357 = vmatpush1.xpose.msra.mxu0 0.0
        %5358 = vmatprep.subr.mxu0 0.0
        %5359 = vmatpush1.xpose.msra.mxu0 0.0
        %5360 = vmatprep.subr.mxu0 0.0
        %5361 = vmatpush1.xpose.msra.mxu0 0.0
        %5362 = vmatprep.subr.mxu0 0.0
        %5363 = vmatpush1.xpose.msra.mxu0 0.0
        %5364 = vmatprep.subr.mxu0 0.0
        %5365 = vmatpush1.xpose.msra.mxu0 0.0
        %5366 = vmatprep.subr.mxu0 0.0
        %5367 = vmatpush1.xpose.msra.mxu0 0.0
        %5368 = vmatprep.subr.mxu0 0.0
        %5369 = vmatpush1.xpose.msra.mxu0 0.0
        %5370 = vmatprep.subr.mxu0 0.0
        %5371 = vmatpush1.xpose.msra.mxu0 0.0
        %5372 = vmatprep.subr.mxu0 0.0
        %5373 = vmatpush1.xpose.msra.mxu0 0.0
        %5374 = vmatprep.subr.mxu0 0.0
        %5375 = vmatpush1.xpose.msra.mxu0 0.0
        %5376 = vmatprep.subr.mxu0 0.0
        %5377 = vmatpush1.xpose.msra.mxu0 0.0
        %5378 = vmatprep.subr.mxu0 0.0
        %5379 = vmatpush1.xpose.msra.mxu0 0.0
        %5380 = vmatprep.subr.mxu0 0.0
        %5381 = vmatpush1.xpose.msra.mxu0 0.0
        %5382 = vmatprep.subr.mxu0 0.0
        %5383 = vmatpush1.xpose.msra.mxu0 0.0
        %5384 = vmatprep.subr.mxu0 0.0
        %5385 = vmatpush1.xpose.msra.mxu0 0.0
        %5386 = vmatprep.subr.mxu0 0.0
        %5387 = vmatpush1.xpose.msra.mxu0 0.0
        %5388 = vmatprep.subr.mxu0 0.0
        %5389 = vmatpush1.xpose.msra.mxu0 0.0
        %5390 = vmatprep.subr.mxu0 0.0
        %5391 = vmatpush1.xpose.msra.mxu0 0.0
        %5392 = vmatprep.subr.mxu0 0.0
        %5393 = vmatpush1.xpose.msra.mxu0 0.0
        %5394 = vmatprep.subr.mxu0 0.0
        %5395 = vmatpush1.xpose.msra.mxu0 0.0
        %5396 = vmatprep.subr.mxu0 0.0
        %5397 = vmatpush1.xpose.msra.mxu0 0.0
        %5398 = vmatprep.subr.mxu0 0.0
        %5399 = vmatpush1.xpose.msra.mxu0 0.0
        %5400 = vmatprep.subr.mxu0 0.0
        %5401 = vmatpush1.xpose.msra.mxu0 0.0
        %5402 = vmatprep.subr.mxu0 0.0
        %5403 = vmatpush1.xpose.msra.mxu0 0.0
        %5404 = vmatprep.subr.mxu0 0.0
        %5405 = vmatpush1.xpose.msra.mxu0 0.0
        %5406 = vmatprep.subr.mxu0 0.0
        %5407 = vmatpush1.xpose.msra.mxu0 0.0
        %5408 = vmatprep.mubr.f32.mxu0 0.0
        %5409 = vmatmul.mubr.f32.gmra.mrb[0].mxu0 %v5342
        %v5410 = vpop.f32.mrb[0].mxu0
        %v5411 = vadd.f32 0.0, %v5410
        %v5412 = vpop.f32.mrb[0].mxu0
        %5413 = vdwg.mxu0
        %v5414 = vmul.f32 %v982, %v637
        %v5415 = vmul.f32 %v983, %v642
        %v5416 = vmul.f32 %v987, %v909
        %v5417 = vmul.f32 %v989, %v911
        %v5418 = vmul.f32 %v993, %v915
        %v5419 = vmul.f32 %v995, %v917
        %v5420 = vmul.f32 %v999, %v921
        %v5421 = vmul.f32 %v1001, %v923
        %v5422 = vsel %vm3557, %v5414, 0.0
        %5423 = vadd.xlane.f32.xlu0 %v5422
        %v5424 = vpop.xlane.xlu0 %5423
        %v5425 = vsel %vm3557, %v5415, 0.0
        %5426 = vadd.xlane.f32.xlu0 %v5425
        %v5427 = vpop.xlane.xlu0 %5426
        %v5428 = vsel %vm3557, %v5416, 0.0
        %5429 = vadd.xlane.f32.xlu0 %v5428
        %v5430 = vpop.xlane.xlu0 %5429
        %v5431 = vsel %vm3557, %v5417, 0.0
        %5432 = vadd.xlane.f32.xlu0 %v5431
        %v5433 = vpop.xlane.xlu0 %5432
        %v5434 = vsel %vm3557, %v5418, 0.0
        %5435 = vadd.xlane.f32.xlu0 %v5434
        %v5436 = vpop.xlane.xlu0 %5435
        %v5437 = vsel %vm3557, %v5419, 0.0
        %5438 = vadd.xlane.f32.xlu0 %v5437
        %v5439 = vpop.xlane.xlu0 %5438
        %v5440 = vsel %vm3557, %v5420, 0.0
        %5441 = vadd.xlane.f32.xlu0 %v5440
        %v5442 = vpop.xlane.xlu0 %5441
        %v5443 = vsel %vm3557, %v5421, 0.0
        %5444 = vadd.xlane.f32.xlu0 %v5443
        %v5445 = vpop.xlane.xlu0 %5444
        %5454 = vrot.lane.b32.xlu0 %v2319, 2
        %v5455 = vpop.permute.xlu0 %5454
        %5456 = vrot.lane.b32.xlu0 %v2396, 2
        %v5457 = vpop.permute.xlu0 %5456
        %5458 = vrot.lane.b32.xlu0 %v2473, 2
        %v5459 = vpop.permute.xlu0 %5458
        %5460 = vrot.lane.b32.xlu0 %v2550, 2
        %v5461 = vpop.permute.xlu0 %5460
        %5462 = vrot.lane.b32.xlu0 %v2627, 2
        %v5463 = vpop.permute.xlu0 %5462
        %5464 = vrot.lane.b32.xlu0 %v2704, 2
        %v5465 = vpop.permute.xlu0 %5464
        %5466 = vrot.lane.b32.xlu0 %v2781, 2
        %v5467 = vpop.permute.xlu0 %5466
        %5468 = vrot.lane.b32.xlu0 %v2858, 2
        %v5469 = vpop.permute.xlu0 %5468
        %5486 = vrot.lane.b32.xlu0 %v2935, 4
        %v5487 = vpop.permute.xlu0 %5486
        %5488 = vrot.lane.b32.xlu0 %v3012, 4
        %v5489 = vpop.permute.xlu0 %5488
        %5490 = vrot.lane.b32.xlu0 %v3089, 4
        %v5491 = vpop.permute.xlu0 %5490
        %5492 = vrot.lane.b32.xlu0 %v3166, 4
        %v5493 = vpop.permute.xlu0 %5492
        %5494 = vrot.lane.b32.xlu0 %v3243, 4
        %v5495 = vpop.permute.xlu0 %5494
        %5496 = vrot.lane.b32.xlu0 %v3320, 4
        %v5497 = vpop.permute.xlu0 %5496
        %5498 = vrot.lane.b32.xlu0 %v3397, 4
        %v5499 = vpop.permute.xlu0 %5498
        %5500 = vrot.lane.b32.xlu0 %v3474, 4
        %v5501 = vpop.permute.xlu0 %5500
        %vm5510 = vcmask 15360
        %v5511 = vsel %vm5510, %v1675, %v5455
        %v5512 = vsel %vm5510, %v1756, %v5457
        %v5513 = vsel %vm5510, %v1837, %v5459
        %v5514 = vsel %vm5510, %v1918, %v5461
        %v5515 = vsel %vm5510, %v1999, %v5463
        %v5516 = vsel %vm5510, %v2080, %v5465
        %v5517 = vsel %vm5510, %v2161, %v5467
        %v5518 = vsel %vm5510, %v2242, %v5469
        %vm5519 = vcmask 31744
        %v5520 = vsel %vm5519, %v5511, %v5487
        %v5521 = vsel %vm5519, %v5512, %v5489
        %v5522 = vsel %vm5519, %v5513, %v5491
        %v5523 = vsel %vm5519, %v5514, %v5493
        %v5524 = vsel %vm5519, %v5515, %v5495
        %v5525 = vsel %vm5519, %v5516, %v5497
        %v5526 = vsel %vm5519, %v5517, %v5499
        %v5527 = vsel %vm5519, %v5518, %v5501
        %vm5528 = vcmask 56320
        %v5529 = vsel %vm5528, %v5520, %v3560
        %v5530 = vsel %vm5528, %v5521, %v3563
        %v5531 = vsel %vm5528, %v5522, %v3566
        %v5532 = vsel %vm5528, %v5523, %v3569
        %v5533 = vsel %vm5528, %v5524, %v3572
        %v5534 = vsel %vm5528, %v5525, %v3575
        %v5535 = vsel %vm5528, %v5526, %v3578
        %v5536 = vsel %vm5528, %v5527, %v3581
        %5545 = vrot.lane.b32.xlu0 %v4301, 2
        %v5546 = vpop.permute.xlu0 %5545
        %5547 = vrot.lane.b32.xlu0 %v4375, 2
        %v5548 = vpop.permute.xlu0 %5547
        %5549 = vrot.lane.b32.xlu0 %v4449, 2
        %v5550 = vpop.permute.xlu0 %5549
        %5551 = vrot.lane.b32.xlu0 %v4523, 2
        %v5552 = vpop.permute.xlu0 %5551
        %5553 = vrot.lane.b32.xlu0 %v4597, 2
        %v5554 = vpop.permute.xlu0 %5553
        %5555 = vrot.lane.b32.xlu0 %v4671, 2
        %v5556 = vpop.permute.xlu0 %5555
        %5557 = vrot.lane.b32.xlu0 %v4745, 2
        %v5558 = vpop.permute.xlu0 %5557
        %5559 = vrot.lane.b32.xlu0 %v4819, 2
        %v5560 = vpop.permute.xlu0 %5559
        %5577 = vrot.lane.b32.xlu0 %v4893, 4
        %v5578 = vpop.permute.xlu0 %5577
        %5579 = vrot.lane.b32.xlu0 %v4967, 4
        %v5580 = vpop.permute.xlu0 %5579
        %5581 = vrot.lane.b32.xlu0 %v5041, 4
        %v5582 = vpop.permute.xlu0 %5581
        %5583 = vrot.lane.b32.xlu0 %v5115, 4
        %v5584 = vpop.permute.xlu0 %5583
        %5585 = vrot.lane.b32.xlu0 %v5189, 4
        %v5586 = vpop.permute.xlu0 %5585
        %5587 = vrot.lane.b32.xlu0 %v5263, 4
        %v5588 = vpop.permute.xlu0 %5587
        %5589 = vrot.lane.b32.xlu0 %v5337, 4
        %v5590 = vpop.permute.xlu0 %5589
        %5591 = vrot.lane.b32.xlu0 %v5411, 4
        %v5592 = vpop.permute.xlu0 %5591
        %v5601 = vsel %vm5510, %v3660, %v5546
        %v5602 = vsel %vm5510, %v3741, %v5548
        %v5603 = vsel %vm5510, %v3822, %v5550
        %v5604 = vsel %vm5510, %v3903, %v5552
        %v5605 = vsel %vm5510, %v3984, %v5554
        %v5606 = vsel %vm5510, %v4065, %v5556
        %v5607 = vsel %vm5510, %v4146, %v5558
        %v5608 = vsel %vm5510, %v4227, %v5560
        %v5609 = vsel %vm5519, %v5601, %v5578
        %v5610 = vsel %vm5519, %v5602, %v5580
        %v5611 = vsel %vm5519, %v5603, %v5582
        %v5612 = vsel %vm5519, %v5604, %v5584
        %v5613 = vsel %vm5519, %v5605, %v5586
        %v5614 = vsel %vm5519, %v5606, %v5588
        %v5615 = vsel %vm5519, %v5607, %v5590
        %v5616 = vsel %vm5519, %v5608, %v5592
        %v5617 = vsel %vm5528, %v5609, %v5424
        %v5618 = vsel %vm5528, %v5610, %v5427
        %v5619 = vsel %vm5528, %v5611, %v5430
        %v5620 = vsel %vm5528, %v5612, %v5433
        %v5621 = vsel %vm5528, %v5613, %v5436
        %v5622 = vsel %vm5528, %v5614, %v5439
        %v5623 = vsel %vm5528, %v5615, %v5442
        %v5624 = vsel %vm5528, %v5616, %v5445
        %v5633 = vrot.slane %v5617, 6
        %v5634 = vrot.slane %v5618, 6
        %v5635 = vrot.slane %v5619, 6
        %v5636 = vrot.slane %v5620, 6
        %v5637 = vrot.slane %v5621, 6
        %v5638 = vrot.slane %v5622, 6
        %v5639 = vrot.slane %v5623, 6
        %v5640 = vrot.slane %v5624, 6
        %vm5649 = vcmask 1041408
        %v5650 = vsel %vm5649, %v5529, %v5633
        %v5651 = vsel %vm5649, %v5530, %v5634
        %v5652 = vsel %vm5649, %v5531, %v5635
        %v5653 = vsel %vm5649, %v5532, %v5636
        %v5654 = vsel %vm5649, %v5533, %v5637
        %v5655 = vsel %vm5649, %v5534, %v5638
        %v5656 = vsel %vm5649, %v5535, %v5639
        %v5657 = vsel %vm5649, %v5536, %v5640
        %v5658 = vsel %vm1004, %v1076, -inf
        %5659 = vmax.xlane.f32.xlu0 %v5658
        %v5660 = vpop.xlane.xlu0 %5659
        %v5661 = vsel %vm1004, %v1150, -inf
        %5662 = vmax.xlane.f32.xlu0 %v5661
        %v5663 = vpop.xlane.xlu0 %5662
        %v5664 = vsel %vm1004, %v1224, -inf
        %5665 = vmax.xlane.f32.xlu0 %v5664
        %v5666 = vpop.xlane.xlu0 %5665
        %v5667 = vsel %vm1004, %v1298, -inf
        %5668 = vmax.xlane.f32.xlu0 %v5667
        %v5669 = vpop.xlane.xlu0 %5668
        %v5670 = vsel %vm1004, %v1372, -inf
        %5671 = vmax.xlane.f32.xlu0 %v5670
        %v5672 = vpop.xlane.xlu0 %5671
        %v5673 = vsel %vm1004, %v1446, -inf
        %5674 = vmax.xlane.f32.xlu0 %v5673
        %v5675 = vpop.xlane.xlu0 %5674
        %v5676 = vsel %vm1004, %v1520, -inf
        %5677 = vmax.xlane.f32.xlu0 %v5676
        %v5678 = vpop.xlane.xlu0 %5677
        %v5679 = vsel %vm1004, %v1594, -inf
        %5680 = vmax.xlane.f32.xlu0 %v5679
        %v5681 = vpop.xlane.xlu0 %5680
        %vm5682 = vcmask 60416
        %v5683 = vsel %vm5682, %v5650, -inf
        %5684 = vmax.xlane.f32.xlu0 %v5683
        %v5685 = vpop.xlane.xlu0 %5684
        %v5686 = vsel %vm5682, %v5651, -inf
        %5687 = vmax.xlane.f32.xlu0 %v5686
        %v5688 = vpop.xlane.xlu0 %5687
        %v5689 = vsel %vm5682, %v5652, -inf
        %5690 = vmax.xlane.f32.xlu0 %v5689
        %v5691 = vpop.xlane.xlu0 %5690
        %v5692 = vsel %vm5682, %v5653, -inf
        %5693 = vmax.xlane.f32.xlu0 %v5692
        %v5694 = vpop.xlane.xlu0 %5693
        %v5695 = vsel %vm5682, %v5654, -inf
        %5696 = vmax.xlane.f32.xlu0 %v5695
        %v5697 = vpop.xlane.xlu0 %5696
        %v5698 = vsel %vm5682, %v5655, -inf
        %5699 = vmax.xlane.f32.xlu0 %v5698
        %v5700 = vpop.xlane.xlu0 %5699
        %v5701 = vsel %vm5682, %v5656, -inf
        %5702 = vmax.xlane.f32.xlu0 %v5701
        %v5703 = vpop.xlane.xlu0 %5702
        %v5704 = vsel %vm5682, %v5657, -inf
        %5705 = vmax.xlane.f32.xlu0 %v5704
        %v5706 = vpop.xlane.xlu0 %5705
        %v5707 = vmax.f32 %v5660, %v5685
        %v5708 = vmax.f32 %v5663, %v5688
        %v5709 = vmax.f32 %v5666, %v5691
        %v5710 = vmax.f32 %v5669, %v5694
        %v5711 = vmax.f32 %v5672, %v5697
        %v5712 = vmax.f32 %v5675, %v5700
        %v5713 = vmax.f32 %v5678, %v5703
        %v5714 = vmax.f32 %v5681, %v5706
        %vm5715 = vcmask 1043456
        %v5716 = vsel %vm5715, %v5707, %v5660
        %v5717 = vsel %vm5715, %v5708, %v5663
        %v5718 = vsel %vm5715, %v5709, %v5666
        %v5719 = vsel %vm5715, %v5710, %v5669
        %v5720 = vsel %vm5715, %v5711, %v5672
        %v5721 = vsel %vm5715, %v5712, %v5675
        %v5722 = vsel %vm5715, %v5713, %v5678
        %v5723 = vsel %vm5715, %v5714, %v5681
        %5725 = vset.pattern.permute.xlu0 0
        %5726 = vperm.xlu0 %5725, %v5716
        %v5727 = vpop.permute.xlu0 %5726
        %5730 = vset.pattern.permute.xlu0 0
        %5731 = vperm.xlu0 %5730, %v5717
        %v5732 = vpop.permute.xlu0 %5731
        %5735 = vset.pattern.permute.xlu0 0
        %5736 = vperm.xlu0 %5735, %v5718
        %v5737 = vpop.permute.xlu0 %5736
        %5740 = vset.pattern.permute.xlu0 0
        %5741 = vperm.xlu0 %5740, %v5719
        %v5742 = vpop.permute.xlu0 %5741
        %5745 = vset.pattern.permute.xlu0 0
        %5746 = vperm.xlu0 %5745, %v5720
        %v5747 = vpop.permute.xlu0 %5746
        %5750 = vset.pattern.permute.xlu0 0
        %5751 = vperm.xlu0 %5750, %v5721
        %v5752 = vpop.permute.xlu0 %5751
        %5755 = vset.pattern.permute.xlu0 0
        %5756 = vperm.xlu0 %5755, %v5722
        %v5757 = vpop.permute.xlu0 %5756
        %5760 = vset.pattern.permute.xlu0 0
        %5761 = vperm.xlu0 %5760, %v5723
        %v5762 = vpop.permute.xlu0 %5761
        %v5764 = vsub.f32 %v1076, %v5727
        %v5765 = vsub.f32 %v1150, %v5732
        %v5766 = vsub.f32 %v1224, %v5737
        %v5767 = vsub.f32 %v1298, %v5742
        %v5768 = vsub.f32 %v1372, %v5747
        %v5769 = vsub.f32 %v1446, %v5752
        %v5770 = vsub.f32 %v1520, %v5757
        %v5771 = vsub.f32 %v1594, %v5762
        %v5772 = vmul.f32 %v5764, 1.442695
        %v5773 = vpow.pop %v5772
        %v5774 = vmul.f32 %v5765, 1.442695
        %v5775 = vpow.pop %v5774
        %v5776 = vmul.f32 %v5766, 1.442695
        %v5777 = vpow.pop %v5776
        %v5778 = vmul.f32 %v5767, 1.442695
        %v5779 = vpow.pop %v5778
        %v5780 = vmul.f32 %v5768, 1.442695
        %v5781 = vpow.pop %v5780
        %v5782 = vmul.f32 %v5769, 1.442695
        %v5783 = vpow.pop %v5782
        %v5784 = vmul.f32 %v5770, 1.442695
        %v5785 = vpow.pop %v5784
        %v5786 = vmul.f32 %v5771, 1.442695
        %v5787 = vpow.pop %v5786
        %v5788 = vsub.f32 %v5650, %v5707
        %v5789 = vsub.f32 %v5651, %v5708
        %v5790 = vsub.f32 %v5652, %v5709
        %v5791 = vsub.f32 %v5653, %v5710
        %v5792 = vsub.f32 %v5654, %v5711
        %v5793 = vsub.f32 %v5655, %v5712
        %v5794 = vsub.f32 %v5656, %v5713
        %v5795 = vsub.f32 %v5657, %v5714
        %v5796 = vmul.f32 %v5788, 1.442695
        %v5797 = vpow.pop %v5796
        %v5798 = vmul.f32 %v5789, 1.442695
        %v5799 = vpow.pop %v5798
        %v5800 = vmul.f32 %v5790, 1.442695
        %v5801 = vpow.pop %v5800
        %v5802 = vmul.f32 %v5791, 1.442695
        %v5803 = vpow.pop %v5802
        %v5804 = vmul.f32 %v5792, 1.442695
        %v5805 = vpow.pop %v5804
        %v5806 = vmul.f32 %v5793, 1.442695
        %v5807 = vpow.pop %v5806
        %v5808 = vmul.f32 %v5794, 1.442695
        %v5809 = vpow.pop %v5808
        %v5810 = vmul.f32 %v5795, 1.442695
        %v5811 = vpow.pop %v5810
        %v5812 = vsel %vm1004, %v5773, 0.0
        %5813 = vadd.xlane.f32.xlu0 %v5812
        %v5814 = vpop.xlane.xlu0 %5813
        %v5815 = vsel %vm1004, %v5775, 0.0
        %5816 = vadd.xlane.f32.xlu0 %v5815
        %v5817 = vpop.xlane.xlu0 %5816
        %v5818 = vsel %vm1004, %v5777, 0.0
        %5819 = vadd.xlane.f32.xlu0 %v5818
        %v5820 = vpop.xlane.xlu0 %5819
        %v5821 = vsel %vm1004, %v5779, 0.0
        %5822 = vadd.xlane.f32.xlu0 %v5821
        %v5823 = vpop.xlane.xlu0 %5822
        %v5824 = vsel %vm1004, %v5781, 0.0
        %5825 = vadd.xlane.f32.xlu0 %v5824
        %v5826 = vpop.xlane.xlu0 %5825
        %v5827 = vsel %vm1004, %v5783, 0.0
        %5828 = vadd.xlane.f32.xlu0 %v5827
        %v5829 = vpop.xlane.xlu0 %5828
        %v5830 = vsel %vm1004, %v5785, 0.0
        %5831 = vadd.xlane.f32.xlu0 %v5830
        %v5832 = vpop.xlane.xlu0 %5831
        %v5833 = vsel %vm1004, %v5787, 0.0
        %5834 = vadd.xlane.f32.xlu0 %v5833
        %v5835 = vpop.xlane.xlu0 %5834
        %v5836 = vsel %vm5682, %v5797, 0.0
        %5837 = vadd.xlane.f32.xlu0 %v5836
        %v5838 = vpop.xlane.xlu0 %5837
        %v5839 = vsel %vm5682, %v5799, 0.0
        %5840 = vadd.xlane.f32.xlu0 %v5839
        %v5841 = vpop.xlane.xlu0 %5840
        %v5842 = vsel %vm5682, %v5801, 0.0
        %5843 = vadd.xlane.f32.xlu0 %v5842
        %v5844 = vpop.xlane.xlu0 %5843
        %v5845 = vsel %vm5682, %v5803, 0.0
        %5846 = vadd.xlane.f32.xlu0 %v5845
        %v5847 = vpop.xlane.xlu0 %5846
        %v5848 = vsel %vm5682, %v5805, 0.0
        %5849 = vadd.xlane.f32.xlu0 %v5848
        %v5850 = vpop.xlane.xlu0 %5849
        %v5851 = vsel %vm5682, %v5807, 0.0
        %5852 = vadd.xlane.f32.xlu0 %v5851
        %v5853 = vpop.xlane.xlu0 %5852
        %v5854 = vsel %vm5682, %v5809, 0.0
        %5855 = vadd.xlane.f32.xlu0 %v5854
        %v5856 = vpop.xlane.xlu0 %5855
        %v5857 = vsel %vm5682, %v5811, 0.0
        %5858 = vadd.xlane.f32.xlu0 %v5857
        %v5859 = vpop.xlane.xlu0 %5858
        %v5860 = vadd.f32 %v5814, %v5838
        %v5861 = vadd.f32 %v5817, %v5841
        %v5862 = vadd.f32 %v5820, %v5844
        %v5863 = vadd.f32 %v5823, %v5847
        %v5864 = vadd.f32 %v5826, %v5850
        %v5865 = vadd.f32 %v5829, %v5853
        %v5866 = vadd.f32 %v5832, %v5856
        %v5867 = vadd.f32 %v5835, %v5859
        %v5868 = vsel %vm5715, %v5860, %v5814
        %v5869 = vsel %vm5715, %v5861, %v5817
        %v5870 = vsel %vm5715, %v5862, %v5820
        %v5871 = vsel %vm5715, %v5863, %v5823
        %v5872 = vsel %vm5715, %v5864, %v5826
        %v5873 = vsel %vm5715, %v5865, %v5829
        %v5874 = vsel %vm5715, %v5866, %v5832
        %v5875 = vsel %vm5715, %v5867, %v5835
        %v5876 = vrcp.pop %v5868
        %v5877 = vrcp.pop %v5869
        %v5878 = vrcp.pop %v5870
        %v5879 = vrcp.pop %v5871
        %v5880 = vrcp.pop %v5872
        %v5881 = vrcp.pop %v5873
        %v5882 = vrcp.pop %v5874
        %v5883 = vrcp.pop %v5875
        %5885 = vset.pattern.permute.xlu0 0
        %5886 = vperm.xlu0 %5885, %v5876
        %v5887 = vpop.permute.xlu0 %5886
        %5890 = vset.pattern.permute.xlu0 0
        %5891 = vperm.xlu0 %5890, %v5877
        %v5892 = vpop.permute.xlu0 %5891
        %5895 = vset.pattern.permute.xlu0 0
        %5896 = vperm.xlu0 %5895, %v5878
        %v5897 = vpop.permute.xlu0 %5896
        %5900 = vset.pattern.permute.xlu0 0
        %5901 = vperm.xlu0 %5900, %v5879
        %v5902 = vpop.permute.xlu0 %5901
        %5905 = vset.pattern.permute.xlu0 0
        %5906 = vperm.xlu0 %5905, %v5880
        %v5907 = vpop.permute.xlu0 %5906
        %5910 = vset.pattern.permute.xlu0 0
        %5911 = vperm.xlu0 %5910, %v5881
        %v5912 = vpop.permute.xlu0 %5911
        %5915 = vset.pattern.permute.xlu0 0
        %5916 = vperm.xlu0 %5915, %v5882
        %v5917 = vpop.permute.xlu0 %5916
        %5920 = vset.pattern.permute.xlu0 0
        %5921 = vperm.xlu0 %5920, %v5883
        %v5922 = vpop.permute.xlu0 %5921
        %v5924 = vmul.f32 %v5773, %v5887
        %v5925 = vmul.f32 %v5775, %v5892
        %v5926 = vmul.f32 %v5777, %v5897
        %v5927 = vmul.f32 %v5779, %v5902
        %v5928 = vmul.f32 %v5781, %v5907
        %v5929 = vmul.f32 %v5783, %v5912
        %v5930 = vmul.f32 %v5785, %v5917
        %v5931 = vmul.f32 %v5787, %v5922
        %v5932 = vmul.f32 %v5797, %v5887
        %v5933 = vmul.f32 %v5799, %v5892
        %v5934 = vmul.f32 %v5801, %v5897
        %v5935 = vmul.f32 %v5803, %v5902
        %v5936 = vmul.f32 %v5805, %v5907
        %v5937 = vmul.f32 %v5807, %v5912
        %v5938 = vmul.f32 %v5809, %v5917
        %v5939 = vmul.f32 %v5811, %v5922
        %v5940 = vlaneseq
        %v5941 = vshrl.u32 %v5940, 7
        %vm5942 = vcmp.lt.s32.totalorder %v5941, 7
        %v5943 = vsel %vm5942, 1, 0
        %v5944 = vcvt.s32.f32 %v5943
        %v5945 = vmul.f32 %v716, %v5944
        %v5946 = vmul.f32 %v721, %v5944
        %v5947 = vmul.f32 %v929, %v5944
        %v5948 = vmul.f32 %v931, %v5944
        %v5949 = vmul.f32 %v935, %v5944
        %v5950 = vmul.f32 %v937, %v5944
        %v5951 = vmul.f32 %v941, %v5944
        %v5952 = vmul.f32 %v943, %v5944
        %v5953 = vrot.slane %v716, 2
        %v5954 = vrot.slane %v721, 2
        %v5955 = vrot.slane %v929, 2
        %v5956 = vrot.slane %v931, 2
        %v5957 = vrot.slane %v935, 2
        %v5958 = vrot.slane %v937, 2
        %v5959 = vrot.slane %v941, 2
        %v5960 = vrot.slane %v943, 2
        %v5969 = vrot.slane %v716, 6
        %v5970 = vrot.slane %v721, 6
        %v5971 = vrot.slane %v929, 6
        %v5972 = vrot.slane %v931, 6
        %v5973 = vrot.slane %v935, 6
        %v5974 = vrot.slane %v937, 6
        %v5975 = vrot.slane %v941, 6
        %v5976 = vrot.slane %v943, 6
        %v5985 = vsel %vm5649, %v5953, %v5969
        %v5986 = vsel %vm5649, %v5954, %v5970
        %v5987 = vsel %vm5649, %v5955, %v5971
        %v5988 = vsel %vm5649, %v5956, %v5972
        %v5989 = vsel %vm5649, %v5957, %v5973
        %v5990 = vsel %vm5649, %v5958, %v5974
        %v5991 = vsel %vm5649, %v5959, %v5975
        %v5992 = vsel %vm5649, %v5960, %v5976
        %5994 = vset.pattern.permute.xlu0 7
        %5995 = vperm.xlu0 %5994, %v5932
        %v5996 = vpop.permute.xlu0 %5995
        %5999 = vset.pattern.permute.xlu0 7
        %6000 = vperm.xlu0 %5999, %v5933
        %v6001 = vpop.permute.xlu0 %6000
        %6004 = vset.pattern.permute.xlu0 7
        %6005 = vperm.xlu0 %6004, %v5934
        %v6006 = vpop.permute.xlu0 %6005
        %6009 = vset.pattern.permute.xlu0 7
        %6010 = vperm.xlu0 %6009, %v5935
        %v6011 = vpop.permute.xlu0 %6010
        %6014 = vset.pattern.permute.xlu0 7
        %6015 = vperm.xlu0 %6014, %v5936
        %v6016 = vpop.permute.xlu0 %6015
        %6019 = vset.pattern.permute.xlu0 7
        %6020 = vperm.xlu0 %6019, %v5937
        %v6021 = vpop.permute.xlu0 %6020
        %6024 = vset.pattern.permute.xlu0 7
        %6025 = vperm.xlu0 %6024, %v5938
        %v6026 = vpop.permute.xlu0 %6025
        %6029 = vset.pattern.permute.xlu0 7
        %6030 = vperm.xlu0 %6029, %v5939
        %v6031 = vpop.permute.xlu0 %6030
        %v6033 = vmul.f32 %v5996, %v5985
        %v6034 = vmul.f32 %v6001, %v5986
        %v6035 = vmul.f32 %v6006, %v5987
        %v6036 = vmul.f32 %v6011, %v5988
        %v6037 = vmul.f32 %v6016, %v5989
        %v6038 = vmul.f32 %v6021, %v5990
        %v6039 = vmul.f32 %v6026, %v5991
        %v6040 = vmul.f32 %v6031, %v5992
        %v6041 = vsel %vm1004, %v5932, 0
        %6043 = vmatprep.subr.mxu0 0.0
        %6044 = vmatpush1.msra.mxu0 %v5945
        %6045 = vmatprep.subr.mxu0 0.0
        %6046 = vmatpush1.msra.mxu0 0.0
        %6047 = vmatprep.subr.mxu0 0.0
        %6048 = vmatpush1.msra.mxu0 0.0
        %6049 = vmatprep.subr.mxu0 0.0
        %6050 = vmatpush1.msra.mxu0 0.0
        %6051 = vmatprep.subr.mxu0 0.0
        %6052 = vmatpush1.msra.mxu0 0.0
        %6053 = vmatprep.subr.mxu0 0.0
        %6054 = vmatpush1.msra.mxu0 0.0
        %6055 = vmatprep.subr.mxu0 0.0
        %6056 = vmatpush1.msra.mxu0 0.0
        %6057 = vmatprep.subr.mxu0 0.0
        %6058 = vmatpush1.msra.mxu0 0.0
        %6059 = vmatprep.subr.mxu0 0.0
        %6060 = vmatpush1.msra.mxu0 0.0
        %6061 = vmatprep.subr.mxu0 0.0
        %6062 = vmatpush1.msra.mxu0 0.0
        %6063 = vmatprep.subr.mxu0 0.0
        %6064 = vmatpush1.msra.mxu0 0.0
        %6065 = vmatprep.subr.mxu0 0.0
        %6066 = vmatpush1.msra.mxu0 0.0
        %6067 = vmatprep.subr.mxu0 0.0
        %6068 = vmatpush1.msra.mxu0 0.0
        %6069 = vmatprep.subr.mxu0 0.0
        %6070 = vmatpush1.msra.mxu0 0.0
        %6071 = vmatprep.subr.mxu0 0.0
        %6072 = vmatpush1.msra.mxu0 0.0
        %6073 = vmatprep.subr.mxu0 0.0
        %6074 = vmatpush1.msra.mxu0 0.0
        %6075 = vmatprep.subr.mxu0 0.0
        %6076 = vmatpush1.msra.mxu0 0.0
        %6077 = vmatprep.subr.mxu0 0.0
        %6078 = vmatpush1.msra.mxu0 0.0
        %6079 = vmatprep.subr.mxu0 0.0
        %6080 = vmatpush1.msra.mxu0 0.0
        %6081 = vmatprep.subr.mxu0 0.0
        %6082 = vmatpush1.msra.mxu0 0.0
        %6083 = vmatprep.subr.mxu0 0.0
        %6084 = vmatpush1.msra.mxu0 0.0
        %6085 = vmatprep.subr.mxu0 0.0
        %6086 = vmatpush1.msra.mxu0 0.0
        %6087 = vmatprep.subr.mxu0 0.0
        %6088 = vmatpush1.msra.mxu0 0.0
        %6089 = vmatprep.subr.mxu0 0.0
        %6090 = vmatpush1.msra.mxu0 0.0
        %6091 = vmatprep.subr.mxu0 0.0
        %6092 = vmatpush1.msra.mxu0 0.0
        %6093 = vmatprep.subr.mxu0 0.0
        %6094 = vmatpush1.msra.mxu0 0.0
        %6095 = vmatprep.subr.mxu0 0.0
        %6096 = vmatpush1.msra.mxu0 0.0
        %6097 = vmatprep.subr.mxu0 0.0
        %6098 = vmatpush1.msra.mxu0 0.0
        %6099 = vmatprep.subr.mxu0 0.0
        %6100 = vmatpush1.msra.mxu0 0.0
        %6101 = vmatprep.subr.mxu0 0.0
        %6102 = vmatpush1.msra.mxu0 0.0
        %6103 = vmatprep.subr.mxu0 0.0
        %6104 = vmatpush1.msra.mxu0 0.0
        %6105 = vmatprep.subr.mxu0 0.0
        %6106 = vmatpush1.msra.mxu0 0.0
        %6107 = vmatprep.mubr.f32.mxu0 0.0
        %6108 = vmatmul.mubr.f32.gmra.mrb[0].mxu0 %v6041
        %v6109 = vpop.f32.mrb[0].mxu0
        %v6110 = vadd.f32 %v6033, %v6109
        %v6111 = vpop.f32.mrb[0].mxu0
        %6112 = vdwg.mxu0
        %v6113 = vsel %vm1004, %v5933, 0
        %6115 = vmatprep.subr.mxu0 0.0
        %6116 = vmatpush1.msra.mxu0 %v5946
        %6117 = vmatprep.subr.mxu0 0.0
        %6118 = vmatpush1.msra.mxu0 0.0
        %6119 = vmatprep.subr.mxu0 0.0
        %6120 = vmatpush1.msra.mxu0 0.0
        %6121 = vmatprep.subr.mxu0 0.0
        %6122 = vmatpush1.msra.mxu0 0.0
        %6123 = vmatprep.subr.mxu0 0.0
        %6124 = vmatpush1.msra.mxu0 0.0
        %6125 = vmatprep.subr.mxu0 0.0
        %6126 = vmatpush1.msra.mxu0 0.0
        %6127 = vmatprep.subr.mxu0 0.0
        %6128 = vmatpush1.msra.mxu0 0.0
        %6129 = vmatprep.subr.mxu0 0.0
        %6130 = vmatpush1.msra.mxu0 0.0
        %6131 = vmatprep.subr.mxu0 0.0
        %6132 = vmatpush1.msra.mxu0 0.0
        %6133 = vmatprep.subr.mxu0 0.0
        %6134 = vmatpush1.msra.mxu0 0.0
        %6135 = vmatprep.subr.mxu0 0.0
        %6136 = vmatpush1.msra.mxu0 0.0
        %6137 = vmatprep.subr.mxu0 0.0
        %6138 = vmatpush1.msra.mxu0 0.0
        %6139 = vmatprep.subr.mxu0 0.0
        %6140 = vmatpush1.msra.mxu0 0.0
        %6141 = vmatprep.subr.mxu0 0.0
        %6142 = vmatpush1.msra.mxu0 0.0
        %6143 = vmatprep.subr.mxu0 0.0
        %6144 = vmatpush1.msra.mxu0 0.0
        %6145 = vmatprep.subr.mxu0 0.0
        %6146 = vmatpush1.msra.mxu0 0.0
        %6147 = vmatprep.subr.mxu0 0.0
        %6148 = vmatpush1.msra.mxu0 0.0
        %6149 = vmatprep.subr.mxu0 0.0
        %6150 = vmatpush1.msra.mxu0 0.0
        %6151 = vmatprep.subr.mxu0 0.0
        %6152 = vmatpush1.msra.mxu0 0.0
        %6153 = vmatprep.subr.mxu0 0.0
        %6154 = vmatpush1.msra.mxu0 0.0
        %6155 = vmatprep.subr.mxu0 0.0
        %6156 = vmatpush1.msra.mxu0 0.0
        %6157 = vmatprep.subr.mxu0 0.0
        %6158 = vmatpush1.msra.mxu0 0.0
        %6159 = vmatprep.subr.mxu0 0.0
        %6160 = vmatpush1.msra.mxu0 0.0
        %6161 = vmatprep.subr.mxu0 0.0
        %6162 = vmatpush1.msra.mxu0 0.0
        %6163 = vmatprep.subr.mxu0 0.0
        %6164 = vmatpush1.msra.mxu0 0.0
        %6165 = vmatprep.subr.mxu0 0.0
        %6166 = vmatpush1.msra.mxu0 0.0
        %6167 = vmatprep.subr.mxu0 0.0
        %6168 = vmatpush1.msra.mxu0 0.0
        %6169 = vmatprep.subr.mxu0 0.0
        %6170 = vmatpush1.msra.mxu0 0.0
        %6171 = vmatprep.subr.mxu0 0.0
        %6172 = vmatpush1.msra.mxu0 0.0
        %6173 = vmatprep.subr.mxu0 0.0
        %6174 = vmatpush1.msra.mxu0 0.0
        %6175 = vmatprep.subr.mxu0 0.0
        %6176 = vmatpush1.msra.mxu0 0.0
        %6177 = vmatprep.subr.mxu0 0.0
        %6178 = vmatpush1.msra.mxu0 0.0
        %6179 = vmatprep.mubr.f32.mxu0 0.0
        %6180 = vmatmul.mubr.f32.gmra.mrb[0].mxu0 %v6113
        %v6181 = vpop.f32.mrb[0].mxu0
        %v6182 = vadd.f32 %v6034, %v6181
        %v6183 = vpop.f32.mrb[0].mxu0
        %6184 = vdwg.mxu0
        %v6185 = vsel %vm1004, %v5934, 0
        %6187 = vmatprep.subr.mxu0 0.0
        %6188 = vmatpush1.msra.mxu0 %v5947
        %6189 = vmatprep.subr.mxu0 0.0
        %6190 = vmatpush1.msra.mxu0 0.0
        %6191 = vmatprep.subr.mxu0 0.0
        %6192 = vmatpush1.msra.mxu0 0.0
        %6193 = vmatprep.subr.mxu0 0.0
        %6194 = vmatpush1.msra.mxu0 0.0
        %6195 = vmatprep.subr.mxu0 0.0
        %6196 = vmatpush1.msra.mxu0 0.0
        %6197 = vmatprep.subr.mxu0 0.0
        %6198 = vmatpush1.msra.mxu0 0.0
        %6199 = vmatprep.subr.mxu0 0.0
        %6200 = vmatpush1.msra.mxu0 0.0
        %6201 = vmatprep.subr.mxu0 0.0
        %6202 = vmatpush1.msra.mxu0 0.0
        %6203 = vmatprep.subr.mxu0 0.0
        %6204 = vmatpush1.msra.mxu0 0.0
        %6205 = vmatprep.subr.mxu0 0.0
        %6206 = vmatpush1.msra.mxu0 0.0
        %6207 = vmatprep.subr.mxu0 0.0
        %6208 = vmatpush1.msra.mxu0 0.0
        %6209 = vmatprep.subr.mxu0 0.0
        %6210 = vmatpush1.msra.mxu0 0.0
        %6211 = vmatprep.subr.mxu0 0.0
        %6212 = vmatpush1.msra.mxu0 0.0
        %6213 = vmatprep.subr.mxu0 0.0
        %6214 = vmatpush1.msra.mxu0 0.0
        %6215 = vmatprep.subr.mxu0 0.0
        %6216 = vmatpush1.msra.mxu0 0.0
        %6217 = vmatprep.subr.mxu0 0.0
        %6218 = vmatpush1.msra.mxu0 0.0
        %6219 = vmatprep.subr.mxu0 0.0
        %6220 = vmatpush1.msra.mxu0 0.0
        %6221 = vmatprep.subr.mxu0 0.0
        %6222 = vmatpush1.msra.mxu0 0.0
        %6223 = vmatprep.subr.mxu0 0.0
        %6224 = vmatpush1.msra.mxu0 0.0
        %6225 = vmatprep.subr.mxu0 0.0
        %6226 = vmatpush1.msra.mxu0 0.0
        %6227 = vmatprep.subr.mxu0 0.0
        %6228 = vmatpush1.msra.mxu0 0.0
        %6229 = vmatprep.subr.mxu0 0.0
        %6230 = vmatpush1.msra.mxu0 0.0
        %6231 = vmatprep.subr.mxu0 0.0
        %6232 = vmatpush1.msra.mxu0 0.0
        %6233 = vmatprep.subr.mxu0 0.0
        %6234 = vmatpush1.msra.mxu0 0.0
        %6235 = vmatprep.subr.mxu0 0.0
        %6236 = vmatpush1.msra.mxu0 0.0
        %6237 = vmatprep.subr.mxu0 0.0
        %6238 = vmatpush1.msra.mxu0 0.0
        %6239 = vmatprep.subr.mxu0 0.0
        %6240 = vmatpush1.msra.mxu0 0.0
        %6241 = vmatprep.subr.mxu0 0.0
        %6242 = vmatpush1.msra.mxu0 0.0
        %6243 = vmatprep.subr.mxu0 0.0
        %6244 = vmatpush1.msra.mxu0 0.0
        %6245 = vmatprep.subr.mxu0 0.0
        %6246 = vmatpush1.msra.mxu0 0.0
        %6247 = vmatprep.subr.mxu0 0.0
        %6248 = vmatpush1.msra.mxu0 0.0
        %6249 = vmatprep.subr.mxu0 0.0
        %6250 = vmatpush1.msra.mxu0 0.0
        %6251 = vmatprep.mubr.f32.mxu0 0.0
        %6252 = vmatmul.mubr.f32.gmra.mrb[0].mxu0 %v6185
        %v6253 = vpop.f32.mrb[0].mxu0
        %v6254 = vadd.f32 %v6035, %v6253
        %v6255 = vpop.f32.mrb[0].mxu0
        %6256 = vdwg.mxu0
        %v6257 = vsel %vm1004, %v5935, 0
        %6259 = vmatprep.subr.mxu0 0.0
        %6260 = vmatpush1.msra.mxu0 %v5948
        %6261 = vmatprep.subr.mxu0 0.0
        %6262 = vmatpush1.msra.mxu0 0.0
        %6263 = vmatprep.subr.mxu0 0.0
        %6264 = vmatpush1.msra.mxu0 0.0
        %6265 = vmatprep.subr.mxu0 0.0
        %6266 = vmatpush1.msra.mxu0 0.0
        %6267 = vmatprep.subr.mxu0 0.0
        %6268 = vmatpush1.msra.mxu0 0.0
        %6269 = vmatprep.subr.mxu0 0.0
        %6270 = vmatpush1.msra.mxu0 0.0
        %6271 = vmatprep.subr.mxu0 0.0
        %6272 = vmatpush1.msra.mxu0 0.0
        %6273 = vmatprep.subr.mxu0 0.0
        %6274 = vmatpush1.msra.mxu0 0.0
        %6275 = vmatprep.subr.mxu0 0.0
        %6276 = vmatpush1.msra.mxu0 0.0
        %6277 = vmatprep.subr.mxu0 0.0
        %6278 = vmatpush1.msra.mxu0 0.0
        %6279 = vmatprep.subr.mxu0 0.0
        %6280 = vmatpush1.msra.mxu0 0.0
        %6281 = vmatprep.subr.mxu0 0.0
        %6282 = vmatpush1.msra.mxu0 0.0
        %6283 = vmatprep.subr.mxu0 0.0
        %6284 = vmatpush1.msra.mxu0 0.0
        %6285 = vmatprep.subr.mxu0 0.0
        %6286 = vmatpush1.msra.mxu0 0.0
        %6287 = vmatprep.subr.mxu0 0.0
        %6288 = vmatpush1.msra.mxu0 0.0
        %6289 = vmatprep.subr.mxu0 0.0
        %6290 = vmatpush1.msra.mxu0 0.0
        %6291 = vmatprep.subr.mxu0 0.0
        %6292 = vmatpush1.msra.mxu0 0.0
        %6293 = vmatprep.subr.mxu0 0.0
        %6294 = vmatpush1.msra.mxu0 0.0
        %6295 = vmatprep.subr.mxu0 0.0
        %6296 = vmatpush1.msra.mxu0 0.0
        %6297 = vmatprep.subr.mxu0 0.0
        %6298 = vmatpush1.msra.mxu0 0.0
        %6299 = vmatprep.subr.mxu0 0.0
        %6300 = vmatpush1.msra.mxu0 0.0
        %6301 = vmatprep.subr.mxu0 0.0
        %6302 = vmatpush1.msra.mxu0 0.0
        %6303 = vmatprep.subr.mxu0 0.0
        %6304 = vmatpush1.msra.mxu0 0.0
        %6305 = vmatprep.subr.mxu0 0.0
        %6306 = vmatpush1.msra.mxu0 0.0
        %6307 = vmatprep.subr.mxu0 0.0
        %6308 = vmatpush1.msra.mxu0 0.0
        %6309 = vmatprep.subr.mxu0 0.0
        %6310 = vmatpush1.msra.mxu0 0.0
        %6311 = vmatprep.subr.mxu0 0.0
        %6312 = vmatpush1.msra.mxu0 0.0
        %6313 = vmatprep.subr.mxu0 0.0
        %6314 = vmatpush1.msra.mxu0 0.0
        %6315 = vmatprep.subr.mxu0 0.0
        %6316 = vmatpush1.msra.mxu0 0.0
        %6317 = vmatprep.subr.mxu0 0.0
        %6318 = vmatpush1.msra.mxu0 0.0
        %6319 = vmatprep.subr.mxu0 0.0
        %6320 = vmatpush1.msra.mxu0 0.0
        %6321 = vmatprep.subr.mxu0 0.0
        %6322 = vmatpush1.msra.mxu0 0.0
        %6323 = vmatprep.mubr.f32.mxu0 0.0
        %6324 = vmatmul.mubr.f32.gmra.mrb[0].mxu0 %v6257
        %v6325 = vpop.f32.mrb[0].mxu0
        %v6326 = vadd.f32 %v6036, %v6325
        %v6327 = vpop.f32.mrb[0].mxu0
        %6328 = vdwg.mxu0
        %v6329 = vsel %vm1004, %v5936, 0
        %6331 = vmatprep.subr.mxu0 0.0
        %6332 = vmatpush1.msra.mxu0 %v5949
        %6333 = vmatprep.subr.mxu0 0.0
        %6334 = vmatpush1.msra.mxu0 0.0
        %6335 = vmatprep.subr.mxu0 0.0
        %6336 = vmatpush1.msra.mxu0 0.0
        %6337 = vmatprep.subr.mxu0 0.0
        %6338 = vmatpush1.msra.mxu0 0.0
        %6339 = vmatprep.subr.mxu0 0.0
        %6340 = vmatpush1.msra.mxu0 0.0
        %6341 = vmatprep.subr.mxu0 0.0
        %6342 = vmatpush1.msra.mxu0 0.0
        %6343 = vmatprep.subr.mxu0 0.0
        %6344 = vmatpush1.msra.mxu0 0.0
        %6345 = vmatprep.subr.mxu0 0.0
        %6346 = vmatpush1.msra.mxu0 0.0
        %6347 = vmatprep.subr.mxu0 0.0
        %6348 = vmatpush1.msra.mxu0 0.0
        %6349 = vmatprep.subr.mxu0 0.0
        %6350 = vmatpush1.msra.mxu0 0.0
        %6351 = vmatprep.subr.mxu0 0.0
        %6352 = vmatpush1.msra.mxu0 0.0
        %6353 = vmatprep.subr.mxu0 0.0
        %6354 = vmatpush1.msra.mxu0 0.0
        %6355 = vmatprep.subr.mxu0 0.0
        %6356 = vmatpush1.msra.mxu0 0.0
        %6357 = vmatprep.subr.mxu0 0.0
        %6358 = vmatpush1.msra.mxu0 0.0
        %6359 = vmatprep.subr.mxu0 0.0
        %6360 = vmatpush1.msra.mxu0 0.0
        %6361 = vmatprep.subr.mxu0 0.0
        %6362 = vmatpush1.msra.mxu0 0.0
        %6363 = vmatprep.subr.mxu0 0.0
        %6364 = vmatpush1.msra.mxu0 0.0
        %6365 = vmatprep.subr.mxu0 0.0
        %6366 = vmatpush1.msra.mxu0 0.0
        %6367 = vmatprep.subr.mxu0 0.0
        %6368 = vmatpush1.msra.mxu0 0.0
        %6369 = vmatprep.subr.mxu0 0.0
        %6370 = vmatpush1.msra.mxu0 0.0
        %6371 = vmatprep.subr.mxu0 0.0
        %6372 = vmatpush1.msra.mxu0 0.0
        %6373 = vmatprep.subr.mxu0 0.0
        %6374 = vmatpush1.msra.mxu0 0.0
        %6375 = vmatprep.subr.mxu0 0.0
        %6376 = vmatpush1.msra.mxu0 0.0
        %6377 = vmatprep.subr.mxu0 0.0
        %6378 = vmatpush1.msra.mxu0 0.0
        %6379 = vmatprep.subr.mxu0 0.0
        %6380 = vmatpush1.msra.mxu0 0.0
        %6381 = vmatprep.subr.mxu0 0.0
        %6382 = vmatpush1.msra.mxu0 0.0
        %6383 = vmatprep.subr.mxu0 0.0
        %6384 = vmatpush1.msra.mxu0 0.0
        %6385 = vmatprep.subr.mxu0 0.0
        %6386 = vmatpush1.msra.mxu0 0.0
        %6387 = vmatprep.subr.mxu0 0.0
        %6388 = vmatpush1.msra.mxu0 0.0
        %6389 = vmatprep.subr.mxu0 0.0
        %6390 = vmatpush1.msra.mxu0 0.0
        %6391 = vmatprep.subr.mxu0 0.0
        %6392 = vmatpush1.msra.mxu0 0.0
        %6393 = vmatprep.subr.mxu0 0.0
        %6394 = vmatpush1.msra.mxu0 0.0
        %6395 = vmatprep.mubr.f32.mxu0 0.0
        %6396 = vmatmul.mubr.f32.gmra.mrb[0].mxu0 %v6329
        %v6397 = vpop.f32.mrb[0].mxu0
        %v6398 = vadd.f32 %v6037, %v6397
        %v6399 = vpop.f32.mrb[0].mxu0
        %6400 = vdwg.mxu0
        %v6401 = vsel %vm1004, %v5937, 0
        %6403 = vmatprep.subr.mxu0 0.0
        %6404 = vmatpush1.msra.mxu0 %v5950
        %6405 = vmatprep.subr.mxu0 0.0
        %6406 = vmatpush1.msra.mxu0 0.0
        %6407 = vmatprep.subr.mxu0 0.0
        %6408 = vmatpush1.msra.mxu0 0.0
        %6409 = vmatprep.subr.mxu0 0.0
        %6410 = vmatpush1.msra.mxu0 0.0
        %6411 = vmatprep.subr.mxu0 0.0
        %6412 = vmatpush1.msra.mxu0 0.0
        %6413 = vmatprep.subr.mxu0 0.0
        %6414 = vmatpush1.msra.mxu0 0.0
        %6415 = vmatprep.subr.mxu0 0.0
        %6416 = vmatpush1.msra.mxu0 0.0
        %6417 = vmatprep.subr.mxu0 0.0
        %6418 = vmatpush1.msra.mxu0 0.0
        %6419 = vmatprep.subr.mxu0 0.0
        %6420 = vmatpush1.msra.mxu0 0.0
        %6421 = vmatprep.subr.mxu0 0.0
        %6422 = vmatpush1.msra.mxu0 0.0
        %6423 = vmatprep.subr.mxu0 0.0
        %6424 = vmatpush1.msra.mxu0 0.0
        %6425 = vmatprep.subr.mxu0 0.0
        %6426 = vmatpush1.msra.mxu0 0.0
        %6427 = vmatprep.subr.mxu0 0.0
        %6428 = vmatpush1.msra.mxu0 0.0
        %6429 = vmatprep.subr.mxu0 0.0
        %6430 = vmatpush1.msra.mxu0 0.0
        %6431 = vmatprep.subr.mxu0 0.0
        %6432 = vmatpush1.msra.mxu0 0.0
        %6433 = vmatprep.subr.mxu0 0.0
        %6434 = vmatpush1.msra.mxu0 0.0
        %6435 = vmatprep.subr.mxu0 0.0
        %6436 = vmatpush1.msra.mxu0 0.0
        %6437 = vmatprep.subr.mxu0 0.0
        %6438 = vmatpush1.msra.mxu0 0.0
        %6439 = vmatprep.subr.mxu0 0.0
        %6440 = vmatpush1.msra.mxu0 0.0
        %6441 = vmatprep.subr.mxu0 0.0
        %6442 = vmatpush1.msra.mxu0 0.0
        %6443 = vmatprep.subr.mxu0 0.0
        %6444 = vmatpush1.msra.mxu0 0.0
        %6445 = vmatprep.subr.mxu0 0.0
        %6446 = vmatpush1.msra.mxu0 0.0
        %6447 = vmatprep.subr.mxu0 0.0
        %6448 = vmatpush1.msra.mxu0 0.0
        %6449 = vmatprep.subr.mxu0 0.0
        %6450 = vmatpush1.msra.mxu0 0.0
        %6451 = vmatprep.subr.mxu0 0.0
        %6452 = vmatpush1.msra.mxu0 0.0
        %6453 = vmatprep.subr.mxu0 0.0
        %6454 = vmatpush1.msra.mxu0 0.0
        %6455 = vmatprep.subr.mxu0 0.0
        %6456 = vmatpush1.msra.mxu0 0.0
        %6457 = vmatprep.subr.mxu0 0.0
        %6458 = vmatpush1.msra.mxu0 0.0
        %6459 = vmatprep.subr.mxu0 0.0
        %6460 = vmatpush1.msra.mxu0 0.0
        %6461 = vmatprep.subr.mxu0 0.0
        %6462 = vmatpush1.msra.mxu0 0.0
        %6463 = vmatprep.subr.mxu0 0.0
        %6464 = vmatpush1.msra.mxu0 0.0
        %6465 = vmatprep.subr.mxu0 0.0
        %6466 = vmatpush1.msra.mxu0 0.0
        %6467 = vmatprep.mubr.f32.mxu0 0.0
        %6468 = vmatmul.mubr.f32.gmra.mrb[0].mxu0 %v6401
        %v6469 = vpop.f32.mrb[0].mxu0
        %v6470 = vadd.f32 %v6038, %v6469
        %v6471 = vpop.f32.mrb[0].mxu0
        %6472 = vdwg.mxu0
        %v6473 = vsel %vm1004, %v5938, 0
        %6475 = vmatprep.subr.mxu0 0.0
        %6476 = vmatpush1.msra.mxu0 %v5951
        %6477 = vmatprep.subr.mxu0 0.0
        %6478 = vmatpush1.msra.mxu0 0.0
        %6479 = vmatprep.subr.mxu0 0.0
        %6480 = vmatpush1.msra.mxu0 0.0
        %6481 = vmatprep.subr.mxu0 0.0
        %6482 = vmatpush1.msra.mxu0 0.0
        %6483 = vmatprep.subr.mxu0 0.0
        %6484 = vmatpush1.msra.mxu0 0.0
        %6485 = vmatprep.subr.mxu0 0.0
        %6486 = vmatpush1.msra.mxu0 0.0
        %6487 = vmatprep.subr.mxu0 0.0
        %6488 = vmatpush1.msra.mxu0 0.0
        %6489 = vmatprep.subr.mxu0 0.0
        %6490 = vmatpush1.msra.mxu0 0.0
        %6491 = vmatprep.subr.mxu0 0.0
        %6492 = vmatpush1.msra.mxu0 0.0
        %6493 = vmatprep.subr.mxu0 0.0
        %6494 = vmatpush1.msra.mxu0 0.0
        %6495 = vmatprep.subr.mxu0 0.0
        %6496 = vmatpush1.msra.mxu0 0.0
        %6497 = vmatprep.subr.mxu0 0.0
        %6498 = vmatpush1.msra.mxu0 0.0
        %6499 = vmatprep.subr.mxu0 0.0
        %6500 = vmatpush1.msra.mxu0 0.0
        %6501 = vmatprep.subr.mxu0 0.0
        %6502 = vmatpush1.msra.mxu0 0.0
        %6503 = vmatprep.subr.mxu0 0.0
        %6504 = vmatpush1.msra.mxu0 0.0
        %6505 = vmatprep.subr.mxu0 0.0
        %6506 = vmatpush1.msra.mxu0 0.0
        %6507 = vmatprep.subr.mxu0 0.0
        %6508 = vmatpush1.msra.mxu0 0.0
        %6509 = vmatprep.subr.mxu0 0.0
        %6510 = vmatpush1.msra.mxu0 0.0
        %6511 = vmatprep.subr.mxu0 0.0
        %6512 = vmatpush1.msra.mxu0 0.0
        %6513 = vmatprep.subr.mxu0 0.0
        %6514 = vmatpush1.msra.mxu0 0.0
        %6515 = vmatprep.subr.mxu0 0.0
        %6516 = vmatpush1.msra.mxu0 0.0
        %6517 = vmatprep.subr.mxu0 0.0
        %6518 = vmatpush1.msra.mxu0 0.0
        %6519 = vmatprep.subr.mxu0 0.0
        %6520 = vmatpush1.msra.mxu0 0.0
        %6521 = vmatprep.subr.mxu0 0.0
        %6522 = vmatpush1.msra.mxu0 0.0
        %6523 = vmatprep.subr.mxu0 0.0
        %6524 = vmatpush1.msra.mxu0 0.0
        %6525 = vmatprep.subr.mxu0 0.0
        %6526 = vmatpush1.msra.mxu0 0.0
        %6527 = vmatprep.subr.mxu0 0.0
        %6528 = vmatpush1.msra.mxu0 0.0
        %6529 = vmatprep.subr.mxu0 0.0
        %6530 = vmatpush1.msra.mxu0 0.0
        %6531 = vmatprep.subr.mxu0 0.0
        %6532 = vmatpush1.msra.mxu0 0.0
        %6533 = vmatprep.subr.mxu0 0.0
        %6534 = vmatpush1.msra.mxu0 0.0
        %6535 = vmatprep.subr.mxu0 0.0
        %6536 = vmatpush1.msra.mxu0 0.0
        %6537 = vmatprep.subr.mxu0 0.0
        %6538 = vmatpush1.msra.mxu0 0.0
        %6539 = vmatprep.mubr.f32.mxu0 0.0
        %6540 = vmatmul.mubr.f32.gmra.mrb[0].mxu0 %v6473
        %v6541 = vpop.f32.mrb[0].mxu0
        %v6542 = vadd.f32 %v6039, %v6541
        %v6543 = vpop.f32.mrb[0].mxu0
        %6544 = vdwg.mxu0
        %v6545 = vsel %vm1004, %v5939, 0
        %6547 = vmatprep.subr.mxu0 0.0
        %6548 = vmatpush1.msra.mxu0 %v5952
        %6549 = vmatprep.subr.mxu0 0.0
        %6550 = vmatpush1.msra.mxu0 0.0
        %6551 = vmatprep.subr.mxu0 0.0
        %6552 = vmatpush1.msra.mxu0 0.0
        %6553 = vmatprep.subr.mxu0 0.0
        %6554 = vmatpush1.msra.mxu0 0.0
        %6555 = vmatprep.subr.mxu0 0.0
        %6556 = vmatpush1.msra.mxu0 0.0
        %6557 = vmatprep.subr.mxu0 0.0
        %6558 = vmatpush1.msra.mxu0 0.0
        %6559 = vmatprep.subr.mxu0 0.0
        %6560 = vmatpush1.msra.mxu0 0.0
        %6561 = vmatprep.subr.mxu0 0.0
        %6562 = vmatpush1.msra.mxu0 0.0
        %6563 = vmatprep.subr.mxu0 0.0
        %6564 = vmatpush1.msra.mxu0 0.0
        %6565 = vmatprep.subr.mxu0 0.0
        %6566 = vmatpush1.msra.mxu0 0.0
        %6567 = vmatprep.subr.mxu0 0.0
        %6568 = vmatpush1.msra.mxu0 0.0
        %6569 = vmatprep.subr.mxu0 0.0
        %6570 = vmatpush1.msra.mxu0 0.0
        %6571 = vmatprep.subr.mxu0 0.0
        %6572 = vmatpush1.msra.mxu0 0.0
        %6573 = vmatprep.subr.mxu0 0.0
        %6574 = vmatpush1.msra.mxu0 0.0
        %6575 = vmatprep.subr.mxu0 0.0
        %6576 = vmatpush1.msra.mxu0 0.0
        %6577 = vmatprep.subr.mxu0 0.0
        %6578 = vmatpush1.msra.mxu0 0.0
        %6579 = vmatprep.subr.mxu0 0.0
        %6580 = vmatpush1.msra.mxu0 0.0
        %6581 = vmatprep.subr.mxu0 0.0
        %6582 = vmatpush1.msra.mxu0 0.0
        %6583 = vmatprep.subr.mxu0 0.0
        %6584 = vmatpush1.msra.mxu0 0.0
        %6585 = vmatprep.subr.mxu0 0.0
        %6586 = vmatpush1.msra.mxu0 0.0
        %6587 = vmatprep.subr.mxu0 0.0
        %6588 = vmatpush1.msra.mxu0 0.0
        %6589 = vmatprep.subr.mxu0 0.0
        %6590 = vmatpush1.msra.mxu0 0.0
        %6591 = vmatprep.subr.mxu0 0.0
        %6592 = vmatpush1.msra.mxu0 0.0
        %6593 = vmatprep.subr.mxu0 0.0
        %6594 = vmatpush1.msra.mxu0 0.0
        %6595 = vmatprep.subr.mxu0 0.0
        %6596 = vmatpush1.msra.mxu0 0.0
        %6597 = vmatprep.subr.mxu0 0.0
        %6598 = vmatpush1.msra.mxu0 0.0
        %6599 = vmatprep.subr.mxu0 0.0
        %6600 = vmatpush1.msra.mxu0 0.0
        %6601 = vmatprep.subr.mxu0 0.0
        %6602 = vmatpush1.msra.mxu0 0.0
        %6603 = vmatprep.subr.mxu0 0.0
        %6604 = vmatpush1.msra.mxu0 0.0
        %6605 = vmatprep.subr.mxu0 0.0
        %6606 = vmatpush1.msra.mxu0 0.0
        %6607 = vmatprep.subr.mxu0 0.0
        %6608 = vmatpush1.msra.mxu0 0.0
        %6609 = vmatprep.subr.mxu0 0.0
        %6610 = vmatpush1.msra.mxu0 0.0
        %6611 = vmatprep.mubr.f32.mxu0 0.0
        %6612 = vmatmul.mubr.f32.gmra.mrb[0].mxu0 %v6545
        %v6613 = vpop.f32.mrb[0].mxu0
        %v6614 = vadd.f32 %v6040, %v6613
        %v6615 = vpop.f32.mrb[0].mxu0
        %6616 = vdwg.mxu0
        %v6617 = vsel %vm5715, %v6110, 0.0
        %v6618 = vsel %vm5715, %v6182, 0.0
        %v6619 = vsel %vm5715, %v6254, 0.0
        %v6620 = vsel %vm5715, %v6326, 0.0
        %v6621 = vsel %vm5715, %v6398, 0.0
        %v6622 = vsel %vm5715, %v6470, 0.0
        %v6623 = vsel %vm5715, %v6542, 0.0
        %v6624 = vsel %vm5715, %v6614, 0.0
        %v6626 = vsel %vm1004, %v5924, 0
        %6628 = vmatprep.subr.mxu0 0.0
        %6629 = vmatpush1.msra.mxu0 %v716
        %6630 = vmatprep.subr.mxu0 0.0
        %6631 = vmatpush1.msra.mxu0 0.0
        %6632 = vmatprep.subr.mxu0 0.0
        %6633 = vmatpush1.msra.mxu0 0.0
        %6634 = vmatprep.subr.mxu0 0.0
        %6635 = vmatpush1.msra.mxu0 0.0
        %6636 = vmatprep.subr.mxu0 0.0
        %6637 = vmatpush1.msra.mxu0 0.0
        %6638 = vmatprep.subr.mxu0 0.0
        %6639 = vmatpush1.msra.mxu0 0.0
        %6640 = vmatprep.subr.mxu0 0.0
        %6641 = vmatpush1.msra.mxu0 0.0
        %6642 = vmatprep.subr.mxu0 0.0
        %6643 = vmatpush1.msra.mxu0 0.0
        %6644 = vmatprep.subr.mxu0 0.0
        %6645 = vmatpush1.msra.mxu0 0.0
        %6646 = vmatprep.subr.mxu0 0.0
        %6647 = vmatpush1.msra.mxu0 0.0
        %6648 = vmatprep.subr.mxu0 0.0
        %6649 = vmatpush1.msra.mxu0 0.0
        %6650 = vmatprep.subr.mxu0 0.0
        %6651 = vmatpush1.msra.mxu0 0.0
        %6652 = vmatprep.subr.mxu0 0.0
        %6653 = vmatpush1.msra.mxu0 0.0
        %6654 = vmatprep.subr.mxu0 0.0
        %6655 = vmatpush1.msra.mxu0 0.0
        %6656 = vmatprep.subr.mxu0 0.0
        %6657 = vmatpush1.msra.mxu0 0.0
        %6658 = vmatprep.subr.mxu0 0.0
        %6659 = vmatpush1.msra.mxu0 0.0
        %6660 = vmatprep.subr.mxu0 0.0
        %6661 = vmatpush1.msra.mxu0 0.0
        %6662 = vmatprep.subr.mxu0 0.0
        %6663 = vmatpush1.msra.mxu0 0.0
        %6664 = vmatprep.subr.mxu0 0.0
        %6665 = vmatpush1.msra.mxu0 0.0
        %6666 = vmatprep.subr.mxu0 0.0
        %6667 = vmatpush1.msra.mxu0 0.0
        %6668 = vmatprep.subr.mxu0 0.0
        %6669 = vmatpush1.msra.mxu0 0.0
        %6670 = vmatprep.subr.mxu0 0.0
        %6671 = vmatpush1.msra.mxu0 0.0
        %6672 = vmatprep.subr.mxu0 0.0
        %6673 = vmatpush1.msra.mxu0 0.0
        %6674 = vmatprep.subr.mxu0 0.0
        %6675 = vmatpush1.msra.mxu0 0.0
        %6676 = vmatprep.subr.mxu0 0.0
        %6677 = vmatpush1.msra.mxu0 0.0
        %6678 = vmatprep.subr.mxu0 0.0
        %6679 = vmatpush1.msra.mxu0 0.0
        %6680 = vmatprep.subr.mxu0 0.0
        %6681 = vmatpush1.msra.mxu0 0.0
        %6682 = vmatprep.subr.mxu0 0.0
        %6683 = vmatpush1.msra.mxu0 0.0
        %6684 = vmatprep.subr.mxu0 0.0
        %6685 = vmatpush1.msra.mxu0 0.0
        %6686 = vmatprep.subr.mxu0 0.0
        %6687 = vmatpush1.msra.mxu0 0.0
        %6688 = vmatprep.subr.mxu0 0.0
        %6689 = vmatpush1.msra.mxu0 0.0
        %6690 = vmatprep.subr.mxu0 0.0
        %6691 = vmatpush1.msra.mxu0 0.0
        %6692 = vmatprep.mubr.f32.mxu0 0.0
        %6693 = vmatmul.mubr.f32.gmra.mrb[0].mxu0 %v6626
        %v6694 = vpop.f32.mrb[0].mxu0
        %v6695 = vadd.f32 %v6617, %v6694
        %v6696 = vpop.f32.mrb[0].mxu0
        %6697 = vdwg.mxu0
        %v6699 = vsel %vm1004, %v5925, 0
        %6701 = vmatprep.subr.mxu0 0.0
        %6702 = vmatpush1.msra.mxu0 %v721
        %6703 = vmatprep.subr.mxu0 0.0
        %6704 = vmatpush1.msra.mxu0 0.0
        %6705 = vmatprep.subr.mxu0 0.0
        %6706 = vmatpush1.msra.mxu0 0.0
        %6707 = vmatprep.subr.mxu0 0.0
        %6708 = vmatpush1.msra.mxu0 0.0
        %6709 = vmatprep.subr.mxu0 0.0
        %6710 = vmatpush1.msra.mxu0 0.0
        %6711 = vmatprep.subr.mxu0 0.0
        %6712 = vmatpush1.msra.mxu0 0.0
        %6713 = vmatprep.subr.mxu0 0.0
        %6714 = vmatpush1.msra.mxu0 0.0
        %6715 = vmatprep.subr.mxu0 0.0
        %6716 = vmatpush1.msra.mxu0 0.0
        %6717 = vmatprep.subr.mxu0 0.0
        %6718 = vmatpush1.msra.mxu0 0.0
        %6719 = vmatprep.subr.mxu0 0.0
        %6720 = vmatpush1.msra.mxu0 0.0
        %6721 = vmatprep.subr.mxu0 0.0
        %6722 = vmatpush1.msra.mxu0 0.0
        %6723 = vmatprep.subr.mxu0 0.0
        %6724 = vmatpush1.msra.mxu0 0.0
        %6725 = vmatprep.subr.mxu0 0.0
        %6726 = vmatpush1.msra.mxu0 0.0
        %6727 = vmatprep.subr.mxu0 0.0
        %6728 = vmatpush1.msra.mxu0 0.0
        %6729 = vmatprep.subr.mxu0 0.0
        %6730 = vmatpush1.msra.mxu0 0.0
        %6731 = vmatprep.subr.mxu0 0.0
        %6732 = vmatpush1.msra.mxu0 0.0
        %6733 = vmatprep.subr.mxu0 0.0
        %6734 = vmatpush1.msra.mxu0 0.0
        %6735 = vmatprep.subr.mxu0 0.0
        %6736 = vmatpush1.msra.mxu0 0.0
        %6737 = vmatprep.subr.mxu0 0.0
        %6738 = vmatpush1.msra.mxu0 0.0
        %6739 = vmatprep.subr.mxu0 0.0
        %6740 = vmatpush1.msra.mxu0 0.0
        %6741 = vmatprep.subr.mxu0 0.0
        %6742 = vmatpush1.msra.mxu0 0.0
        %6743 = vmatprep.subr.mxu0 0.0
        %6744 = vmatpush1.msra.mxu0 0.0
        %6745 = vmatprep.subr.mxu0 0.0
        %6746 = vmatpush1.msra.mxu0 0.0
        %6747 = vmatprep.subr.mxu0 0.0
        %6748 = vmatpush1.msra.mxu0 0.0
        %6749 = vmatprep.subr.mxu0 0.0
        %6750 = vmatpush1.msra.mxu0 0.0
        %6751 = vmatprep.subr.mxu0 0.0
        %6752 = vmatpush1.msra.mxu0 0.0
        %6753 = vmatprep.subr.mxu0 0.0
        %6754 = vmatpush1.msra.mxu0 0.0
        %6755 = vmatprep.subr.mxu0 0.0
        %6756 = vmatpush1.msra.mxu0 0.0
        %6757 = vmatprep.subr.mxu0 0.0
        %6758 = vmatpush1.msra.mxu0 0.0
        %6759 = vmatprep.subr.mxu0 0.0
        %6760 = vmatpush1.msra.mxu0 0.0
        %6761 = vmatprep.subr.mxu0 0.0
        %6762 = vmatpush1.msra.mxu0 0.0
        %6763 = vmatprep.subr.mxu0 0.0
        %6764 = vmatpush1.msra.mxu0 0.0
        %6765 = vmatprep.mubr.f32.mxu0 0.0
        %6766 = vmatmul.mubr.f32.gmra.mrb[0].mxu0 %v6699
        %v6767 = vpop.f32.mrb[0].mxu0
        %v6768 = vadd.f32 %v6618, %v6767
        %v6769 = vpop.f32.mrb[0].mxu0
        %6770 = vdwg.mxu0
        %v6772 = vsel %vm1004, %v5926, 0
        %6774 = vmatprep.subr.mxu0 0.0
        %6775 = vmatpush1.msra.mxu0 %v929
        %6776 = vmatprep.subr.mxu0 0.0
        %6777 = vmatpush1.msra.mxu0 0.0
        %6778 = vmatprep.subr.mxu0 0.0
        %6779 = vmatpush1.msra.mxu0 0.0
        %6780 = vmatprep.subr.mxu0 0.0
        %6781 = vmatpush1.msra.mxu0 0.0
        %6782 = vmatprep.subr.mxu0 0.0
        %6783 = vmatpush1.msra.mxu0 0.0
        %6784 = vmatprep.subr.mxu0 0.0
        %6785 = vmatpush1.msra.mxu0 0.0
        %6786 = vmatprep.subr.mxu0 0.0
        %6787 = vmatpush1.msra.mxu0 0.0
        %6788 = vmatprep.subr.mxu0 0.0
        %6789 = vmatpush1.msra.mxu0 0.0
        %6790 = vmatprep.subr.mxu0 0.0
        %6791 = vmatpush1.msra.mxu0 0.0
        %6792 = vmatprep.subr.mxu0 0.0
        %6793 = vmatpush1.msra.mxu0 0.0
        %6794 = vmatprep.subr.mxu0 0.0
        %6795 = vmatpush1.msra.mxu0 0.0
        %6796 = vmatprep.subr.mxu0 0.0
        %6797 = vmatpush1.msra.mxu0 0.0
        %6798 = vmatprep.subr.mxu0 0.0
        %6799 = vmatpush1.msra.mxu0 0.0
        %6800 = vmatprep.subr.mxu0 0.0
        %6801 = vmatpush1.msra.mxu0 0.0
        %6802 = vmatprep.subr.mxu0 0.0
        %6803 = vmatpush1.msra.mxu0 0.0
        %6804 = vmatprep.subr.mxu0 0.0
        %6805 = vmatpush1.msra.mxu0 0.0
        %6806 = vmatprep.subr.mxu0 0.0
        %6807 = vmatpush1.msra.mxu0 0.0
        %6808 = vmatprep.subr.mxu0 0.0
        %6809 = vmatpush1.msra.mxu0 0.0
        %6810 = vmatprep.subr.mxu0 0.0
        %6811 = vmatpush1.msra.mxu0 0.0
        %6812 = vmatprep.subr.mxu0 0.0
        %6813 = vmatpush1.msra.mxu0 0.0
        %6814 = vmatprep.subr.mxu0 0.0
        %6815 = vmatpush1.msra.mxu0 0.0
        %6816 = vmatprep.subr.mxu0 0.0
        %6817 = vmatpush1.msra.mxu0 0.0
        %6818 = vmatprep.subr.mxu0 0.0
        %6819 = vmatpush1.msra.mxu0 0.0
        %6820 = vmatprep.subr.mxu0 0.0
        %6821 = vmatpush1.msra.mxu0 0.0
        %6822 = vmatprep.subr.mxu0 0.0
        %6823 = vmatpush1.msra.mxu0 0.0
        %6824 = vmatprep.subr.mxu0 0.0
        %6825 = vmatpush1.msra.mxu0 0.0
        %6826 = vmatprep.subr.mxu0 0.0
        %6827 = vmatpush1.msra.mxu0 0.0
        %6828 = vmatprep.subr.mxu0 0.0
        %6829 = vmatpush1.msra.mxu0 0.0
        %6830 = vmatprep.subr.mxu0 0.0
        %6831 = vmatpush1.msra.mxu0 0.0
        %6832 = vmatprep.subr.mxu0 0.0
        %6833 = vmatpush1.msra.mxu0 0.0
        %6834 = vmatprep.subr.mxu0 0.0
        %6835 = vmatpush1.msra.mxu0 0.0
        %6836 = vmatprep.subr.mxu0 0.0
        %6837 = vmatpush1.msra.mxu0 0.0
        %6838 = vmatprep.mubr.f32.mxu0 0.0
        %6839 = vmatmul.mubr.f32.gmra.mrb[0].mxu0 %v6772
        %v6840 = vpop.f32.mrb[0].mxu0
        %v6841 = vadd.f32 %v6619, %v6840
        %v6842 = vpop.f32.mrb[0].mxu0
        %6843 = vdwg.mxu0
        %v6845 = vsel %vm1004, %v5927, 0
        %6847 = vmatprep.subr.mxu0 0.0
        %6848 = vmatpush1.msra.mxu0 %v931
        %6849 = vmatprep.subr.mxu0 0.0
        %6850 = vmatpush1.msra.mxu0 0.0
        %6851 = vmatprep.subr.mxu0 0.0
        %6852 = vmatpush1.msra.mxu0 0.0
        %6853 = vmatprep.subr.mxu0 0.0
        %6854 = vmatpush1.msra.mxu0 0.0
        %6855 = vmatprep.subr.mxu0 0.0
        %6856 = vmatpush1.msra.mxu0 0.0
        %6857 = vmatprep.subr.mxu0 0.0
        %6858 = vmatpush1.msra.mxu0 0.0
        %6859 = vmatprep.subr.mxu0 0.0
        %6860 = vmatpush1.msra.mxu0 0.0
        %6861 = vmatprep.subr.mxu0 0.0
        %6862 = vmatpush1.msra.mxu0 0.0
        %6863 = vmatprep.subr.mxu0 0.0
        %6864 = vmatpush1.msra.mxu0 0.0
        %6865 = vmatprep.subr.mxu0 0.0
        %6866 = vmatpush1.msra.mxu0 0.0
        %6867 = vmatprep.subr.mxu0 0.0
        %6868 = vmatpush1.msra.mxu0 0.0
        %6869 = vmatprep.subr.mxu0 0.0
        %6870 = vmatpush1.msra.mxu0 0.0
        %6871 = vmatprep.subr.mxu0 0.0
        %6872 = vmatpush1.msra.mxu0 0.0
        %6873 = vmatprep.subr.mxu0 0.0
        %6874 = vmatpush1.msra.mxu0 0.0
        %6875 = vmatprep.subr.mxu0 0.0
        %6876 = vmatpush1.msra.mxu0 0.0
        %6877 = vmatprep.subr.mxu0 0.0
        %6878 = vmatpush1.msra.mxu0 0.0
        %6879 = vmatprep.subr.mxu0 0.0
        %6880 = vmatpush1.msra.mxu0 0.0
        %6881 = vmatprep.subr.mxu0 0.0
        %6882 = vmatpush1.msra.mxu0 0.0
        %6883 = vmatprep.subr.mxu0 0.0
        %6884 = vmatpush1.msra.mxu0 0.0
        %6885 = vmatprep.subr.mxu0 0.0
        %6886 = vmatpush1.msra.mxu0 0.0
        %6887 = vmatprep.subr.mxu0 0.0
        %6888 = vmatpush1.msra.mxu0 0.0
        %6889 = vmatprep.subr.mxu0 0.0
        %6890 = vmatpush1.msra.mxu0 0.0
        %6891 = vmatprep.subr.mxu0 0.0
        %6892 = vmatpush1.msra.mxu0 0.0
        %6893 = vmatprep.subr.mxu0 0.0
        %6894 = vmatpush1.msra.mxu0 0.0
        %6895 = vmatprep.subr.mxu0 0.0
        %6896 = vmatpush1.msra.mxu0 0.0
        %6897 = vmatprep.subr.mxu0 0.0
        %6898 = vmatpush1.msra.mxu0 0.0
        %6899 = vmatprep.subr.mxu0 0.0
        %6900 = vmatpush1.msra.mxu0 0.0
        %6901 = vmatprep.subr.mxu0 0.0
        %6902 = vmatpush1.msra.mxu0 0.0
        %6903 = vmatprep.subr.mxu0 0.0
        %6904 = vmatpush1.msra.mxu0 0.0
        %6905 = vmatprep.subr.mxu0 0.0
        %6906 = vmatpush1.msra.mxu0 0.0
        %6907 = vmatprep.subr.mxu0 0.0
        %6908 = vmatpush1.msra.mxu0 0.0
        %6909 = vmatprep.subr.mxu0 0.0
        %6910 = vmatpush1.msra.mxu0 0.0
        %6911 = vmatprep.mubr.f32.mxu0 0.0
        %6912 = vmatmul.mubr.f32.gmra.mrb[0].mxu0 %v6845
        %v6913 = vpop.f32.mrb[0].mxu0
        %v6914 = vadd.f32 %v6620, %v6913
        %v6915 = vpop.f32.mrb[0].mxu0
        %6916 = vdwg.mxu0
        %v6918 = vsel %vm1004, %v5928, 0
        %6920 = vmatprep.subr.mxu0 0.0
        %6921 = vmatpush1.msra.mxu0 %v935
        %6922 = vmatprep.subr.mxu0 0.0
        %6923 = vmatpush1.msra.mxu0 0.0
        %6924 = vmatprep.subr.mxu0 0.0
        %6925 = vmatpush1.msra.mxu0 0.0
        %6926 = vmatprep.subr.mxu0 0.0
        %6927 = vmatpush1.msra.mxu0 0.0
        %6928 = vmatprep.subr.mxu0 0.0
        %6929 = vmatpush1.msra.mxu0 0.0
        %6930 = vmatprep.subr.mxu0 0.0
        %6931 = vmatpush1.msra.mxu0 0.0
        %6932 = vmatprep.subr.mxu0 0.0
        %6933 = vmatpush1.msra.mxu0 0.0
        %6934 = vmatprep.subr.mxu0 0.0
        %6935 = vmatpush1.msra.mxu0 0.0
        %6936 = vmatprep.subr.mxu0 0.0
        %6937 = vmatpush1.msra.mxu0 0.0
        %6938 = vmatprep.subr.mxu0 0.0
        %6939 = vmatpush1.msra.mxu0 0.0
        %6940 = vmatprep.subr.mxu0 0.0
        %6941 = vmatpush1.msra.mxu0 0.0
        %6942 = vmatprep.subr.mxu0 0.0
        %6943 = vmatpush1.msra.mxu0 0.0
        %6944 = vmatprep.subr.mxu0 0.0
        %6945 = vmatpush1.msra.mxu0 0.0
        %6946 = vmatprep.subr.mxu0 0.0
        %6947 = vmatpush1.msra.mxu0 0.0
        %6948 = vmatprep.subr.mxu0 0.0
        %6949 = vmatpush1.msra.mxu0 0.0
        %6950 = vmatprep.subr.mxu0 0.0
        %6951 = vmatpush1.msra.mxu0 0.0
        %6952 = vmatprep.subr.mxu0 0.0
        %6953 = vmatpush1.msra.mxu0 0.0
        %6954 = vmatprep.subr.mxu0 0.0
        %6955 = vmatpush1.msra.mxu0 0.0
        %6956 = vmatprep.subr.mxu0 0.0
        %6957 = vmatpush1.msra.mxu0 0.0
        %6958 = vmatprep.subr.mxu0 0.0
        %6959 = vmatpush1.msra.mxu0 0.0
        %6960 = vmatprep.subr.mxu0 0.0
        %6961 = vmatpush1.msra.mxu0 0.0
        %6962 = vmatprep.subr.mxu0 0.0
        %6963 = vmatpush1.msra.mxu0 0.0
        %6964 = vmatprep.subr.mxu0 0.0
        %6965 = vmatpush1.msra.mxu0 0.0
        %6966 = vmatprep.subr.mxu0 0.0
        %6967 = vmatpush1.msra.mxu0 0.0
        %6968 = vmatprep.subr.mxu0 0.0
        %6969 = vmatpush1.msra.mxu0 0.0
        %6970 = vmatprep.subr.mxu0 0.0
        %6971 = vmatpush1.msra.mxu0 0.0
        %6972 = vmatprep.subr.mxu0 0.0
        %6973 = vmatpush1.msra.mxu0 0.0
        %6974 = vmatprep.subr.mxu0 0.0
        %6975 = vmatpush1.msra.mxu0 0.0
        %6976 = vmatprep.subr.mxu0 0.0
        %6977 = vmatpush1.msra.mxu0 0.0
        %6978 = vmatprep.subr.mxu0 0.0
        %6979 = vmatpush1.msra.mxu0 0.0
        %6980 = vmatprep.subr.mxu0 0.0
        %6981 = vmatpush1.msra.mxu0 0.0
        %6982 = vmatprep.subr.mxu0 0.0
        %6983 = vmatpush1.msra.mxu0 0.0
        %6984 = vmatprep.mubr.f32.mxu0 0.0
        %6985 = vmatmul.mubr.f32.gmra.mrb[0].mxu0 %v6918
        %v6986 = vpop.f32.mrb[0].mxu0
        %v6987 = vadd.f32 %v6621, %v6986
        %v6988 = vpop.f32.mrb[0].mxu0
        %6989 = vdwg.mxu0
        %v6991 = vsel %vm1004, %v5929, 0
        %6993 = vmatprep.subr.mxu0 0.0
        %6994 = vmatpush1.msra.mxu0 %v937
        %6995 = vmatprep.subr.mxu0 0.0
        %6996 = vmatpush1.msra.mxu0 0.0
        %6997 = vmatprep.subr.mxu0 0.0
        %6998 = vmatpush1.msra.mxu0 0.0
        %6999 = vmatprep.subr.mxu0 0.0
        %7000 = vmatpush1.msra.mxu0 0.0
        %7001 = vmatprep.subr.mxu0 0.0
        %7002 = vmatpush1.msra.mxu0 0.0
        %7003 = vmatprep.subr.mxu0 0.0
        %7004 = vmatpush1.msra.mxu0 0.0
        %7005 = vmatprep.subr.mxu0 0.0
        %7006 = vmatpush1.msra.mxu0 0.0
        %7007 = vmatprep.subr.mxu0 0.0
        %7008 = vmatpush1.msra.mxu0 0.0
        %7009 = vmatprep.subr.mxu0 0.0
        %7010 = vmatpush1.msra.mxu0 0.0
        %7011 = vmatprep.subr.mxu0 0.0
        %7012 = vmatpush1.msra.mxu0 0.0
        %7013 = vmatprep.subr.mxu0 0.0
        %7014 = vmatpush1.msra.mxu0 0.0
        %7015 = vmatprep.subr.mxu0 0.0
        %7016 = vmatpush1.msra.mxu0 0.0
        %7017 = vmatprep.subr.mxu0 0.0
        %7018 = vmatpush1.msra.mxu0 0.0
        %7019 = vmatprep.subr.mxu0 0.0
        %7020 = vmatpush1.msra.mxu0 0.0
        %7021 = vmatprep.subr.mxu0 0.0
        %7022 = vmatpush1.msra.mxu0 0.0
        %7023 = vmatprep.subr.mxu0 0.0
        %7024 = vmatpush1.msra.mxu0 0.0
        %7025 = vmatprep.subr.mxu0 0.0
        %7026 = vmatpush1.msra.mxu0 0.0
        %7027 = vmatprep.subr.mxu0 0.0
        %7028 = vmatpush1.msra.mxu0 0.0
        %7029 = vmatprep.subr.mxu0 0.0
        %7030 = vmatpush1.msra.mxu0 0.0
        %7031 = vmatprep.subr.mxu0 0.0
        %7032 = vmatpush1.msra.mxu0 0.0
        %7033 = vmatprep.subr.mxu0 0.0
        %7034 = vmatpush1.msra.mxu0 0.0
        %7035 = vmatprep.subr.mxu0 0.0
        %7036 = vmatpush1.msra.mxu0 0.0
        %7037 = vmatprep.subr.mxu0 0.0
        %7038 = vmatpush1.msra.mxu0 0.0
        %7039 = vmatprep.subr.mxu0 0.0
        %7040 = vmatpush1.msra.mxu0 0.0
        %7041 = vmatprep.subr.mxu0 0.0
        %7042 = vmatpush1.msra.mxu0 0.0
        %7043 = vmatprep.subr.mxu0 0.0
        %7044 = vmatpush1.msra.mxu0 0.0
        %7045 = vmatprep.subr.mxu0 0.0
        %7046 = vmatpush1.msra.mxu0 0.0
        %7047 = vmatprep.subr.mxu0 0.0
        %7048 = vmatpush1.msra.mxu0 0.0
        %7049 = vmatprep.subr.mxu0 0.0
        %7050 = vmatpush1.msra.mxu0 0.0
        %7051 = vmatprep.subr.mxu0 0.0
        %7052 = vmatpush1.msra.mxu0 0.0
        %7053 = vmatprep.subr.mxu0 0.0
        %7054 = vmatpush1.msra.mxu0 0.0
        %7055 = vmatprep.subr.mxu0 0.0
        %7056 = vmatpush1.msra.mxu0 0.0
        %7057 = vmatprep.mubr.f32.mxu0 0.0
        %7058 = vmatmul.mubr.f32.gmra.mrb[0].mxu0 %v6991
        %v7059 = vpop.f32.mrb[0].mxu0
        %v7060 = vadd.f32 %v6622, %v7059
        %v7061 = vpop.f32.mrb[0].mxu0
        %7062 = vdwg.mxu0
        %v7064 = vsel %vm1004, %v5930, 0
        %7066 = vmatprep.subr.mxu0 0.0
        %7067 = vmatpush1.msra.mxu0 %v941
        %7068 = vmatprep.subr.mxu0 0.0
        %7069 = vmatpush1.msra.mxu0 0.0
        %7070 = vmatprep.subr.mxu0 0.0
        %7071 = vmatpush1.msra.mxu0 0.0
        %7072 = vmatprep.subr.mxu0 0.0
        %7073 = vmatpush1.msra.mxu0 0.0
        %7074 = vmatprep.subr.mxu0 0.0
        %7075 = vmatpush1.msra.mxu0 0.0
        %7076 = vmatprep.subr.mxu0 0.0
        %7077 = vmatpush1.msra.mxu0 0.0
        %7078 = vmatprep.subr.mxu0 0.0
        %7079 = vmatpush1.msra.mxu0 0.0
        %7080 = vmatprep.subr.mxu0 0.0
        %7081 = vmatpush1.msra.mxu0 0.0
        %7082 = vmatprep.subr.mxu0 0.0
        %7083 = vmatpush1.msra.mxu0 0.0
        %7084 = vmatprep.subr.mxu0 0.0
        %7085 = vmatpush1.msra.mxu0 0.0
        %7086 = vmatprep.subr.mxu0 0.0
        %7087 = vmatpush1.msra.mxu0 0.0
        %7088 = vmatprep.subr.mxu0 0.0
        %7089 = vmatpush1.msra.mxu0 0.0
        %7090 = vmatprep.subr.mxu0 0.0
        %7091 = vmatpush1.msra.mxu0 0.0
        %7092 = vmatprep.subr.mxu0 0.0
        %7093 = vmatpush1.msra.mxu0 0.0
        %7094 = vmatprep.subr.mxu0 0.0
        %7095 = vmatpush1.msra.mxu0 0.0
        %7096 = vmatprep.subr.mxu0 0.0
        %7097 = vmatpush1.msra.mxu0 0.0
        %7098 = vmatprep.subr.mxu0 0.0
        %7099 = vmatpush1.msra.mxu0 0.0
        %7100 = vmatprep.subr.mxu0 0.0
        %7101 = vmatpush1.msra.mxu0 0.0
        %7102 = vmatprep.subr.mxu0 0.0
        %7103 = vmatpush1.msra.mxu0 0.0
        %7104 = vmatprep.subr.mxu0 0.0
        %7105 = vmatpush1.msra.mxu0 0.0
        %7106 = vmatprep.subr.mxu0 0.0
        %7107 = vmatpush1.msra.mxu0 0.0
        %7108 = vmatprep.subr.mxu0 0.0
        %7109 = vmatpush1.msra.mxu0 0.0
        %7110 = vmatprep.subr.mxu0 0.0
        %7111 = vmatpush1.msra.mxu0 0.0
        %7112 = vmatprep.subr.mxu0 0.0
        %7113 = vmatpush1.msra.mxu0 0.0
        %7114 = vmatprep.subr.mxu0 0.0
        %7115 = vmatpush1.msra.mxu0 0.0
        %7116 = vmatprep.subr.mxu0 0.0
        %7117 = vmatpush1.msra.mxu0 0.0
        %7118 = vmatprep.subr.mxu0 0.0
        %7119 = vmatpush1.msra.mxu0 0.0
        %7120 = vmatprep.subr.mxu0 0.0
        %7121 = vmatpush1.msra.mxu0 0.0
        %7122 = vmatprep.subr.mxu0 0.0
        %7123 = vmatpush1.msra.mxu0 0.0
        %7124 = vmatprep.subr.mxu0 0.0
        %7125 = vmatpush1.msra.mxu0 0.0
        %7126 = vmatprep.subr.mxu0 0.0
        %7127 = vmatpush1.msra.mxu0 0.0
        %7128 = vmatprep.subr.mxu0 0.0
        %7129 = vmatpush1.msra.mxu0 0.0
        %7130 = vmatprep.mubr.f32.mxu0 0.0
        %7131 = vmatmul.mubr.f32.gmra.mrb[0].mxu0 %v7064
        %v7132 = vpop.f32.mrb[0].mxu0
        %v7133 = vadd.f32 %v6623, %v7132
        %v7134 = vpop.f32.mrb[0].mxu0
        %7135 = vdwg.mxu0
        %v7137 = vsel %vm1004, %v5931, 0
        %7139 = vmatprep.subr.mxu0 0.0
        %7140 = vmatpush1.msra.mxu0 %v943
        %7141 = vmatprep.subr.mxu0 0.0
        %7142 = vmatpush1.msra.mxu0 0.0
        %7143 = vmatprep.subr.mxu0 0.0
        %7144 = vmatpush1.msra.mxu0 0.0
        %7145 = vmatprep.subr.mxu0 0.0
        %7146 = vmatpush1.msra.mxu0 0.0
        %7147 = vmatprep.subr.mxu0 0.0
        %7148 = vmatpush1.msra.mxu0 0.0
        %7149 = vmatprep.subr.mxu0 0.0
        %7150 = vmatpush1.msra.mxu0 0.0
        %7151 = vmatprep.subr.mxu0 0.0
        %7152 = vmatpush1.msra.mxu0 0.0
        %7153 = vmatprep.subr.mxu0 0.0
        %7154 = vmatpush1.msra.mxu0 0.0
        %7155 = vmatprep.subr.mxu0 0.0
        %7156 = vmatpush1.msra.mxu0 0.0
        %7157 = vmatprep.subr.mxu0 0.0
        %7158 = vmatpush1.msra.mxu0 0.0
        %7159 = vmatprep.subr.mxu0 0.0
        %7160 = vmatpush1.msra.mxu0 0.0
        %7161 = vmatprep.subr.mxu0 0.0
        %7162 = vmatpush1.msra.mxu0 0.0
        %7163 = vmatprep.subr.mxu0 0.0
        %7164 = vmatpush1.msra.mxu0 0.0
        %7165 = vmatprep.subr.mxu0 0.0
        %7166 = vmatpush1.msra.mxu0 0.0
        %7167 = vmatprep.subr.mxu0 0.0
        %7168 = vmatpush1.msra.mxu0 0.0
        %7169 = vmatprep.subr.mxu0 0.0
        %7170 = vmatpush1.msra.mxu0 0.0
        %7171 = vmatprep.subr.mxu0 0.0
        %7172 = vmatpush1.msra.mxu0 0.0
        %7173 = vmatprep.subr.mxu0 0.0
        %7174 = vmatpush1.msra.mxu0 0.0
        %7175 = vmatprep.subr.mxu0 0.0
        %7176 = vmatpush1.msra.mxu0 0.0
        %7177 = vmatprep.subr.mxu0 0.0
        %7178 = vmatpush1.msra.mxu0 0.0
        %7179 = vmatprep.subr.mxu0 0.0
        %7180 = vmatpush1.msra.mxu0 0.0
        %7181 = vmatprep.subr.mxu0 0.0
        %7182 = vmatpush1.msra.mxu0 0.0
        %7183 = vmatprep.subr.mxu0 0.0
        %7184 = vmatpush1.msra.mxu0 0.0
        %7185 = vmatprep.subr.mxu0 0.0
        %7186 = vmatpush1.msra.mxu0 0.0
        %7187 = vmatprep.subr.mxu0 0.0
        %7188 = vmatpush1.msra.mxu0 0.0
        %7189 = vmatprep.subr.mxu0 0.0
        %7190 = vmatpush1.msra.mxu0 0.0
        %7191 = vmatprep.subr.mxu0 0.0
        %7192 = vmatpush1.msra.mxu0 0.0
        %7193 = vmatprep.subr.mxu0 0.0
        %7194 = vmatpush1.msra.mxu0 0.0
        %7195 = vmatprep.subr.mxu0 0.0
        %7196 = vmatpush1.msra.mxu0 0.0
        %7197 = vmatprep.subr.mxu0 0.0
        %7198 = vmatpush1.msra.mxu0 0.0
        %7199 = vmatprep.subr.mxu0 0.0
        %7200 = vmatpush1.msra.mxu0 0.0
        %7201 = vmatprep.subr.mxu0 0.0
        %7202 = vmatpush1.msra.mxu0 0.0
        %7203 = vmatprep.mubr.f32.mxu0 0.0
        %7204 = vmatmul.mubr.f32.gmra.mrb[0].mxu0 %v7137
        %v7205 = vpop.f32.mrb[0].mxu0
        %v7206 = vadd.f32 %v6624, %v7205
        %v7207 = vpop.f32.mrb[0].mxu0
        %7208 = vdwg.mxu0
        %7211 = vrot.lane.b32.xlu0 %v6841, 8
        %v7212 = vpop.permute.xlu0 %7211
        %7213 = vrot.lane.b32.xlu0 %v6914, 8
        %v7214 = vpop.permute.xlu0 %7213
        %7219 = vrot.lane.b32.xlu0 %v6987, 16
        %v7220 = vpop.permute.xlu0 %7219
        %7221 = vrot.lane.b32.xlu0 %v7060, 16
        %v7222 = vpop.permute.xlu0 %7221
        %7227 = vrot.lane.b32.xlu0 %v7133, 24
        %v7228 = vpop.permute.xlu0 %7227
        %7229 = vrot.lane.b32.xlu0 %v7206, 24
        %v7230 = vpop.permute.xlu0 %7229
        %v7233 = vsel %vm1004, %v6695, %v7212
        %v7234 = vsel %vm1004, %v6768, %v7214
        %vm7235 = vcmask 130048
        %v7236 = vsel %vm7235, %v7233, %v7220
        %v7237 = vsel %vm7235, %v7234, %v7222
        %vm7238 = vcmask 195584
        %v7239 = vsel %vm7238, %v7236, %v7228
        %v7240 = vsel %vm7238, %v7237, %v7230
        %v7241 = vld [vmem:[#allocation14] sm:$0xff]
        %v7242 = vld [vmem:[#allocation14 + $0x8] sm:$0xff]
        %v7243 = vld [vmem:[#allocation14 + $0x10] sm:$0xff]
        %v7244 = vld [vmem:[#allocation14 + $0x18] sm:$0xff]
        %v7246 = vsel %vm480, %v7239, 0
        %v7249 = vsel %vm480, %v7240, 0
        %7251 = vmatprep.subr.mxu0 0.0
        %7252 = vmatpush1.msra.mxu0 %v7241
        %7253 = vmatprep.subr.mxu0 0.0
        %7254 = vmatpush1.msra.mxu0 %v7242
        %7255 = vmatprep.subr.mxu0 0.0
        %7256 = vmatpush1.msra.mxu0 %v7243
        %7257 = vmatprep.subr.mxu0 0.0
        %7258 = vmatpush1.msra.mxu0 %v7244
        %7259 = vmatprep.subr.mxu0 0.0
        %7260 = vmatpush1.msra.mxu0 0.0
        %7261 = vmatprep.subr.mxu0 0.0
        %7262 = vmatpush1.msra.mxu0 0.0
        %7263 = vmatprep.subr.mxu0 0.0
        %7264 = vmatpush1.msra.mxu0 0.0
        %7265 = vmatprep.subr.mxu0 0.0
        %7266 = vmatpush1.msra.mxu0 0.0
        %7267 = vmatprep.subr.mxu0 0.0
        %7268 = vmatpush1.msra.mxu0 0.0
        %7269 = vmatprep.subr.mxu0 0.0
        %7270 = vmatpush1.msra.mxu0 0.0
        %7271 = vmatprep.subr.mxu0 0.0
        %7272 = vmatpush1.msra.mxu0 0.0
        %7273 = vmatprep.subr.mxu0 0.0
        %7274 = vmatpush1.msra.mxu0 0.0
        %7275 = vmatprep.subr.mxu0 0.0
        %7276 = vmatpush1.msra.mxu0 0.0
        %7277 = vmatprep.subr.mxu0 0.0
        %7278 = vmatpush1.msra.mxu0 0.0
        %7279 = vmatprep.subr.mxu0 0.0
        %7280 = vmatpush1.msra.mxu0 0.0
        %7281 = vmatprep.subr.mxu0 0.0
        %7282 = vmatpush1.msra.mxu0 0.0
        %7283 = vmatprep.subr.mxu0 0.0
        %7284 = vmatpush1.msra.mxu0 0.0
        %7285 = vmatprep.subr.mxu0 0.0
        %7286 = vmatpush1.msra.mxu0 0.0
        %7287 = vmatprep.subr.mxu0 0.0
        %7288 = vmatpush1.msra.mxu0 0.0
        %7289 = vmatprep.subr.mxu0 0.0
        %7290 = vmatpush1.msra.mxu0 0.0
        %7291 = vmatprep.subr.mxu0 0.0
        %7292 = vmatpush1.msra.mxu0 0.0
        %7293 = vmatprep.subr.mxu0 0.0
        %7294 = vmatpush1.msra.mxu0 0.0
        %7295 = vmatprep.subr.mxu0 0.0
        %7296 = vmatpush1.msra.mxu0 0.0
        %7297 = vmatprep.subr.mxu0 0.0
        %7298 = vmatpush1.msra.mxu0 0.0
        %7299 = vmatprep.subr.mxu0 0.0
        %7300 = vmatpush1.msra.mxu0 0.0
        %7301 = vmatprep.subr.mxu0 0.0
        %7302 = vmatpush1.msra.mxu0 0.0
        %7303 = vmatprep.subr.mxu0 0.0
        %7304 = vmatpush1.msra.mxu0 0.0
        %7305 = vmatprep.subr.mxu0 0.0
        %7306 = vmatpush1.msra.mxu0 0.0
        %7307 = vmatprep.subr.mxu0 0.0
        %7308 = vmatpush1.msra.mxu0 0.0
        %7309 = vmatprep.subr.mxu0 0.0
        %7310 = vmatpush1.msra.mxu0 0.0
        %7311 = vmatprep.subr.mxu0 0.0
        %7312 = vmatpush1.msra.mxu0 0.0
        %7313 = vmatprep.subr.mxu0 0.0
        %7314 = vmatpush1.msra.mxu0 0.0
        %7315 = vmatprep.mubr.f32.mxu0 0.0
        %7316 = vmatmul.mubr.f32.gmra.mrb[0].mxu0 %v7246
        %v7317 = vpop.f32.mrb[0].mxu0
        %v7318 = vadd.f32 0.0, %v7317
        %v7319 = vpop.f32.mrb[0].mxu0
        %7320 = vmatprep.mubr.f32.mxu0 0.0
        %7321 = vmatmul.mubr.f32.gmra.mrb[0].mxu0 %v7249
        %v7322 = vpop.f32.mrb[0].mxu0
        %v7323 = vadd.f32 0.0, %v7322
        %v7324 = vpop.f32.mrb[0].mxu0
        %7325 = vdwg.mxu0
        %7326 = vst [vmem:[%s450] sm:$0xff] %v7318
        %7327 = vst [vmem:[%s450 + $0x8] sm:$0xff] %v7323
        %s7328 = sand.u32 %s217, 1
        %s7329 = scalar_lea.sflag [#allocation4], %s7328
        %s7330 = sand.u32 %s217, 1
        %s7331 = smul.addr %s7330, 16
        %s7332 = scalar_lea.vmem [#allocation16], %s7331
        // Predicated region
        $region85: #{tpu_custom_call.1} parent=51 // pred_check
          %p7333 = pneg %p227
        $region86: #{tpu_custom_call.1} parent=51 // pred_check_branch
          %7335 = sbr.rel (%p7333) target = $region88
        $region87: #{tpu_custom_call.1} parent=51 // pred_region
          %s7336 = smul.u32 2, %s31
          %s7338 = ssub.s32 256, 256
          %7339 = vsyncadd %s7329, %s7338
          %s7340 = smul.addr %s7336, 128
          %s7341 = scalar_lea.hbm %s8, %s7340
          %s7342 = sshll.u32 %s7332, 4
          %s7343 = int_to_ptr.vmem [resolvable:$true] %s7342
          %7348 = dma.vmem_to_hbm [thread:$0]  %s7343, 256, %s7341, %s7329, 128, 128, 8
        $region88: #{tpu_custom_call.1} parent=51 // pred_fallthru
          _
      $region52: #{tpu_custom_call.1} parent=5 // pred_fallthru
        _
      %p7349 = scmp.le.s32.totalorder 2, %s26
      // Predicated region
      $region89: #{tpu_custom_call.1} parent=5 // pred_check
        %p7350 = pneg %p7349
      $region90: #{tpu_custom_call.1} parent=5 // pred_check_branch
        %7352 = sbr.rel (%p7350) target = $region92
      $region91: #{tpu_custom_call.1} parent=5 // pred_region
        %s7353 = ssub.s32 %s26, 2
        // Predicated region
        $region93: #{tpu_custom_call.1} parent=91 // pred_check
          %p7354 = pneg %p233
        $region94: #{tpu_custom_call.1} parent=91 // pred_check_branch
          %7356 = sbr.rel (%p7354) target = $region96
        $region95: #{tpu_custom_call.1} parent=91 // pred_region
          %s7357 = sand.u32 %s218, 1
          %s7358 = scalar_lea.sflag [#allocation4], %s7357
          %s7359 = sand.u32 %s218, 1
          %s7360 = smul.addr %s7359, 16
          %s7361 = scalar_lea.vmem [#allocation16], %s7360
          %7362 = dma.done %s7358, 256
        $region96: #{tpu_custom_call.1} parent=91 // pred_fallthru
          _
      $region92: #{tpu_custom_call.1} parent=5 // pred_fallthru
        _
    $region6: #{tpu_custom_call.1} parent=1 // loop_footer
      %s30 = sadd.s32 1, %s26
    $region7: #{tpu_custom_call.1} parent=1 // loop_footer_branch
      %25 = sbr.rel target = $region3
    $region8: #{tpu_custom_call.1} parent=1 // loop_exit
      _
    %7363 = vsyncpa [#allocation3], 1
    %s7364 = scalar_lea.sflag [#allocation3], 1
    %7365 = vsyncpa %s7364, 1
    %7366 = vsyncpa [#allocation6], 1
    %s7367 = scalar_lea.sflag [#allocation6], 1
    %7368 = vsyncpa %s7367, 1
    %7369 = vsyncpa [#allocation9], 1
    %7370 = vsyncpa [#allocation12], 1
    %7371 = vsyncpa [#allocation15], 1
    %7372 = vsyncpa [#allocation4], 1
    %s7373 = scalar_lea.sflag [#allocation4], 1
    %7374 = vsyncpa %s7373, 1

</llo_original>
